<compile_context>
chip_gen: v7x
topology: tpu7x:2x2x1
jax: 0.10.0
libtpu: 0.0.40
codegen_flags: <defaults>
</compile_context>

<pallas_src>
import functools

import numpy as np
import jax
import jax.numpy as jnp
from jax import lax
from jax.experimental import pallas as pl
from jax.experimental.pallas import tpu as pltpu


# ----------------------------- config (small) -----------------------------
B = 2            # batch
T = 8            # depth (sequence length)
C_IN = 3         # RGB
H_IMG = 16       # data_size['height']
W_IMG = 16       # data_size['width']
C_CONV = 128     # synthetic conv stem channels (lane-dense)
NUM_FTRS = 512   # resnet34 fc.in_features (folded away at runtime, see w_fused)
HID = 128        # GRU hidden
CLS_H = 64       # classifier hidden (logical)
N_CLS = 2        # output classes (logical)
B_PAD = 8        # sublane-padded batch inside the kernel
CLS_PAD = 128    # lane-padded classifier width / kernel output width

KPATCH = C_IN * 9            # im2col patch size (3x3 kernel)
HW = H_IMG * W_IMG           # spatial positions per frame
FRAMES = B * T               # frames fed to the backbone
GATES = 3 * HID              # GRU gate width [r | z | n] (PyTorch order)


# --------------------- constant pool / permute / pad matrix ---------------------
def _build_pool_matrix():
    """(T*B_PAD, FRAMES*HW): global-avg-pool per frame, reorder to time-major,
    zero rows for padded batch entries. One MXU matmul does all three."""
    p = np.zeros((T * B_PAD, FRAMES * HW), np.float32)
    inv = 1.0 / HW
    for t in range(T):
        for b in range(B):
            f = b * T + t                     # frame index after (B,T,...) flatten
            p[t * B_PAD + b, f * HW:(f + 1) * HW] = inv
    return p


# ----------------------------- fused forward kernel -----------------------------
def _grunet_kernel(p_ref, wc_ref, bc_ref, pool_ref, wf_ref, bf_ref,
                   wh_ref, bh_ref, w1_ref, b1_ref, w2_ref, b2_ref,
                   o_ref, gi_ref):
    # p_ref   : (FRAMES*HW, KPATCH)  bf16  im2col patches for all frames
    # wc_ref  : (KPATCH, C_CONV)     bf16  conv-as-matmul weights
    # bc_ref  : (1, C_CONV)          f32
    # pool_ref: (T*B_PAD, FRAMES*HW) bf16  pooling / time-major / batch-pad matrix
    # wf_ref  : (C_CONV, GATES)      bf16  fused wp @ w_ih
    # bf_ref  : (1, GATES)           f32   fused bp @ w_ih + b_ih
    # wh_ref  : (HID, GATES)         bf16  GRU hidden weights
    # bh_ref  : (1, GATES)           f32
    # w1_ref  : (HID, CLS_PAD) f32, b1_ref: (1, CLS_PAD) f32   (zero-padded cols)
    # w2_ref  : (CLS_PAD, CLS_PAD) f32, b2_ref: (1, CLS_PAD) f32
    # o_ref   : (B_PAD, CLS_PAD)     f32   lane-dense padded logits
    # gi_ref  : (T, B_PAD, GATES)    f32   VMEM scratch, precomputed gate inputs

    # --- synthetic backbone: conv3x3 (as matmul) + ReLU ---
    a = jnp.dot(p_ref[...], wc_ref[...], preferred_element_type=jnp.float32)
    a = jnp.maximum(a + bc_ref[...], 0.0)                      # (FRAMES*HW, C_CONV)

    # --- global avg pool + time-major reorder + batch pad, on the MXU ---
    pooled = jnp.dot(pool_ref[...], a.astype(jnp.bfloat16),
                     preferred_element_type=jnp.float32)       # (T*B_PAD, C_CONV)

    # --- fused projection straight to GRU gate pre-activations (feat never built) ---
    gi = jnp.dot(pooled.astype(jnp.bfloat16), wf_ref[...],
                 preferred_element_type=jnp.float32) + bf_ref[...]   # (T*B_PAD, GATES)
    gi_ref[...] = gi.reshape(T, B_PAD, GATES)

    # hoist the hidden-bias broadcast out of the recurrence
    bh = jnp.broadcast_to(bh_ref[...], (B_PAD, GATES))

    # --- GRU recurrence (PyTorch gate order r, z, n); only h @ w_hh stays inside ---
    def step(t, h):
        g = gi_ref[t]                                          # (B_PAD, GATES)
        gh = jnp.dot(h.astype(jnp.bfloat16), wh_ref[...],
                     preferred_element_type=jnp.float32) + bh
        r = jax.nn.sigmoid(g[:, 0:HID] + gh[:, 0:HID])
        z = jax.nn.sigmoid(g[:, HID:2 * HID] + gh[:, HID:2 * HID])
        n = jnp.tanh(g[:, 2 * HID:GATES] + r * gh[:, 2 * HID:GATES])
        return (1.0 - z) * n + z * h

    h0 = jnp.zeros((B_PAD, HID), jnp.float32)
    h_last = lax.fori_loop(0, T, step, h0, unroll=True)        # == gru output[:, -1, :]

    # --- classifier: Linear(128,64) -> ReLU -> Dropout(eval) -> Linear(64,2), lane-padded ---
    y = jnp.maximum(
        jnp.dot(h_last, w1_ref[...], preferred_element_type=jnp.float32) + b1_ref[...],
        0.0)
    out = jnp.dot(y, w2_ref[...], preferred_element_type=jnp.float32) + b2_ref[...]
    o_ref[...] = out.astype(o_ref.dtype)


# ----------------------------- wrapper -----------------------------
@jax.jit
def grunet_forward(x, kp):
    """x: (B, C, T, H, W), kp: prepared kernel params -> logits (B, N_CLS)."""
    # permute(0,2,1,3,4) -> (B, T, C, H, W) -> (B*T, C, H, W)
    # NOTE: reshape keeps the logical (C, H, W) order (previous version swapped H/W;
    # harmless only because H == W).
    xp = jnp.transpose(x, (0, 2, 1, 3, 4)).reshape(FRAMES, C_IN, H_IMG, W_IMG)
    # im2col (glue, plain JAX): (N, C*9, H, W) -> (N*H*W, C*9)
    patches = lax.conv_general_dilated_patches(
        xp, filter_shape=(3, 3), window_strides=(1, 1), padding="SAME")
    patches = jnp.transpose(patches, (0, 2, 3, 1)).reshape(FRAMES * HW, KPATCH)
    patches = patches.astype(jnp.bfloat16)

    vmem = pl.BlockSpec(memory_space=pltpu.MemorySpace.VMEM)
    out = pl.pallas_call(
        _grunet_kernel,
        out_shape=jax.ShapeDtypeStruct((B_PAD, CLS_PAD), jnp.float32),
        in_specs=[vmem] * 12,
        out_specs=vmem,
        scratch_shapes=[pltpu.VMEM((T, B_PAD, GATES), jnp.float32)],
    )(patches, kp["wc"], kp["bc"], kp["pool"], kp["wf"], kp["bf"],
      kp["wh"], kp["bh"], kp["w1"], kp["b1"], kp["w2"], kp["b2"])
    return out[:B, :N_CLS]


# ----------------------------- parameters -----------------------------
def make_params(key):
    """Module-equivalent parameters (synthetic stand-ins for the pretrained parts)."""
    ks = jax.random.split(key, 12)

    def u(k, shape, fan_in):
        s = 1.0 / jnp.sqrt(jnp.float32(fan_in))
        return jax.random.uniform(k, shape, jnp.float32, -s, s)

    return {
        # synthetic backbone stem (stand-in for resnet34)
        "wc": u(ks[0], (KPATCH, C_CONV), KPATCH),
        "bc": u(ks[1], (1, C_CONV), KPATCH),
        "wp": u(ks[2], (C_CONV, NUM_FTRS), C_CONV),
        "bp": u(ks[3], (1, NUM_FTRS), C_CONV),
        # GRU (PyTorch gate order r, z, n), stored transposed for x @ W
        "w_ih": u(ks[4], (NUM_FTRS, GATES), NUM_FTRS),
        "w_hh": u(ks[5], (HID, GATES), HID),
        "b_ih": u(ks[6], (1, GATES), HID),
        "b_hh": u(ks[7], (1, GATES), HID),
        # classifier (logical shapes from the module)
        "w1": u(ks[8], (HID, CLS_H), HID),
        "b1": u(ks[9], (1, CLS_H), HID),
        "w2": u(ks[10], (CLS_H, N_CLS), CLS_H),
        "b2": u(ks[11], (1, N_CLS), CLS_H),
    }


def prepare_kernel_params(p):
    """One-time fold / pad / cast to kernel-ready operands (mathematically identical)."""
    # feat = a@wp + bp ; gi = feat@w_ih + b_ih  ==>  gi = a@(wp@w_ih) + (bp@w_ih + b_ih)
    w_fused = (p["wp"] @ p["w_ih"]).astype(jnp.bfloat16)        # (C_CONV, GATES)
    b_fused = p["bp"] @ p["w_ih"] + p["b_ih"]                   # (1, GATES) f32
    return {
        "wc": p["wc"].astype(jnp.bfloat16),
        "bc": p["bc"],
        "pool": jnp.asarray(_build_pool_matrix(), jnp.bfloat16),
        "wf": w_fused,
        "bf": b_fused,
        "wh": p["w_hh"].astype(jnp.bfloat16),
        "bh": p["b_hh"],
        # zero-pad classifier to lane-dense 128-wide (identical result: padded
        # columns are relu(0)=0 and padded w2 rows/cols are 0)
        "w1": jnp.pad(p["w1"], ((0, 0), (0, CLS_PAD - CLS_H))),
        "b1": jnp.pad(p["b1"], ((0, 0), (0, CLS_PAD - CLS_H))),
        "w2": jnp.pad(p["w2"], ((0, CLS_PAD - CLS_H), (0, CLS_PAD - N_CLS))),
        "b2": jnp.pad(p["b2"], ((0, 0), (0, CLS_PAD - N_CLS))),
    }


if __name__ == "__main__":
    key = jax.random.PRNGKey(0)
    kx, kparam = jax.random.split(key)
    x = jax.random.normal(kx, (B, C_IN, T, H_IMG, W_IMG), jnp.float32)
    params = make_params(kparam)
    kp = prepare_kernel_params(params)

    logits = grunet_forward(x, kp)
    logits = jax.block_until_ready(logits)
    assert logits.shape == (B, N_CLS), logits.shape
    assert bool(jnp.all(jnp.isfinite(logits)))
    print("KERNEL_OK")
</pallas_src>

<mosaic_0001>
module attributes {stable_mosaic.version = 11 : i64} {
  func.func @_grunet_kernel(%arg0: memref<4096x27xbf16, #tpu.memory_space<vmem>>, %arg1: memref<27x128xbf16, #tpu.memory_space<vmem>>, %arg2: memref<1x128xf32, #tpu.memory_space<vmem>>, %arg3: memref<64x4096xbf16, #tpu.memory_space<vmem>>, %arg4: memref<128x384xbf16, #tpu.memory_space<vmem>>, %arg5: memref<1x384xf32, #tpu.memory_space<vmem>>, %arg6: memref<128x384xbf16, #tpu.memory_space<vmem>>, %arg7: memref<1x384xf32, #tpu.memory_space<vmem>>, %arg8: memref<128x128xf32, #tpu.memory_space<vmem>>, %arg9: memref<1x128xf32, #tpu.memory_space<vmem>>, %arg10: memref<128x128xf32, #tpu.memory_space<vmem>>, %arg11: memref<1x128xf32, #tpu.memory_space<vmem>>, %arg12: memref<8x128xf32, #tpu.memory_space<vmem>>, %arg13: memref<8x8x384xf32, #tpu.memory_space<vmem>>) attributes {dimension_semantics = [], scalar_prefetch = 0 : i64, scratch_operands = 1 : i64, tpu.core_type = #tpu.core_type<tc>} {
    %c0 = arith.constant 0 : index
    %c0_0 = arith.constant 0 : index
    %0 = vector.load %arg0[%c0, %c0_0] : memref<4096x27xbf16, #tpu.memory_space<vmem>>, vector<4096x27xbf16>
    %c0_1 = arith.constant 0 : index
    %c0_2 = arith.constant 0 : index
    %1 = vector.load %arg1[%c0_1, %c0_2] : memref<27x128xbf16, #tpu.memory_space<vmem>>, vector<27x128xbf16>
    %cst = arith.constant dense<0.000000e+00> : vector<4096x128xf32>
    %2 = tpu.matmul %0, %1, %cst {dimension_numbers = #tpu.dot_dimension_numbers<[1], [0], [0], [1], [0, 0, 1, 1], [], []>} : vector<4096x27xbf16>, vector<27x128xbf16>, vector<4096x128xf32> -> vector<4096x128xf32>
    %c0_3 = arith.constant 0 : index
    %c0_4 = arith.constant 0 : index
    %3 = vector.load %arg2[%c0_3, %c0_4] : memref<1x128xf32, #tpu.memory_space<vmem>>, vector<1x128xf32>
    %4 = vector.broadcast %3 : vector<1x128xf32> to vector<4096x128xf32>
    %5 = arith.addf %2, %4 : vector<4096x128xf32>
    %cst_5 = arith.constant 0.000000e+00 : f32
    %6 = vector.broadcast %cst_5 : f32 to vector<4096x128xf32>
    %7 = arith.maximumf %5, %6 : vector<4096x128xf32>
    %c0_6 = arith.constant 0 : index
    %c0_7 = arith.constant 0 : index
    %8 = vector.load %arg3[%c0_6, %c0_7] : memref<64x4096xbf16, #tpu.memory_space<vmem>>, vector<64x4096xbf16>
    %9 = arith.truncf %7 : vector<4096x128xf32> to vector<4096x128xbf16>
    %cst_8 = arith.constant dense<0.000000e+00> : vector<64x128xf32>
    %10 = tpu.matmul %8, %9, %cst_8 {dimension_numbers = #tpu.dot_dimension_numbers<[1], [0], [0], [1], [0, 0, 1, 1], [], []>} : vector<64x4096xbf16>, vector<4096x128xbf16>, vector<64x128xf32> -> vector<64x128xf32>
    %11 = arith.truncf %10 : vector<64x128xf32> to vector<64x128xbf16>
    %c0_9 = arith.constant 0 : index
    %c0_10 = arith.constant 0 : index
    %12 = vector.load %arg4[%c0_9, %c0_10] : memref<128x384xbf16, #tpu.memory_space<vmem>>, vector<128x384xbf16>
    %cst_11 = arith.constant dense<0.000000e+00> : vector<64x384xf32>
    %13 = tpu.matmul %11, %12, %cst_11 {dimension_numbers = #tpu.dot_dimension_numbers<[1], [0], [0], [1], [0, 0, 1, 1], [], []>} : vector<64x128xbf16>, vector<128x384xbf16>, vector<64x384xf32> -> vector<64x384xf32>
    %c0_12 = arith.constant 0 : index
    %c0_13 = arith.constant 0 : index
    %14 = vector.load %arg5[%c0_12, %c0_13] : memref<1x384xf32, #tpu.memory_space<vmem>>, vector<1x384xf32>
    %15 = vector.broadcast %14 : vector<1x384xf32> to vector<64x384xf32>
    %16 = arith.addf %13, %15 : vector<64x384xf32>
    %17 = vector.shape_cast %16 : vector<64x384xf32> to vector<8x8x384xf32>
    %c0_14 = arith.constant 0 : index
    %c0_15 = arith.constant 0 : index
    %c0_16 = arith.constant 0 : index
    %18 = vector.load %arg13[%c0_14, %c0_15, %c0_16] : memref<8x8x384xf32, #tpu.memory_space<vmem>>, vector<8x8x384xf32>
    tpu.vector_store %arg13[%c0_14, %c0_15, %c0_16], %17 {strides = array<i32>} : memref<8x8x384xf32, #tpu.memory_space<vmem>>, vector<8x8x384xf32>,
    %c0_17 = arith.constant 0 : index
    %c0_18 = arith.constant 0 : index
    %19 = vector.load %arg7[%c0_17, %c0_18] : memref<1x384xf32, #tpu.memory_space<vmem>>, vector<1x384xf32>
    %20 = vector.shape_cast %19 : vector<1x384xf32> to vector<1x384xf32>
    %21 = vector.broadcast %20 : vector<1x384xf32> to vector<8x384xf32>
    %cst_19 = arith.constant 0.000000e+00 : f32
    %22 = vector.broadcast %cst_19 : f32 to vector<8x128xf32>
    %c0_i32 = arith.constant 0 : i32
    %23 = arith.index_cast %c0_i32 : i32 to index
    %c0_20 = arith.constant 0 : index
    %c0_21 = arith.constant 0 : index
    %24 = vector.load %arg13[%23, %c0_20, %c0_21] : memref<8x8x384xf32, #tpu.memory_space<vmem>>, vector<1x8x384xf32>
    %25 = vector.shape_cast %24 : vector<1x8x384xf32> to vector<8x384xf32>
    %26 = arith.truncf %22 : vector<8x128xf32> to vector<8x128xbf16>
    %c0_22 = arith.constant 0 : index
    %c0_23 = arith.constant 0 : index
    %27 = vector.load %arg6[%c0_22, %c0_23] : memref<128x384xbf16, #tpu.memory_space<vmem>>, vector<128x384xbf16>
    %cst_24 = arith.constant dense<0.000000e+00> : vector<8x384xf32>
    %28 = tpu.matmul %26, %27, %cst_24 {dimension_numbers = #tpu.dot_dimension_numbers<[1], [0], [0], [1], [0, 0, 1, 1], [], []>} : vector<8x128xbf16>, vector<128x384xbf16>, vector<8x384xf32> -> vector<8x384xf32>
    %29 = arith.addf %28, %21 : vector<8x384xf32>
    %30 = vector.extract_strided_slice %25 {offsets = [0, 0], sizes = [8, 128], strides = [1, 1]} : vector<8x384xf32> to vector<8x128xf32>
    %31 = vector.extract_strided_slice %29 {offsets = [0, 0], sizes = [8, 128], strides = [1, 1]} : vector<8x384xf32> to vector<8x128xf32>
    %32 = arith.addf %30, %31 : vector<8x128xf32>
    %33 = arith.negf %32 : vector<8x128xf32>
    %34 = math.exp %33 : vector<8x128xf32>
    %cst_25 = arith.constant 1.000000e+00 : f32
    %35 = vector.broadcast %cst_25 : f32 to vector<8x128xf32>
    %36 = arith.addf %35, %34 : vector<8x128xf32>
    %37 = arith.divf %35, %36 : vector<8x128xf32>
    %38 = vector.extract_strided_slice %25 {offsets = [0, 128], sizes = [8, 128], strides = [1, 1]} : vector<8x384xf32> to vector<8x128xf32>
    %39 = vector.extract_strided_slice %29 {offsets = [0, 128], sizes = [8, 128], strides = [1, 1]} : vector<8x384xf32> to vector<8x128xf32>
    %40 = arith.addf %38, %39 : vector<8x128xf32>
    %41 = arith.negf %40 : vector<8x128xf32>
    %42 = math.exp %41 : vector<8x128xf32>
    %cst_26 = arith.constant 1.000000e+00 : f32
    %43 = vector.broadcast %cst_26 : f32 to vector<8x128xf32>
    %44 = arith.addf %43, %42 : vector<8x128xf32>
    %45 = arith.divf %43, %44 : vector<8x128xf32>
    %46 = vector.extract_strided_slice %25 {offsets = [0, 256], sizes = [8, 128], strides = [1, 1]} : vector<8x384xf32> to vector<8x128xf32>
    %47 = vector.extract_strided_slice %29 {offsets = [0, 256], sizes = [8, 128], strides = [1, 1]} : vector<8x384xf32> to vector<8x128xf32>
    %48 = arith.mulf %37, %47 : vector<8x128xf32>
    %49 = arith.addf %46, %48 : vector<8x128xf32>
    %50 = math.tanh %49 : vector<8x128xf32>
    %cst_27 = arith.constant 1.000000e+00 : f32
    %51 = vector.broadcast %cst_27 : f32 to vector<8x128xf32>
    %52 = arith.subf %51, %45 : vector<8x128xf32>
    %53 = arith.mulf %52, %50 : vector<8x128xf32>
    %54 = arith.mulf %45, %22 : vector<8x128xf32>
    %55 = arith.addf %53, %54 : vector<8x128xf32>
    %c1_i32 = arith.constant 1 : i32
    %56 = arith.index_cast %c1_i32 : i32 to index
    %c0_28 = arith.constant 0 : index
    %c0_29 = arith.constant 0 : index
    %57 = vector.load %arg13[%56, %c0_28, %c0_29] : memref<8x8x384xf32, #tpu.memory_space<vmem>>, vector<1x8x384xf32>
    %58 = vector.shape_cast %57 : vector<1x8x384xf32> to vector<8x384xf32>
    %59 = arith.truncf %55 : vector<8x128xf32> to vector<8x128xbf16>
    %c0_30 = arith.constant 0 : index
    %c0_31 = arith.constant 0 : index
    %60 = vector.load %arg6[%c0_30, %c0_31] : memref<128x384xbf16, #tpu.memory_space<vmem>>, vector<128x384xbf16>
    %cst_32 = arith.constant dense<0.000000e+00> : vector<8x384xf32>
    %61 = tpu.matmul %59, %60, %cst_32 {dimension_numbers = #tpu.dot_dimension_numbers<[1], [0], [0], [1], [0, 0, 1, 1], [], []>} : vector<8x128xbf16>, vector<128x384xbf16>, vector<8x384xf32> -> vector<8x384xf32>
    %62 = arith.addf %61, %21 : vector<8x384xf32>
    %63 = vector.extract_strided_slice %58 {offsets = [0, 0], sizes = [8, 128], strides = [1, 1]} : vector<8x384xf32> to vector<8x128xf32>
    %64 = vector.extract_strided_slice %62 {offsets = [0, 0], sizes = [8, 128], strides = [1, 1]} : vector<8x384xf32> to vector<8x128xf32>
    %65 = arith.addf %63, %64 : vector<8x128xf32>
    %66 = arith.negf %65 : vector<8x128xf32>
    %67 = math.exp %66 : vector<8x128xf32>
    %cst_33 = arith.constant 1.000000e+00 : f32
    %68 = vector.broadcast %cst_33 : f32 to vector<8x128xf32>
    %69 = arith.addf %68, %67 : vector<8x128xf32>
    %70 = arith.divf %68, %69 : vector<8x128xf32>
    %71 = vector.extract_strided_slice %58 {offsets = [0, 128], sizes = [8, 128], strides = [1, 1]} : vector<8x384xf32> to vector<8x128xf32>
    %72 = vector.extract_strided_slice %62 {offsets = [0, 128], sizes = [8, 128], strides = [1, 1]} : vector<8x384xf32> to vector<8x128xf32>
    %73 = arith.addf %71, %72 : vector<8x128xf32>
    %74 = arith.negf %73 : vector<8x128xf32>
    %75 = math.exp %74 : vector<8x128xf32>
    %cst_34 = arith.constant 1.000000e+00 : f32
    %76 = vector.broadcast %cst_34 : f32 to vector<8x128xf32>
    %77 = arith.addf %76, %75 : vector<8x128xf32>
    %78 = arith.divf %76, %77 : vector<8x128xf32>
    %79 = vector.extract_strided_slice %58 {offsets = [0, 256], sizes = [8, 128], strides = [1, 1]} : vector<8x384xf32> to vector<8x128xf32>
    %80 = vector.extract_strided_slice %62 {offsets = [0, 256], sizes = [8, 128], strides = [1, 1]} : vector<8x384xf32> to vector<8x128xf32>
    %81 = arith.mulf %70, %80 : vector<8x128xf32>
    %82 = arith.addf %79, %81 : vector<8x128xf32>
    %83 = math.tanh %82 : vector<8x128xf32>
    %cst_35 = arith.constant 1.000000e+00 : f32
    %84 = vector.broadcast %cst_35 : f32 to vector<8x128xf32>
    %85 = arith.subf %84, %78 : vector<8x128xf32>
    %86 = arith.mulf %85, %83 : vector<8x128xf32>
    %87 = arith.mulf %78, %55 : vector<8x128xf32>
    %88 = arith.addf %86, %87 : vector<8x128xf32>
    %c2_i32 = arith.constant 2 : i32
    %89 = arith.index_cast %c2_i32 : i32 to index
    %c0_36 = arith.constant 0 : index
    %c0_37 = arith.constant 0 : index
    %90 = vector.load %arg13[%89, %c0_36, %c0_37] : memref<8x8x384xf32, #tpu.memory_space<vmem>>, vector<1x8x384xf32>
    %91 = vector.shape_cast %90 : vector<1x8x384xf32> to vector<8x384xf32>
    %92 = arith.truncf %88 : vector<8x128xf32> to vector<8x128xbf16>
    %c0_38 = arith.constant 0 : index
    %c0_39 = arith.constant 0 : index
    %93 = vector.load %arg6[%c0_38, %c0_39] : memref<128x384xbf16, #tpu.memory_space<vmem>>, vector<128x384xbf16>
    %cst_40 = arith.constant dense<0.000000e+00> : vector<8x384xf32>
    %94 = tpu.matmul %92, %93, %cst_40 {dimension_numbers = #tpu.dot_dimension_numbers<[1], [0], [0], [1], [0, 0, 1, 1], [], []>} : vector<8x128xbf16>, vector<128x384xbf16>, vector<8x384xf32> -> vector<8x384xf32>
    %95 = arith.addf %94, %21 : vector<8x384xf32>
    %96 = vector.extract_strided_slice %91 {offsets = [0, 0], sizes = [8, 128], strides = [1, 1]} : vector<8x384xf32> to vector<8x128xf32>
    %97 = vector.extract_strided_slice %95 {offsets = [0, 0], sizes = [8, 128], strides = [1, 1]} : vector<8x384xf32> to vector<8x128xf32>
    %98 = arith.addf %96, %97 : vector<8x128xf32>
    %99 = arith.negf %98 : vector<8x128xf32>
    %100 = math.exp %99 : vector<8x128xf32>
    %cst_41 = arith.constant 1.000000e+00 : f32
    %101 = vector.broadcast %cst_41 : f32 to vector<8x128xf32>
    %102 = arith.addf %101, %100 : vector<8x128xf32>
    %103 = arith.divf %101, %102 : vector<8x128xf32>
    %104 = vector.extract_strided_slice %91 {offsets = [0, 128], sizes = [8, 128], strides = [1, 1]} : vector<8x384xf32> to vector<8x128xf32>
    %105 = vector.extract_strided_slice %95 {offsets = [0, 128], sizes = [8, 128], strides = [1, 1]} : vector<8x384xf32> to vector<8x128xf32>
    %106 = arith.addf %104, %105 : vector<8x128xf32>
    %107 = arith.negf %106 : vector<8x128xf32>
    %108 = math.exp %107 : vector<8x128xf32>
    %cst_42 = arith.constant 1.000000e+00 : f32
    %109 = vector.broadcast %cst_42 : f32 to vector<8x128xf32>
    %110 = arith.addf %109, %108 : vector<8x128xf32>
    %111 = arith.divf %109, %110 : vector<8x128xf32>
    %112 = vector.extract_strided_slice %91 {offsets = [0, 256], sizes = [8, 128], strides = [1, 1]} : vector<8x384xf32> to vector<8x128xf32>
    %113 = vector.extract_strided_slice %95 {offsets = [0, 256], sizes = [8, 128], strides = [1, 1]} : vector<8x384xf32> to vector<8x128xf32>
    %114 = arith.mulf %103, %113 : vector<8x128xf32>
    %115 = arith.addf %112, %114 : vector<8x128xf32>
    %116 = math.tanh %115 : vector<8x128xf32>
    %cst_43 = arith.constant 1.000000e+00 : f32
    %117 = vector.broadcast %cst_43 : f32 to vector<8x128xf32>
    %118 = arith.subf %117, %111 : vector<8x128xf32>
    %119 = arith.mulf %118, %116 : vector<8x128xf32>
    %120 = arith.mulf %111, %88 : vector<8x128xf32>
    %121 = arith.addf %119, %120 : vector<8x128xf32>
    %c3_i32 = arith.constant 3 : i32
    %122 = arith.index_cast %c3_i32 : i32 to index
    %c0_44 = arith.constant 0 : index
    %c0_45 = arith.constant 0 : index
    %123 = vector.load %arg13[%122, %c0_44, %c0_45] : memref<8x8x384xf32, #tpu.memory_space<vmem>>, vector<1x8x384xf32>
    %124 = vector.shape_cast %123 : vector<1x8x384xf32> to vector<8x384xf32>
    %125 = arith.truncf %121 : vector<8x128xf32> to vector<8x128xbf16>
    %c0_46 = arith.constant 0 : index
    %c0_47 = arith.constant 0 : index
    %126 = vector.load %arg6[%c0_46, %c0_47] : memref<128x384xbf16, #tpu.memory_space<vmem>>, vector<128x384xbf16>
    %cst_48 = arith.constant dense<0.000000e+00> : vector<8x384xf32>
    %127 = tpu.matmul %125, %126, %cst_48 {dimension_numbers = #tpu.dot_dimension_numbers<[1], [0], [0], [1], [0, 0, 1, 1], [], []>} : vector<8x128xbf16>, vector<128x384xbf16>, vector<8x384xf32> -> vector<8x384xf32>
    %128 = arith.addf %127, %21 : vector<8x384xf32>
    %129 = vector.extract_strided_slice %124 {offsets = [0, 0], sizes = [8, 128], strides = [1, 1]} : vector<8x384xf32> to vector<8x128xf32>
    %130 = vector.extract_strided_slice %128 {offsets = [0, 0], sizes = [8, 128], strides = [1, 1]} : vector<8x384xf32> to vector<8x128xf32>
    %131 = arith.addf %129, %130 : vector<8x128xf32>
    %132 = arith.negf %131 : vector<8x128xf32>
    %133 = math.exp %132 : vector<8x128xf32>
    %cst_49 = arith.constant 1.000000e+00 : f32
    %134 = vector.broadcast %cst_49 : f32 to vector<8x128xf32>
    %135 = arith.addf %134, %133 : vector<8x128xf32>
    %136 = arith.divf %134, %135 : vector<8x128xf32>
    %137 = vector.extract_strided_slice %124 {offsets = [0, 128], sizes = [8, 128], strides = [1, 1]} : vector<8x384xf32> to vector<8x128xf32>
    %138 = vector.extract_strided_slice %128 {offsets = [0, 128], sizes = [8, 128], strides = [1, 1]} : vector<8x384xf32> to vector<8x128xf32>
    %139 = arith.addf %137, %138 : vector<8x128xf32>
    %140 = arith.negf %139 : vector<8x128xf32>
    %141 = math.exp %140 : vector<8x128xf32>
    %cst_50 = arith.constant 1.000000e+00 : f32
    %142 = vector.broadcast %cst_50 : f32 to vector<8x128xf32>
    %143 = arith.addf %142, %141 : vector<8x128xf32>
    %144 = arith.divf %142, %143 : vector<8x128xf32>
    %145 = vector.extract_strided_slice %124 {offsets = [0, 256], sizes = [8, 128], strides = [1, 1]} : vector<8x384xf32> to vector<8x128xf32>
    %146 = vector.extract_strided_slice %128 {offsets = [0, 256], sizes = [8, 128], strides = [1, 1]} : vector<8x384xf32> to vector<8x128xf32>
    %147 = arith.mulf %136, %146 : vector<8x128xf32>
    %148 = arith.addf %145, %147 : vector<8x128xf32>
    %149 = math.tanh %148 : vector<8x128xf32>
    %cst_51 = arith.constant 1.000000e+00 : f32
    %150 = vector.broadcast %cst_51 : f32 to vector<8x128xf32>
    %151 = arith.subf %150, %144 : vector<8x128xf32>
    %152 = arith.mulf %151, %149 : vector<8x128xf32>
    %153 = arith.mulf %144, %121 : vector<8x128xf32>
    %154 = arith.addf %152, %153 : vector<8x128xf32>
    %c4_i32 = arith.constant 4 : i32
    %155 = arith.index_cast %c4_i32 : i32 to index
    %c0_52 = arith.constant 0 : index
    %c0_53 = arith.constant 0 : index
    %156 = vector.load %arg13[%155, %c0_52, %c0_53] : memref<8x8x384xf32, #tpu.memory_space<vmem>>, vector<1x8x384xf32>
    %157 = vector.shape_cast %156 : vector<1x8x384xf32> to vector<8x384xf32>
    %158 = arith.truncf %154 : vector<8x128xf32> to vector<8x128xbf16>
    %c0_54 = arith.constant 0 : index
    %c0_55 = arith.constant 0 : index
    %159 = vector.load %arg6[%c0_54, %c0_55] : memref<128x384xbf16, #tpu.memory_space<vmem>>, vector<128x384xbf16>
    %cst_56 = arith.constant dense<0.000000e+00> : vector<8x384xf32>
    %160 = tpu.matmul %158, %159, %cst_56 {dimension_numbers = #tpu.dot_dimension_numbers<[1], [0], [0], [1], [0, 0, 1, 1], [], []>} : vector<8x128xbf16>, vector<128x384xbf16>, vector<8x384xf32> -> vector<8x384xf32>
    %161 = arith.addf %160, %21 : vector<8x384xf32>
    %162 = vector.extract_strided_slice %157 {offsets = [0, 0], sizes = [8, 128], strides = [1, 1]} : vector<8x384xf32> to vector<8x128xf32>
    %163 = vector.extract_strided_slice %161 {offsets = [0, 0], sizes = [8, 128], strides = [1, 1]} : vector<8x384xf32> to vector<8x128xf32>
    %164 = arith.addf %162, %163 : vector<8x128xf32>
    %165 = arith.negf %164 : vector<8x128xf32>
    %166 = math.exp %165 : vector<8x128xf32>
    %cst_57 = arith.constant 1.000000e+00 : f32
    %167 = vector.broadcast %cst_57 : f32 to vector<8x128xf32>
    %168 = arith.addf %167, %166 : vector<8x128xf32>
    %169 = arith.divf %167, %168 : vector<8x128xf32>
    %170 = vector.extract_strided_slice %157 {offsets = [0, 128], sizes = [8, 128], strides = [1, 1]} : vector<8x384xf32> to vector<8x128xf32>
    %171 = vector.extract_strided_slice %161 {offsets = [0, 128], sizes = [8, 128], strides = [1, 1]} : vector<8x384xf32> to vector<8x128xf32>
    %172 = arith.addf %170, %171 : vector<8x128xf32>
    %173 = arith.negf %172 : vector<8x128xf32>
    %174 = math.exp %173 : vector<8x128xf32>
    %cst_58 = arith.constant 1.000000e+00 : f32
    %175 = vector.broadcast %cst_58 : f32 to vector<8x128xf32>
    %176 = arith.addf %175, %174 : vector<8x128xf32>
    %177 = arith.divf %175, %176 : vector<8x128xf32>
    %178 = vector.extract_strided_slice %157 {offsets = [0, 256], sizes = [8, 128], strides = [1, 1]} : vector<8x384xf32> to vector<8x128xf32>
    %179 = vector.extract_strided_slice %161 {offsets = [0, 256], sizes = [8, 128], strides = [1, 1]} : vector<8x384xf32> to vector<8x128xf32>
    %180 = arith.mulf %169, %179 : vector<8x128xf32>
    %181 = arith.addf %178, %180 : vector<8x128xf32>
    %182 = math.tanh %181 : vector<8x128xf32>
    %cst_59 = arith.constant 1.000000e+00 : f32
    %183 = vector.broadcast %cst_59 : f32 to vector<8x128xf32>
    %184 = arith.subf %183, %177 : vector<8x128xf32>
    %185 = arith.mulf %184, %182 : vector<8x128xf32>
    %186 = arith.mulf %177, %154 : vector<8x128xf32>
    %187 = arith.addf %185, %186 : vector<8x128xf32>
    %c5_i32 = arith.constant 5 : i32
    %188 = arith.index_cast %c5_i32 : i32 to index
    %c0_60 = arith.constant 0 : index
    %c0_61 = arith.constant 0 : index
    %189 = vector.load %arg13[%188, %c0_60, %c0_61] : memref<8x8x384xf32, #tpu.memory_space<vmem>>, vector<1x8x384xf32>
    %190 = vector.shape_cast %189 : vector<1x8x384xf32> to vector<8x384xf32>
    %191 = arith.truncf %187 : vector<8x128xf32> to vector<8x128xbf16>
    %c0_62 = arith.constant 0 : index
    %c0_63 = arith.constant 0 : index
    %192 = vector.load %arg6[%c0_62, %c0_63] : memref<128x384xbf16, #tpu.memory_space<vmem>>, vector<128x384xbf16>
    %cst_64 = arith.constant dense<0.000000e+00> : vector<8x384xf32>
    %193 = tpu.matmul %191, %192, %cst_64 {dimension_numbers = #tpu.dot_dimension_numbers<[1], [0], [0], [1], [0, 0, 1, 1], [], []>} : vector<8x128xbf16>, vector<128x384xbf16>, vector<8x384xf32> -> vector<8x384xf32>
    %194 = arith.addf %193, %21 : vector<8x384xf32>
    %195 = vector.extract_strided_slice %190 {offsets = [0, 0], sizes = [8, 128], strides = [1, 1]} : vector<8x384xf32> to vector<8x128xf32>
    %196 = vector.extract_strided_slice %194 {offsets = [0, 0], sizes = [8, 128], strides = [1, 1]} : vector<8x384xf32> to vector<8x128xf32>
    %197 = arith.addf %195, %196 : vector<8x128xf32>
    %198 = arith.negf %197 : vector<8x128xf32>
    %199 = math.exp %198 : vector<8x128xf32>
    %cst_65 = arith.constant 1.000000e+00 : f32
    %200 = vector.broadcast %cst_65 : f32 to vector<8x128xf32>
    %201 = arith.addf %200, %199 : vector<8x128xf32>
    %202 = arith.divf %200, %201 : vector<8x128xf32>
    %203 = vector.extract_strided_slice %190 {offsets = [0, 128], sizes = [8, 128], strides = [1, 1]} : vector<8x384xf32> to vector<8x128xf32>
    %204 = vector.extract_strided_slice %194 {offsets = [0, 128], sizes = [8, 128], strides = [1, 1]} : vector<8x384xf32> to vector<8x128xf32>
    %205 = arith.addf %203, %204 : vector<8x128xf32>
    %206 = arith.negf %205 : vector<8x128xf32>
    %207 = math.exp %206 : vector<8x128xf32>
    %cst_66 = arith.constant 1.000000e+00 : f32
    %208 = vector.broadcast %cst_66 : f32 to vector<8x128xf32>
    %209 = arith.addf %208, %207 : vector<8x128xf32>
    %210 = arith.divf %208, %209 : vector<8x128xf32>
    %211 = vector.extract_strided_slice %190 {offsets = [0, 256], sizes = [8, 128], strides = [1, 1]} : vector<8x384xf32> to vector<8x128xf32>
    %212 = vector.extract_strided_slice %194 {offsets = [0, 256], sizes = [8, 128], strides = [1, 1]} : vector<8x384xf32> to vector<8x128xf32>
    %213 = arith.mulf %202, %212 : vector<8x128xf32>
    %214 = arith.addf %211, %213 : vector<8x128xf32>
    %215 = math.tanh %214 : vector<8x128xf32>
    %cst_67 = arith.constant 1.000000e+00 : f32
    %216 = vector.broadcast %cst_67 : f32 to vector<8x128xf32>
    %217 = arith.subf %216, %210 : vector<8x128xf32>
    %218 = arith.mulf %217, %215 : vector<8x128xf32>
    %219 = arith.mulf %210, %187 : vector<8x128xf32>
    %220 = arith.addf %218, %219 : vector<8x128xf32>
    %c6_i32 = arith.constant 6 : i32
    %221 = arith.index_cast %c6_i32 : i32 to index
    %c0_68 = arith.constant 0 : index
    %c0_69 = arith.constant 0 : index
    %222 = vector.load %arg13[%221, %c0_68, %c0_69] : memref<8x8x384xf32, #tpu.memory_space<vmem>>, vector<1x8x384xf32>
    %223 = vector.shape_cast %222 : vector<1x8x384xf32> to vector<8x384xf32>
    %224 = arith.truncf %220 : vector<8x128xf32> to vector<8x128xbf16>
    %c0_70 = arith.constant 0 : index
    %c0_71 = arith.constant 0 : index
    %225 = vector.load %arg6[%c0_70, %c0_71] : memref<128x384xbf16, #tpu.memory_space<vmem>>, vector<128x384xbf16>
    %cst_72 = arith.constant dense<0.000000e+00> : vector<8x384xf32>
    %226 = tpu.matmul %224, %225, %cst_72 {dimension_numbers = #tpu.dot_dimension_numbers<[1], [0], [0], [1], [0, 0, 1, 1], [], []>} : vector<8x128xbf16>, vector<128x384xbf16>, vector<8x384xf32> -> vector<8x384xf32>
    %227 = arith.addf %226, %21 : vector<8x384xf32>
    %228 = vector.extract_strided_slice %223 {offsets = [0, 0], sizes = [8, 128], strides = [1, 1]} : vector<8x384xf32> to vector<8x128xf32>
    %229 = vector.extract_strided_slice %227 {offsets = [0, 0], sizes = [8, 128], strides = [1, 1]} : vector<8x384xf32> to vector<8x128xf32>
    %230 = arith.addf %228, %229 : vector<8x128xf32>
    %231 = arith.negf %230 : vector<8x128xf32>
    %232 = math.exp %231 : vector<8x128xf32>
    %cst_73 = arith.constant 1.000000e+00 : f32
    %233 = vector.broadcast %cst_73 : f32 to vector<8x128xf32>
    %234 = arith.addf %233, %232 : vector<8x128xf32>
    %235 = arith.divf %233, %234 : vector<8x128xf32>
    %236 = vector.extract_strided_slice %223 {offsets = [0, 128], sizes = [8, 128], strides = [1, 1]} : vector<8x384xf32> to vector<8x128xf32>
    %237 = vector.extract_strided_slice %227 {offsets = [0, 128], sizes = [8, 128], strides = [1, 1]} : vector<8x384xf32> to vector<8x128xf32>
    %238 = arith.addf %236, %237 : vector<8x128xf32>
    %239 = arith.negf %238 : vector<8x128xf32>
    %240 = math.exp %239 : vector<8x128xf32>
    %cst_74 = arith.constant 1.000000e+00 : f32
    %241 = vector.broadcast %cst_74 : f32 to vector<8x128xf32>
    %242 = arith.addf %241, %240 : vector<8x128xf32>
    %243 = arith.divf %241, %242 : vector<8x128xf32>
    %244 = vector.extract_strided_slice %223 {offsets = [0, 256], sizes = [8, 128], strides = [1, 1]} : vector<8x384xf32> to vector<8x128xf32>
    %245 = vector.extract_strided_slice %227 {offsets = [0, 256], sizes = [8, 128], strides = [1, 1]} : vector<8x384xf32> to vector<8x128xf32>
    %246 = arith.mulf %235, %245 : vector<8x128xf32>
    %247 = arith.addf %244, %246 : vector<8x128xf32>
    %248 = math.tanh %247 : vector<8x128xf32>
    %cst_75 = arith.constant 1.000000e+00 : f32
    %249 = vector.broadcast %cst_75 : f32 to vector<8x128xf32>
    %250 = arith.subf %249, %243 : vector<8x128xf32>
    %251 = arith.mulf %250, %248 : vector<8x128xf32>
    %252 = arith.mulf %243, %220 : vector<8x128xf32>
    %253 = arith.addf %251, %252 : vector<8x128xf32>
    %c7_i32 = arith.constant 7 : i32
    %254 = arith.index_cast %c7_i32 : i32 to index
    %c0_76 = arith.constant 0 : index
    %c0_77 = arith.constant 0 : index
    %255 = vector.load %arg13[%254, %c0_76, %c0_77] : memref<8x8x384xf32, #tpu.memory_space<vmem>>, vector<1x8x384xf32>
    %256 = vector.shape_cast %255 : vector<1x8x384xf32> to vector<8x384xf32>
    %257 = arith.truncf %253 : vector<8x128xf32> to vector<8x128xbf16>
    %c0_78 = arith.constant 0 : index
    %c0_79 = arith.constant 0 : index
    %258 = vector.load %arg6[%c0_78, %c0_79] : memref<128x384xbf16, #tpu.memory_space<vmem>>, vector<128x384xbf16>
    %cst_80 = arith.constant dense<0.000000e+00> : vector<8x384xf32>
    %259 = tpu.matmul %257, %258, %cst_80 {dimension_numbers = #tpu.dot_dimension_numbers<[1], [0], [0], [1], [0, 0, 1, 1], [], []>} : vector<8x128xbf16>, vector<128x384xbf16>, vector<8x384xf32> -> vector<8x384xf32>
    %260 = arith.addf %259, %21 : vector<8x384xf32>
    %261 = vector.extract_strided_slice %256 {offsets = [0, 0], sizes = [8, 128], strides = [1, 1]} : vector<8x384xf32> to vector<8x128xf32>
    %262 = vector.extract_strided_slice %260 {offsets = [0, 0], sizes = [8, 128], strides = [1, 1]} : vector<8x384xf32> to vector<8x128xf32>
    %263 = arith.addf %261, %262 : vector<8x128xf32>
    %264 = arith.negf %263 : vector<8x128xf32>
    %265 = math.exp %264 : vector<8x128xf32>
    %cst_81 = arith.constant 1.000000e+00 : f32
    %266 = vector.broadcast %cst_81 : f32 to vector<8x128xf32>
    %267 = arith.addf %266, %265 : vector<8x128xf32>
    %268 = arith.divf %266, %267 : vector<8x128xf32>
    %269 = vector.extract_strided_slice %256 {offsets = [0, 128], sizes = [8, 128], strides = [1, 1]} : vector<8x384xf32> to vector<8x128xf32>
    %270 = vector.extract_strided_slice %260 {offsets = [0, 128], sizes = [8, 128], strides = [1, 1]} : vector<8x384xf32> to vector<8x128xf32>
    %271 = arith.addf %269, %270 : vector<8x128xf32>
    %272 = arith.negf %271 : vector<8x128xf32>
    %273 = math.exp %272 : vector<8x128xf32>
    %cst_82 = arith.constant 1.000000e+00 : f32
    %274 = vector.broadcast %cst_82 : f32 to vector<8x128xf32>
    %275 = arith.addf %274, %273 : vector<8x128xf32>
    %276 = arith.divf %274, %275 : vector<8x128xf32>
    %277 = vector.extract_strided_slice %256 {offsets = [0, 256], sizes = [8, 128], strides = [1, 1]} : vector<8x384xf32> to vector<8x128xf32>
    %278 = vector.extract_strided_slice %260 {offsets = [0, 256], sizes = [8, 128], strides = [1, 1]} : vector<8x384xf32> to vector<8x128xf32>
    %279 = arith.mulf %268, %278 : vector<8x128xf32>
    %280 = arith.addf %277, %279 : vector<8x128xf32>
    %281 = math.tanh %280 : vector<8x128xf32>
    %cst_83 = arith.constant 1.000000e+00 : f32
    %282 = vector.broadcast %cst_83 : f32 to vector<8x128xf32>
    %283 = arith.subf %282, %276 : vector<8x128xf32>
    %284 = arith.mulf %283, %281 : vector<8x128xf32>
    %285 = arith.mulf %276, %253 : vector<8x128xf32>
    %286 = arith.addf %284, %285 : vector<8x128xf32>
    %c8_i32 = arith.constant 8 : i32
    %c0_84 = arith.constant 0 : index
    %c0_85 = arith.constant 0 : index
    %287 = vector.load %arg8[%c0_84, %c0_85] : memref<128x128xf32, #tpu.memory_space<vmem>>, vector<128x128xf32>
    %cst_86 = arith.constant dense<0.000000e+00> : vector<8x128xf32>
    %288 = tpu.matmul %286, %287, %cst_86 {dimension_numbers = #tpu.dot_dimension_numbers<[1], [0], [0], [1], [0, 0, 1, 1], [], []>} : vector<8x128xf32>, vector<128x128xf32>, vector<8x128xf32> -> vector<8x128xf32>
    %c0_87 = arith.constant 0 : index
    %c0_88 = arith.constant 0 : index
    %289 = vector.load %arg9[%c0_87, %c0_88] : memref<1x128xf32, #tpu.memory_space<vmem>>, vector<1x128xf32>
    %290 = vector.broadcast %289 : vector<1x128xf32> to vector<8x128xf32>
    %291 = arith.addf %288, %290 : vector<8x128xf32>
    %cst_89 = arith.constant 0.000000e+00 : f32
    %292 = vector.broadcast %cst_89 : f32 to vector<8x128xf32>
    %293 = arith.maximumf %291, %292 : vector<8x128xf32>
    %c0_90 = arith.constant 0 : index
    %c0_91 = arith.constant 0 : index
    %294 = vector.load %arg10[%c0_90, %c0_91] : memref<128x128xf32, #tpu.memory_space<vmem>>, vector<128x128xf32>
    %cst_92 = arith.constant dense<0.000000e+00> : vector<8x128xf32>
    %295 = tpu.matmul %293, %294, %cst_92 {dimension_numbers = #tpu.dot_dimension_numbers<[1], [0], [0], [1], [0, 0, 1, 1], [], []>} : vector<8x128xf32>, vector<128x128xf32>, vector<8x128xf32> -> vector<8x128xf32>
    %c0_93 = arith.constant 0 : index
    %c0_94 = arith.constant 0 : index
    %296 = vector.load %arg11[%c0_93, %c0_94] : memref<1x128xf32, #tpu.memory_space<vmem>>, vector<1x128xf32>
    %297 = vector.broadcast %296 : vector<1x128xf32> to vector<8x128xf32>
    %298 = arith.addf %295, %297 : vector<8x128xf32>
    %c0_95 = arith.constant 0 : index
    %c0_96 = arith.constant 0 : index
    %299 = vector.load %arg12[%c0_95, %c0_96] : memref<8x128xf32, #tpu.memory_space<vmem>>, vector<8x128xf32>
    tpu.vector_store %arg12[%c0_95, %c0_96], %298 {strides = array<i32>} : memref<8x128xf32, #tpu.memory_space<vmem>>, vector<8x128xf32>,
    return
  }
}

</mosaic_0001>

<llo_original>
// kernel: grunet_forward.1
$region0: #{grunet_forward.1}
  #allocation0 [shape = 'u32[]', space=smem, size = 0x4, offset = 0x4, fixed_abs, tag = 'smem constant byte address 0x4 - core index']
  #allocation1 [shape = 'u32[144,128]{1,0:T(1,128)}', space=vmem, size = 0x12000, scoped, tag = 'internal scratch']
  #allocation2 [shape = 'f32[8,8,384]{2,1,0:T(8,128)}', space=vmem, size = 0x18000, scoped, tag = 'scratch operand']
  %s0 = inlined_call_operand.vmem [shape: bf16[4096,27], index: 0, kind: input, shape index: {}]
  %s1 = inlined_call_operand.vmem [shape: bf16[27,128], index: 1, kind: input, shape index: {}]
  %s2 = inlined_call_operand.vmem [shape: f32[1,128], index: 2, kind: input, shape index: {}]
  %s3 = inlined_call_operand.vmem [shape: bf16[64,4096], index: 3, kind: input, shape index: {}]
  %s4 = inlined_call_operand.vmem [shape: bf16[128,384], index: 4, kind: input, shape index: {}]
  %s5 = inlined_call_operand.vmem [shape: f32[1,384], index: 5, kind: input, shape index: {}]
  %s6 = inlined_call_operand.vmem [shape: bf16[128,384], index: 6, kind: input, shape index: {}]
  %s7 = inlined_call_operand.vmem [shape: f32[1,384], index: 7, kind: input, shape index: {}]
  %s8 = inlined_call_operand.vmem [shape: f32[128,128], index: 8, kind: input, shape index: {}]
  %s9 = inlined_call_operand.vmem [shape: f32[1,128], index: 9, kind: input, shape index: {}]
  %s10 = inlined_call_operand.vmem [shape: f32[128,128], index: 10, kind: input, shape index: {}]
  %s11 = inlined_call_operand.vmem [shape: f32[1,128], index: 11, kind: input, shape index: {}]
  %s12 = inlined_call_operand.vmem [shape: f32[8,128], index: 12, kind: output, shape index: {}]
  %s13 = sld [smem:[#allocation0]]
  $region58: #{grunet_forward.1} parent=0
    _
  %s15 = ssub.s32 1, %s13
  %s16 = scalar_select 0, %s15, %s13
  // Predicated region
  $region2: #{grunet_forward.1} parent=0 // pred_check
    _
  $region3: #{grunet_forward.1} parent=0 // pred_check_branch
    %18 = sbr.rel (0) target = $region5
  $region4: #{grunet_forward.1} parent=0 // pred_region
    _
  $region5: #{grunet_forward.1} parent=0 // pred_fallthru
    _
  // Predicated region
  $region6: #{grunet_forward.1} parent=0 // pred_check
    _
  $region7: #{grunet_forward.1} parent=0 // pred_check_branch
    %20 = sbr.rel (0) target = $region9
  $region8: #{grunet_forward.1} parent=0 // pred_region
    _
  $region9: #{grunet_forward.1} parent=0 // pred_fallthru
    _
  // Predicated region
  $region10: #{grunet_forward.1} parent=0 // pred_check
    _
  $region11: #{grunet_forward.1} parent=0 // pred_check_branch
    %22 = sbr.rel (0) target = $region13
  $region12: #{grunet_forward.1} parent=0 // pred_region
    _
  $region13: #{grunet_forward.1} parent=0 // pred_fallthru
    _
  // Predicated region
  $region14: #{grunet_forward.1} parent=0 // pred_check
    _
  $region15: #{grunet_forward.1} parent=0 // pred_check_branch
    %24 = sbr.rel (0) target = $region17
  $region16: #{grunet_forward.1} parent=0 // pred_region
    _
  $region17: #{grunet_forward.1} parent=0 // pred_fallthru
    _
  // Predicated region
  $region18: #{grunet_forward.1} parent=0 // pred_check
    _
  $region19: #{grunet_forward.1} parent=0 // pred_check_branch
    %26 = sbr.rel (0) target = $region21
  $region20: #{grunet_forward.1} parent=0 // pred_region
    _
  $region21: #{grunet_forward.1} parent=0 // pred_fallthru
    _
  // Predicated region
  $region22: #{grunet_forward.1} parent=0 // pred_check
    _
  $region23: #{grunet_forward.1} parent=0 // pred_check_branch
    %28 = sbr.rel (0) target = $region25
  $region24: #{grunet_forward.1} parent=0 // pred_region
    _
  $region25: #{grunet_forward.1} parent=0 // pred_fallthru
    _
  // Predicated region
  $region26: #{grunet_forward.1} parent=0 // pred_check
    _
  $region27: #{grunet_forward.1} parent=0 // pred_check_branch
    %30 = sbr.rel (0) target = $region29
  $region28: #{grunet_forward.1} parent=0 // pred_region
    _
  $region29: #{grunet_forward.1} parent=0 // pred_fallthru
    _
  // Predicated region
  $region30: #{grunet_forward.1} parent=0 // pred_check
    _
  $region31: #{grunet_forward.1} parent=0 // pred_check_branch
    %32 = sbr.rel (0) target = $region33
  $region32: #{grunet_forward.1} parent=0 // pred_region
    _
  $region33: #{grunet_forward.1} parent=0 // pred_fallthru
    _
  // Predicated region
  $region34: #{grunet_forward.1} parent=0 // pred_check
    _
  $region35: #{grunet_forward.1} parent=0 // pred_check_branch
    %34 = sbr.rel (0) target = $region37
  $region36: #{grunet_forward.1} parent=0 // pred_region
    _
  $region37: #{grunet_forward.1} parent=0 // pred_fallthru
    _
  // Predicated region
  $region38: #{grunet_forward.1} parent=0 // pred_check
    _
  $region39: #{grunet_forward.1} parent=0 // pred_check_branch
    %36 = sbr.rel (0) target = $region41
  $region40: #{grunet_forward.1} parent=0 // pred_region
    _
  $region41: #{grunet_forward.1} parent=0 // pred_fallthru
    _
  // Predicated region
  $region42: #{grunet_forward.1} parent=0 // pred_check
    _
  $region43: #{grunet_forward.1} parent=0 // pred_check_branch
    %38 = sbr.rel (0) target = $region45
  $region44: #{grunet_forward.1} parent=0 // pred_region
    _
  $region45: #{grunet_forward.1} parent=0 // pred_fallthru
    _
  // Predicated region
  $region46: #{grunet_forward.1} parent=0 // pred_check
    _
  $region47: #{grunet_forward.1} parent=0 // pred_check_branch
    %40 = sbr.rel (0) target = $region49
  $region48: #{grunet_forward.1} parent=0 // pred_region
    _
  $region49: #{grunet_forward.1} parent=0 // pred_fallthru
    _
  %v42 = vld [vmem:[%s0] sm:$0xf]
  %v43 = vld [vmem:[%s0 + $0x4] sm:$0xf]
  %v44 = vld [vmem:[%s0 + $0x8] sm:$0xf]
  %v45 = vld [vmem:[%s0 + $0xc] sm:$0xf]
  %v46 = vld [vmem:[%s0 + $0x10] sm:$0xf]
  %v47 = vld [vmem:[%s0 + $0x14] sm:$0xf]
  %v48 = vld [vmem:[%s0 + $0x18] sm:$0xf]
  %v49 = vld [vmem:[%s0 + $0x1c] sm:$0xf]
  %v50 = vld [vmem:[%s0 + $0x20] sm:$0xf]
  %v51 = vld [vmem:[%s0 + $0x24] sm:$0xf]
  %v52 = vld [vmem:[%s0 + $0x28] sm:$0xf]
  %v53 = vld [vmem:[%s0 + $0x2c] sm:$0xf]
  %v54 = vld [vmem:[%s0 + $0x30] sm:$0xf]
  %v55 = vld [vmem:[%s0 + $0x34] sm:$0xf]
  %v56 = vld [vmem:[%s0 + $0x38] sm:$0xf]
  %v57 = vld [vmem:[%s0 + $0x3c] sm:$0xf]
  %v58 = vld [vmem:[%s0 + $0x40] sm:$0xf]
  %v59 = vld [vmem:[%s0 + $0x44] sm:$0xf]
  %v60 = vld [vmem:[%s0 + $0x48] sm:$0xf]
  %v61 = vld [vmem:[%s0 + $0x4c] sm:$0xf]
  %v62 = vld [vmem:[%s0 + $0x50] sm:$0xf]
  %v63 = vld [vmem:[%s0 + $0x54] sm:$0xf]
  %v64 = vld [vmem:[%s0 + $0x58] sm:$0xf]
  %v65 = vld [vmem:[%s0 + $0x5c] sm:$0xf]
  %v66 = vld [vmem:[%s0 + $0x60] sm:$0xf]
  %v67 = vld [vmem:[%s0 + $0x64] sm:$0xf]
  %v68 = vld [vmem:[%s0 + $0x68] sm:$0xf]
  %v69 = vld [vmem:[%s0 + $0x6c] sm:$0xf]
  %v70 = vld [vmem:[%s0 + $0x70] sm:$0xf]
  %v71 = vld [vmem:[%s0 + $0x74] sm:$0xf]
  %v72 = vld [vmem:[%s0 + $0x78] sm:$0xf]
  %v73 = vld [vmem:[%s0 + $0x7c] sm:$0xf]
  %v74 = vld [vmem:[%s0 + $0x80] sm:$0xf]
  %v75 = vld [vmem:[%s0 + $0x84] sm:$0xf]
  %v76 = vld [vmem:[%s0 + $0x88] sm:$0xf]
  %v77 = vld [vmem:[%s0 + $0x8c] sm:$0xf]
  %v78 = vld [vmem:[%s0 + $0x90] sm:$0xf]
  %v79 = vld [vmem:[%s0 + $0x94] sm:$0xf]
  %v80 = vld [vmem:[%s0 + $0x98] sm:$0xf]
  %v81 = vld [vmem:[%s0 + $0x9c] sm:$0xf]
  %v82 = vld [vmem:[%s0 + $0xa0] sm:$0xf]
  %v83 = vld [vmem:[%s0 + $0xa4] sm:$0xf]
  %v84 = vld [vmem:[%s0 + $0xa8] sm:$0xf]
  %v85 = vld [vmem:[%s0 + $0xac] sm:$0xf]
  %v86 = vld [vmem:[%s0 + $0xb0] sm:$0xf]
  %v87 = vld [vmem:[%s0 + $0xb4] sm:$0xf]
  %v88 = vld [vmem:[%s0 + $0xb8] sm:$0xf]
  %v89 = vld [vmem:[%s0 + $0xbc] sm:$0xf]
  %v90 = vld [vmem:[%s0 + $0xc0] sm:$0xf]
  %v91 = vld [vmem:[%s0 + $0xc4] sm:$0xf]
  %v92 = vld [vmem:[%s0 + $0xc8] sm:$0xf]
  %v93 = vld [vmem:[%s0 + $0xcc] sm:$0xf]
  %v94 = vld [vmem:[%s0 + $0xd0] sm:$0xf]
  %v95 = vld [vmem:[%s0 + $0xd4] sm:$0xf]
  %v96 = vld [vmem:[%s0 + $0xd8] sm:$0xf]
  %v97 = vld [vmem:[%s0 + $0xdc] sm:$0xf]
  %v98 = vld [vmem:[%s0 + $0xe0] sm:$0xf]
  %v99 = vld [vmem:[%s0 + $0xe4] sm:$0xf]
  %v100 = vld [vmem:[%s0 + $0xe8] sm:$0xf]
  %v101 = vld [vmem:[%s0 + $0xec] sm:$0xf]
  %v102 = vld [vmem:[%s0 + $0xf0] sm:$0xf]
  %v103 = vld [vmem:[%s0 + $0xf4] sm:$0xf]
  %v104 = vld [vmem:[%s0 + $0xf8] sm:$0xf]
  %v105 = vld [vmem:[%s0 + $0xfc] sm:$0xf]
  %v106 = vld [vmem:[%s0 + $0x100] sm:$0xf]
  %v107 = vld [vmem:[%s0 + $0x104] sm:$0xf]
  %v108 = vld [vmem:[%s0 + $0x108] sm:$0xf]
  %v109 = vld [vmem:[%s0 + $0x10c] sm:$0xf]
  %v110 = vld [vmem:[%s0 + $0x110] sm:$0xf]
  %v111 = vld [vmem:[%s0 + $0x114] sm:$0xf]
  %v112 = vld [vmem:[%s0 + $0x118] sm:$0xf]
  %v113 = vld [vmem:[%s0 + $0x11c] sm:$0xf]
  %v114 = vld [vmem:[%s0 + $0x120] sm:$0xf]
  %v115 = vld [vmem:[%s0 + $0x124] sm:$0xf]
  %v116 = vld [vmem:[%s0 + $0x128] sm:$0xf]
  %v117 = vld [vmem:[%s0 + $0x12c] sm:$0xf]
  %v118 = vld [vmem:[%s0 + $0x130] sm:$0xf]
  %v119 = vld [vmem:[%s0 + $0x134] sm:$0xf]
  %v120 = vld [vmem:[%s0 + $0x138] sm:$0xf]
  %v121 = vld [vmem:[%s0 + $0x13c] sm:$0xf]
  %v122 = vld [vmem:[%s0 + $0x140] sm:$0xf]
  %v123 = vld [vmem:[%s0 + $0x144] sm:$0xf]
  %v124 = vld [vmem:[%s0 + $0x148] sm:$0xf]
  %v125 = vld [vmem:[%s0 + $0x14c] sm:$0xf]
  %v126 = vld [vmem:[%s0 + $0x150] sm:$0xf]
  %v127 = vld [vmem:[%s0 + $0x154] sm:$0xf]
  %v128 = vld [vmem:[%s0 + $0x158] sm:$0xf]
  %v129 = vld [vmem:[%s0 + $0x15c] sm:$0xf]
  %v130 = vld [vmem:[%s0 + $0x160] sm:$0xf]
  %v131 = vld [vmem:[%s0 + $0x164] sm:$0xf]
  %v132 = vld [vmem:[%s0 + $0x168] sm:$0xf]
  %v133 = vld [vmem:[%s0 + $0x16c] sm:$0xf]
  %v134 = vld [vmem:[%s0 + $0x170] sm:$0xf]
  %v135 = vld [vmem:[%s0 + $0x174] sm:$0xf]
  %v136 = vld [vmem:[%s0 + $0x178] sm:$0xf]
  %v137 = vld [vmem:[%s0 + $0x17c] sm:$0xf]
  %v138 = vld [vmem:[%s0 + $0x180] sm:$0xf]
  %v139 = vld [vmem:[%s0 + $0x184] sm:$0xf]
  %v140 = vld [vmem:[%s0 + $0x188] sm:$0xf]
  %v141 = vld [vmem:[%s0 + $0x18c] sm:$0xf]
  %v142 = vld [vmem:[%s0 + $0x190] sm:$0xf]
  %v143 = vld [vmem:[%s0 + $0x194] sm:$0xf]
  %v144 = vld [vmem:[%s0 + $0x198] sm:$0xf]
  %v145 = vld [vmem:[%s0 + $0x19c] sm:$0xf]
  %v146 = vld [vmem:[%s0 + $0x1a0] sm:$0xf]
  %v147 = vld [vmem:[%s0 + $0x1a4] sm:$0xf]
  %v148 = vld [vmem:[%s0 + $0x1a8] sm:$0xf]
  %v149 = vld [vmem:[%s0 + $0x1ac] sm:$0xf]
  %v150 = vld [vmem:[%s0 + $0x1b0] sm:$0xf]
  %v151 = vld [vmem:[%s0 + $0x1b4] sm:$0xf]
  %v152 = vld [vmem:[%s0 + $0x1b8] sm:$0xf]
  %v153 = vld [vmem:[%s0 + $0x1bc] sm:$0xf]
  %v154 = vld [vmem:[%s0 + $0x1c0] sm:$0xf]
  %v155 = vld [vmem:[%s0 + $0x1c4] sm:$0xf]
  %v156 = vld [vmem:[%s0 + $0x1c8] sm:$0xf]
  %v157 = vld [vmem:[%s0 + $0x1cc] sm:$0xf]
  %v158 = vld [vmem:[%s0 + $0x1d0] sm:$0xf]
  %v159 = vld [vmem:[%s0 + $0x1d4] sm:$0xf]
  %v160 = vld [vmem:[%s0 + $0x1d8] sm:$0xf]
  %v161 = vld [vmem:[%s0 + $0x1dc] sm:$0xf]
  %v162 = vld [vmem:[%s0 + $0x1e0] sm:$0xf]
  %v163 = vld [vmem:[%s0 + $0x1e4] sm:$0xf]
  %v164 = vld [vmem:[%s0 + $0x1e8] sm:$0xf]
  %v165 = vld [vmem:[%s0 + $0x1ec] sm:$0xf]
  %v166 = vld [vmem:[%s0 + $0x1f0] sm:$0xf]
  %v167 = vld [vmem:[%s0 + $0x1f4] sm:$0xf]
  %v168 = vld [vmem:[%s0 + $0x1f8] sm:$0xf]
  %v169 = vld [vmem:[%s0 + $0x1fc] sm:$0xf]
  %v170 = vld [vmem:[%s0 + $0x200] sm:$0xf]
  %v171 = vld [vmem:[%s0 + $0x204] sm:$0xf]
  %v172 = vld [vmem:[%s0 + $0x208] sm:$0xf]
  %v173 = vld [vmem:[%s0 + $0x20c] sm:$0xf]
  %v174 = vld [vmem:[%s0 + $0x210] sm:$0xf]
  %v175 = vld [vmem:[%s0 + $0x214] sm:$0xf]
  %v176 = vld [vmem:[%s0 + $0x218] sm:$0xf]
  %v177 = vld [vmem:[%s0 + $0x21c] sm:$0xf]
  %v178 = vld [vmem:[%s0 + $0x220] sm:$0xf]
  %v179 = vld [vmem:[%s0 + $0x224] sm:$0xf]
  %v180 = vld [vmem:[%s0 + $0x228] sm:$0xf]
  %v181 = vld [vmem:[%s0 + $0x22c] sm:$0xf]
  %v182 = vld [vmem:[%s0 + $0x230] sm:$0xf]
  %v183 = vld [vmem:[%s0 + $0x234] sm:$0xf]
  %v184 = vld [vmem:[%s0 + $0x238] sm:$0xf]
  %v185 = vld [vmem:[%s0 + $0x23c] sm:$0xf]
  %v186 = vld [vmem:[%s0 + $0x240] sm:$0xf]
  %v187 = vld [vmem:[%s0 + $0x244] sm:$0xf]
  %v188 = vld [vmem:[%s0 + $0x248] sm:$0xf]
  %v189 = vld [vmem:[%s0 + $0x24c] sm:$0xf]
  %v190 = vld [vmem:[%s0 + $0x250] sm:$0xf]
  %v191 = vld [vmem:[%s0 + $0x254] sm:$0xf]
  %v192 = vld [vmem:[%s0 + $0x258] sm:$0xf]
  %v193 = vld [vmem:[%s0 + $0x25c] sm:$0xf]
  %v194 = vld [vmem:[%s0 + $0x260] sm:$0xf]
  %v195 = vld [vmem:[%s0 + $0x264] sm:$0xf]
  %v196 = vld [vmem:[%s0 + $0x268] sm:$0xf]
  %v197 = vld [vmem:[%s0 + $0x26c] sm:$0xf]
  %v198 = vld [vmem:[%s0 + $0x270] sm:$0xf]
  %v199 = vld [vmem:[%s0 + $0x274] sm:$0xf]
  %v200 = vld [vmem:[%s0 + $0x278] sm:$0xf]
  %v201 = vld [vmem:[%s0 + $0x27c] sm:$0xf]
  %v202 = vld [vmem:[%s0 + $0x280] sm:$0xf]
  %v203 = vld [vmem:[%s0 + $0x284] sm:$0xf]
  %v204 = vld [vmem:[%s0 + $0x288] sm:$0xf]
  %v205 = vld [vmem:[%s0 + $0x28c] sm:$0xf]
  %v206 = vld [vmem:[%s0 + $0x290] sm:$0xf]
  %v207 = vld [vmem:[%s0 + $0x294] sm:$0xf]
  %v208 = vld [vmem:[%s0 + $0x298] sm:$0xf]
  %v209 = vld [vmem:[%s0 + $0x29c] sm:$0xf]
  %v210 = vld [vmem:[%s0 + $0x2a0] sm:$0xf]
  %v211 = vld [vmem:[%s0 + $0x2a4] sm:$0xf]
  %v212 = vld [vmem:[%s0 + $0x2a8] sm:$0xf]
  %v213 = vld [vmem:[%s0 + $0x2ac] sm:$0xf]
  %v214 = vld [vmem:[%s0 + $0x2b0] sm:$0xf]
  %v215 = vld [vmem:[%s0 + $0x2b4] sm:$0xf]
  %v216 = vld [vmem:[%s0 + $0x2b8] sm:$0xf]
  %v217 = vld [vmem:[%s0 + $0x2bc] sm:$0xf]
  %v218 = vld [vmem:[%s0 + $0x2c0] sm:$0xf]
  %v219 = vld [vmem:[%s0 + $0x2c4] sm:$0xf]
  %v220 = vld [vmem:[%s0 + $0x2c8] sm:$0xf]
  %v221 = vld [vmem:[%s0 + $0x2cc] sm:$0xf]
  %v222 = vld [vmem:[%s0 + $0x2d0] sm:$0xf]
  %v223 = vld [vmem:[%s0 + $0x2d4] sm:$0xf]
  %v224 = vld [vmem:[%s0 + $0x2d8] sm:$0xf]
  %v225 = vld [vmem:[%s0 + $0x2dc] sm:$0xf]
  %v226 = vld [vmem:[%s0 + $0x2e0] sm:$0xf]
  %v227 = vld [vmem:[%s0 + $0x2e4] sm:$0xf]
  %v228 = vld [vmem:[%s0 + $0x2e8] sm:$0xf]
  %v229 = vld [vmem:[%s0 + $0x2ec] sm:$0xf]
  %v230 = vld [vmem:[%s0 + $0x2f0] sm:$0xf]
  %v231 = vld [vmem:[%s0 + $0x2f4] sm:$0xf]
  %v232 = vld [vmem:[%s0 + $0x2f8] sm:$0xf]
  %v233 = vld [vmem:[%s0 + $0x2fc] sm:$0xf]
  %v234 = vld [vmem:[%s0 + $0x300] sm:$0xf]
  %v235 = vld [vmem:[%s0 + $0x304] sm:$0xf]
  %v236 = vld [vmem:[%s0 + $0x308] sm:$0xf]
  %v237 = vld [vmem:[%s0 + $0x30c] sm:$0xf]
  %v238 = vld [vmem:[%s0 + $0x310] sm:$0xf]
  %v239 = vld [vmem:[%s0 + $0x314] sm:$0xf]
  %v240 = vld [vmem:[%s0 + $0x318] sm:$0xf]
  %v241 = vld [vmem:[%s0 + $0x31c] sm:$0xf]
  %v242 = vld [vmem:[%s0 + $0x320] sm:$0xf]
  %v243 = vld [vmem:[%s0 + $0x324] sm:$0xf]
  %v244 = vld [vmem:[%s0 + $0x328] sm:$0xf]
  %v245 = vld [vmem:[%s0 + $0x32c] sm:$0xf]
  %v246 = vld [vmem:[%s0 + $0x330] sm:$0xf]
  %v247 = vld [vmem:[%s0 + $0x334] sm:$0xf]
  %v248 = vld [vmem:[%s0 + $0x338] sm:$0xf]
  %v249 = vld [vmem:[%s0 + $0x33c] sm:$0xf]
  %v250 = vld [vmem:[%s0 + $0x340] sm:$0xf]
  %v251 = vld [vmem:[%s0 + $0x344] sm:$0xf]
  %v252 = vld [vmem:[%s0 + $0x348] sm:$0xf]
  %v253 = vld [vmem:[%s0 + $0x34c] sm:$0xf]
  %v254 = vld [vmem:[%s0 + $0x350] sm:$0xf]
  %v255 = vld [vmem:[%s0 + $0x354] sm:$0xf]
  %v256 = vld [vmem:[%s0 + $0x358] sm:$0xf]
  %v257 = vld [vmem:[%s0 + $0x35c] sm:$0xf]
  %v258 = vld [vmem:[%s0 + $0x360] sm:$0xf]
  %v259 = vld [vmem:[%s0 + $0x364] sm:$0xf]
  %v260 = vld [vmem:[%s0 + $0x368] sm:$0xf]
  %v261 = vld [vmem:[%s0 + $0x36c] sm:$0xf]
  %v262 = vld [vmem:[%s0 + $0x370] sm:$0xf]
  %v263 = vld [vmem:[%s0 + $0x374] sm:$0xf]
  %v264 = vld [vmem:[%s0 + $0x378] sm:$0xf]
  %v265 = vld [vmem:[%s0 + $0x37c] sm:$0xf]
  %v266 = vld [vmem:[%s0 + $0x380] sm:$0xf]
  %v267 = vld [vmem:[%s0 + $0x384] sm:$0xf]
  %v268 = vld [vmem:[%s0 + $0x388] sm:$0xf]
  %v269 = vld [vmem:[%s0 + $0x38c] sm:$0xf]
  %v270 = vld [vmem:[%s0 + $0x390] sm:$0xf]
  %v271 = vld [vmem:[%s0 + $0x394] sm:$0xf]
  %v272 = vld [vmem:[%s0 + $0x398] sm:$0xf]
  %v273 = vld [vmem:[%s0 + $0x39c] sm:$0xf]
  %v274 = vld [vmem:[%s0 + $0x3a0] sm:$0xf]
  %v275 = vld [vmem:[%s0 + $0x3a4] sm:$0xf]
  %v276 = vld [vmem:[%s0 + $0x3a8] sm:$0xf]
  %v277 = vld [vmem:[%s0 + $0x3ac] sm:$0xf]
  %v278 = vld [vmem:[%s0 + $0x3b0] sm:$0xf]
  %v279 = vld [vmem:[%s0 + $0x3b4] sm:$0xf]
  %v280 = vld [vmem:[%s0 + $0x3b8] sm:$0xf]
  %v281 = vld [vmem:[%s0 + $0x3bc] sm:$0xf]
  %v282 = vld [vmem:[%s0 + $0x3c0] sm:$0xf]
  %v283 = vld [vmem:[%s0 + $0x3c4] sm:$0xf]
  %v284 = vld [vmem:[%s0 + $0x3c8] sm:$0xf]
  %v285 = vld [vmem:[%s0 + $0x3cc] sm:$0xf]
  %v286 = vld [vmem:[%s0 + $0x3d0] sm:$0xf]
  %v287 = vld [vmem:[%s0 + $0x3d4] sm:$0xf]
  %v288 = vld [vmem:[%s0 + $0x3d8] sm:$0xf]
  %v289 = vld [vmem:[%s0 + $0x3dc] sm:$0xf]
  %v290 = vld [vmem:[%s0 + $0x3e0] sm:$0xf]
  %v291 = vld [vmem:[%s0 + $0x3e4] sm:$0xf]
  %v292 = vld [vmem:[%s0 + $0x3e8] sm:$0xf]
  %v293 = vld [vmem:[%s0 + $0x3ec] sm:$0xf]
  %v294 = vld [vmem:[%s0 + $0x3f0] sm:$0xf]
  %v295 = vld [vmem:[%s0 + $0x3f4] sm:$0xf]
  %v296 = vld [vmem:[%s0 + $0x3f8] sm:$0xf]
  %v297 = vld [vmem:[%s0 + $0x3fc] sm:$0xf]
  %v298 = vld [vmem:[%s0 + $0x400] sm:$0xf]
  %v299 = vld [vmem:[%s0 + $0x404] sm:$0xf]
  %v300 = vld [vmem:[%s0 + $0x408] sm:$0xf]
  %v301 = vld [vmem:[%s0 + $0x40c] sm:$0xf]
  %v302 = vld [vmem:[%s0 + $0x410] sm:$0xf]
  %v303 = vld [vmem:[%s0 + $0x414] sm:$0xf]
  %v304 = vld [vmem:[%s0 + $0x418] sm:$0xf]
  %v305 = vld [vmem:[%s0 + $0x41c] sm:$0xf]
  %v306 = vld [vmem:[%s0 + $0x420] sm:$0xf]
  %v307 = vld [vmem:[%s0 + $0x424] sm:$0xf]
  %v308 = vld [vmem:[%s0 + $0x428] sm:$0xf]
  %v309 = vld [vmem:[%s0 + $0x42c] sm:$0xf]
  %v310 = vld [vmem:[%s0 + $0x430] sm:$0xf]
  %v311 = vld [vmem:[%s0 + $0x434] sm:$0xf]
  %v312 = vld [vmem:[%s0 + $0x438] sm:$0xf]
  %v313 = vld [vmem:[%s0 + $0x43c] sm:$0xf]
  %v314 = vld [vmem:[%s0 + $0x440] sm:$0xf]
  %v315 = vld [vmem:[%s0 + $0x444] sm:$0xf]
  %v316 = vld [vmem:[%s0 + $0x448] sm:$0xf]
  %v317 = vld [vmem:[%s0 + $0x44c] sm:$0xf]
  %v318 = vld [vmem:[%s0 + $0x450] sm:$0xf]
  %v319 = vld [vmem:[%s0 + $0x454] sm:$0xf]
  %v320 = vld [vmem:[%s0 + $0x458] sm:$0xf]
  %v321 = vld [vmem:[%s0 + $0x45c] sm:$0xf]
  %v322 = vld [vmem:[%s0 + $0x460] sm:$0xf]
  %v323 = vld [vmem:[%s0 + $0x464] sm:$0xf]
  %v324 = vld [vmem:[%s0 + $0x468] sm:$0xf]
  %v325 = vld [vmem:[%s0 + $0x46c] sm:$0xf]
  %v326 = vld [vmem:[%s0 + $0x470] sm:$0xf]
  %v327 = vld [vmem:[%s0 + $0x474] sm:$0xf]
  %v328 = vld [vmem:[%s0 + $0x478] sm:$0xf]
  %v329 = vld [vmem:[%s0 + $0x47c] sm:$0xf]
  %v330 = vld [vmem:[%s0 + $0x480] sm:$0xf]
  %v331 = vld [vmem:[%s0 + $0x484] sm:$0xf]
  %v332 = vld [vmem:[%s0 + $0x488] sm:$0xf]
  %v333 = vld [vmem:[%s0 + $0x48c] sm:$0xf]
  %v334 = vld [vmem:[%s0 + $0x490] sm:$0xf]
  %v335 = vld [vmem:[%s0 + $0x494] sm:$0xf]
  %v336 = vld [vmem:[%s0 + $0x498] sm:$0xf]
  %v337 = vld [vmem:[%s0 + $0x49c] sm:$0xf]
  %v338 = vld [vmem:[%s0 + $0x4a0] sm:$0xf]
  %v339 = vld [vmem:[%s0 + $0x4a4] sm:$0xf]
  %v340 = vld [vmem:[%s0 + $0x4a8] sm:$0xf]
  %v341 = vld [vmem:[%s0 + $0x4ac] sm:$0xf]
  %v342 = vld [vmem:[%s0 + $0x4b0] sm:$0xf]
  %v343 = vld [vmem:[%s0 + $0x4b4] sm:$0xf]
  %v344 = vld [vmem:[%s0 + $0x4b8] sm:$0xf]
  %v345 = vld [vmem:[%s0 + $0x4bc] sm:$0xf]
  %v346 = vld [vmem:[%s0 + $0x4c0] sm:$0xf]
  %v347 = vld [vmem:[%s0 + $0x4c4] sm:$0xf]
  %v348 = vld [vmem:[%s0 + $0x4c8] sm:$0xf]
  %v349 = vld [vmem:[%s0 + $0x4cc] sm:$0xf]
  %v350 = vld [vmem:[%s0 + $0x4d0] sm:$0xf]
  %v351 = vld [vmem:[%s0 + $0x4d4] sm:$0xf]
  %v352 = vld [vmem:[%s0 + $0x4d8] sm:$0xf]
  %v353 = vld [vmem:[%s0 + $0x4dc] sm:$0xf]
  %v354 = vld [vmem:[%s0 + $0x4e0] sm:$0xf]
  %v355 = vld [vmem:[%s0 + $0x4e4] sm:$0xf]
  %v356 = vld [vmem:[%s0 + $0x4e8] sm:$0xf]
  %v357 = vld [vmem:[%s0 + $0x4ec] sm:$0xf]
  %v358 = vld [vmem:[%s0 + $0x4f0] sm:$0xf]
  %v359 = vld [vmem:[%s0 + $0x4f4] sm:$0xf]
  %v360 = vld [vmem:[%s0 + $0x4f8] sm:$0xf]
  %v361 = vld [vmem:[%s0 + $0x4fc] sm:$0xf]
  %v362 = vld [vmem:[%s0 + $0x500] sm:$0xf]
  %v363 = vld [vmem:[%s0 + $0x504] sm:$0xf]
  %v364 = vld [vmem:[%s0 + $0x508] sm:$0xf]
  %v365 = vld [vmem:[%s0 + $0x50c] sm:$0xf]
  %v366 = vld [vmem:[%s0 + $0x510] sm:$0xf]
  %v367 = vld [vmem:[%s0 + $0x514] sm:$0xf]
  %v368 = vld [vmem:[%s0 + $0x518] sm:$0xf]
  %v369 = vld [vmem:[%s0 + $0x51c] sm:$0xf]
  %v370 = vld [vmem:[%s0 + $0x520] sm:$0xf]
  %v371 = vld [vmem:[%s0 + $0x524] sm:$0xf]
  %v372 = vld [vmem:[%s0 + $0x528] sm:$0xf]
  %v373 = vld [vmem:[%s0 + $0x52c] sm:$0xf]
  %v374 = vld [vmem:[%s0 + $0x530] sm:$0xf]
  %v375 = vld [vmem:[%s0 + $0x534] sm:$0xf]
  %v376 = vld [vmem:[%s0 + $0x538] sm:$0xf]
  %v377 = vld [vmem:[%s0 + $0x53c] sm:$0xf]
  %v378 = vld [vmem:[%s0 + $0x540] sm:$0xf]
  %v379 = vld [vmem:[%s0 + $0x544] sm:$0xf]
  %v380 = vld [vmem:[%s0 + $0x548] sm:$0xf]
  %v381 = vld [vmem:[%s0 + $0x54c] sm:$0xf]
  %v382 = vld [vmem:[%s0 + $0x550] sm:$0xf]
  %v383 = vld [vmem:[%s0 + $0x554] sm:$0xf]
  %v384 = vld [vmem:[%s0 + $0x558] sm:$0xf]
  %v385 = vld [vmem:[%s0 + $0x55c] sm:$0xf]
  %v386 = vld [vmem:[%s0 + $0x560] sm:$0xf]
  %v387 = vld [vmem:[%s0 + $0x564] sm:$0xf]
  %v388 = vld [vmem:[%s0 + $0x568] sm:$0xf]
  %v389 = vld [vmem:[%s0 + $0x56c] sm:$0xf]
  %v390 = vld [vmem:[%s0 + $0x570] sm:$0xf]
  %v391 = vld [vmem:[%s0 + $0x574] sm:$0xf]
  %v392 = vld [vmem:[%s0 + $0x578] sm:$0xf]
  %v393 = vld [vmem:[%s0 + $0x57c] sm:$0xf]
  %v394 = vld [vmem:[%s0 + $0x580] sm:$0xf]
  %v395 = vld [vmem:[%s0 + $0x584] sm:$0xf]
  %v396 = vld [vmem:[%s0 + $0x588] sm:$0xf]
  %v397 = vld [vmem:[%s0 + $0x58c] sm:$0xf]
  %v398 = vld [vmem:[%s0 + $0x590] sm:$0xf]
  %v399 = vld [vmem:[%s0 + $0x594] sm:$0xf]
  %v400 = vld [vmem:[%s0 + $0x598] sm:$0xf]
  %v401 = vld [vmem:[%s0 + $0x59c] sm:$0xf]
  %v402 = vld [vmem:[%s0 + $0x5a0] sm:$0xf]
  %v403 = vld [vmem:[%s0 + $0x5a4] sm:$0xf]
  %v404 = vld [vmem:[%s0 + $0x5a8] sm:$0xf]
  %v405 = vld [vmem:[%s0 + $0x5ac] sm:$0xf]
  %v406 = vld [vmem:[%s0 + $0x5b0] sm:$0xf]
  %v407 = vld [vmem:[%s0 + $0x5b4] sm:$0xf]
  %v408 = vld [vmem:[%s0 + $0x5b8] sm:$0xf]
  %v409 = vld [vmem:[%s0 + $0x5bc] sm:$0xf]
  %v410 = vld [vmem:[%s0 + $0x5c0] sm:$0xf]
  %v411 = vld [vmem:[%s0 + $0x5c4] sm:$0xf]
  %v412 = vld [vmem:[%s0 + $0x5c8] sm:$0xf]
  %v413 = vld [vmem:[%s0 + $0x5cc] sm:$0xf]
  %v414 = vld [vmem:[%s0 + $0x5d0] sm:$0xf]
  %v415 = vld [vmem:[%s0 + $0x5d4] sm:$0xf]
  %v416 = vld [vmem:[%s0 + $0x5d8] sm:$0xf]
  %v417 = vld [vmem:[%s0 + $0x5dc] sm:$0xf]
  %v418 = vld [vmem:[%s0 + $0x5e0] sm:$0xf]
  %v419 = vld [vmem:[%s0 + $0x5e4] sm:$0xf]
  %v420 = vld [vmem:[%s0 + $0x5e8] sm:$0xf]
  %v421 = vld [vmem:[%s0 + $0x5ec] sm:$0xf]
  %v422 = vld [vmem:[%s0 + $0x5f0] sm:$0xf]
  %v423 = vld [vmem:[%s0 + $0x5f4] sm:$0xf]
  %v424 = vld [vmem:[%s0 + $0x5f8] sm:$0xf]
  %v425 = vld [vmem:[%s0 + $0x5fc] sm:$0xf]
  %v426 = vld [vmem:[%s0 + $0x600] sm:$0xf]
  %v427 = vld [vmem:[%s0 + $0x604] sm:$0xf]
  %v428 = vld [vmem:[%s0 + $0x608] sm:$0xf]
  %v429 = vld [vmem:[%s0 + $0x60c] sm:$0xf]
  %v430 = vld [vmem:[%s0 + $0x610] sm:$0xf]
  %v431 = vld [vmem:[%s0 + $0x614] sm:$0xf]
  %v432 = vld [vmem:[%s0 + $0x618] sm:$0xf]
  %v433 = vld [vmem:[%s0 + $0x61c] sm:$0xf]
  %v434 = vld [vmem:[%s0 + $0x620] sm:$0xf]
  %v435 = vld [vmem:[%s0 + $0x624] sm:$0xf]
  %v436 = vld [vmem:[%s0 + $0x628] sm:$0xf]
  %v437 = vld [vmem:[%s0 + $0x62c] sm:$0xf]
  %v438 = vld [vmem:[%s0 + $0x630] sm:$0xf]
  %v439 = vld [vmem:[%s0 + $0x634] sm:$0xf]
  %v440 = vld [vmem:[%s0 + $0x638] sm:$0xf]
  %v441 = vld [vmem:[%s0 + $0x63c] sm:$0xf]
  %v442 = vld [vmem:[%s0 + $0x640] sm:$0xf]
  %v443 = vld [vmem:[%s0 + $0x644] sm:$0xf]
  %v444 = vld [vmem:[%s0 + $0x648] sm:$0xf]
  %v445 = vld [vmem:[%s0 + $0x64c] sm:$0xf]
  %v446 = vld [vmem:[%s0 + $0x650] sm:$0xf]
  %v447 = vld [vmem:[%s0 + $0x654] sm:$0xf]
  %v448 = vld [vmem:[%s0 + $0x658] sm:$0xf]
  %v449 = vld [vmem:[%s0 + $0x65c] sm:$0xf]
  %v450 = vld [vmem:[%s0 + $0x660] sm:$0xf]
  %v451 = vld [vmem:[%s0 + $0x664] sm:$0xf]
  %v452 = vld [vmem:[%s0 + $0x668] sm:$0xf]
  %v453 = vld [vmem:[%s0 + $0x66c] sm:$0xf]
  %v454 = vld [vmem:[%s0 + $0x670] sm:$0xf]
  %v455 = vld [vmem:[%s0 + $0x674] sm:$0xf]
  %v456 = vld [vmem:[%s0 + $0x678] sm:$0xf]
  %v457 = vld [vmem:[%s0 + $0x67c] sm:$0xf]
  %v458 = vld [vmem:[%s0 + $0x680] sm:$0xf]
  %v459 = vld [vmem:[%s0 + $0x684] sm:$0xf]
  %v460 = vld [vmem:[%s0 + $0x688] sm:$0xf]
  %v461 = vld [vmem:[%s0 + $0x68c] sm:$0xf]
  %v462 = vld [vmem:[%s0 + $0x690] sm:$0xf]
  %v463 = vld [vmem:[%s0 + $0x694] sm:$0xf]
  %v464 = vld [vmem:[%s0 + $0x698] sm:$0xf]
  %v465 = vld [vmem:[%s0 + $0x69c] sm:$0xf]
  %v466 = vld [vmem:[%s0 + $0x6a0] sm:$0xf]
  %v467 = vld [vmem:[%s0 + $0x6a4] sm:$0xf]
  %v468 = vld [vmem:[%s0 + $0x6a8] sm:$0xf]
  %v469 = vld [vmem:[%s0 + $0x6ac] sm:$0xf]
  %v470 = vld [vmem:[%s0 + $0x6b0] sm:$0xf]
  %v471 = vld [vmem:[%s0 + $0x6b4] sm:$0xf]
  %v472 = vld [vmem:[%s0 + $0x6b8] sm:$0xf]
  %v473 = vld [vmem:[%s0 + $0x6bc] sm:$0xf]
  %v474 = vld [vmem:[%s0 + $0x6c0] sm:$0xf]
  %v475 = vld [vmem:[%s0 + $0x6c4] sm:$0xf]
  %v476 = vld [vmem:[%s0 + $0x6c8] sm:$0xf]
  %v477 = vld [vmem:[%s0 + $0x6cc] sm:$0xf]
  %v478 = vld [vmem:[%s0 + $0x6d0] sm:$0xf]
  %v479 = vld [vmem:[%s0 + $0x6d4] sm:$0xf]
  %v480 = vld [vmem:[%s0 + $0x6d8] sm:$0xf]
  %v481 = vld [vmem:[%s0 + $0x6dc] sm:$0xf]
  %v482 = vld [vmem:[%s0 + $0x6e0] sm:$0xf]
  %v483 = vld [vmem:[%s0 + $0x6e4] sm:$0xf]
  %v484 = vld [vmem:[%s0 + $0x6e8] sm:$0xf]
  %v485 = vld [vmem:[%s0 + $0x6ec] sm:$0xf]
  %v486 = vld [vmem:[%s0 + $0x6f0] sm:$0xf]
  %v487 = vld [vmem:[%s0 + $0x6f4] sm:$0xf]
  %v488 = vld [vmem:[%s0 + $0x6f8] sm:$0xf]
  %v489 = vld [vmem:[%s0 + $0x6fc] sm:$0xf]
  %v490 = vld [vmem:[%s0 + $0x700] sm:$0xf]
  %v491 = vld [vmem:[%s0 + $0x704] sm:$0xf]
  %v492 = vld [vmem:[%s0 + $0x708] sm:$0xf]
  %v493 = vld [vmem:[%s0 + $0x70c] sm:$0xf]
  %v494 = vld [vmem:[%s0 + $0x710] sm:$0xf]
  %v495 = vld [vmem:[%s0 + $0x714] sm:$0xf]
  %v496 = vld [vmem:[%s0 + $0x718] sm:$0xf]
  %v497 = vld [vmem:[%s0 + $0x71c] sm:$0xf]
  %v498 = vld [vmem:[%s0 + $0x720] sm:$0xf]
  %v499 = vld [vmem:[%s0 + $0x724] sm:$0xf]
  %v500 = vld [vmem:[%s0 + $0x728] sm:$0xf]
  %v501 = vld [vmem:[%s0 + $0x72c] sm:$0xf]
  %v502 = vld [vmem:[%s0 + $0x730] sm:$0xf]
  %v503 = vld [vmem:[%s0 + $0x734] sm:$0xf]
  %v504 = vld [vmem:[%s0 + $0x738] sm:$0xf]
  %v505 = vld [vmem:[%s0 + $0x73c] sm:$0xf]
  %v506 = vld [vmem:[%s0 + $0x740] sm:$0xf]
  %v507 = vld [vmem:[%s0 + $0x744] sm:$0xf]
  %v508 = vld [vmem:[%s0 + $0x748] sm:$0xf]
  %v509 = vld [vmem:[%s0 + $0x74c] sm:$0xf]
  %v510 = vld [vmem:[%s0 + $0x750] sm:$0xf]
  %v511 = vld [vmem:[%s0 + $0x754] sm:$0xf]
  %v512 = vld [vmem:[%s0 + $0x758] sm:$0xf]
  %v513 = vld [vmem:[%s0 + $0x75c] sm:$0xf]
  %v514 = vld [vmem:[%s0 + $0x760] sm:$0xf]
  %v515 = vld [vmem:[%s0 + $0x764] sm:$0xf]
  %v516 = vld [vmem:[%s0 + $0x768] sm:$0xf]
  %v517 = vld [vmem:[%s0 + $0x76c] sm:$0xf]
  %v518 = vld [vmem:[%s0 + $0x770] sm:$0xf]
  %v519 = vld [vmem:[%s0 + $0x774] sm:$0xf]
  %v520 = vld [vmem:[%s0 + $0x778] sm:$0xf]
  %v521 = vld [vmem:[%s0 + $0x77c] sm:$0xf]
  %v522 = vld [vmem:[%s0 + $0x780] sm:$0xf]
  %v523 = vld [vmem:[%s0 + $0x784] sm:$0xf]
  %v524 = vld [vmem:[%s0 + $0x788] sm:$0xf]
  %v525 = vld [vmem:[%s0 + $0x78c] sm:$0xf]
  %v526 = vld [vmem:[%s0 + $0x790] sm:$0xf]
  %v527 = vld [vmem:[%s0 + $0x794] sm:$0xf]
  %v528 = vld [vmem:[%s0 + $0x798] sm:$0xf]
  %v529 = vld [vmem:[%s0 + $0x79c] sm:$0xf]
  %v530 = vld [vmem:[%s0 + $0x7a0] sm:$0xf]
  %v531 = vld [vmem:[%s0 + $0x7a4] sm:$0xf]
  %v532 = vld [vmem:[%s0 + $0x7a8] sm:$0xf]
  %v533 = vld [vmem:[%s0 + $0x7ac] sm:$0xf]
  %v534 = vld [vmem:[%s0 + $0x7b0] sm:$0xf]
  %v535 = vld [vmem:[%s0 + $0x7b4] sm:$0xf]
  %v536 = vld [vmem:[%s0 + $0x7b8] sm:$0xf]
  %v537 = vld [vmem:[%s0 + $0x7bc] sm:$0xf]
  %v538 = vld [vmem:[%s0 + $0x7c0] sm:$0xf]
  %v539 = vld [vmem:[%s0 + $0x7c4] sm:$0xf]
  %v540 = vld [vmem:[%s0 + $0x7c8] sm:$0xf]
  %v541 = vld [vmem:[%s0 + $0x7cc] sm:$0xf]
  %v542 = vld [vmem:[%s0 + $0x7d0] sm:$0xf]
  %v543 = vld [vmem:[%s0 + $0x7d4] sm:$0xf]
  %v544 = vld [vmem:[%s0 + $0x7d8] sm:$0xf]
  %v545 = vld [vmem:[%s0 + $0x7dc] sm:$0xf]
  %v546 = vld [vmem:[%s0 + $0x7e0] sm:$0xf]
  %v547 = vld [vmem:[%s0 + $0x7e4] sm:$0xf]
  %v548 = vld [vmem:[%s0 + $0x7e8] sm:$0xf]
  %v549 = vld [vmem:[%s0 + $0x7ec] sm:$0xf]
  %v550 = vld [vmem:[%s0 + $0x7f0] sm:$0xf]
  %v551 = vld [vmem:[%s0 + $0x7f4] sm:$0xf]
  %v552 = vld [vmem:[%s0 + $0x7f8] sm:$0xf]
  %v553 = vld [vmem:[%s0 + $0x7fc] sm:$0xf]
  %v554 = vld [vmem:[%s1] sm:$0xf]
  %v555 = vld [vmem:[%s1 + $0x4] sm:$0xf]
  %v556 = vld [vmem:[%s1 + $0x8] sm:$0xf]
  %v557 = vld [vmem:[%s1 + $0xc] sm:$0x3]
  %v558 = vld [vmem:[%s2] sm:$0x1]
  %v560 = vlaneseq
  %v561 = vshrl.u32 %v560, 7
  %v562 = vsub.s32 0, %v561
  %v563 = vrot.slane %v558, %v562
  %v1077 = vunpack.c.l.b16 %v42
  %v1078 = vunpack.c.l.b16 %v43
  %v1079 = vunpack.c.l.b16 %v44
  %v1080 = vunpack.c.l.b16 %v45
  %v1081 = vunpack.c.l.b16 %v46
  %v1082 = vunpack.c.l.b16 %v47
  %v1083 = vunpack.c.l.b16 %v48
  %v1084 = vunpack.c.l.b16 %v49
  %v1085 = vunpack.c.l.b16 %v50
  %v1086 = vunpack.c.l.b16 %v51
  %v1087 = vunpack.c.l.b16 %v52
  %v1088 = vunpack.c.l.b16 %v53
  %v1089 = vunpack.c.l.b16 %v54
  %v1090 = vunpack.c.l.b16 %v55
  %v1091 = vunpack.c.l.b16 %v56
  %v1092 = vunpack.c.l.b16 %v57
  %v1093 = vunpack.c.l.b16 %v58
  %v1094 = vunpack.c.l.b16 %v59
  %v1095 = vunpack.c.l.b16 %v60
  %v1096 = vunpack.c.l.b16 %v61
  %v1097 = vunpack.c.l.b16 %v62
  %v1098 = vunpack.c.l.b16 %v63
  %v1099 = vunpack.c.l.b16 %v64
  %v1100 = vunpack.c.l.b16 %v65
  %v1101 = vunpack.c.l.b16 %v66
  %v1102 = vunpack.c.l.b16 %v67
  %v1103 = vunpack.c.l.b16 %v68
  %v1104 = vunpack.c.l.b16 %v69
  %v1105 = vunpack.c.l.b16 %v70
  %v1106 = vunpack.c.l.b16 %v71
  %v1107 = vunpack.c.l.b16 %v72
  %v1108 = vunpack.c.l.b16 %v73
  %v1109 = vunpack.c.l.b16 %v74
  %v1110 = vunpack.c.l.b16 %v75
  %v1111 = vunpack.c.l.b16 %v76
  %v1112 = vunpack.c.l.b16 %v77
  %v1113 = vunpack.c.l.b16 %v78
  %v1114 = vunpack.c.l.b16 %v79
  %v1115 = vunpack.c.l.b16 %v80
  %v1116 = vunpack.c.l.b16 %v81
  %v1117 = vunpack.c.l.b16 %v82
  %v1118 = vunpack.c.l.b16 %v83
  %v1119 = vunpack.c.l.b16 %v84
  %v1120 = vunpack.c.l.b16 %v85
  %v1121 = vunpack.c.l.b16 %v86
  %v1122 = vunpack.c.l.b16 %v87
  %v1123 = vunpack.c.l.b16 %v88
  %v1124 = vunpack.c.l.b16 %v89
  %v1125 = vunpack.c.l.b16 %v90
  %v1126 = vunpack.c.l.b16 %v91
  %v1127 = vunpack.c.l.b16 %v92
  %v1128 = vunpack.c.l.b16 %v93
  %v1129 = vunpack.c.l.b16 %v94
  %v1130 = vunpack.c.l.b16 %v95
  %v1131 = vunpack.c.l.b16 %v96
  %v1132 = vunpack.c.l.b16 %v97
  %v1133 = vunpack.c.l.b16 %v98
  %v1134 = vunpack.c.l.b16 %v99
  %v1135 = vunpack.c.l.b16 %v100
  %v1136 = vunpack.c.l.b16 %v101
  %v1137 = vunpack.c.l.b16 %v102
  %v1138 = vunpack.c.l.b16 %v103
  %v1139 = vunpack.c.l.b16 %v104
  %v1140 = vunpack.c.l.b16 %v105
  %v1141 = vunpack.c.l.b16 %v106
  %v1142 = vunpack.c.l.b16 %v107
  %v1143 = vunpack.c.l.b16 %v108
  %v1144 = vunpack.c.l.b16 %v109
  %v1145 = vunpack.c.l.b16 %v110
  %v1146 = vunpack.c.l.b16 %v111
  %v1147 = vunpack.c.l.b16 %v112
  %v1148 = vunpack.c.l.b16 %v113
  %v1149 = vunpack.c.l.b16 %v114
  %v1150 = vunpack.c.l.b16 %v115
  %v1151 = vunpack.c.l.b16 %v116
  %v1152 = vunpack.c.l.b16 %v117
  %v1153 = vunpack.c.l.b16 %v118
  %v1154 = vunpack.c.l.b16 %v119
  %v1155 = vunpack.c.l.b16 %v120
  %v1156 = vunpack.c.l.b16 %v121
  %v1157 = vunpack.c.l.b16 %v122
  %v1158 = vunpack.c.l.b16 %v123
  %v1159 = vunpack.c.l.b16 %v124
  %v1160 = vunpack.c.l.b16 %v125
  %v1161 = vunpack.c.l.b16 %v126
  %v1162 = vunpack.c.l.b16 %v127
  %v1163 = vunpack.c.l.b16 %v128
  %v1164 = vunpack.c.l.b16 %v129
  %v1165 = vunpack.c.l.b16 %v130
  %v1166 = vunpack.c.l.b16 %v131
  %v1167 = vunpack.c.l.b16 %v132
  %v1168 = vunpack.c.l.b16 %v133
  %v1169 = vunpack.c.l.b16 %v134
  %v1170 = vunpack.c.l.b16 %v135
  %v1171 = vunpack.c.l.b16 %v136
  %v1172 = vunpack.c.l.b16 %v137
  %v1173 = vunpack.c.l.b16 %v138
  %v1174 = vunpack.c.l.b16 %v139
  %v1175 = vunpack.c.l.b16 %v140
  %v1176 = vunpack.c.l.b16 %v141
  %v1177 = vunpack.c.l.b16 %v142
  %v1178 = vunpack.c.l.b16 %v143
  %v1179 = vunpack.c.l.b16 %v144
  %v1180 = vunpack.c.l.b16 %v145
  %v1181 = vunpack.c.l.b16 %v146
  %v1182 = vunpack.c.l.b16 %v147
  %v1183 = vunpack.c.l.b16 %v148
  %v1184 = vunpack.c.l.b16 %v149
  %v1185 = vunpack.c.l.b16 %v150
  %v1186 = vunpack.c.l.b16 %v151
  %v1187 = vunpack.c.l.b16 %v152
  %v1188 = vunpack.c.l.b16 %v153
  %v1189 = vunpack.c.l.b16 %v154
  %v1190 = vunpack.c.l.b16 %v155
  %v1191 = vunpack.c.l.b16 %v156
  %v1192 = vunpack.c.l.b16 %v157
  %v1193 = vunpack.c.l.b16 %v158
  %v1194 = vunpack.c.l.b16 %v159
  %v1195 = vunpack.c.l.b16 %v160
  %v1196 = vunpack.c.l.b16 %v161
  %v1197 = vunpack.c.l.b16 %v162
  %v1198 = vunpack.c.l.b16 %v163
  %v1199 = vunpack.c.l.b16 %v164
  %v1200 = vunpack.c.l.b16 %v165
  %v1201 = vunpack.c.l.b16 %v166
  %v1202 = vunpack.c.l.b16 %v167
  %v1203 = vunpack.c.l.b16 %v168
  %v1204 = vunpack.c.l.b16 %v169
  %v1205 = vunpack.c.l.b16 %v170
  %v1206 = vunpack.c.l.b16 %v171
  %v1207 = vunpack.c.l.b16 %v172
  %v1208 = vunpack.c.l.b16 %v173
  %v1209 = vunpack.c.l.b16 %v174
  %v1210 = vunpack.c.l.b16 %v175
  %v1211 = vunpack.c.l.b16 %v176
  %v1212 = vunpack.c.l.b16 %v177
  %v1213 = vunpack.c.l.b16 %v178
  %v1214 = vunpack.c.l.b16 %v179
  %v1215 = vunpack.c.l.b16 %v180
  %v1216 = vunpack.c.l.b16 %v181
  %v1217 = vunpack.c.l.b16 %v182
  %v1218 = vunpack.c.l.b16 %v183
  %v1219 = vunpack.c.l.b16 %v184
  %v1220 = vunpack.c.l.b16 %v185
  %v1221 = vunpack.c.l.b16 %v186
  %v1222 = vunpack.c.l.b16 %v187
  %v1223 = vunpack.c.l.b16 %v188
  %v1224 = vunpack.c.l.b16 %v189
  %v1225 = vunpack.c.l.b16 %v190
  %v1226 = vunpack.c.l.b16 %v191
  %v1227 = vunpack.c.l.b16 %v192
  %v1228 = vunpack.c.l.b16 %v193
  %v1229 = vunpack.c.l.b16 %v194
  %v1230 = vunpack.c.l.b16 %v195
  %v1231 = vunpack.c.l.b16 %v196
  %v1232 = vunpack.c.l.b16 %v197
  %v1233 = vunpack.c.l.b16 %v198
  %v1234 = vunpack.c.l.b16 %v199
  %v1235 = vunpack.c.l.b16 %v200
  %v1236 = vunpack.c.l.b16 %v201
  %v1237 = vunpack.c.l.b16 %v202
  %v1238 = vunpack.c.l.b16 %v203
  %v1239 = vunpack.c.l.b16 %v204
  %v1240 = vunpack.c.l.b16 %v205
  %v1241 = vunpack.c.l.b16 %v206
  %v1242 = vunpack.c.l.b16 %v207
  %v1243 = vunpack.c.l.b16 %v208
  %v1244 = vunpack.c.l.b16 %v209
  %v1245 = vunpack.c.l.b16 %v210
  %v1246 = vunpack.c.l.b16 %v211
  %v1247 = vunpack.c.l.b16 %v212
  %v1248 = vunpack.c.l.b16 %v213
  %v1249 = vunpack.c.l.b16 %v214
  %v1250 = vunpack.c.l.b16 %v215
  %v1251 = vunpack.c.l.b16 %v216
  %v1252 = vunpack.c.l.b16 %v217
  %v1253 = vunpack.c.l.b16 %v218
  %v1254 = vunpack.c.l.b16 %v219
  %v1255 = vunpack.c.l.b16 %v220
  %v1256 = vunpack.c.l.b16 %v221
  %v1257 = vunpack.c.l.b16 %v222
  %v1258 = vunpack.c.l.b16 %v223
  %v1259 = vunpack.c.l.b16 %v224
  %v1260 = vunpack.c.l.b16 %v225
  %v1261 = vunpack.c.l.b16 %v226
  %v1262 = vunpack.c.l.b16 %v227
  %v1263 = vunpack.c.l.b16 %v228
  %v1264 = vunpack.c.l.b16 %v229
  %v1265 = vunpack.c.l.b16 %v230
  %v1266 = vunpack.c.l.b16 %v231
  %v1267 = vunpack.c.l.b16 %v232
  %v1268 = vunpack.c.l.b16 %v233
  %v1269 = vunpack.c.l.b16 %v234
  %v1270 = vunpack.c.l.b16 %v235
  %v1271 = vunpack.c.l.b16 %v236
  %v1272 = vunpack.c.l.b16 %v237
  %v1273 = vunpack.c.l.b16 %v238
  %v1274 = vunpack.c.l.b16 %v239
  %v1275 = vunpack.c.l.b16 %v240
  %v1276 = vunpack.c.l.b16 %v241
  %v1277 = vunpack.c.l.b16 %v242
  %v1278 = vunpack.c.l.b16 %v243
  %v1279 = vunpack.c.l.b16 %v244
  %v1280 = vunpack.c.l.b16 %v245
  %v1281 = vunpack.c.l.b16 %v246
  %v1282 = vunpack.c.l.b16 %v247
  %v1283 = vunpack.c.l.b16 %v248
  %v1284 = vunpack.c.l.b16 %v249
  %v1285 = vunpack.c.l.b16 %v250
  %v1286 = vunpack.c.l.b16 %v251
  %v1287 = vunpack.c.l.b16 %v252
  %v1288 = vunpack.c.l.b16 %v253
  %v1289 = vunpack.c.l.b16 %v254
  %v1290 = vunpack.c.l.b16 %v255
  %v1291 = vunpack.c.l.b16 %v256
  %v1292 = vunpack.c.l.b16 %v257
  %v1293 = vunpack.c.l.b16 %v258
  %v1294 = vunpack.c.l.b16 %v259
  %v1295 = vunpack.c.l.b16 %v260
  %v1296 = vunpack.c.l.b16 %v261
  %v1297 = vunpack.c.l.b16 %v262
  %v1298 = vunpack.c.l.b16 %v263
  %v1299 = vunpack.c.l.b16 %v264
  %v1300 = vunpack.c.l.b16 %v265
  %v1301 = vunpack.c.l.b16 %v266
  %v1302 = vunpack.c.l.b16 %v267
  %v1303 = vunpack.c.l.b16 %v268
  %v1304 = vunpack.c.l.b16 %v269
  %v1305 = vunpack.c.l.b16 %v270
  %v1306 = vunpack.c.l.b16 %v271
  %v1307 = vunpack.c.l.b16 %v272
  %v1308 = vunpack.c.l.b16 %v273
  %v1309 = vunpack.c.l.b16 %v274
  %v1310 = vunpack.c.l.b16 %v275
  %v1311 = vunpack.c.l.b16 %v276
  %v1312 = vunpack.c.l.b16 %v277
  %v1313 = vunpack.c.l.b16 %v278
  %v1314 = vunpack.c.l.b16 %v279
  %v1315 = vunpack.c.l.b16 %v280
  %v1316 = vunpack.c.l.b16 %v281
  %v1317 = vunpack.c.l.b16 %v282
  %v1318 = vunpack.c.l.b16 %v283
  %v1319 = vunpack.c.l.b16 %v284
  %v1320 = vunpack.c.l.b16 %v285
  %v1321 = vunpack.c.l.b16 %v286
  %v1322 = vunpack.c.l.b16 %v287
  %v1323 = vunpack.c.l.b16 %v288
  %v1324 = vunpack.c.l.b16 %v289
  %v1325 = vunpack.c.l.b16 %v290
  %v1326 = vunpack.c.l.b16 %v291
  %v1327 = vunpack.c.l.b16 %v292
  %v1328 = vunpack.c.l.b16 %v293
  %v1329 = vunpack.c.l.b16 %v294
  %v1330 = vunpack.c.l.b16 %v295
  %v1331 = vunpack.c.l.b16 %v296
  %v1332 = vunpack.c.l.b16 %v297
  %v1333 = vunpack.c.l.b16 %v298
  %v1334 = vunpack.c.l.b16 %v299
  %v1335 = vunpack.c.l.b16 %v300
  %v1336 = vunpack.c.l.b16 %v301
  %v1337 = vunpack.c.l.b16 %v302
  %v1338 = vunpack.c.l.b16 %v303
  %v1339 = vunpack.c.l.b16 %v304
  %v1340 = vunpack.c.l.b16 %v305
  %v1341 = vunpack.c.l.b16 %v306
  %v1342 = vunpack.c.l.b16 %v307
  %v1343 = vunpack.c.l.b16 %v308
  %v1344 = vunpack.c.l.b16 %v309
  %v1345 = vunpack.c.l.b16 %v310
  %v1346 = vunpack.c.l.b16 %v311
  %v1347 = vunpack.c.l.b16 %v312
  %v1348 = vunpack.c.l.b16 %v313
  %v1349 = vunpack.c.l.b16 %v314
  %v1350 = vunpack.c.l.b16 %v315
  %v1351 = vunpack.c.l.b16 %v316
  %v1352 = vunpack.c.l.b16 %v317
  %v1353 = vunpack.c.l.b16 %v318
  %v1354 = vunpack.c.l.b16 %v319
  %v1355 = vunpack.c.l.b16 %v320
  %v1356 = vunpack.c.l.b16 %v321
  %v1357 = vunpack.c.l.b16 %v322
  %v1358 = vunpack.c.l.b16 %v323
  %v1359 = vunpack.c.l.b16 %v324
  %v1360 = vunpack.c.l.b16 %v325
  %v1361 = vunpack.c.l.b16 %v326
  %v1362 = vunpack.c.l.b16 %v327
  %v1363 = vunpack.c.l.b16 %v328
  %v1364 = vunpack.c.l.b16 %v329
  %v1365 = vunpack.c.l.b16 %v330
  %v1366 = vunpack.c.l.b16 %v331
  %v1367 = vunpack.c.l.b16 %v332
  %v1368 = vunpack.c.l.b16 %v333
  %v1369 = vunpack.c.l.b16 %v334
  %v1370 = vunpack.c.l.b16 %v335
  %v1371 = vunpack.c.l.b16 %v336
  %v1372 = vunpack.c.l.b16 %v337
  %v1373 = vunpack.c.l.b16 %v338
  %v1374 = vunpack.c.l.b16 %v339
  %v1375 = vunpack.c.l.b16 %v340
  %v1376 = vunpack.c.l.b16 %v341
  %v1377 = vunpack.c.l.b16 %v342
  %v1378 = vunpack.c.l.b16 %v343
  %v1379 = vunpack.c.l.b16 %v344
  %v1380 = vunpack.c.l.b16 %v345
  %v1381 = vunpack.c.l.b16 %v346
  %v1382 = vunpack.c.l.b16 %v347
  %v1383 = vunpack.c.l.b16 %v348
  %v1384 = vunpack.c.l.b16 %v349
  %v1385 = vunpack.c.l.b16 %v350
  %v1386 = vunpack.c.l.b16 %v351
  %v1387 = vunpack.c.l.b16 %v352
  %v1388 = vunpack.c.l.b16 %v353
  %v1389 = vunpack.c.l.b16 %v354
  %v1390 = vunpack.c.l.b16 %v355
  %v1391 = vunpack.c.l.b16 %v356
  %v1392 = vunpack.c.l.b16 %v357
  %v1393 = vunpack.c.l.b16 %v358
  %v1394 = vunpack.c.l.b16 %v359
  %v1395 = vunpack.c.l.b16 %v360
  %v1396 = vunpack.c.l.b16 %v361
  %v1397 = vunpack.c.l.b16 %v362
  %v1398 = vunpack.c.l.b16 %v363
  %v1399 = vunpack.c.l.b16 %v364
  %v1400 = vunpack.c.l.b16 %v365
  %v1401 = vunpack.c.l.b16 %v366
  %v1402 = vunpack.c.l.b16 %v367
  %v1403 = vunpack.c.l.b16 %v368
  %v1404 = vunpack.c.l.b16 %v369
  %v1405 = vunpack.c.l.b16 %v370
  %v1406 = vunpack.c.l.b16 %v371
  %v1407 = vunpack.c.l.b16 %v372
  %v1408 = vunpack.c.l.b16 %v373
  %v1409 = vunpack.c.l.b16 %v374
  %v1410 = vunpack.c.l.b16 %v375
  %v1411 = vunpack.c.l.b16 %v376
  %v1412 = vunpack.c.l.b16 %v377
  %v1413 = vunpack.c.l.b16 %v378
  %v1414 = vunpack.c.l.b16 %v379
  %v1415 = vunpack.c.l.b16 %v380
  %v1416 = vunpack.c.l.b16 %v381
  %v1417 = vunpack.c.l.b16 %v382
  %v1418 = vunpack.c.l.b16 %v383
  %v1419 = vunpack.c.l.b16 %v384
  %v1420 = vunpack.c.l.b16 %v385
  %v1421 = vunpack.c.l.b16 %v386
  %v1422 = vunpack.c.l.b16 %v387
  %v1423 = vunpack.c.l.b16 %v388
  %v1424 = vunpack.c.l.b16 %v389
  %v1425 = vunpack.c.l.b16 %v390
  %v1426 = vunpack.c.l.b16 %v391
  %v1427 = vunpack.c.l.b16 %v392
  %v1428 = vunpack.c.l.b16 %v393
  %v1429 = vunpack.c.l.b16 %v394
  %v1430 = vunpack.c.l.b16 %v395
  %v1431 = vunpack.c.l.b16 %v396
  %v1432 = vunpack.c.l.b16 %v397
  %v1433 = vunpack.c.l.b16 %v398
  %v1434 = vunpack.c.l.b16 %v399
  %v1435 = vunpack.c.l.b16 %v400
  %v1436 = vunpack.c.l.b16 %v401
  %v1437 = vunpack.c.l.b16 %v402
  %v1438 = vunpack.c.l.b16 %v403
  %v1439 = vunpack.c.l.b16 %v404
  %v1440 = vunpack.c.l.b16 %v405
  %v1441 = vunpack.c.l.b16 %v406
  %v1442 = vunpack.c.l.b16 %v407
  %v1443 = vunpack.c.l.b16 %v408
  %v1444 = vunpack.c.l.b16 %v409
  %v1445 = vunpack.c.l.b16 %v410
  %v1446 = vunpack.c.l.b16 %v411
  %v1447 = vunpack.c.l.b16 %v412
  %v1448 = vunpack.c.l.b16 %v413
  %v1449 = vunpack.c.l.b16 %v414
  %v1450 = vunpack.c.l.b16 %v415
  %v1451 = vunpack.c.l.b16 %v416
  %v1452 = vunpack.c.l.b16 %v417
  %v1453 = vunpack.c.l.b16 %v418
  %v1454 = vunpack.c.l.b16 %v419
  %v1455 = vunpack.c.l.b16 %v420
  %v1456 = vunpack.c.l.b16 %v421
  %v1457 = vunpack.c.l.b16 %v422
  %v1458 = vunpack.c.l.b16 %v423
  %v1459 = vunpack.c.l.b16 %v424
  %v1460 = vunpack.c.l.b16 %v425
  %v1461 = vunpack.c.l.b16 %v426
  %v1462 = vunpack.c.l.b16 %v427
  %v1463 = vunpack.c.l.b16 %v428
  %v1464 = vunpack.c.l.b16 %v429
  %v1465 = vunpack.c.l.b16 %v430
  %v1466 = vunpack.c.l.b16 %v431
  %v1467 = vunpack.c.l.b16 %v432
  %v1468 = vunpack.c.l.b16 %v433
  %v1469 = vunpack.c.l.b16 %v434
  %v1470 = vunpack.c.l.b16 %v435
  %v1471 = vunpack.c.l.b16 %v436
  %v1472 = vunpack.c.l.b16 %v437
  %v1473 = vunpack.c.l.b16 %v438
  %v1474 = vunpack.c.l.b16 %v439
  %v1475 = vunpack.c.l.b16 %v440
  %v1476 = vunpack.c.l.b16 %v441
  %v1477 = vunpack.c.l.b16 %v442
  %v1478 = vunpack.c.l.b16 %v443
  %v1479 = vunpack.c.l.b16 %v444
  %v1480 = vunpack.c.l.b16 %v445
  %v1481 = vunpack.c.l.b16 %v446
  %v1482 = vunpack.c.l.b16 %v447
  %v1483 = vunpack.c.l.b16 %v448
  %v1484 = vunpack.c.l.b16 %v449
  %v1485 = vunpack.c.l.b16 %v450
  %v1486 = vunpack.c.l.b16 %v451
  %v1487 = vunpack.c.l.b16 %v452
  %v1488 = vunpack.c.l.b16 %v453
  %v1489 = vunpack.c.l.b16 %v454
  %v1490 = vunpack.c.l.b16 %v455
  %v1491 = vunpack.c.l.b16 %v456
  %v1492 = vunpack.c.l.b16 %v457
  %v1493 = vunpack.c.l.b16 %v458
  %v1494 = vunpack.c.l.b16 %v459
  %v1495 = vunpack.c.l.b16 %v460
  %v1496 = vunpack.c.l.b16 %v461
  %v1497 = vunpack.c.l.b16 %v462
  %v1498 = vunpack.c.l.b16 %v463
  %v1499 = vunpack.c.l.b16 %v464
  %v1500 = vunpack.c.l.b16 %v465
  %v1501 = vunpack.c.l.b16 %v466
  %v1502 = vunpack.c.l.b16 %v467
  %v1503 = vunpack.c.l.b16 %v468
  %v1504 = vunpack.c.l.b16 %v469
  %v1505 = vunpack.c.l.b16 %v470
  %v1506 = vunpack.c.l.b16 %v471
  %v1507 = vunpack.c.l.b16 %v472
  %v1508 = vunpack.c.l.b16 %v473
  %v1509 = vunpack.c.l.b16 %v474
  %v1510 = vunpack.c.l.b16 %v475
  %v1511 = vunpack.c.l.b16 %v476
  %v1512 = vunpack.c.l.b16 %v477
  %v1513 = vunpack.c.l.b16 %v478
  %v1514 = vunpack.c.l.b16 %v479
  %v1515 = vunpack.c.l.b16 %v480
  %v1516 = vunpack.c.l.b16 %v481
  %v1517 = vunpack.c.l.b16 %v482
  %v1518 = vunpack.c.l.b16 %v483
  %v1519 = vunpack.c.l.b16 %v484
  %v1520 = vunpack.c.l.b16 %v485
  %v1521 = vunpack.c.l.b16 %v486
  %v1522 = vunpack.c.l.b16 %v487
  %v1523 = vunpack.c.l.b16 %v488
  %v1524 = vunpack.c.l.b16 %v489
  %v1525 = vunpack.c.l.b16 %v490
  %v1526 = vunpack.c.l.b16 %v491
  %v1527 = vunpack.c.l.b16 %v492
  %v1528 = vunpack.c.l.b16 %v493
  %v1529 = vunpack.c.l.b16 %v494
  %v1530 = vunpack.c.l.b16 %v495
  %v1531 = vunpack.c.l.b16 %v496
  %v1532 = vunpack.c.l.b16 %v497
  %v1533 = vunpack.c.l.b16 %v498
  %v1534 = vunpack.c.l.b16 %v499
  %v1535 = vunpack.c.l.b16 %v500
  %v1536 = vunpack.c.l.b16 %v501
  %v1537 = vunpack.c.l.b16 %v502
  %v1538 = vunpack.c.l.b16 %v503
  %v1539 = vunpack.c.l.b16 %v504
  %v1540 = vunpack.c.l.b16 %v505
  %v1541 = vunpack.c.l.b16 %v506
  %v1542 = vunpack.c.l.b16 %v507
  %v1543 = vunpack.c.l.b16 %v508
  %v1544 = vunpack.c.l.b16 %v509
  %v1545 = vunpack.c.l.b16 %v510
  %v1546 = vunpack.c.l.b16 %v511
  %v1547 = vunpack.c.l.b16 %v512
  %v1548 = vunpack.c.l.b16 %v513
  %v1549 = vunpack.c.l.b16 %v514
  %v1550 = vunpack.c.l.b16 %v515
  %v1551 = vunpack.c.l.b16 %v516
  %v1552 = vunpack.c.l.b16 %v517
  %v1553 = vunpack.c.l.b16 %v518
  %v1554 = vunpack.c.l.b16 %v519
  %v1555 = vunpack.c.l.b16 %v520
  %v1556 = vunpack.c.l.b16 %v521
  %v1557 = vunpack.c.l.b16 %v522
  %v1558 = vunpack.c.l.b16 %v523
  %v1559 = vunpack.c.l.b16 %v524
  %v1560 = vunpack.c.l.b16 %v525
  %v1561 = vunpack.c.l.b16 %v526
  %v1562 = vunpack.c.l.b16 %v527
  %v1563 = vunpack.c.l.b16 %v528
  %v1564 = vunpack.c.l.b16 %v529
  %v1565 = vunpack.c.l.b16 %v530
  %v1566 = vunpack.c.l.b16 %v531
  %v1567 = vunpack.c.l.b16 %v532
  %v1568 = vunpack.c.l.b16 %v533
  %v1569 = vunpack.c.l.b16 %v534
  %v1570 = vunpack.c.l.b16 %v535
  %v1571 = vunpack.c.l.b16 %v536
  %v1572 = vunpack.c.l.b16 %v537
  %v1573 = vunpack.c.l.b16 %v538
  %v1574 = vunpack.c.l.b16 %v539
  %v1575 = vunpack.c.l.b16 %v540
  %v1576 = vunpack.c.l.b16 %v541
  %v1577 = vunpack.c.l.b16 %v542
  %v1578 = vunpack.c.l.b16 %v543
  %v1579 = vunpack.c.l.b16 %v544
  %v1580 = vunpack.c.l.b16 %v545
  %v1581 = vunpack.c.l.b16 %v546
  %v1582 = vunpack.c.l.b16 %v547
  %v1583 = vunpack.c.l.b16 %v548
  %v1584 = vunpack.c.l.b16 %v549
  %v1585 = vunpack.c.l.b16 %v550
  %v1586 = vunpack.c.l.b16 %v551
  %v1587 = vunpack.c.l.b16 %v552
  %v1588 = vunpack.c.l.b16 %v553
  %v1589 = vpack.c.b16 %v1078, %v1077
  %v1590 = vpack.c.b16 %v1080, %v1079
  %v1591 = vpack.c.b16 %v1082, %v1081
  %v1592 = vpack.c.b16 %v1084, %v1083
  %v1593 = vpack.c.b16 %v1086, %v1085
  %v1594 = vpack.c.b16 %v1088, %v1087
  %v1595 = vpack.c.b16 %v1090, %v1089
  %v1596 = vpack.c.b16 %v1092, %v1091
  %v1597 = vpack.c.b16 %v1094, %v1093
  %v1598 = vpack.c.b16 %v1096, %v1095
  %v1599 = vpack.c.b16 %v1098, %v1097
  %v1600 = vpack.c.b16 %v1100, %v1099
  %v1601 = vpack.c.b16 %v1102, %v1101
  %v1602 = vpack.c.b16 %v1104, %v1103
  %v1603 = vpack.c.b16 %v1106, %v1105
  %v1604 = vpack.c.b16 %v1108, %v1107
  %v1605 = vpack.c.b16 %v1110, %v1109
  %v1606 = vpack.c.b16 %v1112, %v1111
  %v1607 = vpack.c.b16 %v1114, %v1113
  %v1608 = vpack.c.b16 %v1116, %v1115
  %v1609 = vpack.c.b16 %v1118, %v1117
  %v1610 = vpack.c.b16 %v1120, %v1119
  %v1611 = vpack.c.b16 %v1122, %v1121
  %v1612 = vpack.c.b16 %v1124, %v1123
  %v1613 = vpack.c.b16 %v1126, %v1125
  %v1614 = vpack.c.b16 %v1128, %v1127
  %v1615 = vpack.c.b16 %v1130, %v1129
  %v1616 = vpack.c.b16 %v1132, %v1131
  %v1617 = vpack.c.b16 %v1134, %v1133
  %v1618 = vpack.c.b16 %v1136, %v1135
  %v1619 = vpack.c.b16 %v1138, %v1137
  %v1620 = vpack.c.b16 %v1140, %v1139
  %v1621 = vpack.c.b16 %v1142, %v1141
  %v1622 = vpack.c.b16 %v1144, %v1143
  %v1623 = vpack.c.b16 %v1146, %v1145
  %v1624 = vpack.c.b16 %v1148, %v1147
  %v1625 = vpack.c.b16 %v1150, %v1149
  %v1626 = vpack.c.b16 %v1152, %v1151
  %v1627 = vpack.c.b16 %v1154, %v1153
  %v1628 = vpack.c.b16 %v1156, %v1155
  %v1629 = vpack.c.b16 %v1158, %v1157
  %v1630 = vpack.c.b16 %v1160, %v1159
  %v1631 = vpack.c.b16 %v1162, %v1161
  %v1632 = vpack.c.b16 %v1164, %v1163
  %v1633 = vpack.c.b16 %v1166, %v1165
  %v1634 = vpack.c.b16 %v1168, %v1167
  %v1635 = vpack.c.b16 %v1170, %v1169
  %v1636 = vpack.c.b16 %v1172, %v1171
  %v1637 = vpack.c.b16 %v1174, %v1173
  %v1638 = vpack.c.b16 %v1176, %v1175
  %v1639 = vpack.c.b16 %v1178, %v1177
  %v1640 = vpack.c.b16 %v1180, %v1179
  %v1641 = vpack.c.b16 %v1182, %v1181
  %v1642 = vpack.c.b16 %v1184, %v1183
  %v1643 = vpack.c.b16 %v1186, %v1185
  %v1644 = vpack.c.b16 %v1188, %v1187
  %v1645 = vpack.c.b16 %v1190, %v1189
  %v1646 = vpack.c.b16 %v1192, %v1191
  %v1647 = vpack.c.b16 %v1194, %v1193
  %v1648 = vpack.c.b16 %v1196, %v1195
  %v1649 = vpack.c.b16 %v1198, %v1197
  %v1650 = vpack.c.b16 %v1200, %v1199
  %v1651 = vpack.c.b16 %v1202, %v1201
  %v1652 = vpack.c.b16 %v1204, %v1203
  %v1653 = vpack.c.b16 %v1206, %v1205
  %v1654 = vpack.c.b16 %v1208, %v1207
  %v1655 = vpack.c.b16 %v1210, %v1209
  %v1656 = vpack.c.b16 %v1212, %v1211
  %v1657 = vpack.c.b16 %v1214, %v1213
  %v1658 = vpack.c.b16 %v1216, %v1215
  %v1659 = vpack.c.b16 %v1218, %v1217
  %v1660 = vpack.c.b16 %v1220, %v1219
  %v1661 = vpack.c.b16 %v1222, %v1221
  %v1662 = vpack.c.b16 %v1224, %v1223
  %v1663 = vpack.c.b16 %v1226, %v1225
  %v1664 = vpack.c.b16 %v1228, %v1227
  %v1665 = vpack.c.b16 %v1230, %v1229
  %v1666 = vpack.c.b16 %v1232, %v1231
  %v1667 = vpack.c.b16 %v1234, %v1233
  %v1668 = vpack.c.b16 %v1236, %v1235
  %v1669 = vpack.c.b16 %v1238, %v1237
  %v1670 = vpack.c.b16 %v1240, %v1239
  %v1671 = vpack.c.b16 %v1242, %v1241
  %v1672 = vpack.c.b16 %v1244, %v1243
  %v1673 = vpack.c.b16 %v1246, %v1245
  %v1674 = vpack.c.b16 %v1248, %v1247
  %v1675 = vpack.c.b16 %v1250, %v1249
  %v1676 = vpack.c.b16 %v1252, %v1251
  %v1677 = vpack.c.b16 %v1254, %v1253
  %v1678 = vpack.c.b16 %v1256, %v1255
  %v1679 = vpack.c.b16 %v1258, %v1257
  %v1680 = vpack.c.b16 %v1260, %v1259
  %v1681 = vpack.c.b16 %v1262, %v1261
  %v1682 = vpack.c.b16 %v1264, %v1263
  %v1683 = vpack.c.b16 %v1266, %v1265
  %v1684 = vpack.c.b16 %v1268, %v1267
  %v1685 = vpack.c.b16 %v1270, %v1269
  %v1686 = vpack.c.b16 %v1272, %v1271
  %v1687 = vpack.c.b16 %v1274, %v1273
  %v1688 = vpack.c.b16 %v1276, %v1275
  %v1689 = vpack.c.b16 %v1278, %v1277
  %v1690 = vpack.c.b16 %v1280, %v1279
  %v1691 = vpack.c.b16 %v1282, %v1281
  %v1692 = vpack.c.b16 %v1284, %v1283
  %v1693 = vpack.c.b16 %v1286, %v1285
  %v1694 = vpack.c.b16 %v1288, %v1287
  %v1695 = vpack.c.b16 %v1290, %v1289
  %v1696 = vpack.c.b16 %v1292, %v1291
  %v1697 = vpack.c.b16 %v1294, %v1293
  %v1698 = vpack.c.b16 %v1296, %v1295
  %v1699 = vpack.c.b16 %v1298, %v1297
  %v1700 = vpack.c.b16 %v1300, %v1299
  %v1701 = vpack.c.b16 %v1302, %v1301
  %v1702 = vpack.c.b16 %v1304, %v1303
  %v1703 = vpack.c.b16 %v1306, %v1305
  %v1704 = vpack.c.b16 %v1308, %v1307
  %v1705 = vpack.c.b16 %v1310, %v1309
  %v1706 = vpack.c.b16 %v1312, %v1311
  %v1707 = vpack.c.b16 %v1314, %v1313
  %v1708 = vpack.c.b16 %v1316, %v1315
  %v1709 = vpack.c.b16 %v1318, %v1317
  %v1710 = vpack.c.b16 %v1320, %v1319
  %v1711 = vpack.c.b16 %v1322, %v1321
  %v1712 = vpack.c.b16 %v1324, %v1323
  %v1713 = vpack.c.b16 %v1326, %v1325
  %v1714 = vpack.c.b16 %v1328, %v1327
  %v1715 = vpack.c.b16 %v1330, %v1329
  %v1716 = vpack.c.b16 %v1332, %v1331
  %v1717 = vpack.c.b16 %v1334, %v1333
  %v1718 = vpack.c.b16 %v1336, %v1335
  %v1719 = vpack.c.b16 %v1338, %v1337
  %v1720 = vpack.c.b16 %v1340, %v1339
  %v1721 = vpack.c.b16 %v1342, %v1341
  %v1722 = vpack.c.b16 %v1344, %v1343
  %v1723 = vpack.c.b16 %v1346, %v1345
  %v1724 = vpack.c.b16 %v1348, %v1347
  %v1725 = vpack.c.b16 %v1350, %v1349
  %v1726 = vpack.c.b16 %v1352, %v1351
  %v1727 = vpack.c.b16 %v1354, %v1353
  %v1728 = vpack.c.b16 %v1356, %v1355
  %v1729 = vpack.c.b16 %v1358, %v1357
  %v1730 = vpack.c.b16 %v1360, %v1359
  %v1731 = vpack.c.b16 %v1362, %v1361
  %v1732 = vpack.c.b16 %v1364, %v1363
  %v1733 = vpack.c.b16 %v1366, %v1365
  %v1734 = vpack.c.b16 %v1368, %v1367
  %v1735 = vpack.c.b16 %v1370, %v1369
  %v1736 = vpack.c.b16 %v1372, %v1371
  %v1737 = vpack.c.b16 %v1374, %v1373
  %v1738 = vpack.c.b16 %v1376, %v1375
  %v1739 = vpack.c.b16 %v1378, %v1377
  %v1740 = vpack.c.b16 %v1380, %v1379
  %v1741 = vpack.c.b16 %v1382, %v1381
  %v1742 = vpack.c.b16 %v1384, %v1383
  %v1743 = vpack.c.b16 %v1386, %v1385
  %v1744 = vpack.c.b16 %v1388, %v1387
  %v1745 = vpack.c.b16 %v1390, %v1389
  %v1746 = vpack.c.b16 %v1392, %v1391
  %v1747 = vpack.c.b16 %v1394, %v1393
  %v1748 = vpack.c.b16 %v1396, %v1395
  %v1749 = vpack.c.b16 %v1398, %v1397
  %v1750 = vpack.c.b16 %v1400, %v1399
  %v1751 = vpack.c.b16 %v1402, %v1401
  %v1752 = vpack.c.b16 %v1404, %v1403
  %v1753 = vpack.c.b16 %v1406, %v1405
  %v1754 = vpack.c.b16 %v1408, %v1407
  %v1755 = vpack.c.b16 %v1410, %v1409
  %v1756 = vpack.c.b16 %v1412, %v1411
  %v1757 = vpack.c.b16 %v1414, %v1413
  %v1758 = vpack.c.b16 %v1416, %v1415
  %v1759 = vpack.c.b16 %v1418, %v1417
  %v1760 = vpack.c.b16 %v1420, %v1419
  %v1761 = vpack.c.b16 %v1422, %v1421
  %v1762 = vpack.c.b16 %v1424, %v1423
  %v1763 = vpack.c.b16 %v1426, %v1425
  %v1764 = vpack.c.b16 %v1428, %v1427
  %v1765 = vpack.c.b16 %v1430, %v1429
  %v1766 = vpack.c.b16 %v1432, %v1431
  %v1767 = vpack.c.b16 %v1434, %v1433
  %v1768 = vpack.c.b16 %v1436, %v1435
  %v1769 = vpack.c.b16 %v1438, %v1437
  %v1770 = vpack.c.b16 %v1440, %v1439
  %v1771 = vpack.c.b16 %v1442, %v1441
  %v1772 = vpack.c.b16 %v1444, %v1443
  %v1773 = vpack.c.b16 %v1446, %v1445
  %v1774 = vpack.c.b16 %v1448, %v1447
  %v1775 = vpack.c.b16 %v1450, %v1449
  %v1776 = vpack.c.b16 %v1452, %v1451
  %v1777 = vpack.c.b16 %v1454, %v1453
  %v1778 = vpack.c.b16 %v1456, %v1455
  %v1779 = vpack.c.b16 %v1458, %v1457
  %v1780 = vpack.c.b16 %v1460, %v1459
  %v1781 = vpack.c.b16 %v1462, %v1461
  %v1782 = vpack.c.b16 %v1464, %v1463
  %v1783 = vpack.c.b16 %v1466, %v1465
  %v1784 = vpack.c.b16 %v1468, %v1467
  %v1785 = vpack.c.b16 %v1470, %v1469
  %v1786 = vpack.c.b16 %v1472, %v1471
  %v1787 = vpack.c.b16 %v1474, %v1473
  %v1788 = vpack.c.b16 %v1476, %v1475
  %v1789 = vpack.c.b16 %v1478, %v1477
  %v1790 = vpack.c.b16 %v1480, %v1479
  %v1791 = vpack.c.b16 %v1482, %v1481
  %v1792 = vpack.c.b16 %v1484, %v1483
  %v1793 = vpack.c.b16 %v1486, %v1485
  %v1794 = vpack.c.b16 %v1488, %v1487
  %v1795 = vpack.c.b16 %v1490, %v1489
  %v1796 = vpack.c.b16 %v1492, %v1491
  %v1797 = vpack.c.b16 %v1494, %v1493
  %v1798 = vpack.c.b16 %v1496, %v1495
  %v1799 = vpack.c.b16 %v1498, %v1497
  %v1800 = vpack.c.b16 %v1500, %v1499
  %v1801 = vpack.c.b16 %v1502, %v1501
  %v1802 = vpack.c.b16 %v1504, %v1503
  %v1803 = vpack.c.b16 %v1506, %v1505
  %v1804 = vpack.c.b16 %v1508, %v1507
  %v1805 = vpack.c.b16 %v1510, %v1509
  %v1806 = vpack.c.b16 %v1512, %v1511
  %v1807 = vpack.c.b16 %v1514, %v1513
  %v1808 = vpack.c.b16 %v1516, %v1515
  %v1809 = vpack.c.b16 %v1518, %v1517
  %v1810 = vpack.c.b16 %v1520, %v1519
  %v1811 = vpack.c.b16 %v1522, %v1521
  %v1812 = vpack.c.b16 %v1524, %v1523
  %v1813 = vpack.c.b16 %v1526, %v1525
  %v1814 = vpack.c.b16 %v1528, %v1527
  %v1815 = vpack.c.b16 %v1530, %v1529
  %v1816 = vpack.c.b16 %v1532, %v1531
  %v1817 = vpack.c.b16 %v1534, %v1533
  %v1818 = vpack.c.b16 %v1536, %v1535
  %v1819 = vpack.c.b16 %v1538, %v1537
  %v1820 = vpack.c.b16 %v1540, %v1539
  %v1821 = vpack.c.b16 %v1542, %v1541
  %v1822 = vpack.c.b16 %v1544, %v1543
  %v1823 = vpack.c.b16 %v1546, %v1545
  %v1824 = vpack.c.b16 %v1548, %v1547
  %v1825 = vpack.c.b16 %v1550, %v1549
  %v1826 = vpack.c.b16 %v1552, %v1551
  %v1827 = vpack.c.b16 %v1554, %v1553
  %v1828 = vpack.c.b16 %v1556, %v1555
  %v1829 = vpack.c.b16 %v1558, %v1557
  %v1830 = vpack.c.b16 %v1560, %v1559
  %v1831 = vpack.c.b16 %v1562, %v1561
  %v1832 = vpack.c.b16 %v1564, %v1563
  %v1833 = vpack.c.b16 %v1566, %v1565
  %v1834 = vpack.c.b16 %v1568, %v1567
  %v1835 = vpack.c.b16 %v1570, %v1569
  %v1836 = vpack.c.b16 %v1572, %v1571
  %v1837 = vpack.c.b16 %v1574, %v1573
  %v1838 = vpack.c.b16 %v1576, %v1575
  %v1839 = vpack.c.b16 %v1578, %v1577
  %v1840 = vpack.c.b16 %v1580, %v1579
  %v1841 = vpack.c.b16 %v1582, %v1581
  %v1842 = vpack.c.b16 %v1584, %v1583
  %v1843 = vpack.c.b16 %v1586, %v1585
  %v1844 = vpack.c.b16 %v1588, %v1587
  %v1849 = vunpack.c.l.b16 %v554
  %v1850 = vunpack.c.l.b16 %v555
  %v1851 = vunpack.c.l.b16 %v556
  %v1852 = vunpack.c.l.b16 %v557
  %v1853 = vpack.c.b16 %v1850, %v1849
  %v1854 = vpack.c.b16 %v1852, %v1851
  %vm1856 = vcmask 220160
  %v1858 = vsel %vm1856, %v1589, 0
  %v1861 = vsel %vm1856, %v1590, 0
  %v1864 = vsel %vm1856, %v1591, 0
  %v1867 = vsel %vm1856, %v1592, 0
  %v1870 = vsel %vm1856, %v1593, 0
  %v1873 = vsel %vm1856, %v1594, 0
  %v1876 = vsel %vm1856, %v1595, 0
  %v1879 = vsel %vm1856, %v1596, 0
  %v1882 = vsel %vm1856, %v1597, 0
  %v1885 = vsel %vm1856, %v1598, 0
  %v1888 = vsel %vm1856, %v1599, 0
  %v1891 = vsel %vm1856, %v1600, 0
  %v1894 = vsel %vm1856, %v1601, 0
  %v1897 = vsel %vm1856, %v1602, 0
  %v1900 = vsel %vm1856, %v1603, 0
  %v1903 = vsel %vm1856, %v1604, 0
  %v1906 = vsel %vm1856, %v1605, 0
  %v1909 = vsel %vm1856, %v1606, 0
  %v1912 = vsel %vm1856, %v1607, 0
  %v1915 = vsel %vm1856, %v1608, 0
  %v1918 = vsel %vm1856, %v1609, 0
  %v1921 = vsel %vm1856, %v1610, 0
  %v1924 = vsel %vm1856, %v1611, 0
  %v1927 = vsel %vm1856, %v1612, 0
  %v1930 = vsel %vm1856, %v1613, 0
  %v1933 = vsel %vm1856, %v1614, 0
  %v1936 = vsel %vm1856, %v1615, 0
  %v1939 = vsel %vm1856, %v1616, 0
  %v1942 = vsel %vm1856, %v1617, 0
  %v1945 = vsel %vm1856, %v1618, 0
  %v1948 = vsel %vm1856, %v1619, 0
  %v1951 = vsel %vm1856, %v1620, 0
  %v1954 = vsel %vm1856, %v1621, 0
  %v1957 = vsel %vm1856, %v1622, 0
  %v1960 = vsel %vm1856, %v1623, 0
  %v1963 = vsel %vm1856, %v1624, 0
  %v1966 = vsel %vm1856, %v1625, 0
  %v1969 = vsel %vm1856, %v1626, 0
  %v1972 = vsel %vm1856, %v1627, 0
  %v1975 = vsel %vm1856, %v1628, 0
  %v1978 = vsel %vm1856, %v1629, 0
  %v1981 = vsel %vm1856, %v1630, 0
  %v1984 = vsel %vm1856, %v1631, 0
  %v1987 = vsel %vm1856, %v1632, 0
  %v1990 = vsel %vm1856, %v1633, 0
  %v1993 = vsel %vm1856, %v1634, 0
  %v1996 = vsel %vm1856, %v1635, 0
  %v1999 = vsel %vm1856, %v1636, 0
  %v2002 = vsel %vm1856, %v1637, 0
  %v2005 = vsel %vm1856, %v1638, 0
  %v2008 = vsel %vm1856, %v1639, 0
  %v2011 = vsel %vm1856, %v1640, 0
  %v2014 = vsel %vm1856, %v1641, 0
  %v2017 = vsel %vm1856, %v1642, 0
  %v2020 = vsel %vm1856, %v1643, 0
  %v2023 = vsel %vm1856, %v1644, 0
  %v2026 = vsel %vm1856, %v1645, 0
  %v2029 = vsel %vm1856, %v1646, 0
  %v2032 = vsel %vm1856, %v1647, 0
  %v2035 = vsel %vm1856, %v1648, 0
  %v2038 = vsel %vm1856, %v1649, 0
  %v2041 = vsel %vm1856, %v1650, 0
  %v2044 = vsel %vm1856, %v1651, 0
  %v2047 = vsel %vm1856, %v1652, 0
  %v2050 = vsel %vm1856, %v1653, 0
  %v2053 = vsel %vm1856, %v1654, 0
  %v2056 = vsel %vm1856, %v1655, 0
  %v2059 = vsel %vm1856, %v1656, 0
  %v2062 = vsel %vm1856, %v1657, 0
  %v2065 = vsel %vm1856, %v1658, 0
  %v2068 = vsel %vm1856, %v1659, 0
  %v2071 = vsel %vm1856, %v1660, 0
  %v2074 = vsel %vm1856, %v1661, 0
  %v2077 = vsel %vm1856, %v1662, 0
  %v2080 = vsel %vm1856, %v1663, 0
  %v2083 = vsel %vm1856, %v1664, 0
  %v2086 = vsel %vm1856, %v1665, 0
  %v2089 = vsel %vm1856, %v1666, 0
  %v2092 = vsel %vm1856, %v1667, 0
  %v2095 = vsel %vm1856, %v1668, 0
  %v2098 = vsel %vm1856, %v1669, 0
  %v2101 = vsel %vm1856, %v1670, 0
  %v2104 = vsel %vm1856, %v1671, 0
  %v2107 = vsel %vm1856, %v1672, 0
  %v2110 = vsel %vm1856, %v1673, 0
  %v2113 = vsel %vm1856, %v1674, 0
  %v2116 = vsel %vm1856, %v1675, 0
  %v2119 = vsel %vm1856, %v1676, 0
  %v2122 = vsel %vm1856, %v1677, 0
  %v2125 = vsel %vm1856, %v1678, 0
  %v2128 = vsel %vm1856, %v1679, 0
  %v2131 = vsel %vm1856, %v1680, 0
  %v2134 = vsel %vm1856, %v1681, 0
  %v2137 = vsel %vm1856, %v1682, 0
  %v2140 = vsel %vm1856, %v1683, 0
  %v2143 = vsel %vm1856, %v1684, 0
  %v2146 = vsel %vm1856, %v1685, 0
  %v2149 = vsel %vm1856, %v1686, 0
  %v2152 = vsel %vm1856, %v1687, 0
  %v2155 = vsel %vm1856, %v1688, 0
  %v2158 = vsel %vm1856, %v1689, 0
  %v2161 = vsel %vm1856, %v1690, 0
  %v2164 = vsel %vm1856, %v1691, 0
  %v2167 = vsel %vm1856, %v1692, 0
  %v2170 = vsel %vm1856, %v1693, 0
  %v2173 = vsel %vm1856, %v1694, 0
  %v2176 = vsel %vm1856, %v1695, 0
  %v2179 = vsel %vm1856, %v1696, 0
  %v2182 = vsel %vm1856, %v1697, 0
  %v2185 = vsel %vm1856, %v1698, 0
  %v2188 = vsel %vm1856, %v1699, 0
  %v2191 = vsel %vm1856, %v1700, 0
  %v2194 = vsel %vm1856, %v1701, 0
  %v2197 = vsel %vm1856, %v1702, 0
  %v2200 = vsel %vm1856, %v1703, 0
  %v2203 = vsel %vm1856, %v1704, 0
  %v2206 = vsel %vm1856, %v1705, 0
  %v2209 = vsel %vm1856, %v1706, 0
  %v2212 = vsel %vm1856, %v1707, 0
  %v2215 = vsel %vm1856, %v1708, 0
  %v2218 = vsel %vm1856, %v1709, 0
  %v2221 = vsel %vm1856, %v1710, 0
  %v2224 = vsel %vm1856, %v1711, 0
  %v2227 = vsel %vm1856, %v1712, 0
  %v2230 = vsel %vm1856, %v1713, 0
  %v2233 = vsel %vm1856, %v1714, 0
  %v2236 = vsel %vm1856, %v1715, 0
  %v2239 = vsel %vm1856, %v1716, 0
  %v2242 = vsel %vm1856, %v1717, 0
  %v2245 = vsel %vm1856, %v1718, 0
  %v2248 = vsel %vm1856, %v1719, 0
  %v2251 = vsel %vm1856, %v1720, 0
  %v2254 = vsel %vm1856, %v1721, 0
  %v2257 = vsel %vm1856, %v1722, 0
  %v2260 = vsel %vm1856, %v1723, 0
  %v2263 = vsel %vm1856, %v1724, 0
  %v2266 = vsel %vm1856, %v1725, 0
  %v2269 = vsel %vm1856, %v1726, 0
  %v2272 = vsel %vm1856, %v1727, 0
  %v2275 = vsel %vm1856, %v1728, 0
  %v2278 = vsel %vm1856, %v1729, 0
  %v2281 = vsel %vm1856, %v1730, 0
  %v2284 = vsel %vm1856, %v1731, 0
  %v2287 = vsel %vm1856, %v1732, 0
  %v2290 = vsel %vm1856, %v1733, 0
  %v2293 = vsel %vm1856, %v1734, 0
  %v2296 = vsel %vm1856, %v1735, 0
  %v2299 = vsel %vm1856, %v1736, 0
  %v2302 = vsel %vm1856, %v1737, 0
  %v2305 = vsel %vm1856, %v1738, 0
  %v2308 = vsel %vm1856, %v1739, 0
  %v2311 = vsel %vm1856, %v1740, 0
  %v2314 = vsel %vm1856, %v1741, 0
  %v2317 = vsel %vm1856, %v1742, 0
  %v2320 = vsel %vm1856, %v1743, 0
  %v2323 = vsel %vm1856, %v1744, 0
  %v2326 = vsel %vm1856, %v1745, 0
  %v2329 = vsel %vm1856, %v1746, 0
  %v2332 = vsel %vm1856, %v1747, 0
  %v2335 = vsel %vm1856, %v1748, 0
  %v2338 = vsel %vm1856, %v1749, 0
  %v2341 = vsel %vm1856, %v1750, 0
  %v2344 = vsel %vm1856, %v1751, 0
  %v2347 = vsel %vm1856, %v1752, 0
  %v2350 = vsel %vm1856, %v1753, 0
  %v2353 = vsel %vm1856, %v1754, 0
  %v2356 = vsel %vm1856, %v1755, 0
  %v2359 = vsel %vm1856, %v1756, 0
  %v2362 = vsel %vm1856, %v1757, 0
  %v2365 = vsel %vm1856, %v1758, 0
  %v2368 = vsel %vm1856, %v1759, 0
  %v2371 = vsel %vm1856, %v1760, 0
  %v2374 = vsel %vm1856, %v1761, 0
  %v2377 = vsel %vm1856, %v1762, 0
  %v2380 = vsel %vm1856, %v1763, 0
  %v2383 = vsel %vm1856, %v1764, 0
  %v2386 = vsel %vm1856, %v1765, 0
  %v2389 = vsel %vm1856, %v1766, 0
  %v2392 = vsel %vm1856, %v1767, 0
  %v2395 = vsel %vm1856, %v1768, 0
  %v2398 = vsel %vm1856, %v1769, 0
  %v2401 = vsel %vm1856, %v1770, 0
  %v2404 = vsel %vm1856, %v1771, 0
  %v2407 = vsel %vm1856, %v1772, 0
  %v2410 = vsel %vm1856, %v1773, 0
  %v2413 = vsel %vm1856, %v1774, 0
  %v2416 = vsel %vm1856, %v1775, 0
  %v2419 = vsel %vm1856, %v1776, 0
  %v2422 = vsel %vm1856, %v1777, 0
  %v2425 = vsel %vm1856, %v1778, 0
  %v2428 = vsel %vm1856, %v1779, 0
  %v2431 = vsel %vm1856, %v1780, 0
  %v2434 = vsel %vm1856, %v1781, 0
  %v2437 = vsel %vm1856, %v1782, 0
  %v2440 = vsel %vm1856, %v1783, 0
  %v2443 = vsel %vm1856, %v1784, 0
  %v2446 = vsel %vm1856, %v1785, 0
  %v2449 = vsel %vm1856, %v1786, 0
  %v2452 = vsel %vm1856, %v1787, 0
  %v2455 = vsel %vm1856, %v1788, 0
  %v2458 = vsel %vm1856, %v1789, 0
  %v2461 = vsel %vm1856, %v1790, 0
  %v2464 = vsel %vm1856, %v1791, 0
  %v2467 = vsel %vm1856, %v1792, 0
  %v2470 = vsel %vm1856, %v1793, 0
  %v2473 = vsel %vm1856, %v1794, 0
  %v2476 = vsel %vm1856, %v1795, 0
  %v2479 = vsel %vm1856, %v1796, 0
  %v2482 = vsel %vm1856, %v1797, 0
  %v2485 = vsel %vm1856, %v1798, 0
  %v2488 = vsel %vm1856, %v1799, 0
  %v2491 = vsel %vm1856, %v1800, 0
  %v2494 = vsel %vm1856, %v1801, 0
  %v2497 = vsel %vm1856, %v1802, 0
  %v2500 = vsel %vm1856, %v1803, 0
  %v2503 = vsel %vm1856, %v1804, 0
  %v2506 = vsel %vm1856, %v1805, 0
  %v2509 = vsel %vm1856, %v1806, 0
  %v2512 = vsel %vm1856, %v1807, 0
  %v2515 = vsel %vm1856, %v1808, 0
  %v2518 = vsel %vm1856, %v1809, 0
  %v2521 = vsel %vm1856, %v1810, 0
  %v2524 = vsel %vm1856, %v1811, 0
  %v2527 = vsel %vm1856, %v1812, 0
  %v2530 = vsel %vm1856, %v1813, 0
  %v2533 = vsel %vm1856, %v1814, 0
  %v2536 = vsel %vm1856, %v1815, 0
  %v2539 = vsel %vm1856, %v1816, 0
  %v2542 = vsel %vm1856, %v1817, 0
  %v2545 = vsel %vm1856, %v1818, 0
  %v2548 = vsel %vm1856, %v1819, 0
  %v2551 = vsel %vm1856, %v1820, 0
  %v2554 = vsel %vm1856, %v1821, 0
  %v2557 = vsel %vm1856, %v1822, 0
  %v2560 = vsel %vm1856, %v1823, 0
  %v2563 = vsel %vm1856, %v1824, 0
  %v2566 = vsel %vm1856, %v1825, 0
  %v2569 = vsel %vm1856, %v1826, 0
  %v2572 = vsel %vm1856, %v1827, 0
  %v2575 = vsel %vm1856, %v1828, 0
  %v2578 = vsel %vm1856, %v1829, 0
  %v2581 = vsel %vm1856, %v1830, 0
  %v2584 = vsel %vm1856, %v1831, 0
  %v2587 = vsel %vm1856, %v1832, 0
  %v2590 = vsel %vm1856, %v1833, 0
  %v2593 = vsel %vm1856, %v1834, 0
  %v2596 = vsel %vm1856, %v1835, 0
  %v2599 = vsel %vm1856, %v1836, 0
  %v2602 = vsel %vm1856, %v1837, 0
  %v2605 = vsel %vm1856, %v1838, 0
  %v2608 = vsel %vm1856, %v1839, 0
  %v2611 = vsel %vm1856, %v1840, 0
  %v2614 = vsel %vm1856, %v1841, 0
  %v2617 = vsel %vm1856, %v1842, 0
  %v2620 = vsel %vm1856, %v1843, 0
  %v2623 = vsel %vm1856, %v1844, 0
  %vm2625 = vcmask 1044480
  %vm2626 = vcmask 1045504
  %v2627 = vsel %vm2625, 4294967295, 65535
  %v2628 = vsel %vm2626, %v2627, 0
  %v2630 = vand.u32 %v1854, %v2628
  %2632 = vmatprep.subr.bf16.mxu0 0
  %2633 = vmatpush1.bf16.msra.mxu0 %v1853
  %2634 = vmatprep.subr.bf16.mxu0 0
  %2635 = vmatpush1.bf16.msra.mxu0 %v2630
  %2636 = vmatprep.subr.bf16.mxu0 0
  %2637 = vmatpush1.bf16.msra.mxu0 0
  %2638 = vmatprep.subr.bf16.mxu0 0
  %2639 = vmatpush1.bf16.msra.mxu0 0
  %2640 = vmatprep.subr.bf16.mxu0 0
  %2641 = vmatpush1.bf16.msra.mxu0 0
  %2642 = vmatprep.subr.bf16.mxu0 0
  %2643 = vmatpush1.bf16.msra.mxu0 0
  %2644 = vmatprep.subr.bf16.mxu0 0
  %2645 = vmatpush1.bf16.msra.mxu0 0
  %2646 = vmatprep.subr.bf16.mxu0 0
  %2647 = vmatpush1.bf16.msra.mxu0 0
  %2648 = vmatprep.subr.bf16.mxu0 0
  %2649 = vmatpush1.bf16.msra.mxu0 0
  %2650 = vmatprep.subr.bf16.mxu0 0
  %2651 = vmatpush1.bf16.msra.mxu0 0
  %2652 = vmatprep.subr.bf16.mxu0 0
  %2653 = vmatpush1.bf16.msra.mxu0 0
  %2654 = vmatprep.subr.bf16.mxu0 0
  %2655 = vmatpush1.bf16.msra.mxu0 0
  %2656 = vmatprep.subr.bf16.mxu0 0
  %2657 = vmatpush1.bf16.msra.mxu0 0
  %2658 = vmatprep.subr.bf16.mxu0 0
  %2659 = vmatpush1.bf16.msra.mxu0 0
  %2660 = vmatprep.subr.bf16.mxu0 0
  %2661 = vmatpush1.bf16.msra.mxu0 0
  %2662 = vmatprep.subr.bf16.mxu0 0
  %2663 = vmatpush1.bf16.msra.mxu0 0
  %2664 = vmatprep.mubr.bf16.mxu0 0
  %2665 = vmatmul.mubr.bf16.gmra.mrb[0].mxu0 %v1858
  %v2666 = vpop.f32.mrb[0].mxu0
  %v2667 = vadd.f32 %v563, %v2666
  %v2668 = vpop.f32.mrb[0].mxu0
  %v2669 = vpop.f32.mrb[0].mxu0
  %v2670 = vadd.f32 %v563, %v2669
  %v2671 = vpop.f32.mrb[0].mxu0
  %2672 = vmatprep.mubr.bf16.mxu0 0
  %2673 = vmatmul.mubr.bf16.gmra.mrb[0].mxu0 %v1861
  %v2674 = vpop.f32.mrb[0].mxu0
  %v2675 = vadd.f32 %v563, %v2674
  %v2676 = vpop.f32.mrb[0].mxu0
  %v2677 = vpop.f32.mrb[0].mxu0
  %v2678 = vadd.f32 %v563, %v2677
  %v2679 = vpop.f32.mrb[0].mxu0
  %2680 = vmatprep.mubr.bf16.mxu0 0
  %2681 = vmatmul.mubr.bf16.gmra.mrb[0].mxu0 %v1864
  %v2682 = vpop.f32.mrb[0].mxu0
  %v2683 = vadd.f32 %v563, %v2682
  %v2684 = vpop.f32.mrb[0].mxu0
  %v2685 = vpop.f32.mrb[0].mxu0
  %v2686 = vadd.f32 %v563, %v2685
  %v2687 = vpop.f32.mrb[0].mxu0
  %2688 = vmatprep.mubr.bf16.mxu0 0
  %2689 = vmatmul.mubr.bf16.gmra.mrb[0].mxu0 %v1867
  %v2690 = vpop.f32.mrb[0].mxu0
  %v2691 = vadd.f32 %v563, %v2690
  %v2692 = vpop.f32.mrb[0].mxu0
  %v2693 = vpop.f32.mrb[0].mxu0
  %v2694 = vadd.f32 %v563, %v2693
  %v2695 = vpop.f32.mrb[0].mxu0
  %2696 = vmatprep.mubr.bf16.mxu0 0
  %2697 = vmatmul.mubr.bf16.gmra.mrb[0].mxu0 %v1870
  %v2698 = vpop.f32.mrb[0].mxu0
  %v2699 = vadd.f32 %v563, %v2698
  %v2700 = vpop.f32.mrb[0].mxu0
  %v2701 = vpop.f32.mrb[0].mxu0
  %v2702 = vadd.f32 %v563, %v2701
  %v2703 = vpop.f32.mrb[0].mxu0
  %2704 = vmatprep.mubr.bf16.mxu0 0
  %2705 = vmatmul.mubr.bf16.gmra.mrb[0].mxu0 %v1873
  %v2706 = vpop.f32.mrb[0].mxu0
  %v2707 = vadd.f32 %v563, %v2706
  %v2708 = vpop.f32.mrb[0].mxu0
  %v2709 = vpop.f32.mrb[0].mxu0
  %v2710 = vadd.f32 %v563, %v2709
  %v2711 = vpop.f32.mrb[0].mxu0
  %2712 = vmatprep.mubr.bf16.mxu0 0
  %2713 = vmatmul.mubr.bf16.gmra.mrb[0].mxu0 %v1876
  %v2714 = vpop.f32.mrb[0].mxu0
  %v2715 = vadd.f32 %v563, %v2714
  %v2716 = vpop.f32.mrb[0].mxu0
  %v2717 = vpop.f32.mrb[0].mxu0
  %v2718 = vadd.f32 %v563, %v2717
  %v2719 = vpop.f32.mrb[0].mxu0
  %2720 = vmatprep.mubr.bf16.mxu0 0
  %2721 = vmatmul.mubr.bf16.gmra.mrb[0].mxu0 %v1879
  %v2722 = vpop.f32.mrb[0].mxu0
  %v2723 = vadd.f32 %v563, %v2722
  %v2724 = vpop.f32.mrb[0].mxu0
  %v2725 = vpop.f32.mrb[0].mxu0
  %v2726 = vadd.f32 %v563, %v2725
  %v2727 = vpop.f32.mrb[0].mxu0
  %2728 = vmatprep.mubr.bf16.mxu0 0
  %2729 = vmatmul.mubr.bf16.gmra.mrb[0].mxu0 %v1882
  %v2730 = vpop.f32.mrb[0].mxu0
  %v2731 = vadd.f32 %v563, %v2730
  %v2732 = vpop.f32.mrb[0].mxu0
  %v2733 = vpop.f32.mrb[0].mxu0
  %v2734 = vadd.f32 %v563, %v2733
  %v2735 = vpop.f32.mrb[0].mxu0
  %2736 = vmatprep.mubr.bf16.mxu0 0
  %2737 = vmatmul.mubr.bf16.gmra.mrb[0].mxu0 %v1885
  %v2738 = vpop.f32.mrb[0].mxu0
  %v2739 = vadd.f32 %v563, %v2738
  %v2740 = vpop.f32.mrb[0].mxu0
  %v2741 = vpop.f32.mrb[0].mxu0
  %v2742 = vadd.f32 %v563, %v2741
  %v2743 = vpop.f32.mrb[0].mxu0
  %2744 = vmatprep.mubr.bf16.mxu0 0
  %2745 = vmatmul.mubr.bf16.gmra.mrb[0].mxu0 %v1888
  %v2746 = vpop.f32.mrb[0].mxu0
  %v2747 = vadd.f32 %v563, %v2746
  %v2748 = vpop.f32.mrb[0].mxu0
  %v2749 = vpop.f32.mrb[0].mxu0
  %v2750 = vadd.f32 %v563, %v2749
  %v2751 = vpop.f32.mrb[0].mxu0
  %2752 = vmatprep.mubr.bf16.mxu0 0
  %2753 = vmatmul.mubr.bf16.gmra.mrb[0].mxu0 %v1891
  %v2754 = vpop.f32.mrb[0].mxu0
  %v2755 = vadd.f32 %v563, %v2754
  %v2756 = vpop.f32.mrb[0].mxu0
  %v2757 = vpop.f32.mrb[0].mxu0
  %v2758 = vadd.f32 %v563, %v2757
  %v2759 = vpop.f32.mrb[0].mxu0
  %2760 = vmatprep.mubr.bf16.mxu0 0
  %2761 = vmatmul.mubr.bf16.gmra.mrb[0].mxu0 %v1894
  %v2762 = vpop.f32.mrb[0].mxu0
  %v2763 = vadd.f32 %v563, %v2762
  %v2764 = vpop.f32.mrb[0].mxu0
  %v2765 = vpop.f32.mrb[0].mxu0
  %v2766 = vadd.f32 %v563, %v2765
  %v2767 = vpop.f32.mrb[0].mxu0
  %2768 = vmatprep.mubr.bf16.mxu0 0
  %2769 = vmatmul.mubr.bf16.gmra.mrb[0].mxu0 %v1897
  %v2770 = vpop.f32.mrb[0].mxu0
  %v2771 = vadd.f32 %v563, %v2770
  %v2772 = vpop.f32.mrb[0].mxu0
  %v2773 = vpop.f32.mrb[0].mxu0
  %v2774 = vadd.f32 %v563, %v2773
  %v2775 = vpop.f32.mrb[0].mxu0
  %2776 = vmatprep.mubr.bf16.mxu0 0
  %2777 = vmatmul.mubr.bf16.gmra.mrb[0].mxu0 %v1900
  %v2778 = vpop.f32.mrb[0].mxu0
  %v2779 = vadd.f32 %v563, %v2778
  %v2780 = vpop.f32.mrb[0].mxu0
  %v2781 = vpop.f32.mrb[0].mxu0
  %v2782 = vadd.f32 %v563, %v2781
  %v2783 = vpop.f32.mrb[0].mxu0
  %2784 = vmatprep.mubr.bf16.mxu0 0
  %2785 = vmatmul.mubr.bf16.gmra.mrb[0].mxu0 %v1903
  %v2786 = vpop.f32.mrb[0].mxu0
  %v2787 = vadd.f32 %v563, %v2786
  %v2788 = vpop.f32.mrb[0].mxu0
  %v2789 = vpop.f32.mrb[0].mxu0
  %v2790 = vadd.f32 %v563, %v2789
  %v2791 = vpop.f32.mrb[0].mxu0
  %2792 = vmatprep.mubr.bf16.mxu0 0
  %2793 = vmatmul.mubr.bf16.gmra.mrb[0].mxu0 %v1906
  %v2794 = vpop.f32.mrb[0].mxu0
  %v2795 = vadd.f32 %v563, %v2794
  %v2796 = vpop.f32.mrb[0].mxu0
  %v2797 = vpop.f32.mrb[0].mxu0
  %v2798 = vadd.f32 %v563, %v2797
  %v2799 = vpop.f32.mrb[0].mxu0
  %2800 = vmatprep.mubr.bf16.mxu0 0
  %2801 = vmatmul.mubr.bf16.gmra.mrb[0].mxu0 %v1909
  %v2802 = vpop.f32.mrb[0].mxu0
  %v2803 = vadd.f32 %v563, %v2802
  %v2804 = vpop.f32.mrb[0].mxu0
  %v2805 = vpop.f32.mrb[0].mxu0
  %v2806 = vadd.f32 %v563, %v2805
  %v2807 = vpop.f32.mrb[0].mxu0
  %2808 = vmatprep.mubr.bf16.mxu0 0
  %2809 = vmatmul.mubr.bf16.gmra.mrb[0].mxu0 %v1912
  %v2810 = vpop.f32.mrb[0].mxu0
  %v2811 = vadd.f32 %v563, %v2810
  %v2812 = vpop.f32.mrb[0].mxu0
  %v2813 = vpop.f32.mrb[0].mxu0
  %v2814 = vadd.f32 %v563, %v2813
  %v2815 = vpop.f32.mrb[0].mxu0
  %2816 = vmatprep.mubr.bf16.mxu0 0
  %2817 = vmatmul.mubr.bf16.gmra.mrb[0].mxu0 %v1915
  %v2818 = vpop.f32.mrb[0].mxu0
  %v2819 = vadd.f32 %v563, %v2818
  %v2820 = vpop.f32.mrb[0].mxu0
  %v2821 = vpop.f32.mrb[0].mxu0
  %v2822 = vadd.f32 %v563, %v2821
  %v2823 = vpop.f32.mrb[0].mxu0
  %2824 = vmatprep.mubr.bf16.mxu0 0
  %2825 = vmatmul.mubr.bf16.gmra.mrb[0].mxu0 %v1918
  %v2826 = vpop.f32.mrb[0].mxu0
  %v2827 = vadd.f32 %v563, %v2826
  %v2828 = vpop.f32.mrb[0].mxu0
  %v2829 = vpop.f32.mrb[0].mxu0
  %v2830 = vadd.f32 %v563, %v2829
  %v2831 = vpop.f32.mrb[0].mxu0
  %2832 = vmatprep.mubr.bf16.mxu0 0
  %2833 = vmatmul.mubr.bf16.gmra.mrb[0].mxu0 %v1921
  %v2834 = vpop.f32.mrb[0].mxu0
  %v2835 = vadd.f32 %v563, %v2834
  %v2836 = vpop.f32.mrb[0].mxu0
  %v2837 = vpop.f32.mrb[0].mxu0
  %v2838 = vadd.f32 %v563, %v2837
  %v2839 = vpop.f32.mrb[0].mxu0
  %2840 = vmatprep.mubr.bf16.mxu0 0
  %2841 = vmatmul.mubr.bf16.gmra.mrb[0].mxu0 %v1924
  %v2842 = vpop.f32.mrb[0].mxu0
  %v2843 = vadd.f32 %v563, %v2842
  %v2844 = vpop.f32.mrb[0].mxu0
  %v2845 = vpop.f32.mrb[0].mxu0
  %v2846 = vadd.f32 %v563, %v2845
  %v2847 = vpop.f32.mrb[0].mxu0
  %2848 = vmatprep.mubr.bf16.mxu0 0
  %2849 = vmatmul.mubr.bf16.gmra.mrb[0].mxu0 %v1927
  %v2850 = vpop.f32.mrb[0].mxu0
  %v2851 = vadd.f32 %v563, %v2850
  %v2852 = vpop.f32.mrb[0].mxu0
  %v2853 = vpop.f32.mrb[0].mxu0
  %v2854 = vadd.f32 %v563, %v2853
  %v2855 = vpop.f32.mrb[0].mxu0
  %2856 = vmatprep.mubr.bf16.mxu0 0
  %2857 = vmatmul.mubr.bf16.gmra.mrb[0].mxu0 %v1930
  %v2858 = vpop.f32.mrb[0].mxu0
  %v2859 = vadd.f32 %v563, %v2858
  %v2860 = vpop.f32.mrb[0].mxu0
  %v2861 = vpop.f32.mrb[0].mxu0
  %v2862 = vadd.f32 %v563, %v2861
  %v2863 = vpop.f32.mrb[0].mxu0
  %2864 = vmatprep.mubr.bf16.mxu0 0
  %2865 = vmatmul.mubr.bf16.gmra.mrb[0].mxu0 %v1933
  %v2866 = vpop.f32.mrb[0].mxu0
  %v2867 = vadd.f32 %v563, %v2866
  %v2868 = vpop.f32.mrb[0].mxu0
  %v2869 = vpop.f32.mrb[0].mxu0
  %v2870 = vadd.f32 %v563, %v2869
  %v2871 = vpop.f32.mrb[0].mxu0
  %2872 = vmatprep.mubr.bf16.mxu0 0
  %2873 = vmatmul.mubr.bf16.gmra.mrb[0].mxu0 %v1936
  %v2874 = vpop.f32.mrb[0].mxu0
  %v2875 = vadd.f32 %v563, %v2874
  %v2876 = vpop.f32.mrb[0].mxu0
  %v2877 = vpop.f32.mrb[0].mxu0
  %v2878 = vadd.f32 %v563, %v2877
  %v2879 = vpop.f32.mrb[0].mxu0
  %2880 = vmatprep.mubr.bf16.mxu0 0
  %2881 = vmatmul.mubr.bf16.gmra.mrb[0].mxu0 %v1939
  %v2882 = vpop.f32.mrb[0].mxu0
  %v2883 = vadd.f32 %v563, %v2882
  %v2884 = vpop.f32.mrb[0].mxu0
  %v2885 = vpop.f32.mrb[0].mxu0
  %v2886 = vadd.f32 %v563, %v2885
  %v2887 = vpop.f32.mrb[0].mxu0
  %2888 = vmatprep.mubr.bf16.mxu0 0
  %2889 = vmatmul.mubr.bf16.gmra.mrb[0].mxu0 %v1942
  %v2890 = vpop.f32.mrb[0].mxu0
  %v2891 = vadd.f32 %v563, %v2890
  %v2892 = vpop.f32.mrb[0].mxu0
  %v2893 = vpop.f32.mrb[0].mxu0
  %v2894 = vadd.f32 %v563, %v2893
  %v2895 = vpop.f32.mrb[0].mxu0
  %2896 = vmatprep.mubr.bf16.mxu0 0
  %2897 = vmatmul.mubr.bf16.gmra.mrb[0].mxu0 %v1945
  %v2898 = vpop.f32.mrb[0].mxu0
  %v2899 = vadd.f32 %v563, %v2898
  %v2900 = vpop.f32.mrb[0].mxu0
  %v2901 = vpop.f32.mrb[0].mxu0
  %v2902 = vadd.f32 %v563, %v2901
  %v2903 = vpop.f32.mrb[0].mxu0
  %2904 = vmatprep.mubr.bf16.mxu0 0
  %2905 = vmatmul.mubr.bf16.gmra.mrb[0].mxu0 %v1948
  %v2906 = vpop.f32.mrb[0].mxu0
  %v2907 = vadd.f32 %v563, %v2906
  %v2908 = vpop.f32.mrb[0].mxu0
  %v2909 = vpop.f32.mrb[0].mxu0
  %v2910 = vadd.f32 %v563, %v2909
  %v2911 = vpop.f32.mrb[0].mxu0
  %2912 = vmatprep.mubr.bf16.mxu0 0
  %2913 = vmatmul.mubr.bf16.gmra.mrb[0].mxu0 %v1951
  %v2914 = vpop.f32.mrb[0].mxu0
  %v2915 = vadd.f32 %v563, %v2914
  %v2916 = vpop.f32.mrb[0].mxu0
  %v2917 = vpop.f32.mrb[0].mxu0
  %v2918 = vadd.f32 %v563, %v2917
  %v2919 = vpop.f32.mrb[0].mxu0
  %2920 = vmatprep.mubr.bf16.mxu0 0
  %2921 = vmatmul.mubr.bf16.gmra.mrb[0].mxu0 %v1954
  %v2922 = vpop.f32.mrb[0].mxu0
  %v2923 = vadd.f32 %v563, %v2922
  %v2924 = vpop.f32.mrb[0].mxu0
  %v2925 = vpop.f32.mrb[0].mxu0
  %v2926 = vadd.f32 %v563, %v2925
  %v2927 = vpop.f32.mrb[0].mxu0
  %2928 = vmatprep.mubr.bf16.mxu0 0
  %2929 = vmatmul.mubr.bf16.gmra.mrb[0].mxu0 %v1957
  %v2930 = vpop.f32.mrb[0].mxu0
  %v2931 = vadd.f32 %v563, %v2930
  %v2932 = vpop.f32.mrb[0].mxu0
  %v2933 = vpop.f32.mrb[0].mxu0
  %v2934 = vadd.f32 %v563, %v2933
  %v2935 = vpop.f32.mrb[0].mxu0
  %2936 = vmatprep.mubr.bf16.mxu0 0
  %2937 = vmatmul.mubr.bf16.gmra.mrb[0].mxu0 %v1960
  %v2938 = vpop.f32.mrb[0].mxu0
  %v2939 = vadd.f32 %v563, %v2938
  %v2940 = vpop.f32.mrb[0].mxu0
  %v2941 = vpop.f32.mrb[0].mxu0
  %v2942 = vadd.f32 %v563, %v2941
  %v2943 = vpop.f32.mrb[0].mxu0
  %2944 = vmatprep.mubr.bf16.mxu0 0
  %2945 = vmatmul.mubr.bf16.gmra.mrb[0].mxu0 %v1963
  %v2946 = vpop.f32.mrb[0].mxu0
  %v2947 = vadd.f32 %v563, %v2946
  %v2948 = vpop.f32.mrb[0].mxu0
  %v2949 = vpop.f32.mrb[0].mxu0
  %v2950 = vadd.f32 %v563, %v2949
  %v2951 = vpop.f32.mrb[0].mxu0
  %2952 = vmatprep.mubr.bf16.mxu0 0
  %2953 = vmatmul.mubr.bf16.gmra.mrb[0].mxu0 %v1966
  %v2954 = vpop.f32.mrb[0].mxu0
  %v2955 = vadd.f32 %v563, %v2954
  %v2956 = vpop.f32.mrb[0].mxu0
  %v2957 = vpop.f32.mrb[0].mxu0
  %v2958 = vadd.f32 %v563, %v2957
  %v2959 = vpop.f32.mrb[0].mxu0
  %2960 = vmatprep.mubr.bf16.mxu0 0
  %2961 = vmatmul.mubr.bf16.gmra.mrb[0].mxu0 %v1969
  %v2962 = vpop.f32.mrb[0].mxu0
  %v2963 = vadd.f32 %v563, %v2962
  %v2964 = vpop.f32.mrb[0].mxu0
  %v2965 = vpop.f32.mrb[0].mxu0
  %v2966 = vadd.f32 %v563, %v2965
  %v2967 = vpop.f32.mrb[0].mxu0
  %2968 = vmatprep.mubr.bf16.mxu0 0
  %2969 = vmatmul.mubr.bf16.gmra.mrb[0].mxu0 %v1972
  %v2970 = vpop.f32.mrb[0].mxu0
  %v2971 = vadd.f32 %v563, %v2970
  %v2972 = vpop.f32.mrb[0].mxu0
  %v2973 = vpop.f32.mrb[0].mxu0
  %v2974 = vadd.f32 %v563, %v2973
  %v2975 = vpop.f32.mrb[0].mxu0
  %2976 = vmatprep.mubr.bf16.mxu0 0
  %2977 = vmatmul.mubr.bf16.gmra.mrb[0].mxu0 %v1975
  %v2978 = vpop.f32.mrb[0].mxu0
  %v2979 = vadd.f32 %v563, %v2978
  %v2980 = vpop.f32.mrb[0].mxu0
  %v2981 = vpop.f32.mrb[0].mxu0
  %v2982 = vadd.f32 %v563, %v2981
  %v2983 = vpop.f32.mrb[0].mxu0
  %2984 = vmatprep.mubr.bf16.mxu0 0
  %2985 = vmatmul.mubr.bf16.gmra.mrb[0].mxu0 %v1978
  %v2986 = vpop.f32.mrb[0].mxu0
  %v2987 = vadd.f32 %v563, %v2986
  %v2988 = vpop.f32.mrb[0].mxu0
  %v2989 = vpop.f32.mrb[0].mxu0
  %v2990 = vadd.f32 %v563, %v2989
  %v2991 = vpop.f32.mrb[0].mxu0
  %2992 = vmatprep.mubr.bf16.mxu0 0
  %2993 = vmatmul.mubr.bf16.gmra.mrb[0].mxu0 %v1981
  %v2994 = vpop.f32.mrb[0].mxu0
  %v2995 = vadd.f32 %v563, %v2994
  %v2996 = vpop.f32.mrb[0].mxu0
  %v2997 = vpop.f32.mrb[0].mxu0
  %v2998 = vadd.f32 %v563, %v2997
  %v2999 = vpop.f32.mrb[0].mxu0
  %3000 = vmatprep.mubr.bf16.mxu0 0
  %3001 = vmatmul.mubr.bf16.gmra.mrb[0].mxu0 %v1984
  %v3002 = vpop.f32.mrb[0].mxu0
  %v3003 = vadd.f32 %v563, %v3002
  %v3004 = vpop.f32.mrb[0].mxu0
  %v3005 = vpop.f32.mrb[0].mxu0
  %v3006 = vadd.f32 %v563, %v3005
  %v3007 = vpop.f32.mrb[0].mxu0
  %3008 = vmatprep.mubr.bf16.mxu0 0
  %3009 = vmatmul.mubr.bf16.gmra.mrb[0].mxu0 %v1987
  %v3010 = vpop.f32.mrb[0].mxu0
  %v3011 = vadd.f32 %v563, %v3010
  %v3012 = vpop.f32.mrb[0].mxu0
  %v3013 = vpop.f32.mrb[0].mxu0
  %v3014 = vadd.f32 %v563, %v3013
  %v3015 = vpop.f32.mrb[0].mxu0
  %3016 = vmatprep.mubr.bf16.mxu0 0
  %3017 = vmatmul.mubr.bf16.gmra.mrb[0].mxu0 %v1990
  %v3018 = vpop.f32.mrb[0].mxu0
  %v3019 = vadd.f32 %v563, %v3018
  %v3020 = vpop.f32.mrb[0].mxu0
  %v3021 = vpop.f32.mrb[0].mxu0
  %v3022 = vadd.f32 %v563, %v3021
  %v3023 = vpop.f32.mrb[0].mxu0
  %3024 = vmatprep.mubr.bf16.mxu0 0
  %3025 = vmatmul.mubr.bf16.gmra.mrb[0].mxu0 %v1993
  %v3026 = vpop.f32.mrb[0].mxu0
  %v3027 = vadd.f32 %v563, %v3026
  %v3028 = vpop.f32.mrb[0].mxu0
  %v3029 = vpop.f32.mrb[0].mxu0
  %v3030 = vadd.f32 %v563, %v3029
  %v3031 = vpop.f32.mrb[0].mxu0
  %3032 = vmatprep.mubr.bf16.mxu0 0
  %3033 = vmatmul.mubr.bf16.gmra.mrb[0].mxu0 %v1996
  %v3034 = vpop.f32.mrb[0].mxu0
  %v3035 = vadd.f32 %v563, %v3034
  %v3036 = vpop.f32.mrb[0].mxu0
  %v3037 = vpop.f32.mrb[0].mxu0
  %v3038 = vadd.f32 %v563, %v3037
  %v3039 = vpop.f32.mrb[0].mxu0
  %3040 = vmatprep.mubr.bf16.mxu0 0
  %3041 = vmatmul.mubr.bf16.gmra.mrb[0].mxu0 %v1999
  %v3042 = vpop.f32.mrb[0].mxu0
  %v3043 = vadd.f32 %v563, %v3042
  %v3044 = vpop.f32.mrb[0].mxu0
  %v3045 = vpop.f32.mrb[0].mxu0
  %v3046 = vadd.f32 %v563, %v3045
  %v3047 = vpop.f32.mrb[0].mxu0
  %3048 = vmatprep.mubr.bf16.mxu0 0
  %3049 = vmatmul.mubr.bf16.gmra.mrb[0].mxu0 %v2002
  %v3050 = vpop.f32.mrb[0].mxu0
  %v3051 = vadd.f32 %v563, %v3050
  %v3052 = vpop.f32.mrb[0].mxu0
  %v3053 = vpop.f32.mrb[0].mxu0
  %v3054 = vadd.f32 %v563, %v3053
  %v3055 = vpop.f32.mrb[0].mxu0
  %3056 = vmatprep.mubr.bf16.mxu0 0
  %3057 = vmatmul.mubr.bf16.gmra.mrb[0].mxu0 %v2005
  %v3058 = vpop.f32.mrb[0].mxu0
  %v3059 = vadd.f32 %v563, %v3058
  %v3060 = vpop.f32.mrb[0].mxu0
  %v3061 = vpop.f32.mrb[0].mxu0
  %v3062 = vadd.f32 %v563, %v3061
  %v3063 = vpop.f32.mrb[0].mxu0
  %3064 = vmatprep.mubr.bf16.mxu0 0
  %3065 = vmatmul.mubr.bf16.gmra.mrb[0].mxu0 %v2008
  %v3066 = vpop.f32.mrb[0].mxu0
  %v3067 = vadd.f32 %v563, %v3066
  %v3068 = vpop.f32.mrb[0].mxu0
  %v3069 = vpop.f32.mrb[0].mxu0
  %v3070 = vadd.f32 %v563, %v3069
  %v3071 = vpop.f32.mrb[0].mxu0
  %3072 = vmatprep.mubr.bf16.mxu0 0
  %3073 = vmatmul.mubr.bf16.gmra.mrb[0].mxu0 %v2011
  %v3074 = vpop.f32.mrb[0].mxu0
  %v3075 = vadd.f32 %v563, %v3074
  %v3076 = vpop.f32.mrb[0].mxu0
  %v3077 = vpop.f32.mrb[0].mxu0
  %v3078 = vadd.f32 %v563, %v3077
  %v3079 = vpop.f32.mrb[0].mxu0
  %3080 = vmatprep.mubr.bf16.mxu0 0
  %3081 = vmatmul.mubr.bf16.gmra.mrb[0].mxu0 %v2014
  %v3082 = vpop.f32.mrb[0].mxu0
  %v3083 = vadd.f32 %v563, %v3082
  %v3084 = vpop.f32.mrb[0].mxu0
  %v3085 = vpop.f32.mrb[0].mxu0
  %v3086 = vadd.f32 %v563, %v3085
  %v3087 = vpop.f32.mrb[0].mxu0
  %3088 = vmatprep.mubr.bf16.mxu0 0
  %3089 = vmatmul.mubr.bf16.gmra.mrb[0].mxu0 %v2017
  %v3090 = vpop.f32.mrb[0].mxu0
  %v3091 = vadd.f32 %v563, %v3090
  %v3092 = vpop.f32.mrb[0].mxu0
  %v3093 = vpop.f32.mrb[0].mxu0
  %v3094 = vadd.f32 %v563, %v3093
  %v3095 = vpop.f32.mrb[0].mxu0
  %3096 = vmatprep.mubr.bf16.mxu0 0
  %3097 = vmatmul.mubr.bf16.gmra.mrb[0].mxu0 %v2020
  %v3098 = vpop.f32.mrb[0].mxu0
  %v3099 = vadd.f32 %v563, %v3098
  %v3100 = vpop.f32.mrb[0].mxu0
  %v3101 = vpop.f32.mrb[0].mxu0
  %v3102 = vadd.f32 %v563, %v3101
  %v3103 = vpop.f32.mrb[0].mxu0
  %3104 = vmatprep.mubr.bf16.mxu0 0
  %3105 = vmatmul.mubr.bf16.gmra.mrb[0].mxu0 %v2023
  %v3106 = vpop.f32.mrb[0].mxu0
  %v3107 = vadd.f32 %v563, %v3106
  %v3108 = vpop.f32.mrb[0].mxu0
  %v3109 = vpop.f32.mrb[0].mxu0
  %v3110 = vadd.f32 %v563, %v3109
  %v3111 = vpop.f32.mrb[0].mxu0
  %3112 = vmatprep.mubr.bf16.mxu0 0
  %3113 = vmatmul.mubr.bf16.gmra.mrb[0].mxu0 %v2026
  %v3114 = vpop.f32.mrb[0].mxu0
  %v3115 = vadd.f32 %v563, %v3114
  %v3116 = vpop.f32.mrb[0].mxu0
  %v3117 = vpop.f32.mrb[0].mxu0
  %v3118 = vadd.f32 %v563, %v3117
  %v3119 = vpop.f32.mrb[0].mxu0
  %3120 = vmatprep.mubr.bf16.mxu0 0
  %3121 = vmatmul.mubr.bf16.gmra.mrb[0].mxu0 %v2029
  %v3122 = vpop.f32.mrb[0].mxu0
  %v3123 = vadd.f32 %v563, %v3122
  %v3124 = vpop.f32.mrb[0].mxu0
  %v3125 = vpop.f32.mrb[0].mxu0
  %v3126 = vadd.f32 %v563, %v3125
  %v3127 = vpop.f32.mrb[0].mxu0
  %3128 = vmatprep.mubr.bf16.mxu0 0
  %3129 = vmatmul.mubr.bf16.gmra.mrb[0].mxu0 %v2032
  %v3130 = vpop.f32.mrb[0].mxu0
  %v3131 = vadd.f32 %v563, %v3130
  %v3132 = vpop.f32.mrb[0].mxu0
  %v3133 = vpop.f32.mrb[0].mxu0
  %v3134 = vadd.f32 %v563, %v3133
  %v3135 = vpop.f32.mrb[0].mxu0
  %3136 = vmatprep.mubr.bf16.mxu0 0
  %3137 = vmatmul.mubr.bf16.gmra.mrb[0].mxu0 %v2035
  %v3138 = vpop.f32.mrb[0].mxu0
  %v3139 = vadd.f32 %v563, %v3138
  %v3140 = vpop.f32.mrb[0].mxu0
  %v3141 = vpop.f32.mrb[0].mxu0
  %v3142 = vadd.f32 %v563, %v3141
  %v3143 = vpop.f32.mrb[0].mxu0
  %3144 = vmatprep.mubr.bf16.mxu0 0
  %3145 = vmatmul.mubr.bf16.gmra.mrb[0].mxu0 %v2038
  %v3146 = vpop.f32.mrb[0].mxu0
  %v3147 = vadd.f32 %v563, %v3146
  %v3148 = vpop.f32.mrb[0].mxu0
  %v3149 = vpop.f32.mrb[0].mxu0
  %v3150 = vadd.f32 %v563, %v3149
  %v3151 = vpop.f32.mrb[0].mxu0
  %3152 = vmatprep.mubr.bf16.mxu0 0
  %3153 = vmatmul.mubr.bf16.gmra.mrb[0].mxu0 %v2041
  %v3154 = vpop.f32.mrb[0].mxu0
  %v3155 = vadd.f32 %v563, %v3154
  %v3156 = vpop.f32.mrb[0].mxu0
  %v3157 = vpop.f32.mrb[0].mxu0
  %v3158 = vadd.f32 %v563, %v3157
  %v3159 = vpop.f32.mrb[0].mxu0
  %3160 = vmatprep.mubr.bf16.mxu0 0
  %3161 = vmatmul.mubr.bf16.gmra.mrb[0].mxu0 %v2044
  %v3162 = vpop.f32.mrb[0].mxu0
  %v3163 = vadd.f32 %v563, %v3162
  %v3164 = vpop.f32.mrb[0].mxu0
  %v3165 = vpop.f32.mrb[0].mxu0
  %v3166 = vadd.f32 %v563, %v3165
  %v3167 = vpop.f32.mrb[0].mxu0
  %3168 = vmatprep.mubr.bf16.mxu0 0
  %3169 = vmatmul.mubr.bf16.gmra.mrb[0].mxu0 %v2047
  %v3170 = vpop.f32.mrb[0].mxu0
  %v3171 = vadd.f32 %v563, %v3170
  %v3172 = vpop.f32.mrb[0].mxu0
  %v3173 = vpop.f32.mrb[0].mxu0
  %v3174 = vadd.f32 %v563, %v3173
  %v3175 = vpop.f32.mrb[0].mxu0
  %3176 = vmatprep.mubr.bf16.mxu0 0
  %3177 = vmatmul.mubr.bf16.gmra.mrb[0].mxu0 %v2050
  %v3178 = vpop.f32.mrb[0].mxu0
  %v3179 = vadd.f32 %v563, %v3178
  %v3180 = vpop.f32.mrb[0].mxu0
  %v3181 = vpop.f32.mrb[0].mxu0
  %v3182 = vadd.f32 %v563, %v3181
  %v3183 = vpop.f32.mrb[0].mxu0
  %3184 = vmatprep.mubr.bf16.mxu0 0
  %3185 = vmatmul.mubr.bf16.gmra.mrb[0].mxu0 %v2053
  %v3186 = vpop.f32.mrb[0].mxu0
  %v3187 = vadd.f32 %v563, %v3186
  %v3188 = vpop.f32.mrb[0].mxu0
  %v3189 = vpop.f32.mrb[0].mxu0
  %v3190 = vadd.f32 %v563, %v3189
  %v3191 = vpop.f32.mrb[0].mxu0
  %3192 = vmatprep.mubr.bf16.mxu0 0
  %3193 = vmatmul.mubr.bf16.gmra.mrb[0].mxu0 %v2056
  %v3194 = vpop.f32.mrb[0].mxu0
  %v3195 = vadd.f32 %v563, %v3194
  %v3196 = vpop.f32.mrb[0].mxu0
  %v3197 = vpop.f32.mrb[0].mxu0
  %v3198 = vadd.f32 %v563, %v3197
  %v3199 = vpop.f32.mrb[0].mxu0
  %3200 = vmatprep.mubr.bf16.mxu0 0
  %3201 = vmatmul.mubr.bf16.gmra.mrb[0].mxu0 %v2059
  %v3202 = vpop.f32.mrb[0].mxu0
  %v3203 = vadd.f32 %v563, %v3202
  %v3204 = vpop.f32.mrb[0].mxu0
  %v3205 = vpop.f32.mrb[0].mxu0
  %v3206 = vadd.f32 %v563, %v3205
  %v3207 = vpop.f32.mrb[0].mxu0
  %3208 = vmatprep.mubr.bf16.mxu0 0
  %3209 = vmatmul.mubr.bf16.gmra.mrb[0].mxu0 %v2062
  %v3210 = vpop.f32.mrb[0].mxu0
  %v3211 = vadd.f32 %v563, %v3210
  %v3212 = vpop.f32.mrb[0].mxu0
  %v3213 = vpop.f32.mrb[0].mxu0
  %v3214 = vadd.f32 %v563, %v3213
  %v3215 = vpop.f32.mrb[0].mxu0
  %3216 = vmatprep.mubr.bf16.mxu0 0
  %3217 = vmatmul.mubr.bf16.gmra.mrb[0].mxu0 %v2065
  %v3218 = vpop.f32.mrb[0].mxu0
  %v3219 = vadd.f32 %v563, %v3218
  %v3220 = vpop.f32.mrb[0].mxu0
  %v3221 = vpop.f32.mrb[0].mxu0
  %v3222 = vadd.f32 %v563, %v3221
  %v3223 = vpop.f32.mrb[0].mxu0
  %3224 = vmatprep.mubr.bf16.mxu0 0
  %3225 = vmatmul.mubr.bf16.gmra.mrb[0].mxu0 %v2068
  %v3226 = vpop.f32.mrb[0].mxu0
  %v3227 = vadd.f32 %v563, %v3226
  %v3228 = vpop.f32.mrb[0].mxu0
  %v3229 = vpop.f32.mrb[0].mxu0
  %v3230 = vadd.f32 %v563, %v3229
  %v3231 = vpop.f32.mrb[0].mxu0
  %3232 = vmatprep.mubr.bf16.mxu0 0
  %3233 = vmatmul.mubr.bf16.gmra.mrb[0].mxu0 %v2071
  %v3234 = vpop.f32.mrb[0].mxu0
  %v3235 = vadd.f32 %v563, %v3234
  %v3236 = vpop.f32.mrb[0].mxu0
  %v3237 = vpop.f32.mrb[0].mxu0
  %v3238 = vadd.f32 %v563, %v3237
  %v3239 = vpop.f32.mrb[0].mxu0
  %3240 = vmatprep.mubr.bf16.mxu0 0
  %3241 = vmatmul.mubr.bf16.gmra.mrb[0].mxu0 %v2074
  %v3242 = vpop.f32.mrb[0].mxu0
  %v3243 = vadd.f32 %v563, %v3242
  %v3244 = vpop.f32.mrb[0].mxu0
  %v3245 = vpop.f32.mrb[0].mxu0
  %v3246 = vadd.f32 %v563, %v3245
  %v3247 = vpop.f32.mrb[0].mxu0
  %3248 = vmatprep.mubr.bf16.mxu0 0
  %3249 = vmatmul.mubr.bf16.gmra.mrb[0].mxu0 %v2077
  %v3250 = vpop.f32.mrb[0].mxu0
  %v3251 = vadd.f32 %v563, %v3250
  %v3252 = vpop.f32.mrb[0].mxu0
  %v3253 = vpop.f32.mrb[0].mxu0
  %v3254 = vadd.f32 %v563, %v3253
  %v3255 = vpop.f32.mrb[0].mxu0
  %3256 = vmatprep.mubr.bf16.mxu0 0
  %3257 = vmatmul.mubr.bf16.gmra.mrb[0].mxu0 %v2080
  %v3258 = vpop.f32.mrb[0].mxu0
  %v3259 = vadd.f32 %v563, %v3258
  %v3260 = vpop.f32.mrb[0].mxu0
  %v3261 = vpop.f32.mrb[0].mxu0
  %v3262 = vadd.f32 %v563, %v3261
  %v3263 = vpop.f32.mrb[0].mxu0
  %3264 = vmatprep.mubr.bf16.mxu0 0
  %3265 = vmatmul.mubr.bf16.gmra.mrb[0].mxu0 %v2083
  %v3266 = vpop.f32.mrb[0].mxu0
  %v3267 = vadd.f32 %v563, %v3266
  %v3268 = vpop.f32.mrb[0].mxu0
  %v3269 = vpop.f32.mrb[0].mxu0
  %v3270 = vadd.f32 %v563, %v3269
  %v3271 = vpop.f32.mrb[0].mxu0
  %3272 = vmatprep.mubr.bf16.mxu0 0
  %3273 = vmatmul.mubr.bf16.gmra.mrb[0].mxu0 %v2086
  %v3274 = vpop.f32.mrb[0].mxu0
  %v3275 = vadd.f32 %v563, %v3274
  %v3276 = vpop.f32.mrb[0].mxu0
  %v3277 = vpop.f32.mrb[0].mxu0
  %v3278 = vadd.f32 %v563, %v3277
  %v3279 = vpop.f32.mrb[0].mxu0
  %3280 = vmatprep.mubr.bf16.mxu0 0
  %3281 = vmatmul.mubr.bf16.gmra.mrb[0].mxu0 %v2089
  %v3282 = vpop.f32.mrb[0].mxu0
  %v3283 = vadd.f32 %v563, %v3282
  %v3284 = vpop.f32.mrb[0].mxu0
  %v3285 = vpop.f32.mrb[0].mxu0
  %v3286 = vadd.f32 %v563, %v3285
  %v3287 = vpop.f32.mrb[0].mxu0
  %3288 = vmatprep.mubr.bf16.mxu0 0
  %3289 = vmatmul.mubr.bf16.gmra.mrb[0].mxu0 %v2092
  %v3290 = vpop.f32.mrb[0].mxu0
  %v3291 = vadd.f32 %v563, %v3290
  %v3292 = vpop.f32.mrb[0].mxu0
  %v3293 = vpop.f32.mrb[0].mxu0
  %v3294 = vadd.f32 %v563, %v3293
  %v3295 = vpop.f32.mrb[0].mxu0
  %3296 = vmatprep.mubr.bf16.mxu0 0
  %3297 = vmatmul.mubr.bf16.gmra.mrb[0].mxu0 %v2095
  %v3298 = vpop.f32.mrb[0].mxu0
  %v3299 = vadd.f32 %v563, %v3298
  %v3300 = vpop.f32.mrb[0].mxu0
  %v3301 = vpop.f32.mrb[0].mxu0
  %v3302 = vadd.f32 %v563, %v3301
  %v3303 = vpop.f32.mrb[0].mxu0
  %3304 = vmatprep.mubr.bf16.mxu0 0
  %3305 = vmatmul.mubr.bf16.gmra.mrb[0].mxu0 %v2098
  %v3306 = vpop.f32.mrb[0].mxu0
  %v3307 = vadd.f32 %v563, %v3306
  %v3308 = vpop.f32.mrb[0].mxu0
  %v3309 = vpop.f32.mrb[0].mxu0
  %v3310 = vadd.f32 %v563, %v3309
  %v3311 = vpop.f32.mrb[0].mxu0
  %3312 = vmatprep.mubr.bf16.mxu0 0
  %3313 = vmatmul.mubr.bf16.gmra.mrb[0].mxu0 %v2101
  %v3314 = vpop.f32.mrb[0].mxu0
  %v3315 = vadd.f32 %v563, %v3314
  %v3316 = vpop.f32.mrb[0].mxu0
  %v3317 = vpop.f32.mrb[0].mxu0
  %v3318 = vadd.f32 %v563, %v3317
  %v3319 = vpop.f32.mrb[0].mxu0
  %3320 = vmatprep.mubr.bf16.mxu0 0
  %3321 = vmatmul.mubr.bf16.gmra.mrb[0].mxu0 %v2104
  %v3322 = vpop.f32.mrb[0].mxu0
  %v3323 = vadd.f32 %v563, %v3322
  %v3324 = vpop.f32.mrb[0].mxu0
  %v3325 = vpop.f32.mrb[0].mxu0
  %v3326 = vadd.f32 %v563, %v3325
  %v3327 = vpop.f32.mrb[0].mxu0
  %3328 = vmatprep.mubr.bf16.mxu0 0
  %3329 = vmatmul.mubr.bf16.gmra.mrb[0].mxu0 %v2107
  %v3330 = vpop.f32.mrb[0].mxu0
  %v3331 = vadd.f32 %v563, %v3330
  %v3332 = vpop.f32.mrb[0].mxu0
  %v3333 = vpop.f32.mrb[0].mxu0
  %v3334 = vadd.f32 %v563, %v3333
  %v3335 = vpop.f32.mrb[0].mxu0
  %3336 = vmatprep.mubr.bf16.mxu0 0
  %3337 = vmatmul.mubr.bf16.gmra.mrb[0].mxu0 %v2110
  %v3338 = vpop.f32.mrb[0].mxu0
  %v3339 = vadd.f32 %v563, %v3338
  %v3340 = vpop.f32.mrb[0].mxu0
  %v3341 = vpop.f32.mrb[0].mxu0
  %v3342 = vadd.f32 %v563, %v3341
  %v3343 = vpop.f32.mrb[0].mxu0
  %3344 = vmatprep.mubr.bf16.mxu0 0
  %3345 = vmatmul.mubr.bf16.gmra.mrb[0].mxu0 %v2113
  %v3346 = vpop.f32.mrb[0].mxu0
  %v3347 = vadd.f32 %v563, %v3346
  %v3348 = vpop.f32.mrb[0].mxu0
  %v3349 = vpop.f32.mrb[0].mxu0
  %v3350 = vadd.f32 %v563, %v3349
  %v3351 = vpop.f32.mrb[0].mxu0
  %3352 = vmatprep.mubr.bf16.mxu0 0
  %3353 = vmatmul.mubr.bf16.gmra.mrb[0].mxu0 %v2116
  %v3354 = vpop.f32.mrb[0].mxu0
  %v3355 = vadd.f32 %v563, %v3354
  %v3356 = vpop.f32.mrb[0].mxu0
  %v3357 = vpop.f32.mrb[0].mxu0
  %v3358 = vadd.f32 %v563, %v3357
  %v3359 = vpop.f32.mrb[0].mxu0
  %3360 = vmatprep.mubr.bf16.mxu0 0
  %3361 = vmatmul.mubr.bf16.gmra.mrb[0].mxu0 %v2119
  %v3362 = vpop.f32.mrb[0].mxu0
  %v3363 = vadd.f32 %v563, %v3362
  %v3364 = vpop.f32.mrb[0].mxu0
  %v3365 = vpop.f32.mrb[0].mxu0
  %v3366 = vadd.f32 %v563, %v3365
  %v3367 = vpop.f32.mrb[0].mxu0
  %3368 = vmatprep.mubr.bf16.mxu0 0
  %3369 = vmatmul.mubr.bf16.gmra.mrb[0].mxu0 %v2122
  %v3370 = vpop.f32.mrb[0].mxu0
  %v3371 = vadd.f32 %v563, %v3370
  %v3372 = vpop.f32.mrb[0].mxu0
  %v3373 = vpop.f32.mrb[0].mxu0
  %v3374 = vadd.f32 %v563, %v3373
  %v3375 = vpop.f32.mrb[0].mxu0
  %3376 = vmatprep.mubr.bf16.mxu0 0
  %3377 = vmatmul.mubr.bf16.gmra.mrb[0].mxu0 %v2125
  %v3378 = vpop.f32.mrb[0].mxu0
  %v3379 = vadd.f32 %v563, %v3378
  %v3380 = vpop.f32.mrb[0].mxu0
  %v3381 = vpop.f32.mrb[0].mxu0
  %v3382 = vadd.f32 %v563, %v3381
  %v3383 = vpop.f32.mrb[0].mxu0
  %3384 = vmatprep.mubr.bf16.mxu0 0
  %3385 = vmatmul.mubr.bf16.gmra.mrb[0].mxu0 %v2128
  %v3386 = vpop.f32.mrb[0].mxu0
  %v3387 = vadd.f32 %v563, %v3386
  %v3388 = vpop.f32.mrb[0].mxu0
  %v3389 = vpop.f32.mrb[0].mxu0
  %v3390 = vadd.f32 %v563, %v3389
  %v3391 = vpop.f32.mrb[0].mxu0
  %3392 = vmatprep.mubr.bf16.mxu0 0
  %3393 = vmatmul.mubr.bf16.gmra.mrb[0].mxu0 %v2131
  %v3394 = vpop.f32.mrb[0].mxu0
  %v3395 = vadd.f32 %v563, %v3394
  %v3396 = vpop.f32.mrb[0].mxu0
  %v3397 = vpop.f32.mrb[0].mxu0
  %v3398 = vadd.f32 %v563, %v3397
  %v3399 = vpop.f32.mrb[0].mxu0
  %3400 = vmatprep.mubr.bf16.mxu0 0
  %3401 = vmatmul.mubr.bf16.gmra.mrb[0].mxu0 %v2134
  %v3402 = vpop.f32.mrb[0].mxu0
  %v3403 = vadd.f32 %v563, %v3402
  %v3404 = vpop.f32.mrb[0].mxu0
  %v3405 = vpop.f32.mrb[0].mxu0
  %v3406 = vadd.f32 %v563, %v3405
  %v3407 = vpop.f32.mrb[0].mxu0
  %3408 = vmatprep.mubr.bf16.mxu0 0
  %3409 = vmatmul.mubr.bf16.gmra.mrb[0].mxu0 %v2137
  %v3410 = vpop.f32.mrb[0].mxu0
  %v3411 = vadd.f32 %v563, %v3410
  %v3412 = vpop.f32.mrb[0].mxu0
  %v3413 = vpop.f32.mrb[0].mxu0
  %v3414 = vadd.f32 %v563, %v3413
  %v3415 = vpop.f32.mrb[0].mxu0
  %3416 = vmatprep.mubr.bf16.mxu0 0
  %3417 = vmatmul.mubr.bf16.gmra.mrb[0].mxu0 %v2140
  %v3418 = vpop.f32.mrb[0].mxu0
  %v3419 = vadd.f32 %v563, %v3418
  %v3420 = vpop.f32.mrb[0].mxu0
  %v3421 = vpop.f32.mrb[0].mxu0
  %v3422 = vadd.f32 %v563, %v3421
  %v3423 = vpop.f32.mrb[0].mxu0
  %3424 = vmatprep.mubr.bf16.mxu0 0
  %3425 = vmatmul.mubr.bf16.gmra.mrb[0].mxu0 %v2143
  %v3426 = vpop.f32.mrb[0].mxu0
  %v3427 = vadd.f32 %v563, %v3426
  %v3428 = vpop.f32.mrb[0].mxu0
  %v3429 = vpop.f32.mrb[0].mxu0
  %v3430 = vadd.f32 %v563, %v3429
  %v3431 = vpop.f32.mrb[0].mxu0
  %3432 = vmatprep.mubr.bf16.mxu0 0
  %3433 = vmatmul.mubr.bf16.gmra.mrb[0].mxu0 %v2146
  %v3434 = vpop.f32.mrb[0].mxu0
  %v3435 = vadd.f32 %v563, %v3434
  %v3436 = vpop.f32.mrb[0].mxu0
  %v3437 = vpop.f32.mrb[0].mxu0
  %v3438 = vadd.f32 %v563, %v3437
  %v3439 = vpop.f32.mrb[0].mxu0
  %3440 = vmatprep.mubr.bf16.mxu0 0
  %3441 = vmatmul.mubr.bf16.gmra.mrb[0].mxu0 %v2149
  %v3442 = vpop.f32.mrb[0].mxu0
  %v3443 = vadd.f32 %v563, %v3442
  %v3444 = vpop.f32.mrb[0].mxu0
  %v3445 = vpop.f32.mrb[0].mxu0
  %v3446 = vadd.f32 %v563, %v3445
  %v3447 = vpop.f32.mrb[0].mxu0
  %3448 = vmatprep.mubr.bf16.mxu0 0
  %3449 = vmatmul.mubr.bf16.gmra.mrb[0].mxu0 %v2152
  %v3450 = vpop.f32.mrb[0].mxu0
  %v3451 = vadd.f32 %v563, %v3450
  %v3452 = vpop.f32.mrb[0].mxu0
  %v3453 = vpop.f32.mrb[0].mxu0
  %v3454 = vadd.f32 %v563, %v3453
  %v3455 = vpop.f32.mrb[0].mxu0
  %3456 = vmatprep.mubr.bf16.mxu0 0
  %3457 = vmatmul.mubr.bf16.gmra.mrb[0].mxu0 %v2155
  %v3458 = vpop.f32.mrb[0].mxu0
  %v3459 = vadd.f32 %v563, %v3458
  %v3460 = vpop.f32.mrb[0].mxu0
  %v3461 = vpop.f32.mrb[0].mxu0
  %v3462 = vadd.f32 %v563, %v3461
  %v3463 = vpop.f32.mrb[0].mxu0
  %3464 = vmatprep.mubr.bf16.mxu0 0
  %3465 = vmatmul.mubr.bf16.gmra.mrb[0].mxu0 %v2158
  %v3466 = vpop.f32.mrb[0].mxu0
  %v3467 = vadd.f32 %v563, %v3466
  %v3468 = vpop.f32.mrb[0].mxu0
  %v3469 = vpop.f32.mrb[0].mxu0
  %v3470 = vadd.f32 %v563, %v3469
  %v3471 = vpop.f32.mrb[0].mxu0
  %3472 = vmatprep.mubr.bf16.mxu0 0
  %3473 = vmatmul.mubr.bf16.gmra.mrb[0].mxu0 %v2161
  %v3474 = vpop.f32.mrb[0].mxu0
  %v3475 = vadd.f32 %v563, %v3474
  %v3476 = vpop.f32.mrb[0].mxu0
  %v3477 = vpop.f32.mrb[0].mxu0
  %v3478 = vadd.f32 %v563, %v3477
  %v3479 = vpop.f32.mrb[0].mxu0
  %3480 = vmatprep.mubr.bf16.mxu0 0
  %3481 = vmatmul.mubr.bf16.gmra.mrb[0].mxu0 %v2164
  %v3482 = vpop.f32.mrb[0].mxu0
  %v3483 = vadd.f32 %v563, %v3482
  %v3484 = vpop.f32.mrb[0].mxu0
  %v3485 = vpop.f32.mrb[0].mxu0
  %v3486 = vadd.f32 %v563, %v3485
  %v3487 = vpop.f32.mrb[0].mxu0
  %3488 = vmatprep.mubr.bf16.mxu0 0
  %3489 = vmatmul.mubr.bf16.gmra.mrb[0].mxu0 %v2167
  %v3490 = vpop.f32.mrb[0].mxu0
  %v3491 = vadd.f32 %v563, %v3490
  %v3492 = vpop.f32.mrb[0].mxu0
  %v3493 = vpop.f32.mrb[0].mxu0
  %v3494 = vadd.f32 %v563, %v3493
  %v3495 = vpop.f32.mrb[0].mxu0
  %3496 = vmatprep.mubr.bf16.mxu0 0
  %3497 = vmatmul.mubr.bf16.gmra.mrb[0].mxu0 %v2170
  %v3498 = vpop.f32.mrb[0].mxu0
  %v3499 = vadd.f32 %v563, %v3498
  %v3500 = vpop.f32.mrb[0].mxu0
  %v3501 = vpop.f32.mrb[0].mxu0
  %v3502 = vadd.f32 %v563, %v3501
  %v3503 = vpop.f32.mrb[0].mxu0
  %3504 = vmatprep.mubr.bf16.mxu0 0
  %3505 = vmatmul.mubr.bf16.gmra.mrb[0].mxu0 %v2173
  %v3506 = vpop.f32.mrb[0].mxu0
  %v3507 = vadd.f32 %v563, %v3506
  %v3508 = vpop.f32.mrb[0].mxu0
  %v3509 = vpop.f32.mrb[0].mxu0
  %v3510 = vadd.f32 %v563, %v3509
  %v3511 = vpop.f32.mrb[0].mxu0
  %3512 = vmatprep.mubr.bf16.mxu0 0
  %3513 = vmatmul.mubr.bf16.gmra.mrb[0].mxu0 %v2176
  %v3514 = vpop.f32.mrb[0].mxu0
  %v3515 = vadd.f32 %v563, %v3514
  %v3516 = vpop.f32.mrb[0].mxu0
  %v3517 = vpop.f32.mrb[0].mxu0
  %v3518 = vadd.f32 %v563, %v3517
  %v3519 = vpop.f32.mrb[0].mxu0
  %3520 = vmatprep.mubr.bf16.mxu0 0
  %3521 = vmatmul.mubr.bf16.gmra.mrb[0].mxu0 %v2179
  %v3522 = vpop.f32.mrb[0].mxu0
  %v3523 = vadd.f32 %v563, %v3522
  %v3524 = vpop.f32.mrb[0].mxu0
  %v3525 = vpop.f32.mrb[0].mxu0
  %v3526 = vadd.f32 %v563, %v3525
  %v3527 = vpop.f32.mrb[0].mxu0
  %3528 = vmatprep.mubr.bf16.mxu0 0
  %3529 = vmatmul.mubr.bf16.gmra.mrb[0].mxu0 %v2182
  %v3530 = vpop.f32.mrb[0].mxu0
  %v3531 = vadd.f32 %v563, %v3530
  %v3532 = vpop.f32.mrb[0].mxu0
  %v3533 = vpop.f32.mrb[0].mxu0
  %v3534 = vadd.f32 %v563, %v3533
  %v3535 = vpop.f32.mrb[0].mxu0
  %3536 = vmatprep.mubr.bf16.mxu0 0
  %3537 = vmatmul.mubr.bf16.gmra.mrb[0].mxu0 %v2185
  %v3538 = vpop.f32.mrb[0].mxu0
  %v3539 = vadd.f32 %v563, %v3538
  %v3540 = vpop.f32.mrb[0].mxu0
  %v3541 = vpop.f32.mrb[0].mxu0
  %v3542 = vadd.f32 %v563, %v3541
  %v3543 = vpop.f32.mrb[0].mxu0
  %3544 = vmatprep.mubr.bf16.mxu0 0
  %3545 = vmatmul.mubr.bf16.gmra.mrb[0].mxu0 %v2188
  %v3546 = vpop.f32.mrb[0].mxu0
  %v3547 = vadd.f32 %v563, %v3546
  %v3548 = vpop.f32.mrb[0].mxu0
  %v3549 = vpop.f32.mrb[0].mxu0
  %v3550 = vadd.f32 %v563, %v3549
  %v3551 = vpop.f32.mrb[0].mxu0
  %3552 = vmatprep.mubr.bf16.mxu0 0
  %3553 = vmatmul.mubr.bf16.gmra.mrb[0].mxu0 %v2191
  %v3554 = vpop.f32.mrb[0].mxu0
  %v3555 = vadd.f32 %v563, %v3554
  %v3556 = vpop.f32.mrb[0].mxu0
  %v3557 = vpop.f32.mrb[0].mxu0
  %v3558 = vadd.f32 %v563, %v3557
  %v3559 = vpop.f32.mrb[0].mxu0
  %3560 = vmatprep.mubr.bf16.mxu0 0
  %3561 = vmatmul.mubr.bf16.gmra.mrb[0].mxu0 %v2194
  %v3562 = vpop.f32.mrb[0].mxu0
  %v3563 = vadd.f32 %v563, %v3562
  %v3564 = vpop.f32.mrb[0].mxu0
  %v3565 = vpop.f32.mrb[0].mxu0
  %v3566 = vadd.f32 %v563, %v3565
  %v3567 = vpop.f32.mrb[0].mxu0
  %3568 = vmatprep.mubr.bf16.mxu0 0
  %3569 = vmatmul.mubr.bf16.gmra.mrb[0].mxu0 %v2197
  %v3570 = vpop.f32.mrb[0].mxu0
  %v3571 = vadd.f32 %v563, %v3570
  %v3572 = vpop.f32.mrb[0].mxu0
  %v3573 = vpop.f32.mrb[0].mxu0
  %v3574 = vadd.f32 %v563, %v3573
  %v3575 = vpop.f32.mrb[0].mxu0
  %3576 = vmatprep.mubr.bf16.mxu0 0
  %3577 = vmatmul.mubr.bf16.gmra.mrb[0].mxu0 %v2200
  %v3578 = vpop.f32.mrb[0].mxu0
  %v3579 = vadd.f32 %v563, %v3578
  %v3580 = vpop.f32.mrb[0].mxu0
  %v3581 = vpop.f32.mrb[0].mxu0
  %v3582 = vadd.f32 %v563, %v3581
  %v3583 = vpop.f32.mrb[0].mxu0
  %3584 = vmatprep.mubr.bf16.mxu0 0
  %3585 = vmatmul.mubr.bf16.gmra.mrb[0].mxu0 %v2203
  %v3586 = vpop.f32.mrb[0].mxu0
  %v3587 = vadd.f32 %v563, %v3586
  %v3588 = vpop.f32.mrb[0].mxu0
  %v3589 = vpop.f32.mrb[0].mxu0
  %v3590 = vadd.f32 %v563, %v3589
  %v3591 = vpop.f32.mrb[0].mxu0
  %3592 = vmatprep.mubr.bf16.mxu0 0
  %3593 = vmatmul.mubr.bf16.gmra.mrb[0].mxu0 %v2206
  %v3594 = vpop.f32.mrb[0].mxu0
  %v3595 = vadd.f32 %v563, %v3594
  %v3596 = vpop.f32.mrb[0].mxu0
  %v3597 = vpop.f32.mrb[0].mxu0
  %v3598 = vadd.f32 %v563, %v3597
  %v3599 = vpop.f32.mrb[0].mxu0
  %3600 = vmatprep.mubr.bf16.mxu0 0
  %3601 = vmatmul.mubr.bf16.gmra.mrb[0].mxu0 %v2209
  %v3602 = vpop.f32.mrb[0].mxu0
  %v3603 = vadd.f32 %v563, %v3602
  %v3604 = vpop.f32.mrb[0].mxu0
  %v3605 = vpop.f32.mrb[0].mxu0
  %v3606 = vadd.f32 %v563, %v3605
  %v3607 = vpop.f32.mrb[0].mxu0
  %3608 = vmatprep.mubr.bf16.mxu0 0
  %3609 = vmatmul.mubr.bf16.gmra.mrb[0].mxu0 %v2212
  %v3610 = vpop.f32.mrb[0].mxu0
  %v3611 = vadd.f32 %v563, %v3610
  %v3612 = vpop.f32.mrb[0].mxu0
  %v3613 = vpop.f32.mrb[0].mxu0
  %v3614 = vadd.f32 %v563, %v3613
  %v3615 = vpop.f32.mrb[0].mxu0
  %3616 = vmatprep.mubr.bf16.mxu0 0
  %3617 = vmatmul.mubr.bf16.gmra.mrb[0].mxu0 %v2215
  %v3618 = vpop.f32.mrb[0].mxu0
  %v3619 = vadd.f32 %v563, %v3618
  %v3620 = vpop.f32.mrb[0].mxu0
  %v3621 = vpop.f32.mrb[0].mxu0
  %v3622 = vadd.f32 %v563, %v3621
  %v3623 = vpop.f32.mrb[0].mxu0
  %3624 = vmatprep.mubr.bf16.mxu0 0
  %3625 = vmatmul.mubr.bf16.gmra.mrb[0].mxu0 %v2218
  %v3626 = vpop.f32.mrb[0].mxu0
  %v3627 = vadd.f32 %v563, %v3626
  %v3628 = vpop.f32.mrb[0].mxu0
  %v3629 = vpop.f32.mrb[0].mxu0
  %v3630 = vadd.f32 %v563, %v3629
  %v3631 = vpop.f32.mrb[0].mxu0
  %3632 = vmatprep.mubr.bf16.mxu0 0
  %3633 = vmatmul.mubr.bf16.gmra.mrb[0].mxu0 %v2221
  %v3634 = vpop.f32.mrb[0].mxu0
  %v3635 = vadd.f32 %v563, %v3634
  %v3636 = vpop.f32.mrb[0].mxu0
  %v3637 = vpop.f32.mrb[0].mxu0
  %v3638 = vadd.f32 %v563, %v3637
  %v3639 = vpop.f32.mrb[0].mxu0
  %3640 = vmatprep.mubr.bf16.mxu0 0
  %3641 = vmatmul.mubr.bf16.gmra.mrb[0].mxu0 %v2224
  %v3642 = vpop.f32.mrb[0].mxu0
  %v3643 = vadd.f32 %v563, %v3642
  %v3644 = vpop.f32.mrb[0].mxu0
  %v3645 = vpop.f32.mrb[0].mxu0
  %v3646 = vadd.f32 %v563, %v3645
  %v3647 = vpop.f32.mrb[0].mxu0
  %3648 = vmatprep.mubr.bf16.mxu0 0
  %3649 = vmatmul.mubr.bf16.gmra.mrb[0].mxu0 %v2227
  %v3650 = vpop.f32.mrb[0].mxu0
  %v3651 = vadd.f32 %v563, %v3650
  %v3652 = vpop.f32.mrb[0].mxu0
  %v3653 = vpop.f32.mrb[0].mxu0
  %v3654 = vadd.f32 %v563, %v3653
  %v3655 = vpop.f32.mrb[0].mxu0
  %3656 = vmatprep.mubr.bf16.mxu0 0
  %3657 = vmatmul.mubr.bf16.gmra.mrb[0].mxu0 %v2230
  %v3658 = vpop.f32.mrb[0].mxu0
  %v3659 = vadd.f32 %v563, %v3658
  %v3660 = vpop.f32.mrb[0].mxu0
  %v3661 = vpop.f32.mrb[0].mxu0
  %v3662 = vadd.f32 %v563, %v3661
  %v3663 = vpop.f32.mrb[0].mxu0
  %3664 = vmatprep.mubr.bf16.mxu0 0
  %3665 = vmatmul.mubr.bf16.gmra.mrb[0].mxu0 %v2233
  %v3666 = vpop.f32.mrb[0].mxu0
  %v3667 = vadd.f32 %v563, %v3666
  %v3668 = vpop.f32.mrb[0].mxu0
  %v3669 = vpop.f32.mrb[0].mxu0
  %v3670 = vadd.f32 %v563, %v3669
  %v3671 = vpop.f32.mrb[0].mxu0
  %3672 = vmatprep.mubr.bf16.mxu0 0
  %3673 = vmatmul.mubr.bf16.gmra.mrb[0].mxu0 %v2236
  %v3674 = vpop.f32.mrb[0].mxu0
  %v3675 = vadd.f32 %v563, %v3674
  %v3676 = vpop.f32.mrb[0].mxu0
  %v3677 = vpop.f32.mrb[0].mxu0
  %v3678 = vadd.f32 %v563, %v3677
  %v3679 = vpop.f32.mrb[0].mxu0
  %3680 = vmatprep.mubr.bf16.mxu0 0
  %3681 = vmatmul.mubr.bf16.gmra.mrb[0].mxu0 %v2239
  %v3682 = vpop.f32.mrb[0].mxu0
  %v3683 = vadd.f32 %v563, %v3682
  %v3684 = vpop.f32.mrb[0].mxu0
  %v3685 = vpop.f32.mrb[0].mxu0
  %v3686 = vadd.f32 %v563, %v3685
  %v3687 = vpop.f32.mrb[0].mxu0
  %3688 = vmatprep.mubr.bf16.mxu0 0
  %3689 = vmatmul.mubr.bf16.gmra.mrb[0].mxu0 %v2242
  %v3690 = vpop.f32.mrb[0].mxu0
  %v3691 = vadd.f32 %v563, %v3690
  %v3692 = vpop.f32.mrb[0].mxu0
  %v3693 = vpop.f32.mrb[0].mxu0
  %v3694 = vadd.f32 %v563, %v3693
  %v3695 = vpop.f32.mrb[0].mxu0
  %3696 = vmatprep.mubr.bf16.mxu0 0
  %3697 = vmatmul.mubr.bf16.gmra.mrb[0].mxu0 %v2245
  %v3698 = vpop.f32.mrb[0].mxu0
  %v3699 = vadd.f32 %v563, %v3698
  %v3700 = vpop.f32.mrb[0].mxu0
  %v3701 = vpop.f32.mrb[0].mxu0
  %v3702 = vadd.f32 %v563, %v3701
  %v3703 = vpop.f32.mrb[0].mxu0
  %3704 = vmatprep.mubr.bf16.mxu0 0
  %3705 = vmatmul.mubr.bf16.gmra.mrb[0].mxu0 %v2248
  %v3706 = vpop.f32.mrb[0].mxu0
  %v3707 = vadd.f32 %v563, %v3706
  %v3708 = vpop.f32.mrb[0].mxu0
  %v3709 = vpop.f32.mrb[0].mxu0
  %v3710 = vadd.f32 %v563, %v3709
  %v3711 = vpop.f32.mrb[0].mxu0
  %3712 = vmatprep.mubr.bf16.mxu0 0
  %3713 = vmatmul.mubr.bf16.gmra.mrb[0].mxu0 %v2251
  %v3714 = vpop.f32.mrb[0].mxu0
  %v3715 = vadd.f32 %v563, %v3714
  %v3716 = vpop.f32.mrb[0].mxu0
  %v3717 = vpop.f32.mrb[0].mxu0
  %v3718 = vadd.f32 %v563, %v3717
  %v3719 = vpop.f32.mrb[0].mxu0
  %3720 = vmatprep.mubr.bf16.mxu0 0
  %3721 = vmatmul.mubr.bf16.gmra.mrb[0].mxu0 %v2254
  %v3722 = vpop.f32.mrb[0].mxu0
  %v3723 = vadd.f32 %v563, %v3722
  %v3724 = vpop.f32.mrb[0].mxu0
  %v3725 = vpop.f32.mrb[0].mxu0
  %v3726 = vadd.f32 %v563, %v3725
  %v3727 = vpop.f32.mrb[0].mxu0
  %3728 = vmatprep.mubr.bf16.mxu0 0
  %3729 = vmatmul.mubr.bf16.gmra.mrb[0].mxu0 %v2257
  %v3730 = vpop.f32.mrb[0].mxu0
  %v3731 = vadd.f32 %v563, %v3730
  %v3732 = vpop.f32.mrb[0].mxu0
  %v3733 = vpop.f32.mrb[0].mxu0
  %v3734 = vadd.f32 %v563, %v3733
  %v3735 = vpop.f32.mrb[0].mxu0
  %3736 = vmatprep.mubr.bf16.mxu0 0
  %3737 = vmatmul.mubr.bf16.gmra.mrb[0].mxu0 %v2260
  %v3738 = vpop.f32.mrb[0].mxu0
  %v3739 = vadd.f32 %v563, %v3738
  %v3740 = vpop.f32.mrb[0].mxu0
  %v3741 = vpop.f32.mrb[0].mxu0
  %v3742 = vadd.f32 %v563, %v3741
  %v3743 = vpop.f32.mrb[0].mxu0
  %3744 = vmatprep.mubr.bf16.mxu0 0
  %3745 = vmatmul.mubr.bf16.gmra.mrb[0].mxu0 %v2263
  %v3746 = vpop.f32.mrb[0].mxu0
  %v3747 = vadd.f32 %v563, %v3746
  %v3748 = vpop.f32.mrb[0].mxu0
  %v3749 = vpop.f32.mrb[0].mxu0
  %v3750 = vadd.f32 %v563, %v3749
  %v3751 = vpop.f32.mrb[0].mxu0
  %3752 = vmatprep.mubr.bf16.mxu0 0
  %3753 = vmatmul.mubr.bf16.gmra.mrb[0].mxu0 %v2266
  %v3754 = vpop.f32.mrb[0].mxu0
  %v3755 = vadd.f32 %v563, %v3754
  %v3756 = vpop.f32.mrb[0].mxu0
  %v3757 = vpop.f32.mrb[0].mxu0
  %v3758 = vadd.f32 %v563, %v3757
  %v3759 = vpop.f32.mrb[0].mxu0
  %3760 = vmatprep.mubr.bf16.mxu0 0
  %3761 = vmatmul.mubr.bf16.gmra.mrb[0].mxu0 %v2269
  %v3762 = vpop.f32.mrb[0].mxu0
  %v3763 = vadd.f32 %v563, %v3762
  %v3764 = vpop.f32.mrb[0].mxu0
  %v3765 = vpop.f32.mrb[0].mxu0
  %v3766 = vadd.f32 %v563, %v3765
  %v3767 = vpop.f32.mrb[0].mxu0
  %3768 = vmatprep.mubr.bf16.mxu0 0
  %3769 = vmatmul.mubr.bf16.gmra.mrb[0].mxu0 %v2272
  %v3770 = vpop.f32.mrb[0].mxu0
  %v3771 = vadd.f32 %v563, %v3770
  %v3772 = vpop.f32.mrb[0].mxu0
  %v3773 = vpop.f32.mrb[0].mxu0
  %v3774 = vadd.f32 %v563, %v3773
  %v3775 = vpop.f32.mrb[0].mxu0
  %3776 = vmatprep.mubr.bf16.mxu0 0
  %3777 = vmatmul.mubr.bf16.gmra.mrb[0].mxu0 %v2275
  %v3778 = vpop.f32.mrb[0].mxu0
  %v3779 = vadd.f32 %v563, %v3778
  %v3780 = vpop.f32.mrb[0].mxu0
  %v3781 = vpop.f32.mrb[0].mxu0
  %v3782 = vadd.f32 %v563, %v3781
  %v3783 = vpop.f32.mrb[0].mxu0
  %3784 = vmatprep.mubr.bf16.mxu0 0
  %3785 = vmatmul.mubr.bf16.gmra.mrb[0].mxu0 %v2278
  %v3786 = vpop.f32.mrb[0].mxu0
  %v3787 = vadd.f32 %v563, %v3786
  %v3788 = vpop.f32.mrb[0].mxu0
  %v3789 = vpop.f32.mrb[0].mxu0
  %v3790 = vadd.f32 %v563, %v3789
  %v3791 = vpop.f32.mrb[0].mxu0
  %3792 = vmatprep.mubr.bf16.mxu0 0
  %3793 = vmatmul.mubr.bf16.gmra.mrb[0].mxu0 %v2281
  %v3794 = vpop.f32.mrb[0].mxu0
  %v3795 = vadd.f32 %v563, %v3794
  %v3796 = vpop.f32.mrb[0].mxu0
  %v3797 = vpop.f32.mrb[0].mxu0
  %v3798 = vadd.f32 %v563, %v3797
  %v3799 = vpop.f32.mrb[0].mxu0
  %3800 = vmatprep.mubr.bf16.mxu0 0
  %3801 = vmatmul.mubr.bf16.gmra.mrb[0].mxu0 %v2284
  %v3802 = vpop.f32.mrb[0].mxu0
  %v3803 = vadd.f32 %v563, %v3802
  %v3804 = vpop.f32.mrb[0].mxu0
  %v3805 = vpop.f32.mrb[0].mxu0
  %v3806 = vadd.f32 %v563, %v3805
  %v3807 = vpop.f32.mrb[0].mxu0
  %3808 = vmatprep.mubr.bf16.mxu0 0
  %3809 = vmatmul.mubr.bf16.gmra.mrb[0].mxu0 %v2287
  %v3810 = vpop.f32.mrb[0].mxu0
  %v3811 = vadd.f32 %v563, %v3810
  %v3812 = vpop.f32.mrb[0].mxu0
  %v3813 = vpop.f32.mrb[0].mxu0
  %v3814 = vadd.f32 %v563, %v3813
  %v3815 = vpop.f32.mrb[0].mxu0
  %3816 = vmatprep.mubr.bf16.mxu0 0
  %3817 = vmatmul.mubr.bf16.gmra.mrb[0].mxu0 %v2290
  %v3818 = vpop.f32.mrb[0].mxu0
  %v3819 = vadd.f32 %v563, %v3818
  %v3820 = vpop.f32.mrb[0].mxu0
  %v3821 = vpop.f32.mrb[0].mxu0
  %v3822 = vadd.f32 %v563, %v3821
  %v3823 = vpop.f32.mrb[0].mxu0
  %3824 = vmatprep.mubr.bf16.mxu0 0
  %3825 = vmatmul.mubr.bf16.gmra.mrb[0].mxu0 %v2293
  %v3826 = vpop.f32.mrb[0].mxu0
  %v3827 = vadd.f32 %v563, %v3826
  %v3828 = vpop.f32.mrb[0].mxu0
  %v3829 = vpop.f32.mrb[0].mxu0
  %v3830 = vadd.f32 %v563, %v3829
  %v3831 = vpop.f32.mrb[0].mxu0
  %3832 = vmatprep.mubr.bf16.mxu0 0
  %3833 = vmatmul.mubr.bf16.gmra.mrb[0].mxu0 %v2296
  %v3834 = vpop.f32.mrb[0].mxu0
  %v3835 = vadd.f32 %v563, %v3834
  %v3836 = vpop.f32.mrb[0].mxu0
  %v3837 = vpop.f32.mrb[0].mxu0
  %v3838 = vadd.f32 %v563, %v3837
  %v3839 = vpop.f32.mrb[0].mxu0
  %3840 = vmatprep.mubr.bf16.mxu0 0
  %3841 = vmatmul.mubr.bf16.gmra.mrb[0].mxu0 %v2299
  %v3842 = vpop.f32.mrb[0].mxu0
  %v3843 = vadd.f32 %v563, %v3842
  %v3844 = vpop.f32.mrb[0].mxu0
  %v3845 = vpop.f32.mrb[0].mxu0
  %v3846 = vadd.f32 %v563, %v3845
  %v3847 = vpop.f32.mrb[0].mxu0
  %3848 = vmatprep.mubr.bf16.mxu0 0
  %3849 = vmatmul.mubr.bf16.gmra.mrb[0].mxu0 %v2302
  %v3850 = vpop.f32.mrb[0].mxu0
  %v3851 = vadd.f32 %v563, %v3850
  %v3852 = vpop.f32.mrb[0].mxu0
  %v3853 = vpop.f32.mrb[0].mxu0
  %v3854 = vadd.f32 %v563, %v3853
  %v3855 = vpop.f32.mrb[0].mxu0
  %3856 = vmatprep.mubr.bf16.mxu0 0
  %3857 = vmatmul.mubr.bf16.gmra.mrb[0].mxu0 %v2305
  %v3858 = vpop.f32.mrb[0].mxu0
  %v3859 = vadd.f32 %v563, %v3858
  %v3860 = vpop.f32.mrb[0].mxu0
  %v3861 = vpop.f32.mrb[0].mxu0
  %v3862 = vadd.f32 %v563, %v3861
  %v3863 = vpop.f32.mrb[0].mxu0
  %3864 = vmatprep.mubr.bf16.mxu0 0
  %3865 = vmatmul.mubr.bf16.gmra.mrb[0].mxu0 %v2308
  %v3866 = vpop.f32.mrb[0].mxu0
  %v3867 = vadd.f32 %v563, %v3866
  %v3868 = vpop.f32.mrb[0].mxu0
  %v3869 = vpop.f32.mrb[0].mxu0
  %v3870 = vadd.f32 %v563, %v3869
  %v3871 = vpop.f32.mrb[0].mxu0
  %3872 = vmatprep.mubr.bf16.mxu0 0
  %3873 = vmatmul.mubr.bf16.gmra.mrb[0].mxu0 %v2311
  %v3874 = vpop.f32.mrb[0].mxu0
  %v3875 = vadd.f32 %v563, %v3874
  %v3876 = vpop.f32.mrb[0].mxu0
  %v3877 = vpop.f32.mrb[0].mxu0
  %v3878 = vadd.f32 %v563, %v3877
  %v3879 = vpop.f32.mrb[0].mxu0
  %3880 = vmatprep.mubr.bf16.mxu0 0
  %3881 = vmatmul.mubr.bf16.gmra.mrb[0].mxu0 %v2314
  %v3882 = vpop.f32.mrb[0].mxu0
  %v3883 = vadd.f32 %v563, %v3882
  %v3884 = vpop.f32.mrb[0].mxu0
  %v3885 = vpop.f32.mrb[0].mxu0
  %v3886 = vadd.f32 %v563, %v3885
  %v3887 = vpop.f32.mrb[0].mxu0
  %3888 = vmatprep.mubr.bf16.mxu0 0
  %3889 = vmatmul.mubr.bf16.gmra.mrb[0].mxu0 %v2317
  %v3890 = vpop.f32.mrb[0].mxu0
  %v3891 = vadd.f32 %v563, %v3890
  %v3892 = vpop.f32.mrb[0].mxu0
  %v3893 = vpop.f32.mrb[0].mxu0
  %v3894 = vadd.f32 %v563, %v3893
  %v3895 = vpop.f32.mrb[0].mxu0
  %3896 = vmatprep.mubr.bf16.mxu0 0
  %3897 = vmatmul.mubr.bf16.gmra.mrb[0].mxu0 %v2320
  %v3898 = vpop.f32.mrb[0].mxu0
  %v3899 = vadd.f32 %v563, %v3898
  %v3900 = vpop.f32.mrb[0].mxu0
  %v3901 = vpop.f32.mrb[0].mxu0
  %v3902 = vadd.f32 %v563, %v3901
  %v3903 = vpop.f32.mrb[0].mxu0
  %3904 = vmatprep.mubr.bf16.mxu0 0
  %3905 = vmatmul.mubr.bf16.gmra.mrb[0].mxu0 %v2323
  %v3906 = vpop.f32.mrb[0].mxu0
  %v3907 = vadd.f32 %v563, %v3906
  %v3908 = vpop.f32.mrb[0].mxu0
  %v3909 = vpop.f32.mrb[0].mxu0
  %v3910 = vadd.f32 %v563, %v3909
  %v3911 = vpop.f32.mrb[0].mxu0
  %3912 = vmatprep.mubr.bf16.mxu0 0
  %3913 = vmatmul.mubr.bf16.gmra.mrb[0].mxu0 %v2326
  %v3914 = vpop.f32.mrb[0].mxu0
  %v3915 = vadd.f32 %v563, %v3914
  %v3916 = vpop.f32.mrb[0].mxu0
  %v3917 = vpop.f32.mrb[0].mxu0
  %v3918 = vadd.f32 %v563, %v3917
  %v3919 = vpop.f32.mrb[0].mxu0
  %3920 = vmatprep.mubr.bf16.mxu0 0
  %3921 = vmatmul.mubr.bf16.gmra.mrb[0].mxu0 %v2329
  %v3922 = vpop.f32.mrb[0].mxu0
  %v3923 = vadd.f32 %v563, %v3922
  %v3924 = vpop.f32.mrb[0].mxu0
  %v3925 = vpop.f32.mrb[0].mxu0
  %v3926 = vadd.f32 %v563, %v3925
  %v3927 = vpop.f32.mrb[0].mxu0
  %3928 = vmatprep.mubr.bf16.mxu0 0
  %3929 = vmatmul.mubr.bf16.gmra.mrb[0].mxu0 %v2332
  %v3930 = vpop.f32.mrb[0].mxu0
  %v3931 = vadd.f32 %v563, %v3930
  %v3932 = vpop.f32.mrb[0].mxu0
  %v3933 = vpop.f32.mrb[0].mxu0
  %v3934 = vadd.f32 %v563, %v3933
  %v3935 = vpop.f32.mrb[0].mxu0
  %3936 = vmatprep.mubr.bf16.mxu0 0
  %3937 = vmatmul.mubr.bf16.gmra.mrb[0].mxu0 %v2335
  %v3938 = vpop.f32.mrb[0].mxu0
  %v3939 = vadd.f32 %v563, %v3938
  %v3940 = vpop.f32.mrb[0].mxu0
  %v3941 = vpop.f32.mrb[0].mxu0
  %v3942 = vadd.f32 %v563, %v3941
  %v3943 = vpop.f32.mrb[0].mxu0
  %3944 = vmatprep.mubr.bf16.mxu0 0
  %3945 = vmatmul.mubr.bf16.gmra.mrb[0].mxu0 %v2338
  %v3946 = vpop.f32.mrb[0].mxu0
  %v3947 = vadd.f32 %v563, %v3946
  %v3948 = vpop.f32.mrb[0].mxu0
  %v3949 = vpop.f32.mrb[0].mxu0
  %v3950 = vadd.f32 %v563, %v3949
  %v3951 = vpop.f32.mrb[0].mxu0
  %3952 = vmatprep.mubr.bf16.mxu0 0
  %3953 = vmatmul.mubr.bf16.gmra.mrb[0].mxu0 %v2341
  %v3954 = vpop.f32.mrb[0].mxu0
  %v3955 = vadd.f32 %v563, %v3954
  %v3956 = vpop.f32.mrb[0].mxu0
  %v3957 = vpop.f32.mrb[0].mxu0
  %v3958 = vadd.f32 %v563, %v3957
  %v3959 = vpop.f32.mrb[0].mxu0
  %3960 = vmatprep.mubr.bf16.mxu0 0
  %3961 = vmatmul.mubr.bf16.gmra.mrb[0].mxu0 %v2344
  %v3962 = vpop.f32.mrb[0].mxu0
  %v3963 = vadd.f32 %v563, %v3962
  %v3964 = vpop.f32.mrb[0].mxu0
  %v3965 = vpop.f32.mrb[0].mxu0
  %v3966 = vadd.f32 %v563, %v3965
  %v3967 = vpop.f32.mrb[0].mxu0
  %3968 = vmatprep.mubr.bf16.mxu0 0
  %3969 = vmatmul.mubr.bf16.gmra.mrb[0].mxu0 %v2347
  %v3970 = vpop.f32.mrb[0].mxu0
  %v3971 = vadd.f32 %v563, %v3970
  %v3972 = vpop.f32.mrb[0].mxu0
  %v3973 = vpop.f32.mrb[0].mxu0
  %v3974 = vadd.f32 %v563, %v3973
  %v3975 = vpop.f32.mrb[0].mxu0
  %3976 = vmatprep.mubr.bf16.mxu0 0
  %3977 = vmatmul.mubr.bf16.gmra.mrb[0].mxu0 %v2350
  %v3978 = vpop.f32.mrb[0].mxu0
  %v3979 = vadd.f32 %v563, %v3978
  %v3980 = vpop.f32.mrb[0].mxu0
  %v3981 = vpop.f32.mrb[0].mxu0
  %v3982 = vadd.f32 %v563, %v3981
  %v3983 = vpop.f32.mrb[0].mxu0
  %3984 = vmatprep.mubr.bf16.mxu0 0
  %3985 = vmatmul.mubr.bf16.gmra.mrb[0].mxu0 %v2353
  %v3986 = vpop.f32.mrb[0].mxu0
  %v3987 = vadd.f32 %v563, %v3986
  %v3988 = vpop.f32.mrb[0].mxu0
  %v3989 = vpop.f32.mrb[0].mxu0
  %v3990 = vadd.f32 %v563, %v3989
  %v3991 = vpop.f32.mrb[0].mxu0
  %3992 = vmatprep.mubr.bf16.mxu0 0
  %3993 = vmatmul.mubr.bf16.gmra.mrb[0].mxu0 %v2356
  %v3994 = vpop.f32.mrb[0].mxu0
  %v3995 = vadd.f32 %v563, %v3994
  %v3996 = vpop.f32.mrb[0].mxu0
  %v3997 = vpop.f32.mrb[0].mxu0
  %v3998 = vadd.f32 %v563, %v3997
  %v3999 = vpop.f32.mrb[0].mxu0
  %4000 = vmatprep.mubr.bf16.mxu0 0
  %4001 = vmatmul.mubr.bf16.gmra.mrb[0].mxu0 %v2359
  %v4002 = vpop.f32.mrb[0].mxu0
  %v4003 = vadd.f32 %v563, %v4002
  %v4004 = vpop.f32.mrb[0].mxu0
  %v4005 = vpop.f32.mrb[0].mxu0
  %v4006 = vadd.f32 %v563, %v4005
  %v4007 = vpop.f32.mrb[0].mxu0
  %4008 = vmatprep.mubr.bf16.mxu0 0
  %4009 = vmatmul.mubr.bf16.gmra.mrb[0].mxu0 %v2362
  %v4010 = vpop.f32.mrb[0].mxu0
  %v4011 = vadd.f32 %v563, %v4010
  %v4012 = vpop.f32.mrb[0].mxu0
  %v4013 = vpop.f32.mrb[0].mxu0
  %v4014 = vadd.f32 %v563, %v4013
  %v4015 = vpop.f32.mrb[0].mxu0
  %4016 = vmatprep.mubr.bf16.mxu0 0
  %4017 = vmatmul.mubr.bf16.gmra.mrb[0].mxu0 %v2365
  %v4018 = vpop.f32.mrb[0].mxu0
  %v4019 = vadd.f32 %v563, %v4018
  %v4020 = vpop.f32.mrb[0].mxu0
  %v4021 = vpop.f32.mrb[0].mxu0
  %v4022 = vadd.f32 %v563, %v4021
  %v4023 = vpop.f32.mrb[0].mxu0
  %4024 = vmatprep.mubr.bf16.mxu0 0
  %4025 = vmatmul.mubr.bf16.gmra.mrb[0].mxu0 %v2368
  %v4026 = vpop.f32.mrb[0].mxu0
  %v4027 = vadd.f32 %v563, %v4026
  %v4028 = vpop.f32.mrb[0].mxu0
  %v4029 = vpop.f32.mrb[0].mxu0
  %v4030 = vadd.f32 %v563, %v4029
  %v4031 = vpop.f32.mrb[0].mxu0
  %4032 = vmatprep.mubr.bf16.mxu0 0
  %4033 = vmatmul.mubr.bf16.gmra.mrb[0].mxu0 %v2371
  %v4034 = vpop.f32.mrb[0].mxu0
  %v4035 = vadd.f32 %v563, %v4034
  %v4036 = vpop.f32.mrb[0].mxu0
  %v4037 = vpop.f32.mrb[0].mxu0
  %v4038 = vadd.f32 %v563, %v4037
  %v4039 = vpop.f32.mrb[0].mxu0
  %4040 = vmatprep.mubr.bf16.mxu0 0
  %4041 = vmatmul.mubr.bf16.gmra.mrb[0].mxu0 %v2374
  %v4042 = vpop.f32.mrb[0].mxu0
  %v4043 = vadd.f32 %v563, %v4042
  %v4044 = vpop.f32.mrb[0].mxu0
  %v4045 = vpop.f32.mrb[0].mxu0
  %v4046 = vadd.f32 %v563, %v4045
  %v4047 = vpop.f32.mrb[0].mxu0
  %4048 = vmatprep.mubr.bf16.mxu0 0
  %4049 = vmatmul.mubr.bf16.gmra.mrb[0].mxu0 %v2377
  %v4050 = vpop.f32.mrb[0].mxu0
  %v4051 = vadd.f32 %v563, %v4050
  %v4052 = vpop.f32.mrb[0].mxu0
  %v4053 = vpop.f32.mrb[0].mxu0
  %v4054 = vadd.f32 %v563, %v4053
  %v4055 = vpop.f32.mrb[0].mxu0
  %4056 = vmatprep.mubr.bf16.mxu0 0
  %4057 = vmatmul.mubr.bf16.gmra.mrb[0].mxu0 %v2380
  %v4058 = vpop.f32.mrb[0].mxu0
  %v4059 = vadd.f32 %v563, %v4058
  %v4060 = vpop.f32.mrb[0].mxu0
  %v4061 = vpop.f32.mrb[0].mxu0
  %v4062 = vadd.f32 %v563, %v4061
  %v4063 = vpop.f32.mrb[0].mxu0
  %4064 = vmatprep.mubr.bf16.mxu0 0
  %4065 = vmatmul.mubr.bf16.gmra.mrb[0].mxu0 %v2383
  %v4066 = vpop.f32.mrb[0].mxu0
  %v4067 = vadd.f32 %v563, %v4066
  %v4068 = vpop.f32.mrb[0].mxu0
  %v4069 = vpop.f32.mrb[0].mxu0
  %v4070 = vadd.f32 %v563, %v4069
  %v4071 = vpop.f32.mrb[0].mxu0
  %4072 = vmatprep.mubr.bf16.mxu0 0
  %4073 = vmatmul.mubr.bf16.gmra.mrb[0].mxu0 %v2386
  %v4074 = vpop.f32.mrb[0].mxu0
  %v4075 = vadd.f32 %v563, %v4074
  %v4076 = vpop.f32.mrb[0].mxu0
  %v4077 = vpop.f32.mrb[0].mxu0
  %v4078 = vadd.f32 %v563, %v4077
  %v4079 = vpop.f32.mrb[0].mxu0
  %4080 = vmatprep.mubr.bf16.mxu0 0
  %4081 = vmatmul.mubr.bf16.gmra.mrb[0].mxu0 %v2389
  %v4082 = vpop.f32.mrb[0].mxu0
  %v4083 = vadd.f32 %v563, %v4082
  %v4084 = vpop.f32.mrb[0].mxu0
  %v4085 = vpop.f32.mrb[0].mxu0
  %v4086 = vadd.f32 %v563, %v4085
  %v4087 = vpop.f32.mrb[0].mxu0
  %4088 = vmatprep.mubr.bf16.mxu0 0
  %4089 = vmatmul.mubr.bf16.gmra.mrb[0].mxu0 %v2392
  %v4090 = vpop.f32.mrb[0].mxu0
  %v4091 = vadd.f32 %v563, %v4090
  %v4092 = vpop.f32.mrb[0].mxu0
  %v4093 = vpop.f32.mrb[0].mxu0
  %v4094 = vadd.f32 %v563, %v4093
  %v4095 = vpop.f32.mrb[0].mxu0
  %4096 = vmatprep.mubr.bf16.mxu0 0
  %4097 = vmatmul.mubr.bf16.gmra.mrb[0].mxu0 %v2395
  %v4098 = vpop.f32.mrb[0].mxu0
  %v4099 = vadd.f32 %v563, %v4098
  %v4100 = vpop.f32.mrb[0].mxu0
  %v4101 = vpop.f32.mrb[0].mxu0
  %v4102 = vadd.f32 %v563, %v4101
  %v4103 = vpop.f32.mrb[0].mxu0
  %4104 = vmatprep.mubr.bf16.mxu0 0
  %4105 = vmatmul.mubr.bf16.gmra.mrb[0].mxu0 %v2398
  %v4106 = vpop.f32.mrb[0].mxu0
  %v4107 = vadd.f32 %v563, %v4106
  %v4108 = vpop.f32.mrb[0].mxu0
  %v4109 = vpop.f32.mrb[0].mxu0
  %v4110 = vadd.f32 %v563, %v4109
  %v4111 = vpop.f32.mrb[0].mxu0
  %4112 = vmatprep.mubr.bf16.mxu0 0
  %4113 = vmatmul.mubr.bf16.gmra.mrb[0].mxu0 %v2401
  %v4114 = vpop.f32.mrb[0].mxu0
  %v4115 = vadd.f32 %v563, %v4114
  %v4116 = vpop.f32.mrb[0].mxu0
  %v4117 = vpop.f32.mrb[0].mxu0
  %v4118 = vadd.f32 %v563, %v4117
  %v4119 = vpop.f32.mrb[0].mxu0
  %4120 = vmatprep.mubr.bf16.mxu0 0
  %4121 = vmatmul.mubr.bf16.gmra.mrb[0].mxu0 %v2404
  %v4122 = vpop.f32.mrb[0].mxu0
  %v4123 = vadd.f32 %v563, %v4122
  %v4124 = vpop.f32.mrb[0].mxu0
  %v4125 = vpop.f32.mrb[0].mxu0
  %v4126 = vadd.f32 %v563, %v4125
  %v4127 = vpop.f32.mrb[0].mxu0
  %4128 = vmatprep.mubr.bf16.mxu0 0
  %4129 = vmatmul.mubr.bf16.gmra.mrb[0].mxu0 %v2407
  %v4130 = vpop.f32.mrb[0].mxu0
  %v4131 = vadd.f32 %v563, %v4130
  %v4132 = vpop.f32.mrb[0].mxu0
  %v4133 = vpop.f32.mrb[0].mxu0
  %v4134 = vadd.f32 %v563, %v4133
  %v4135 = vpop.f32.mrb[0].mxu0
  %4136 = vmatprep.mubr.bf16.mxu0 0
  %4137 = vmatmul.mubr.bf16.gmra.mrb[0].mxu0 %v2410
  %v4138 = vpop.f32.mrb[0].mxu0
  %v4139 = vadd.f32 %v563, %v4138
  %v4140 = vpop.f32.mrb[0].mxu0
  %v4141 = vpop.f32.mrb[0].mxu0
  %v4142 = vadd.f32 %v563, %v4141
  %v4143 = vpop.f32.mrb[0].mxu0
  %4144 = vmatprep.mubr.bf16.mxu0 0
  %4145 = vmatmul.mubr.bf16.gmra.mrb[0].mxu0 %v2413
  %v4146 = vpop.f32.mrb[0].mxu0
  %v4147 = vadd.f32 %v563, %v4146
  %v4148 = vpop.f32.mrb[0].mxu0
  %v4149 = vpop.f32.mrb[0].mxu0
  %v4150 = vadd.f32 %v563, %v4149
  %v4151 = vpop.f32.mrb[0].mxu0
  %4152 = vmatprep.mubr.bf16.mxu0 0
  %4153 = vmatmul.mubr.bf16.gmra.mrb[0].mxu0 %v2416
  %v4154 = vpop.f32.mrb[0].mxu0
  %v4155 = vadd.f32 %v563, %v4154
  %v4156 = vpop.f32.mrb[0].mxu0
  %v4157 = vpop.f32.mrb[0].mxu0
  %v4158 = vadd.f32 %v563, %v4157
  %v4159 = vpop.f32.mrb[0].mxu0
  %4160 = vmatprep.mubr.bf16.mxu0 0
  %4161 = vmatmul.mubr.bf16.gmra.mrb[0].mxu0 %v2419
  %v4162 = vpop.f32.mrb[0].mxu0
  %v4163 = vadd.f32 %v563, %v4162
  %v4164 = vpop.f32.mrb[0].mxu0
  %v4165 = vpop.f32.mrb[0].mxu0
  %v4166 = vadd.f32 %v563, %v4165
  %v4167 = vpop.f32.mrb[0].mxu0
  %4168 = vmatprep.mubr.bf16.mxu0 0
  %4169 = vmatmul.mubr.bf16.gmra.mrb[0].mxu0 %v2422
  %v4170 = vpop.f32.mrb[0].mxu0
  %v4171 = vadd.f32 %v563, %v4170
  %v4172 = vpop.f32.mrb[0].mxu0
  %v4173 = vpop.f32.mrb[0].mxu0
  %v4174 = vadd.f32 %v563, %v4173
  %v4175 = vpop.f32.mrb[0].mxu0
  %4176 = vmatprep.mubr.bf16.mxu0 0
  %4177 = vmatmul.mubr.bf16.gmra.mrb[0].mxu0 %v2425
  %v4178 = vpop.f32.mrb[0].mxu0
  %v4179 = vadd.f32 %v563, %v4178
  %v4180 = vpop.f32.mrb[0].mxu0
  %v4181 = vpop.f32.mrb[0].mxu0
  %v4182 = vadd.f32 %v563, %v4181
  %v4183 = vpop.f32.mrb[0].mxu0
  %4184 = vmatprep.mubr.bf16.mxu0 0
  %4185 = vmatmul.mubr.bf16.gmra.mrb[0].mxu0 %v2428
  %v4186 = vpop.f32.mrb[0].mxu0
  %v4187 = vadd.f32 %v563, %v4186
  %v4188 = vpop.f32.mrb[0].mxu0
  %v4189 = vpop.f32.mrb[0].mxu0
  %v4190 = vadd.f32 %v563, %v4189
  %v4191 = vpop.f32.mrb[0].mxu0
  %4192 = vmatprep.mubr.bf16.mxu0 0
  %4193 = vmatmul.mubr.bf16.gmra.mrb[0].mxu0 %v2431
  %v4194 = vpop.f32.mrb[0].mxu0
  %v4195 = vadd.f32 %v563, %v4194
  %v4196 = vpop.f32.mrb[0].mxu0
  %v4197 = vpop.f32.mrb[0].mxu0
  %v4198 = vadd.f32 %v563, %v4197
  %v4199 = vpop.f32.mrb[0].mxu0
  %4200 = vmatprep.mubr.bf16.mxu0 0
  %4201 = vmatmul.mubr.bf16.gmra.mrb[0].mxu0 %v2434
  %v4202 = vpop.f32.mrb[0].mxu0
  %v4203 = vadd.f32 %v563, %v4202
  %v4204 = vpop.f32.mrb[0].mxu0
  %v4205 = vpop.f32.mrb[0].mxu0
  %v4206 = vadd.f32 %v563, %v4205
  %v4207 = vpop.f32.mrb[0].mxu0
  %4208 = vmatprep.mubr.bf16.mxu0 0
  %4209 = vmatmul.mubr.bf16.gmra.mrb[0].mxu0 %v2437
  %v4210 = vpop.f32.mrb[0].mxu0
  %v4211 = vadd.f32 %v563, %v4210
  %v4212 = vpop.f32.mrb[0].mxu0
  %v4213 = vpop.f32.mrb[0].mxu0
  %v4214 = vadd.f32 %v563, %v4213
  %v4215 = vpop.f32.mrb[0].mxu0
  %4216 = vmatprep.mubr.bf16.mxu0 0
  %4217 = vmatmul.mubr.bf16.gmra.mrb[0].mxu0 %v2440
  %v4218 = vpop.f32.mrb[0].mxu0
  %v4219 = vadd.f32 %v563, %v4218
  %v4220 = vpop.f32.mrb[0].mxu0
  %v4221 = vpop.f32.mrb[0].mxu0
  %v4222 = vadd.f32 %v563, %v4221
  %v4223 = vpop.f32.mrb[0].mxu0
  %4224 = vmatprep.mubr.bf16.mxu0 0
  %4225 = vmatmul.mubr.bf16.gmra.mrb[0].mxu0 %v2443
  %v4226 = vpop.f32.mrb[0].mxu0
  %v4227 = vadd.f32 %v563, %v4226
  %v4228 = vpop.f32.mrb[0].mxu0
  %v4229 = vpop.f32.mrb[0].mxu0
  %v4230 = vadd.f32 %v563, %v4229
  %v4231 = vpop.f32.mrb[0].mxu0
  %4232 = vmatprep.mubr.bf16.mxu0 0
  %4233 = vmatmul.mubr.bf16.gmra.mrb[0].mxu0 %v2446
  %v4234 = vpop.f32.mrb[0].mxu0
  %v4235 = vadd.f32 %v563, %v4234
  %v4236 = vpop.f32.mrb[0].mxu0
  %v4237 = vpop.f32.mrb[0].mxu0
  %v4238 = vadd.f32 %v563, %v4237
  %v4239 = vpop.f32.mrb[0].mxu0
  %4240 = vmatprep.mubr.bf16.mxu0 0
  %4241 = vmatmul.mubr.bf16.gmra.mrb[0].mxu0 %v2449
  %v4242 = vpop.f32.mrb[0].mxu0
  %v4243 = vadd.f32 %v563, %v4242
  %v4244 = vpop.f32.mrb[0].mxu0
  %v4245 = vpop.f32.mrb[0].mxu0
  %v4246 = vadd.f32 %v563, %v4245
  %v4247 = vpop.f32.mrb[0].mxu0
  %4248 = vmatprep.mubr.bf16.mxu0 0
  %4249 = vmatmul.mubr.bf16.gmra.mrb[0].mxu0 %v2452
  %v4250 = vpop.f32.mrb[0].mxu0
  %v4251 = vadd.f32 %v563, %v4250
  %v4252 = vpop.f32.mrb[0].mxu0
  %v4253 = vpop.f32.mrb[0].mxu0
  %v4254 = vadd.f32 %v563, %v4253
  %v4255 = vpop.f32.mrb[0].mxu0
  %4256 = vmatprep.mubr.bf16.mxu0 0
  %4257 = vmatmul.mubr.bf16.gmra.mrb[0].mxu0 %v2455
  %v4258 = vpop.f32.mrb[0].mxu0
  %v4259 = vadd.f32 %v563, %v4258
  %v4260 = vpop.f32.mrb[0].mxu0
  %v4261 = vpop.f32.mrb[0].mxu0
  %v4262 = vadd.f32 %v563, %v4261
  %v4263 = vpop.f32.mrb[0].mxu0
  %4264 = vmatprep.mubr.bf16.mxu0 0
  %4265 = vmatmul.mubr.bf16.gmra.mrb[0].mxu0 %v2458
  %v4266 = vpop.f32.mrb[0].mxu0
  %v4267 = vadd.f32 %v563, %v4266
  %v4268 = vpop.f32.mrb[0].mxu0
  %v4269 = vpop.f32.mrb[0].mxu0
  %v4270 = vadd.f32 %v563, %v4269
  %v4271 = vpop.f32.mrb[0].mxu0
  %4272 = vmatprep.mubr.bf16.mxu0 0
  %4273 = vmatmul.mubr.bf16.gmra.mrb[0].mxu0 %v2461
  %v4274 = vpop.f32.mrb[0].mxu0
  %v4275 = vadd.f32 %v563, %v4274
  %v4276 = vpop.f32.mrb[0].mxu0
  %v4277 = vpop.f32.mrb[0].mxu0
  %v4278 = vadd.f32 %v563, %v4277
  %v4279 = vpop.f32.mrb[0].mxu0
  %4280 = vmatprep.mubr.bf16.mxu0 0
  %4281 = vmatmul.mubr.bf16.gmra.mrb[0].mxu0 %v2464
  %v4282 = vpop.f32.mrb[0].mxu0
  %v4283 = vadd.f32 %v563, %v4282
  %v4284 = vpop.f32.mrb[0].mxu0
  %v4285 = vpop.f32.mrb[0].mxu0
  %v4286 = vadd.f32 %v563, %v4285
  %v4287 = vpop.f32.mrb[0].mxu0
  %4288 = vmatprep.mubr.bf16.mxu0 0
  %4289 = vmatmul.mubr.bf16.gmra.mrb[0].mxu0 %v2467
  %v4290 = vpop.f32.mrb[0].mxu0
  %v4291 = vadd.f32 %v563, %v4290
  %v4292 = vpop.f32.mrb[0].mxu0
  %v4293 = vpop.f32.mrb[0].mxu0
  %v4294 = vadd.f32 %v563, %v4293
  %v4295 = vpop.f32.mrb[0].mxu0
  %4296 = vmatprep.mubr.bf16.mxu0 0
  %4297 = vmatmul.mubr.bf16.gmra.mrb[0].mxu0 %v2470
  %v4298 = vpop.f32.mrb[0].mxu0
  %v4299 = vadd.f32 %v563, %v4298
  %v4300 = vpop.f32.mrb[0].mxu0
  %v4301 = vpop.f32.mrb[0].mxu0
  %v4302 = vadd.f32 %v563, %v4301
  %v4303 = vpop.f32.mrb[0].mxu0
  %4304 = vmatprep.mubr.bf16.mxu0 0
  %4305 = vmatmul.mubr.bf16.gmra.mrb[0].mxu0 %v2473
  %v4306 = vpop.f32.mrb[0].mxu0
  %v4307 = vadd.f32 %v563, %v4306
  %v4308 = vpop.f32.mrb[0].mxu0
  %v4309 = vpop.f32.mrb[0].mxu0
  %v4310 = vadd.f32 %v563, %v4309
  %v4311 = vpop.f32.mrb[0].mxu0
  %4312 = vmatprep.mubr.bf16.mxu0 0
  %4313 = vmatmul.mubr.bf16.gmra.mrb[0].mxu0 %v2476
  %v4314 = vpop.f32.mrb[0].mxu0
  %v4315 = vadd.f32 %v563, %v4314
  %v4316 = vpop.f32.mrb[0].mxu0
  %v4317 = vpop.f32.mrb[0].mxu0
  %v4318 = vadd.f32 %v563, %v4317
  %v4319 = vpop.f32.mrb[0].mxu0
  %4320 = vmatprep.mubr.bf16.mxu0 0
  %4321 = vmatmul.mubr.bf16.gmra.mrb[0].mxu0 %v2479
  %v4322 = vpop.f32.mrb[0].mxu0
  %v4323 = vadd.f32 %v563, %v4322
  %v4324 = vpop.f32.mrb[0].mxu0
  %v4325 = vpop.f32.mrb[0].mxu0
  %v4326 = vadd.f32 %v563, %v4325
  %v4327 = vpop.f32.mrb[0].mxu0
  %4328 = vmatprep.mubr.bf16.mxu0 0
  %4329 = vmatmul.mubr.bf16.gmra.mrb[0].mxu0 %v2482
  %v4330 = vpop.f32.mrb[0].mxu0
  %v4331 = vadd.f32 %v563, %v4330
  %v4332 = vpop.f32.mrb[0].mxu0
  %v4333 = vpop.f32.mrb[0].mxu0
  %v4334 = vadd.f32 %v563, %v4333
  %v4335 = vpop.f32.mrb[0].mxu0
  %4336 = vmatprep.mubr.bf16.mxu0 0
  %4337 = vmatmul.mubr.bf16.gmra.mrb[0].mxu0 %v2485
  %v4338 = vpop.f32.mrb[0].mxu0
  %v4339 = vadd.f32 %v563, %v4338
  %v4340 = vpop.f32.mrb[0].mxu0
  %v4341 = vpop.f32.mrb[0].mxu0
  %v4342 = vadd.f32 %v563, %v4341
  %v4343 = vpop.f32.mrb[0].mxu0
  %4344 = vmatprep.mubr.bf16.mxu0 0
  %4345 = vmatmul.mubr.bf16.gmra.mrb[0].mxu0 %v2488
  %v4346 = vpop.f32.mrb[0].mxu0
  %v4347 = vadd.f32 %v563, %v4346
  %v4348 = vpop.f32.mrb[0].mxu0
  %v4349 = vpop.f32.mrb[0].mxu0
  %v4350 = vadd.f32 %v563, %v4349
  %v4351 = vpop.f32.mrb[0].mxu0
  %4352 = vmatprep.mubr.bf16.mxu0 0
  %4353 = vmatmul.mubr.bf16.gmra.mrb[0].mxu0 %v2491
  %v4354 = vpop.f32.mrb[0].mxu0
  %v4355 = vadd.f32 %v563, %v4354
  %v4356 = vpop.f32.mrb[0].mxu0
  %v4357 = vpop.f32.mrb[0].mxu0
  %v4358 = vadd.f32 %v563, %v4357
  %v4359 = vpop.f32.mrb[0].mxu0
  %4360 = vmatprep.mubr.bf16.mxu0 0
  %4361 = vmatmul.mubr.bf16.gmra.mrb[0].mxu0 %v2494
  %v4362 = vpop.f32.mrb[0].mxu0
  %v4363 = vadd.f32 %v563, %v4362
  %v4364 = vpop.f32.mrb[0].mxu0
  %v4365 = vpop.f32.mrb[0].mxu0
  %v4366 = vadd.f32 %v563, %v4365
  %v4367 = vpop.f32.mrb[0].mxu0
  %4368 = vmatprep.mubr.bf16.mxu0 0
  %4369 = vmatmul.mubr.bf16.gmra.mrb[0].mxu0 %v2497
  %v4370 = vpop.f32.mrb[0].mxu0
  %v4371 = vadd.f32 %v563, %v4370
  %v4372 = vpop.f32.mrb[0].mxu0
  %v4373 = vpop.f32.mrb[0].mxu0
  %v4374 = vadd.f32 %v563, %v4373
  %v4375 = vpop.f32.mrb[0].mxu0
  %4376 = vmatprep.mubr.bf16.mxu0 0
  %4377 = vmatmul.mubr.bf16.gmra.mrb[0].mxu0 %v2500
  %v4378 = vpop.f32.mrb[0].mxu0
  %v4379 = vadd.f32 %v563, %v4378
  %v4380 = vpop.f32.mrb[0].mxu0
  %v4381 = vpop.f32.mrb[0].mxu0
  %v4382 = vadd.f32 %v563, %v4381
  %v4383 = vpop.f32.mrb[0].mxu0
  %4384 = vmatprep.mubr.bf16.mxu0 0
  %4385 = vmatmul.mubr.bf16.gmra.mrb[0].mxu0 %v2503
  %v4386 = vpop.f32.mrb[0].mxu0
  %v4387 = vadd.f32 %v563, %v4386
  %v4388 = vpop.f32.mrb[0].mxu0
  %v4389 = vpop.f32.mrb[0].mxu0
  %v4390 = vadd.f32 %v563, %v4389
  %v4391 = vpop.f32.mrb[0].mxu0
  %4392 = vmatprep.mubr.bf16.mxu0 0
  %4393 = vmatmul.mubr.bf16.gmra.mrb[0].mxu0 %v2506
  %v4394 = vpop.f32.mrb[0].mxu0
  %v4395 = vadd.f32 %v563, %v4394
  %v4396 = vpop.f32.mrb[0].mxu0
  %v4397 = vpop.f32.mrb[0].mxu0
  %v4398 = vadd.f32 %v563, %v4397
  %v4399 = vpop.f32.mrb[0].mxu0
  %4400 = vmatprep.mubr.bf16.mxu0 0
  %4401 = vmatmul.mubr.bf16.gmra.mrb[0].mxu0 %v2509
  %v4402 = vpop.f32.mrb[0].mxu0
  %v4403 = vadd.f32 %v563, %v4402
  %v4404 = vpop.f32.mrb[0].mxu0
  %v4405 = vpop.f32.mrb[0].mxu0
  %v4406 = vadd.f32 %v563, %v4405
  %v4407 = vpop.f32.mrb[0].mxu0
  %4408 = vmatprep.mubr.bf16.mxu0 0
  %4409 = vmatmul.mubr.bf16.gmra.mrb[0].mxu0 %v2512
  %v4410 = vpop.f32.mrb[0].mxu0
  %v4411 = vadd.f32 %v563, %v4410
  %v4412 = vpop.f32.mrb[0].mxu0
  %v4413 = vpop.f32.mrb[0].mxu0
  %v4414 = vadd.f32 %v563, %v4413
  %v4415 = vpop.f32.mrb[0].mxu0
  %4416 = vmatprep.mubr.bf16.mxu0 0
  %4417 = vmatmul.mubr.bf16.gmra.mrb[0].mxu0 %v2515
  %v4418 = vpop.f32.mrb[0].mxu0
  %v4419 = vadd.f32 %v563, %v4418
  %v4420 = vpop.f32.mrb[0].mxu0
  %v4421 = vpop.f32.mrb[0].mxu0
  %v4422 = vadd.f32 %v563, %v4421
  %v4423 = vpop.f32.mrb[0].mxu0
  %4424 = vmatprep.mubr.bf16.mxu0 0
  %4425 = vmatmul.mubr.bf16.gmra.mrb[0].mxu0 %v2518
  %v4426 = vpop.f32.mrb[0].mxu0
  %v4427 = vadd.f32 %v563, %v4426
  %v4428 = vpop.f32.mrb[0].mxu0
  %v4429 = vpop.f32.mrb[0].mxu0
  %v4430 = vadd.f32 %v563, %v4429
  %v4431 = vpop.f32.mrb[0].mxu0
  %4432 = vmatprep.mubr.bf16.mxu0 0
  %4433 = vmatmul.mubr.bf16.gmra.mrb[0].mxu0 %v2521
  %v4434 = vpop.f32.mrb[0].mxu0
  %v4435 = vadd.f32 %v563, %v4434
  %v4436 = vpop.f32.mrb[0].mxu0
  %v4437 = vpop.f32.mrb[0].mxu0
  %v4438 = vadd.f32 %v563, %v4437
  %v4439 = vpop.f32.mrb[0].mxu0
  %4440 = vmatprep.mubr.bf16.mxu0 0
  %4441 = vmatmul.mubr.bf16.gmra.mrb[0].mxu0 %v2524
  %v4442 = vpop.f32.mrb[0].mxu0
  %v4443 = vadd.f32 %v563, %v4442
  %v4444 = vpop.f32.mrb[0].mxu0
  %v4445 = vpop.f32.mrb[0].mxu0
  %v4446 = vadd.f32 %v563, %v4445
  %v4447 = vpop.f32.mrb[0].mxu0
  %4448 = vmatprep.mubr.bf16.mxu0 0
  %4449 = vmatmul.mubr.bf16.gmra.mrb[0].mxu0 %v2527
  %v4450 = vpop.f32.mrb[0].mxu0
  %v4451 = vadd.f32 %v563, %v4450
  %v4452 = vpop.f32.mrb[0].mxu0
  %v4453 = vpop.f32.mrb[0].mxu0
  %v4454 = vadd.f32 %v563, %v4453
  %v4455 = vpop.f32.mrb[0].mxu0
  %4456 = vmatprep.mubr.bf16.mxu0 0
  %4457 = vmatmul.mubr.bf16.gmra.mrb[0].mxu0 %v2530
  %v4458 = vpop.f32.mrb[0].mxu0
  %v4459 = vadd.f32 %v563, %v4458
  %v4460 = vpop.f32.mrb[0].mxu0
  %v4461 = vpop.f32.mrb[0].mxu0
  %v4462 = vadd.f32 %v563, %v4461
  %v4463 = vpop.f32.mrb[0].mxu0
  %4464 = vmatprep.mubr.bf16.mxu0 0
  %4465 = vmatmul.mubr.bf16.gmra.mrb[0].mxu0 %v2533
  %v4466 = vpop.f32.mrb[0].mxu0
  %v4467 = vadd.f32 %v563, %v4466
  %v4468 = vpop.f32.mrb[0].mxu0
  %v4469 = vpop.f32.mrb[0].mxu0
  %v4470 = vadd.f32 %v563, %v4469
  %v4471 = vpop.f32.mrb[0].mxu0
  %4472 = vmatprep.mubr.bf16.mxu0 0
  %4473 = vmatmul.mubr.bf16.gmra.mrb[0].mxu0 %v2536
  %v4474 = vpop.f32.mrb[0].mxu0
  %v4475 = vadd.f32 %v563, %v4474
  %v4476 = vpop.f32.mrb[0].mxu0
  %v4477 = vpop.f32.mrb[0].mxu0
  %v4478 = vadd.f32 %v563, %v4477
  %v4479 = vpop.f32.mrb[0].mxu0
  %4480 = vmatprep.mubr.bf16.mxu0 0
  %4481 = vmatmul.mubr.bf16.gmra.mrb[0].mxu0 %v2539
  %v4482 = vpop.f32.mrb[0].mxu0
  %v4483 = vadd.f32 %v563, %v4482
  %v4484 = vpop.f32.mrb[0].mxu0
  %v4485 = vpop.f32.mrb[0].mxu0
  %v4486 = vadd.f32 %v563, %v4485
  %v4487 = vpop.f32.mrb[0].mxu0
  %4488 = vmatprep.mubr.bf16.mxu0 0
  %4489 = vmatmul.mubr.bf16.gmra.mrb[0].mxu0 %v2542
  %v4490 = vpop.f32.mrb[0].mxu0
  %v4491 = vadd.f32 %v563, %v4490
  %v4492 = vpop.f32.mrb[0].mxu0
  %v4493 = vpop.f32.mrb[0].mxu0
  %v4494 = vadd.f32 %v563, %v4493
  %v4495 = vpop.f32.mrb[0].mxu0
  %4496 = vmatprep.mubr.bf16.mxu0 0
  %4497 = vmatmul.mubr.bf16.gmra.mrb[0].mxu0 %v2545
  %v4498 = vpop.f32.mrb[0].mxu0
  %v4499 = vadd.f32 %v563, %v4498
  %v4500 = vpop.f32.mrb[0].mxu0
  %v4501 = vpop.f32.mrb[0].mxu0
  %v4502 = vadd.f32 %v563, %v4501
  %v4503 = vpop.f32.mrb[0].mxu0
  %4504 = vmatprep.mubr.bf16.mxu0 0
  %4505 = vmatmul.mubr.bf16.gmra.mrb[0].mxu0 %v2548
  %v4506 = vpop.f32.mrb[0].mxu0
  %v4507 = vadd.f32 %v563, %v4506
  %v4508 = vpop.f32.mrb[0].mxu0
  %v4509 = vpop.f32.mrb[0].mxu0
  %v4510 = vadd.f32 %v563, %v4509
  %v4511 = vpop.f32.mrb[0].mxu0
  %4512 = vmatprep.mubr.bf16.mxu0 0
  %4513 = vmatmul.mubr.bf16.gmra.mrb[0].mxu0 %v2551
  %v4514 = vpop.f32.mrb[0].mxu0
  %v4515 = vadd.f32 %v563, %v4514
  %v4516 = vpop.f32.mrb[0].mxu0
  %v4517 = vpop.f32.mrb[0].mxu0
  %v4518 = vadd.f32 %v563, %v4517
  %v4519 = vpop.f32.mrb[0].mxu0
  %4520 = vmatprep.mubr.bf16.mxu0 0
  %4521 = vmatmul.mubr.bf16.gmra.mrb[0].mxu0 %v2554
  %v4522 = vpop.f32.mrb[0].mxu0
  %v4523 = vadd.f32 %v563, %v4522
  %v4524 = vpop.f32.mrb[0].mxu0
  %v4525 = vpop.f32.mrb[0].mxu0
  %v4526 = vadd.f32 %v563, %v4525
  %v4527 = vpop.f32.mrb[0].mxu0
  %4528 = vmatprep.mubr.bf16.mxu0 0
  %4529 = vmatmul.mubr.bf16.gmra.mrb[0].mxu0 %v2557
  %v4530 = vpop.f32.mrb[0].mxu0
  %v4531 = vadd.f32 %v563, %v4530
  %v4532 = vpop.f32.mrb[0].mxu0
  %v4533 = vpop.f32.mrb[0].mxu0
  %v4534 = vadd.f32 %v563, %v4533
  %v4535 = vpop.f32.mrb[0].mxu0
  %4536 = vmatprep.mubr.bf16.mxu0 0
  %4537 = vmatmul.mubr.bf16.gmra.mrb[0].mxu0 %v2560
  %v4538 = vpop.f32.mrb[0].mxu0
  %v4539 = vadd.f32 %v563, %v4538
  %v4540 = vpop.f32.mrb[0].mxu0
  %v4541 = vpop.f32.mrb[0].mxu0
  %v4542 = vadd.f32 %v563, %v4541
  %v4543 = vpop.f32.mrb[0].mxu0
  %4544 = vmatprep.mubr.bf16.mxu0 0
  %4545 = vmatmul.mubr.bf16.gmra.mrb[0].mxu0 %v2563
  %v4546 = vpop.f32.mrb[0].mxu0
  %v4547 = vadd.f32 %v563, %v4546
  %v4548 = vpop.f32.mrb[0].mxu0
  %v4549 = vpop.f32.mrb[0].mxu0
  %v4550 = vadd.f32 %v563, %v4549
  %v4551 = vpop.f32.mrb[0].mxu0
  %4552 = vmatprep.mubr.bf16.mxu0 0
  %4553 = vmatmul.mubr.bf16.gmra.mrb[0].mxu0 %v2566
  %v4554 = vpop.f32.mrb[0].mxu0
  %v4555 = vadd.f32 %v563, %v4554
  %v4556 = vpop.f32.mrb[0].mxu0
  %v4557 = vpop.f32.mrb[0].mxu0
  %v4558 = vadd.f32 %v563, %v4557
  %v4559 = vpop.f32.mrb[0].mxu0
  %4560 = vmatprep.mubr.bf16.mxu0 0
  %4561 = vmatmul.mubr.bf16.gmra.mrb[0].mxu0 %v2569
  %v4562 = vpop.f32.mrb[0].mxu0
  %v4563 = vadd.f32 %v563, %v4562
  %v4564 = vpop.f32.mrb[0].mxu0
  %v4565 = vpop.f32.mrb[0].mxu0
  %v4566 = vadd.f32 %v563, %v4565
  %v4567 = vpop.f32.mrb[0].mxu0
  %4568 = vmatprep.mubr.bf16.mxu0 0
  %4569 = vmatmul.mubr.bf16.gmra.mrb[0].mxu0 %v2572
  %v4570 = vpop.f32.mrb[0].mxu0
  %v4571 = vadd.f32 %v563, %v4570
  %v4572 = vpop.f32.mrb[0].mxu0
  %v4573 = vpop.f32.mrb[0].mxu0
  %v4574 = vadd.f32 %v563, %v4573
  %v4575 = vpop.f32.mrb[0].mxu0
  %4576 = vmatprep.mubr.bf16.mxu0 0
  %4577 = vmatmul.mubr.bf16.gmra.mrb[0].mxu0 %v2575
  %v4578 = vpop.f32.mrb[0].mxu0
  %v4579 = vadd.f32 %v563, %v4578
  %v4580 = vpop.f32.mrb[0].mxu0
  %v4581 = vpop.f32.mrb[0].mxu0
  %v4582 = vadd.f32 %v563, %v4581
  %v4583 = vpop.f32.mrb[0].mxu0
  %4584 = vmatprep.mubr.bf16.mxu0 0
  %4585 = vmatmul.mubr.bf16.gmra.mrb[0].mxu0 %v2578
  %v4586 = vpop.f32.mrb[0].mxu0
  %v4587 = vadd.f32 %v563, %v4586
  %v4588 = vpop.f32.mrb[0].mxu0
  %v4589 = vpop.f32.mrb[0].mxu0
  %v4590 = vadd.f32 %v563, %v4589
  %v4591 = vpop.f32.mrb[0].mxu0
  %4592 = vmatprep.mubr.bf16.mxu0 0
  %4593 = vmatmul.mubr.bf16.gmra.mrb[0].mxu0 %v2581
  %v4594 = vpop.f32.mrb[0].mxu0
  %v4595 = vadd.f32 %v563, %v4594
  %v4596 = vpop.f32.mrb[0].mxu0
  %v4597 = vpop.f32.mrb[0].mxu0
  %v4598 = vadd.f32 %v563, %v4597
  %v4599 = vpop.f32.mrb[0].mxu0
  %4600 = vmatprep.mubr.bf16.mxu0 0
  %4601 = vmatmul.mubr.bf16.gmra.mrb[0].mxu0 %v2584
  %v4602 = vpop.f32.mrb[0].mxu0
  %v4603 = vadd.f32 %v563, %v4602
  %v4604 = vpop.f32.mrb[0].mxu0
  %v4605 = vpop.f32.mrb[0].mxu0
  %v4606 = vadd.f32 %v563, %v4605
  %v4607 = vpop.f32.mrb[0].mxu0
  %4608 = vmatprep.mubr.bf16.mxu0 0
  %4609 = vmatmul.mubr.bf16.gmra.mrb[0].mxu0 %v2587
  %v4610 = vpop.f32.mrb[0].mxu0
  %v4611 = vadd.f32 %v563, %v4610
  %v4612 = vpop.f32.mrb[0].mxu0
  %v4613 = vpop.f32.mrb[0].mxu0
  %v4614 = vadd.f32 %v563, %v4613
  %v4615 = vpop.f32.mrb[0].mxu0
  %4616 = vmatprep.mubr.bf16.mxu0 0
  %4617 = vmatmul.mubr.bf16.gmra.mrb[0].mxu0 %v2590
  %v4618 = vpop.f32.mrb[0].mxu0
  %v4619 = vadd.f32 %v563, %v4618
  %v4620 = vpop.f32.mrb[0].mxu0
  %v4621 = vpop.f32.mrb[0].mxu0
  %v4622 = vadd.f32 %v563, %v4621
  %v4623 = vpop.f32.mrb[0].mxu0
  %4624 = vmatprep.mubr.bf16.mxu0 0
  %4625 = vmatmul.mubr.bf16.gmra.mrb[0].mxu0 %v2593
  %v4626 = vpop.f32.mrb[0].mxu0
  %v4627 = vadd.f32 %v563, %v4626
  %v4628 = vpop.f32.mrb[0].mxu0
  %v4629 = vpop.f32.mrb[0].mxu0
  %v4630 = vadd.f32 %v563, %v4629
  %v4631 = vpop.f32.mrb[0].mxu0
  %4632 = vmatprep.mubr.bf16.mxu0 0
  %4633 = vmatmul.mubr.bf16.gmra.mrb[0].mxu0 %v2596
  %v4634 = vpop.f32.mrb[0].mxu0
  %v4635 = vadd.f32 %v563, %v4634
  %v4636 = vpop.f32.mrb[0].mxu0
  %v4637 = vpop.f32.mrb[0].mxu0
  %v4638 = vadd.f32 %v563, %v4637
  %v4639 = vpop.f32.mrb[0].mxu0
  %4640 = vmatprep.mubr.bf16.mxu0 0
  %4641 = vmatmul.mubr.bf16.gmra.mrb[0].mxu0 %v2599
  %v4642 = vpop.f32.mrb[0].mxu0
  %v4643 = vadd.f32 %v563, %v4642
  %v4644 = vpop.f32.mrb[0].mxu0
  %v4645 = vpop.f32.mrb[0].mxu0
  %v4646 = vadd.f32 %v563, %v4645
  %v4647 = vpop.f32.mrb[0].mxu0
  %4648 = vmatprep.mubr.bf16.mxu0 0
  %4649 = vmatmul.mubr.bf16.gmra.mrb[0].mxu0 %v2602
  %v4650 = vpop.f32.mrb[0].mxu0
  %v4651 = vadd.f32 %v563, %v4650
  %v4652 = vpop.f32.mrb[0].mxu0
  %v4653 = vpop.f32.mrb[0].mxu0
  %v4654 = vadd.f32 %v563, %v4653
  %v4655 = vpop.f32.mrb[0].mxu0
  %4656 = vmatprep.mubr.bf16.mxu0 0
  %4657 = vmatmul.mubr.bf16.gmra.mrb[0].mxu0 %v2605
  %v4658 = vpop.f32.mrb[0].mxu0
  %v4659 = vadd.f32 %v563, %v4658
  %v4660 = vpop.f32.mrb[0].mxu0
  %v4661 = vpop.f32.mrb[0].mxu0
  %v4662 = vadd.f32 %v563, %v4661
  %v4663 = vpop.f32.mrb[0].mxu0
  %4664 = vmatprep.mubr.bf16.mxu0 0
  %4665 = vmatmul.mubr.bf16.gmra.mrb[0].mxu0 %v2608
  %v4666 = vpop.f32.mrb[0].mxu0
  %v4667 = vadd.f32 %v563, %v4666
  %v4668 = vpop.f32.mrb[0].mxu0
  %v4669 = vpop.f32.mrb[0].mxu0
  %v4670 = vadd.f32 %v563, %v4669
  %v4671 = vpop.f32.mrb[0].mxu0
  %4672 = vmatprep.mubr.bf16.mxu0 0
  %4673 = vmatmul.mubr.bf16.gmra.mrb[0].mxu0 %v2611
  %v4674 = vpop.f32.mrb[0].mxu0
  %v4675 = vadd.f32 %v563, %v4674
  %v4676 = vpop.f32.mrb[0].mxu0
  %v4677 = vpop.f32.mrb[0].mxu0
  %v4678 = vadd.f32 %v563, %v4677
  %v4679 = vpop.f32.mrb[0].mxu0
  %4680 = vmatprep.mubr.bf16.mxu0 0
  %4681 = vmatmul.mubr.bf16.gmra.mrb[0].mxu0 %v2614
  %v4682 = vpop.f32.mrb[0].mxu0
  %v4683 = vadd.f32 %v563, %v4682
  %v4684 = vpop.f32.mrb[0].mxu0
  %v4685 = vpop.f32.mrb[0].mxu0
  %v4686 = vadd.f32 %v563, %v4685
  %v4687 = vpop.f32.mrb[0].mxu0
  %4688 = vmatprep.mubr.bf16.mxu0 0
  %4689 = vmatmul.mubr.bf16.gmra.mrb[0].mxu0 %v2617
  %v4690 = vpop.f32.mrb[0].mxu0
  %v4691 = vadd.f32 %v563, %v4690
  %v4692 = vpop.f32.mrb[0].mxu0
  %v4693 = vpop.f32.mrb[0].mxu0
  %v4694 = vadd.f32 %v563, %v4693
  %v4695 = vpop.f32.mrb[0].mxu0
  %4696 = vmatprep.mubr.bf16.mxu0 0
  %4697 = vmatmul.mubr.bf16.gmra.mrb[0].mxu0 %v2620
  %v4698 = vpop.f32.mrb[0].mxu0
  %v4699 = vadd.f32 %v563, %v4698
  %v4700 = vpop.f32.mrb[0].mxu0
  %v4701 = vpop.f32.mrb[0].mxu0
  %v4702 = vadd.f32 %v563, %v4701
  %v4703 = vpop.f32.mrb[0].mxu0
  %4704 = vmatprep.mubr.bf16.mxu0 0
  %4705 = vmatmul.mubr.bf16.gmra.mrb[0].mxu0 %v2623
  %v4706 = vpop.f32.mrb[0].mxu0
  %v4707 = vadd.f32 %v563, %v4706
  %v4708 = vpop.f32.mrb[0].mxu0
  %v4709 = vpop.f32.mrb[0].mxu0
  %v4710 = vadd.f32 %v563, %v4709
  %v4711 = vpop.f32.mrb[0].mxu0
  %4712 = vdwg.mxu0
  %v4713 = vmax.f32 %v2667, 0.0
  %v4714 = vmax.f32 %v2670, 0.0
  %v4715 = vmax.f32 %v2675, 0.0
  %v4716 = vmax.f32 %v2678, 0.0
  %v4717 = vmax.f32 %v2683, 0.0
  %v4718 = vmax.f32 %v2686, 0.0
  %v4719 = vmax.f32 %v2691, 0.0
  %v4720 = vmax.f32 %v2694, 0.0
  %v4721 = vmax.f32 %v2699, 0.0
  %v4722 = vmax.f32 %v2702, 0.0
  %v4723 = vmax.f32 %v2707, 0.0
  %v4724 = vmax.f32 %v2710, 0.0
  %v4725 = vmax.f32 %v2715, 0.0
  %v4726 = vmax.f32 %v2718, 0.0
  %v4727 = vmax.f32 %v2723, 0.0
  %v4728 = vmax.f32 %v2726, 0.0
  %v4729 = vmax.f32 %v2731, 0.0
  %v4730 = vmax.f32 %v2734, 0.0
  %v4731 = vmax.f32 %v2739, 0.0
  %v4732 = vmax.f32 %v2742, 0.0
  %v4733 = vmax.f32 %v2747, 0.0
  %v4734 = vmax.f32 %v2750, 0.0
  %v4735 = vmax.f32 %v2755, 0.0
  %v4736 = vmax.f32 %v2758, 0.0
  %v4737 = vmax.f32 %v2763, 0.0
  %v4738 = vmax.f32 %v2766, 0.0
  %v4739 = vmax.f32 %v2771, 0.0
  %v4740 = vmax.f32 %v2774, 0.0
  %v4741 = vmax.f32 %v2779, 0.0
  %v4742 = vmax.f32 %v2782, 0.0
  %v4743 = vmax.f32 %v2787, 0.0
  %v4744 = vmax.f32 %v2790, 0.0
  %v4745 = vmax.f32 %v2795, 0.0
  %v4746 = vmax.f32 %v2798, 0.0
  %v4747 = vmax.f32 %v2803, 0.0
  %v4748 = vmax.f32 %v2806, 0.0
  %v4749 = vmax.f32 %v2811, 0.0
  %v4750 = vmax.f32 %v2814, 0.0
  %v4751 = vmax.f32 %v2819, 0.0
  %v4752 = vmax.f32 %v2822, 0.0
  %v4753 = vmax.f32 %v2827, 0.0
  %v4754 = vmax.f32 %v2830, 0.0
  %v4755 = vmax.f32 %v2835, 0.0
  %v4756 = vmax.f32 %v2838, 0.0
  %v4757 = vmax.f32 %v2843, 0.0
  %v4758 = vmax.f32 %v2846, 0.0
  %v4759 = vmax.f32 %v2851, 0.0
  %v4760 = vmax.f32 %v2854, 0.0
  %v4761 = vmax.f32 %v2859, 0.0
  %v4762 = vmax.f32 %v2862, 0.0
  %v4763 = vmax.f32 %v2867, 0.0
  %v4764 = vmax.f32 %v2870, 0.0
  %v4765 = vmax.f32 %v2875, 0.0
  %v4766 = vmax.f32 %v2878, 0.0
  %v4767 = vmax.f32 %v2883, 0.0
  %v4768 = vmax.f32 %v2886, 0.0
  %v4769 = vmax.f32 %v2891, 0.0
  %v4770 = vmax.f32 %v2894, 0.0
  %v4771 = vmax.f32 %v2899, 0.0
  %v4772 = vmax.f32 %v2902, 0.0
  %v4773 = vmax.f32 %v2907, 0.0
  %v4774 = vmax.f32 %v2910, 0.0
  %v4775 = vmax.f32 %v2915, 0.0
  %v4776 = vmax.f32 %v2918, 0.0
  %v4777 = vmax.f32 %v2923, 0.0
  %v4778 = vmax.f32 %v2926, 0.0
  %v4779 = vmax.f32 %v2931, 0.0
  %v4780 = vmax.f32 %v2934, 0.0
  %v4781 = vmax.f32 %v2939, 0.0
  %v4782 = vmax.f32 %v2942, 0.0
  %v4783 = vmax.f32 %v2947, 0.0
  %v4784 = vmax.f32 %v2950, 0.0
  %v4785 = vmax.f32 %v2955, 0.0
  %v4786 = vmax.f32 %v2958, 0.0
  %v4787 = vmax.f32 %v2963, 0.0
  %v4788 = vmax.f32 %v2966, 0.0
  %v4789 = vmax.f32 %v2971, 0.0
  %v4790 = vmax.f32 %v2974, 0.0
  %v4791 = vmax.f32 %v2979, 0.0
  %v4792 = vmax.f32 %v2982, 0.0
  %v4793 = vmax.f32 %v2987, 0.0
  %v4794 = vmax.f32 %v2990, 0.0
  %v4795 = vmax.f32 %v2995, 0.0
  %v4796 = vmax.f32 %v2998, 0.0
  %v4797 = vmax.f32 %v3003, 0.0
  %v4798 = vmax.f32 %v3006, 0.0
  %v4799 = vmax.f32 %v3011, 0.0
  %v4800 = vmax.f32 %v3014, 0.0
  %v4801 = vmax.f32 %v3019, 0.0
  %v4802 = vmax.f32 %v3022, 0.0
  %v4803 = vmax.f32 %v3027, 0.0
  %v4804 = vmax.f32 %v3030, 0.0
  %v4805 = vmax.f32 %v3035, 0.0
  %v4806 = vmax.f32 %v3038, 0.0
  %v4807 = vmax.f32 %v3043, 0.0
  %v4808 = vmax.f32 %v3046, 0.0
  %v4809 = vmax.f32 %v3051, 0.0
  %v4810 = vmax.f32 %v3054, 0.0
  %v4811 = vmax.f32 %v3059, 0.0
  %v4812 = vmax.f32 %v3062, 0.0
  %v4813 = vmax.f32 %v3067, 0.0
  %v4814 = vmax.f32 %v3070, 0.0
  %v4815 = vmax.f32 %v3075, 0.0
  %v4816 = vmax.f32 %v3078, 0.0
  %v4817 = vmax.f32 %v3083, 0.0
  %v4818 = vmax.f32 %v3086, 0.0
  %v4819 = vmax.f32 %v3091, 0.0
  %v4820 = vmax.f32 %v3094, 0.0
  %v4821 = vmax.f32 %v3099, 0.0
  %v4822 = vmax.f32 %v3102, 0.0
  %v4823 = vmax.f32 %v3107, 0.0
  %v4824 = vmax.f32 %v3110, 0.0
  %v4825 = vmax.f32 %v3115, 0.0
  %v4826 = vmax.f32 %v3118, 0.0
  %v4827 = vmax.f32 %v3123, 0.0
  %v4828 = vmax.f32 %v3126, 0.0
  %v4829 = vmax.f32 %v3131, 0.0
  %v4830 = vmax.f32 %v3134, 0.0
  %v4831 = vmax.f32 %v3139, 0.0
  %v4832 = vmax.f32 %v3142, 0.0
  %v4833 = vmax.f32 %v3147, 0.0
  %v4834 = vmax.f32 %v3150, 0.0
  %v4835 = vmax.f32 %v3155, 0.0
  %v4836 = vmax.f32 %v3158, 0.0
  %v4837 = vmax.f32 %v3163, 0.0
  %v4838 = vmax.f32 %v3166, 0.0
  %v4839 = vmax.f32 %v3171, 0.0
  %v4840 = vmax.f32 %v3174, 0.0
  %v4841 = vmax.f32 %v3179, 0.0
  %v4842 = vmax.f32 %v3182, 0.0
  %v4843 = vmax.f32 %v3187, 0.0
  %v4844 = vmax.f32 %v3190, 0.0
  %v4845 = vmax.f32 %v3195, 0.0
  %v4846 = vmax.f32 %v3198, 0.0
  %v4847 = vmax.f32 %v3203, 0.0
  %v4848 = vmax.f32 %v3206, 0.0
  %v4849 = vmax.f32 %v3211, 0.0
  %v4850 = vmax.f32 %v3214, 0.0
  %v4851 = vmax.f32 %v3219, 0.0
  %v4852 = vmax.f32 %v3222, 0.0
  %v4853 = vmax.f32 %v3227, 0.0
  %v4854 = vmax.f32 %v3230, 0.0
  %v4855 = vmax.f32 %v3235, 0.0
  %v4856 = vmax.f32 %v3238, 0.0
  %v4857 = vmax.f32 %v3243, 0.0
  %v4858 = vmax.f32 %v3246, 0.0
  %v4859 = vmax.f32 %v3251, 0.0
  %v4860 = vmax.f32 %v3254, 0.0
  %v4861 = vmax.f32 %v3259, 0.0
  %v4862 = vmax.f32 %v3262, 0.0
  %v4863 = vmax.f32 %v3267, 0.0
  %v4864 = vmax.f32 %v3270, 0.0
  %v4865 = vmax.f32 %v3275, 0.0
  %v4866 = vmax.f32 %v3278, 0.0
  %v4867 = vmax.f32 %v3283, 0.0
  %v4868 = vmax.f32 %v3286, 0.0
  %v4869 = vmax.f32 %v3291, 0.0
  %v4870 = vmax.f32 %v3294, 0.0
  %v4871 = vmax.f32 %v3299, 0.0
  %v4872 = vmax.f32 %v3302, 0.0
  %v4873 = vmax.f32 %v3307, 0.0
  %v4874 = vmax.f32 %v3310, 0.0
  %v4875 = vmax.f32 %v3315, 0.0
  %v4876 = vmax.f32 %v3318, 0.0
  %v4877 = vmax.f32 %v3323, 0.0
  %v4878 = vmax.f32 %v3326, 0.0
  %v4879 = vmax.f32 %v3331, 0.0
  %v4880 = vmax.f32 %v3334, 0.0
  %v4881 = vmax.f32 %v3339, 0.0
  %v4882 = vmax.f32 %v3342, 0.0
  %v4883 = vmax.f32 %v3347, 0.0
  %v4884 = vmax.f32 %v3350, 0.0
  %v4885 = vmax.f32 %v3355, 0.0
  %v4886 = vmax.f32 %v3358, 0.0
  %v4887 = vmax.f32 %v3363, 0.0
  %v4888 = vmax.f32 %v3366, 0.0
  %v4889 = vmax.f32 %v3371, 0.0
  %v4890 = vmax.f32 %v3374, 0.0
  %v4891 = vmax.f32 %v3379, 0.0
  %v4892 = vmax.f32 %v3382, 0.0
  %v4893 = vmax.f32 %v3387, 0.0
  %v4894 = vmax.f32 %v3390, 0.0
  %v4895 = vmax.f32 %v3395, 0.0
  %v4896 = vmax.f32 %v3398, 0.0
  %v4897 = vmax.f32 %v3403, 0.0
  %v4898 = vmax.f32 %v3406, 0.0
  %v4899 = vmax.f32 %v3411, 0.0
  %v4900 = vmax.f32 %v3414, 0.0
  %v4901 = vmax.f32 %v3419, 0.0
  %v4902 = vmax.f32 %v3422, 0.0
  %v4903 = vmax.f32 %v3427, 0.0
  %v4904 = vmax.f32 %v3430, 0.0
  %v4905 = vmax.f32 %v3435, 0.0
  %v4906 = vmax.f32 %v3438, 0.0
  %v4907 = vmax.f32 %v3443, 0.0
  %v4908 = vmax.f32 %v3446, 0.0
  %v4909 = vmax.f32 %v3451, 0.0
  %v4910 = vmax.f32 %v3454, 0.0
  %v4911 = vmax.f32 %v3459, 0.0
  %v4912 = vmax.f32 %v3462, 0.0
  %v4913 = vmax.f32 %v3467, 0.0
  %v4914 = vmax.f32 %v3470, 0.0
  %v4915 = vmax.f32 %v3475, 0.0
  %v4916 = vmax.f32 %v3478, 0.0
  %v4917 = vmax.f32 %v3483, 0.0
  %v4918 = vmax.f32 %v3486, 0.0
  %v4919 = vmax.f32 %v3491, 0.0
  %v4920 = vmax.f32 %v3494, 0.0
  %v4921 = vmax.f32 %v3499, 0.0
  %v4922 = vmax.f32 %v3502, 0.0
  %v4923 = vmax.f32 %v3507, 0.0
  %v4924 = vmax.f32 %v3510, 0.0
  %v4925 = vmax.f32 %v3515, 0.0
  %v4926 = vmax.f32 %v3518, 0.0
  %v4927 = vmax.f32 %v3523, 0.0
  %v4928 = vmax.f32 %v3526, 0.0
  %v4929 = vmax.f32 %v3531, 0.0
  %v4930 = vmax.f32 %v3534, 0.0
  %v4931 = vmax.f32 %v3539, 0.0
  %v4932 = vmax.f32 %v3542, 0.0
  %v4933 = vmax.f32 %v3547, 0.0
  %v4934 = vmax.f32 %v3550, 0.0
  %v4935 = vmax.f32 %v3555, 0.0
  %v4936 = vmax.f32 %v3558, 0.0
  %v4937 = vmax.f32 %v3563, 0.0
  %v4938 = vmax.f32 %v3566, 0.0
  %v4939 = vmax.f32 %v3571, 0.0
  %v4940 = vmax.f32 %v3574, 0.0
  %v4941 = vmax.f32 %v3579, 0.0
  %v4942 = vmax.f32 %v3582, 0.0
  %v4943 = vmax.f32 %v3587, 0.0
  %v4944 = vmax.f32 %v3590, 0.0
  %v4945 = vmax.f32 %v3595, 0.0
  %v4946 = vmax.f32 %v3598, 0.0
  %v4947 = vmax.f32 %v3603, 0.0
  %v4948 = vmax.f32 %v3606, 0.0
  %v4949 = vmax.f32 %v3611, 0.0
  %v4950 = vmax.f32 %v3614, 0.0
  %v4951 = vmax.f32 %v3619, 0.0
  %v4952 = vmax.f32 %v3622, 0.0
  %v4953 = vmax.f32 %v3627, 0.0
  %v4954 = vmax.f32 %v3630, 0.0
  %v4955 = vmax.f32 %v3635, 0.0
  %v4956 = vmax.f32 %v3638, 0.0
  %v4957 = vmax.f32 %v3643, 0.0
  %v4958 = vmax.f32 %v3646, 0.0
  %v4959 = vmax.f32 %v3651, 0.0
  %v4960 = vmax.f32 %v3654, 0.0
  %v4961 = vmax.f32 %v3659, 0.0
  %v4962 = vmax.f32 %v3662, 0.0
  %v4963 = vmax.f32 %v3667, 0.0
  %v4964 = vmax.f32 %v3670, 0.0
  %v4965 = vmax.f32 %v3675, 0.0
  %v4966 = vmax.f32 %v3678, 0.0
  %v4967 = vmax.f32 %v3683, 0.0
  %v4968 = vmax.f32 %v3686, 0.0
  %v4969 = vmax.f32 %v3691, 0.0
  %v4970 = vmax.f32 %v3694, 0.0
  %v4971 = vmax.f32 %v3699, 0.0
  %v4972 = vmax.f32 %v3702, 0.0
  %v4973 = vmax.f32 %v3707, 0.0
  %v4974 = vmax.f32 %v3710, 0.0
  %v4975 = vmax.f32 %v3715, 0.0
  %v4976 = vmax.f32 %v3718, 0.0
  %v4977 = vmax.f32 %v3723, 0.0
  %v4978 = vmax.f32 %v3726, 0.0
  %v4979 = vmax.f32 %v3731, 0.0
  %v4980 = vmax.f32 %v3734, 0.0
  %v4981 = vmax.f32 %v3739, 0.0
  %v4982 = vmax.f32 %v3742, 0.0
  %v4983 = vmax.f32 %v3747, 0.0
  %v4984 = vmax.f32 %v3750, 0.0
  %v4985 = vmax.f32 %v3755, 0.0
  %v4986 = vmax.f32 %v3758, 0.0
  %v4987 = vmax.f32 %v3763, 0.0
  %v4988 = vmax.f32 %v3766, 0.0
  %v4989 = vmax.f32 %v3771, 0.0
  %v4990 = vmax.f32 %v3774, 0.0
  %v4991 = vmax.f32 %v3779, 0.0
  %v4992 = vmax.f32 %v3782, 0.0
  %v4993 = vmax.f32 %v3787, 0.0
  %v4994 = vmax.f32 %v3790, 0.0
  %v4995 = vmax.f32 %v3795, 0.0
  %v4996 = vmax.f32 %v3798, 0.0
  %v4997 = vmax.f32 %v3803, 0.0
  %v4998 = vmax.f32 %v3806, 0.0
  %v4999 = vmax.f32 %v3811, 0.0
  %v5000 = vmax.f32 %v3814, 0.0
  %v5001 = vmax.f32 %v3819, 0.0
  %v5002 = vmax.f32 %v3822, 0.0
  %v5003 = vmax.f32 %v3827, 0.0
  %v5004 = vmax.f32 %v3830, 0.0
  %v5005 = vmax.f32 %v3835, 0.0
  %v5006 = vmax.f32 %v3838, 0.0
  %v5007 = vmax.f32 %v3843, 0.0
  %v5008 = vmax.f32 %v3846, 0.0
  %v5009 = vmax.f32 %v3851, 0.0
  %v5010 = vmax.f32 %v3854, 0.0
  %v5011 = vmax.f32 %v3859, 0.0
  %v5012 = vmax.f32 %v3862, 0.0
  %v5013 = vmax.f32 %v3867, 0.0
  %v5014 = vmax.f32 %v3870, 0.0
  %v5015 = vmax.f32 %v3875, 0.0
  %v5016 = vmax.f32 %v3878, 0.0
  %v5017 = vmax.f32 %v3883, 0.0
  %v5018 = vmax.f32 %v3886, 0.0
  %v5019 = vmax.f32 %v3891, 0.0
  %v5020 = vmax.f32 %v3894, 0.0
  %v5021 = vmax.f32 %v3899, 0.0
  %v5022 = vmax.f32 %v3902, 0.0
  %v5023 = vmax.f32 %v3907, 0.0
  %v5024 = vmax.f32 %v3910, 0.0
  %v5025 = vmax.f32 %v3915, 0.0
  %v5026 = vmax.f32 %v3918, 0.0
  %v5027 = vmax.f32 %v3923, 0.0
  %v5028 = vmax.f32 %v3926, 0.0
  %v5029 = vmax.f32 %v3931, 0.0
  %v5030 = vmax.f32 %v3934, 0.0
  %v5031 = vmax.f32 %v3939, 0.0
  %v5032 = vmax.f32 %v3942, 0.0
  %v5033 = vmax.f32 %v3947, 0.0
  %v5034 = vmax.f32 %v3950, 0.0
  %v5035 = vmax.f32 %v3955, 0.0
  %v5036 = vmax.f32 %v3958, 0.0
  %v5037 = vmax.f32 %v3963, 0.0
  %v5038 = vmax.f32 %v3966, 0.0
  %v5039 = vmax.f32 %v3971, 0.0
  %v5040 = vmax.f32 %v3974, 0.0
  %v5041 = vmax.f32 %v3979, 0.0
  %v5042 = vmax.f32 %v3982, 0.0
  %v5043 = vmax.f32 %v3987, 0.0
  %v5044 = vmax.f32 %v3990, 0.0
  %v5045 = vmax.f32 %v3995, 0.0
  %v5046 = vmax.f32 %v3998, 0.0
  %v5047 = vmax.f32 %v4003, 0.0
  %v5048 = vmax.f32 %v4006, 0.0
  %v5049 = vmax.f32 %v4011, 0.0
  %v5050 = vmax.f32 %v4014, 0.0
  %v5051 = vmax.f32 %v4019, 0.0
  %v5052 = vmax.f32 %v4022, 0.0
  %v5053 = vmax.f32 %v4027, 0.0
  %v5054 = vmax.f32 %v4030, 0.0
  %v5055 = vmax.f32 %v4035, 0.0
  %v5056 = vmax.f32 %v4038, 0.0
  %v5057 = vmax.f32 %v4043, 0.0
  %v5058 = vmax.f32 %v4046, 0.0
  %v5059 = vmax.f32 %v4051, 0.0
  %v5060 = vmax.f32 %v4054, 0.0
  %v5061 = vmax.f32 %v4059, 0.0
  %v5062 = vmax.f32 %v4062, 0.0
  %v5063 = vmax.f32 %v4067, 0.0
  %v5064 = vmax.f32 %v4070, 0.0
  %v5065 = vmax.f32 %v4075, 0.0
  %v5066 = vmax.f32 %v4078, 0.0
  %v5067 = vmax.f32 %v4083, 0.0
  %v5068 = vmax.f32 %v4086, 0.0
  %v5069 = vmax.f32 %v4091, 0.0
  %v5070 = vmax.f32 %v4094, 0.0
  %v5071 = vmax.f32 %v4099, 0.0
  %v5072 = vmax.f32 %v4102, 0.0
  %v5073 = vmax.f32 %v4107, 0.0
  %v5074 = vmax.f32 %v4110, 0.0
  %v5075 = vmax.f32 %v4115, 0.0
  %v5076 = vmax.f32 %v4118, 0.0
  %v5077 = vmax.f32 %v4123, 0.0
  %v5078 = vmax.f32 %v4126, 0.0
  %v5079 = vmax.f32 %v4131, 0.0
  %v5080 = vmax.f32 %v4134, 0.0
  %v5081 = vmax.f32 %v4139, 0.0
  %v5082 = vmax.f32 %v4142, 0.0
  %v5083 = vmax.f32 %v4147, 0.0
  %v5084 = vmax.f32 %v4150, 0.0
  %v5085 = vmax.f32 %v4155, 0.0
  %v5086 = vmax.f32 %v4158, 0.0
  %v5087 = vmax.f32 %v4163, 0.0
  %v5088 = vmax.f32 %v4166, 0.0
  %v5089 = vmax.f32 %v4171, 0.0
  %v5090 = vmax.f32 %v4174, 0.0
  %v5091 = vmax.f32 %v4179, 0.0
  %v5092 = vmax.f32 %v4182, 0.0
  %v5093 = vmax.f32 %v4187, 0.0
  %v5094 = vmax.f32 %v4190, 0.0
  %v5095 = vmax.f32 %v4195, 0.0
  %v5096 = vmax.f32 %v4198, 0.0
  %v5097 = vmax.f32 %v4203, 0.0
  %v5098 = vmax.f32 %v4206, 0.0
  %v5099 = vmax.f32 %v4211, 0.0
  %v5100 = vmax.f32 %v4214, 0.0
  %v5101 = vmax.f32 %v4219, 0.0
  %v5102 = vmax.f32 %v4222, 0.0
  %v5103 = vmax.f32 %v4227, 0.0
  %v5104 = vmax.f32 %v4230, 0.0
  %v5105 = vmax.f32 %v4235, 0.0
  %v5106 = vmax.f32 %v4238, 0.0
  %v5107 = vmax.f32 %v4243, 0.0
  %v5108 = vmax.f32 %v4246, 0.0
  %v5109 = vmax.f32 %v4251, 0.0
  %v5110 = vmax.f32 %v4254, 0.0
  %v5111 = vmax.f32 %v4259, 0.0
  %v5112 = vmax.f32 %v4262, 0.0
  %v5113 = vmax.f32 %v4267, 0.0
  %v5114 = vmax.f32 %v4270, 0.0
  %v5115 = vmax.f32 %v4275, 0.0
  %v5116 = vmax.f32 %v4278, 0.0
  %v5117 = vmax.f32 %v4283, 0.0
  %v5118 = vmax.f32 %v4286, 0.0
  %v5119 = vmax.f32 %v4291, 0.0
  %v5120 = vmax.f32 %v4294, 0.0
  %v5121 = vmax.f32 %v4299, 0.0
  %v5122 = vmax.f32 %v4302, 0.0
  %v5123 = vmax.f32 %v4307, 0.0
  %v5124 = vmax.f32 %v4310, 0.0
  %v5125 = vmax.f32 %v4315, 0.0
  %v5126 = vmax.f32 %v4318, 0.0
  %v5127 = vmax.f32 %v4323, 0.0
  %v5128 = vmax.f32 %v4326, 0.0
  %v5129 = vmax.f32 %v4331, 0.0
  %v5130 = vmax.f32 %v4334, 0.0
  %v5131 = vmax.f32 %v4339, 0.0
  %v5132 = vmax.f32 %v4342, 0.0
  %v5133 = vmax.f32 %v4347, 0.0
  %v5134 = vmax.f32 %v4350, 0.0
  %v5135 = vmax.f32 %v4355, 0.0
  %v5136 = vmax.f32 %v4358, 0.0
  %v5137 = vmax.f32 %v4363, 0.0
  %v5138 = vmax.f32 %v4366, 0.0
  %v5139 = vmax.f32 %v4371, 0.0
  %v5140 = vmax.f32 %v4374, 0.0
  %v5141 = vmax.f32 %v4379, 0.0
  %v5142 = vmax.f32 %v4382, 0.0
  %v5143 = vmax.f32 %v4387, 0.0
  %v5144 = vmax.f32 %v4390, 0.0
  %v5145 = vmax.f32 %v4395, 0.0
  %v5146 = vmax.f32 %v4398, 0.0
  %v5147 = vmax.f32 %v4403, 0.0
  %v5148 = vmax.f32 %v4406, 0.0
  %v5149 = vmax.f32 %v4411, 0.0
  %v5150 = vmax.f32 %v4414, 0.0
  %v5151 = vmax.f32 %v4419, 0.0
  %v5152 = vmax.f32 %v4422, 0.0
  %v5153 = vmax.f32 %v4427, 0.0
  %v5154 = vmax.f32 %v4430, 0.0
  %v5155 = vmax.f32 %v4435, 0.0
  %v5156 = vmax.f32 %v4438, 0.0
  %v5157 = vmax.f32 %v4443, 0.0
  %v5158 = vmax.f32 %v4446, 0.0
  %v5159 = vmax.f32 %v4451, 0.0
  %v5160 = vmax.f32 %v4454, 0.0
  %v5161 = vmax.f32 %v4459, 0.0
  %v5162 = vmax.f32 %v4462, 0.0
  %v5163 = vmax.f32 %v4467, 0.0
  %v5164 = vmax.f32 %v4470, 0.0
  %v5165 = vmax.f32 %v4475, 0.0
  %v5166 = vmax.f32 %v4478, 0.0
  %v5167 = vmax.f32 %v4483, 0.0
  %v5168 = vmax.f32 %v4486, 0.0
  %v5169 = vmax.f32 %v4491, 0.0
  %v5170 = vmax.f32 %v4494, 0.0
  %v5171 = vmax.f32 %v4499, 0.0
  %v5172 = vmax.f32 %v4502, 0.0
  %v5173 = vmax.f32 %v4507, 0.0
  %v5174 = vmax.f32 %v4510, 0.0
  %v5175 = vmax.f32 %v4515, 0.0
  %v5176 = vmax.f32 %v4518, 0.0
  %v5177 = vmax.f32 %v4523, 0.0
  %v5178 = vmax.f32 %v4526, 0.0
  %v5179 = vmax.f32 %v4531, 0.0
  %v5180 = vmax.f32 %v4534, 0.0
  %v5181 = vmax.f32 %v4539, 0.0
  %v5182 = vmax.f32 %v4542, 0.0
  %v5183 = vmax.f32 %v4547, 0.0
  %v5184 = vmax.f32 %v4550, 0.0
  %v5185 = vmax.f32 %v4555, 0.0
  %v5186 = vmax.f32 %v4558, 0.0
  %v5187 = vmax.f32 %v4563, 0.0
  %v5188 = vmax.f32 %v4566, 0.0
  %v5189 = vmax.f32 %v4571, 0.0
  %v5190 = vmax.f32 %v4574, 0.0
  %v5191 = vmax.f32 %v4579, 0.0
  %v5192 = vmax.f32 %v4582, 0.0
  %v5193 = vmax.f32 %v4587, 0.0
  %v5194 = vmax.f32 %v4590, 0.0
  %v5195 = vmax.f32 %v4595, 0.0
  %v5196 = vmax.f32 %v4598, 0.0
  %v5197 = vmax.f32 %v4603, 0.0
  %v5198 = vmax.f32 %v4606, 0.0
  %v5199 = vmax.f32 %v4611, 0.0
  %v5200 = vmax.f32 %v4614, 0.0
  %v5201 = vmax.f32 %v4619, 0.0
  %v5202 = vmax.f32 %v4622, 0.0
  %v5203 = vmax.f32 %v4627, 0.0
  %v5204 = vmax.f32 %v4630, 0.0
  %v5205 = vmax.f32 %v4635, 0.0
  %v5206 = vmax.f32 %v4638, 0.0
  %v5207 = vmax.f32 %v4643, 0.0
  %v5208 = vmax.f32 %v4646, 0.0
  %v5209 = vmax.f32 %v4651, 0.0
  %v5210 = vmax.f32 %v4654, 0.0
  %v5211 = vmax.f32 %v4659, 0.0
  %v5212 = vmax.f32 %v4662, 0.0
  %v5213 = vmax.f32 %v4667, 0.0
  %v5214 = vmax.f32 %v4670, 0.0
  %v5215 = vmax.f32 %v4675, 0.0
  %v5216 = vmax.f32 %v4678, 0.0
  %v5217 = vmax.f32 %v4683, 0.0
  %v5218 = vmax.f32 %v4686, 0.0
  %v5219 = vmax.f32 %v4691, 0.0
  %v5220 = vmax.f32 %v4694, 0.0
  %v5221 = vmax.f32 %v4699, 0.0
  %v5222 = vmax.f32 %v4702, 0.0
  %v5223 = vmax.f32 %v4707, 0.0
  %v5224 = vmax.f32 %v4710, 0.0
  %v5225 = vld [vmem:[%s3] sm:$0xff]
  %v5226 = vld [vmem:[%s3 + $0x8] sm:$0xff]
  %v5227 = vld [vmem:[%s3 + $0x10] sm:$0xff]
  %v5228 = vld [vmem:[%s3 + $0x18] sm:$0xff]
  %v5229 = vld [vmem:[%s3 + $0x20] sm:$0xff]
  %v5230 = vld [vmem:[%s3 + $0x28] sm:$0xff]
  %v5231 = vld [vmem:[%s3 + $0x30] sm:$0xff]
  %v5232 = vld [vmem:[%s3 + $0x38] sm:$0xff]
  %v5233 = vld [vmem:[%s3 + $0x40] sm:$0xff]
  %v5234 = vld [vmem:[%s3 + $0x48] sm:$0xff]
  %v5235 = vld [vmem:[%s3 + $0x50] sm:$0xff]
  %v5236 = vld [vmem:[%s3 + $0x58] sm:$0xff]
  %v5237 = vld [vmem:[%s3 + $0x60] sm:$0xff]
  %v5238 = vld [vmem:[%s3 + $0x68] sm:$0xff]
  %v5239 = vld [vmem:[%s3 + $0x70] sm:$0xff]
  %v5240 = vld [vmem:[%s3 + $0x78] sm:$0xff]
  %v5241 = vld [vmem:[%s3 + $0x80] sm:$0xff]
  %v5242 = vld [vmem:[%s3 + $0x88] sm:$0xff]
  %v5243 = vld [vmem:[%s3 + $0x90] sm:$0xff]
  %v5244 = vld [vmem:[%s3 + $0x98] sm:$0xff]
  %v5245 = vld [vmem:[%s3 + $0xa0] sm:$0xff]
  %v5246 = vld [vmem:[%s3 + $0xa8] sm:$0xff]
  %v5247 = vld [vmem:[%s3 + $0xb0] sm:$0xff]
  %v5248 = vld [vmem:[%s3 + $0xb8] sm:$0xff]
  %v5249 = vld [vmem:[%s3 + $0xc0] sm:$0xff]
  %v5250 = vld [vmem:[%s3 + $0xc8] sm:$0xff]
  %v5251 = vld [vmem:[%s3 + $0xd0] sm:$0xff]
  %v5252 = vld [vmem:[%s3 + $0xd8] sm:$0xff]
  %v5253 = vld [vmem:[%s3 + $0xe0] sm:$0xff]
  %v5254 = vld [vmem:[%s3 + $0xe8] sm:$0xff]
  %v5255 = vld [vmem:[%s3 + $0xf0] sm:$0xff]
  %v5256 = vld [vmem:[%s3 + $0xf8] sm:$0xff]
  %v5257 = vld [vmem:[%s3 + $0x100] sm:$0xff]
  %v5258 = vld [vmem:[%s3 + $0x108] sm:$0xff]
  %v5259 = vld [vmem:[%s3 + $0x110] sm:$0xff]
  %v5260 = vld [vmem:[%s3 + $0x118] sm:$0xff]
  %v5261 = vld [vmem:[%s3 + $0x120] sm:$0xff]
  %v5262 = vld [vmem:[%s3 + $0x128] sm:$0xff]
  %v5263 = vld [vmem:[%s3 + $0x130] sm:$0xff]
  %v5264 = vld [vmem:[%s3 + $0x138] sm:$0xff]
  %v5265 = vld [vmem:[%s3 + $0x140] sm:$0xff]
  %v5266 = vld [vmem:[%s3 + $0x148] sm:$0xff]
  %v5267 = vld [vmem:[%s3 + $0x150] sm:$0xff]
  %v5268 = vld [vmem:[%s3 + $0x158] sm:$0xff]
  %v5269 = vld [vmem:[%s3 + $0x160] sm:$0xff]
  %v5270 = vld [vmem:[%s3 + $0x168] sm:$0xff]
  %v5271 = vld [vmem:[%s3 + $0x170] sm:$0xff]
  %v5272 = vld [vmem:[%s3 + $0x178] sm:$0xff]
  %v5273 = vld [vmem:[%s3 + $0x180] sm:$0xff]
  %v5274 = vld [vmem:[%s3 + $0x188] sm:$0xff]
  %v5275 = vld [vmem:[%s3 + $0x190] sm:$0xff]
  %v5276 = vld [vmem:[%s3 + $0x198] sm:$0xff]
  %v5277 = vld [vmem:[%s3 + $0x1a0] sm:$0xff]
  %v5278 = vld [vmem:[%s3 + $0x1a8] sm:$0xff]
  %v5279 = vld [vmem:[%s3 + $0x1b0] sm:$0xff]
  %v5280 = vld [vmem:[%s3 + $0x1b8] sm:$0xff]
  %v5281 = vld [vmem:[%s3 + $0x1c0] sm:$0xff]
  %v5282 = vld [vmem:[%s3 + $0x1c8] sm:$0xff]
  %v5283 = vld [vmem:[%s3 + $0x1d0] sm:$0xff]
  %v5284 = vld [vmem:[%s3 + $0x1d8] sm:$0xff]
  %v5285 = vld [vmem:[%s3 + $0x1e0] sm:$0xff]
  %v5286 = vld [vmem:[%s3 + $0x1e8] sm:$0xff]
  %v5287 = vld [vmem:[%s3 + $0x1f0] sm:$0xff]
  %v5288 = vld [vmem:[%s3 + $0x1f8] sm:$0xff]
  %v5289 = vld [vmem:[%s3 + $0x200] sm:$0xff]
  %v5290 = vld [vmem:[%s3 + $0x208] sm:$0xff]
  %v5291 = vld [vmem:[%s3 + $0x210] sm:$0xff]
  %v5292 = vld [vmem:[%s3 + $0x218] sm:$0xff]
  %v5293 = vld [vmem:[%s3 + $0x220] sm:$0xff]
  %v5294 = vld [vmem:[%s3 + $0x228] sm:$0xff]
  %v5295 = vld [vmem:[%s3 + $0x230] sm:$0xff]
  %v5296 = vld [vmem:[%s3 + $0x238] sm:$0xff]
  %v5297 = vld [vmem:[%s3 + $0x240] sm:$0xff]
  %v5298 = vld [vmem:[%s3 + $0x248] sm:$0xff]
  %v5299 = vld [vmem:[%s3 + $0x250] sm:$0xff]
  %v5300 = vld [vmem:[%s3 + $0x258] sm:$0xff]
  %v5301 = vld [vmem:[%s3 + $0x260] sm:$0xff]
  %v5302 = vld [vmem:[%s3 + $0x268] sm:$0xff]
  %v5303 = vld [vmem:[%s3 + $0x270] sm:$0xff]
  %v5304 = vld [vmem:[%s3 + $0x278] sm:$0xff]
  %v5305 = vld [vmem:[%s3 + $0x280] sm:$0xff]
  %v5306 = vld [vmem:[%s3 + $0x288] sm:$0xff]
  %v5307 = vld [vmem:[%s3 + $0x290] sm:$0xff]
  %v5308 = vld [vmem:[%s3 + $0x298] sm:$0xff]
  %v5309 = vld [vmem:[%s3 + $0x2a0] sm:$0xff]
  %v5310 = vld [vmem:[%s3 + $0x2a8] sm:$0xff]
  %v5311 = vld [vmem:[%s3 + $0x2b0] sm:$0xff]
  %v5312 = vld [vmem:[%s3 + $0x2b8] sm:$0xff]
  %v5313 = vld [vmem:[%s3 + $0x2c0] sm:$0xff]
  %v5314 = vld [vmem:[%s3 + $0x2c8] sm:$0xff]
  %v5315 = vld [vmem:[%s3 + $0x2d0] sm:$0xff]
  %v5316 = vld [vmem:[%s3 + $0x2d8] sm:$0xff]
  %v5317 = vld [vmem:[%s3 + $0x2e0] sm:$0xff]
  %v5318 = vld [vmem:[%s3 + $0x2e8] sm:$0xff]
  %v5319 = vld [vmem:[%s3 + $0x2f0] sm:$0xff]
  %v5320 = vld [vmem:[%s3 + $0x2f8] sm:$0xff]
  %v5321 = vld [vmem:[%s3 + $0x300] sm:$0xff]
  %v5322 = vld [vmem:[%s3 + $0x308] sm:$0xff]
  %v5323 = vld [vmem:[%s3 + $0x310] sm:$0xff]
  %v5324 = vld [vmem:[%s3 + $0x318] sm:$0xff]
  %v5325 = vld [vmem:[%s3 + $0x320] sm:$0xff]
  %v5326 = vld [vmem:[%s3 + $0x328] sm:$0xff]
  %v5327 = vld [vmem:[%s3 + $0x330] sm:$0xff]
  %v5328 = vld [vmem:[%s3 + $0x338] sm:$0xff]
  %v5329 = vld [vmem:[%s3 + $0x340] sm:$0xff]
  %v5330 = vld [vmem:[%s3 + $0x348] sm:$0xff]
  %v5331 = vld [vmem:[%s3 + $0x350] sm:$0xff]
  %v5332 = vld [vmem:[%s3 + $0x358] sm:$0xff]
  %v5333 = vld [vmem:[%s3 + $0x360] sm:$0xff]
  %v5334 = vld [vmem:[%s3 + $0x368] sm:$0xff]
  %v5335 = vld [vmem:[%s3 + $0x370] sm:$0xff]
  %v5336 = vld [vmem:[%s3 + $0x378] sm:$0xff]
  %v5337 = vld [vmem:[%s3 + $0x380] sm:$0xff]
  %v5338 = vld [vmem:[%s3 + $0x388] sm:$0xff]
  %v5339 = vld [vmem:[%s3 + $0x390] sm:$0xff]
  %v5340 = vld [vmem:[%s3 + $0x398] sm:$0xff]
  %v5341 = vld [vmem:[%s3 + $0x3a0] sm:$0xff]
  %v5342 = vld [vmem:[%s3 + $0x3a8] sm:$0xff]
  %v5343 = vld [vmem:[%s3 + $0x3b0] sm:$0xff]
  %v5344 = vld [vmem:[%s3 + $0x3b8] sm:$0xff]
  %v5345 = vld [vmem:[%s3 + $0x3c0] sm:$0xff]
  %v5346 = vld [vmem:[%s3 + $0x3c8] sm:$0xff]
  %v5347 = vld [vmem:[%s3 + $0x3d0] sm:$0xff]
  %v5348 = vld [vmem:[%s3 + $0x3d8] sm:$0xff]
  %v5349 = vld [vmem:[%s3 + $0x3e0] sm:$0xff]
  %v5350 = vld [vmem:[%s3 + $0x3e8] sm:$0xff]
  %v5351 = vld [vmem:[%s3 + $0x3f0] sm:$0xff]
  %v5352 = vld [vmem:[%s3 + $0x3f8] sm:$0xff]
  %v5353 = vpack.c.bf16 %v4714, %v4713
  %v5354 = vpack.c.bf16 %v4716, %v4715
  %v5355 = vpack.c.bf16 %v4718, %v4717
  %v5356 = vpack.c.bf16 %v4720, %v4719
  %v5357 = vpack.c.bf16 %v4722, %v4721
  %v5358 = vpack.c.bf16 %v4724, %v4723
  %v5359 = vpack.c.bf16 %v4726, %v4725
  %v5360 = vpack.c.bf16 %v4728, %v4727
  %v5361 = vpack.c.bf16 %v4730, %v4729
  %v5362 = vpack.c.bf16 %v4732, %v4731
  %v5363 = vpack.c.bf16 %v4734, %v4733
  %v5364 = vpack.c.bf16 %v4736, %v4735
  %v5365 = vpack.c.bf16 %v4738, %v4737
  %v5366 = vpack.c.bf16 %v4740, %v4739
  %v5367 = vpack.c.bf16 %v4742, %v4741
  %v5368 = vpack.c.bf16 %v4744, %v4743
  %v5369 = vpack.c.bf16 %v4746, %v4745
  %v5370 = vpack.c.bf16 %v4748, %v4747
  %v5371 = vpack.c.bf16 %v4750, %v4749
  %v5372 = vpack.c.bf16 %v4752, %v4751
  %v5373 = vpack.c.bf16 %v4754, %v4753
  %v5374 = vpack.c.bf16 %v4756, %v4755
  %v5375 = vpack.c.bf16 %v4758, %v4757
  %v5376 = vpack.c.bf16 %v4760, %v4759
  %v5377 = vpack.c.bf16 %v4762, %v4761
  %v5378 = vpack.c.bf16 %v4764, %v4763
  %v5379 = vpack.c.bf16 %v4766, %v4765
  %v5380 = vpack.c.bf16 %v4768, %v4767
  %v5381 = vpack.c.bf16 %v4770, %v4769
  %v5382 = vpack.c.bf16 %v4772, %v4771
  %v5383 = vpack.c.bf16 %v4774, %v4773
  %v5384 = vpack.c.bf16 %v4776, %v4775
  %v5385 = vpack.c.bf16 %v4778, %v4777
  %v5386 = vpack.c.bf16 %v4780, %v4779
  %v5387 = vpack.c.bf16 %v4782, %v4781
  %v5388 = vpack.c.bf16 %v4784, %v4783
  %v5389 = vpack.c.bf16 %v4786, %v4785
  %v5390 = vpack.c.bf16 %v4788, %v4787
  %v5391 = vpack.c.bf16 %v4790, %v4789
  %v5392 = vpack.c.bf16 %v4792, %v4791
  %v5393 = vpack.c.bf16 %v4794, %v4793
  %v5394 = vpack.c.bf16 %v4796, %v4795
  %v5395 = vpack.c.bf16 %v4798, %v4797
  %v5396 = vpack.c.bf16 %v4800, %v4799
  %v5397 = vpack.c.bf16 %v4802, %v4801
  %v5398 = vpack.c.bf16 %v4804, %v4803
  %v5399 = vpack.c.bf16 %v4806, %v4805
  %v5400 = vpack.c.bf16 %v4808, %v4807
  %v5401 = vpack.c.bf16 %v4810, %v4809
  %v5402 = vpack.c.bf16 %v4812, %v4811
  %v5403 = vpack.c.bf16 %v4814, %v4813
  %v5404 = vpack.c.bf16 %v4816, %v4815
  %v5405 = vpack.c.bf16 %v4818, %v4817
  %v5406 = vpack.c.bf16 %v4820, %v4819
  %v5407 = vpack.c.bf16 %v4822, %v4821
  %v5408 = vpack.c.bf16 %v4824, %v4823
  %v5409 = vpack.c.bf16 %v4826, %v4825
  %v5410 = vpack.c.bf16 %v4828, %v4827
  %v5411 = vpack.c.bf16 %v4830, %v4829
  %v5412 = vpack.c.bf16 %v4832, %v4831
  %v5413 = vpack.c.bf16 %v4834, %v4833
  %v5414 = vpack.c.bf16 %v4836, %v4835
  %v5415 = vpack.c.bf16 %v4838, %v4837
  %v5416 = vpack.c.bf16 %v4840, %v4839
  %v5417 = vpack.c.bf16 %v4842, %v4841
  %v5418 = vpack.c.bf16 %v4844, %v4843
  %v5419 = vpack.c.bf16 %v4846, %v4845
  %v5420 = vpack.c.bf16 %v4848, %v4847
  %v5421 = vpack.c.bf16 %v4850, %v4849
  %v5422 = vpack.c.bf16 %v4852, %v4851
  %v5423 = vpack.c.bf16 %v4854, %v4853
  %v5424 = vpack.c.bf16 %v4856, %v4855
  %v5425 = vpack.c.bf16 %v4858, %v4857
  %v5426 = vpack.c.bf16 %v4860, %v4859
  %v5427 = vpack.c.bf16 %v4862, %v4861
  %v5428 = vpack.c.bf16 %v4864, %v4863
  %v5429 = vpack.c.bf16 %v4866, %v4865
  %v5430 = vpack.c.bf16 %v4868, %v4867
  %v5431 = vpack.c.bf16 %v4870, %v4869
  %v5432 = vpack.c.bf16 %v4872, %v4871
  %v5433 = vpack.c.bf16 %v4874, %v4873
  %v5434 = vpack.c.bf16 %v4876, %v4875
  %v5435 = vpack.c.bf16 %v4878, %v4877
  %v5436 = vpack.c.bf16 %v4880, %v4879
  %v5437 = vpack.c.bf16 %v4882, %v4881
  %v5438 = vpack.c.bf16 %v4884, %v4883
  %v5439 = vpack.c.bf16 %v4886, %v4885
  %v5440 = vpack.c.bf16 %v4888, %v4887
  %v5441 = vpack.c.bf16 %v4890, %v4889
  %v5442 = vpack.c.bf16 %v4892, %v4891
  %v5443 = vpack.c.bf16 %v4894, %v4893
  %v5444 = vpack.c.bf16 %v4896, %v4895
  %v5445 = vpack.c.bf16 %v4898, %v4897
  %v5446 = vpack.c.bf16 %v4900, %v4899
  %v5447 = vpack.c.bf16 %v4902, %v4901
  %v5448 = vpack.c.bf16 %v4904, %v4903
  %v5449 = vpack.c.bf16 %v4906, %v4905
  %v5450 = vpack.c.bf16 %v4908, %v4907
  %v5451 = vpack.c.bf16 %v4910, %v4909
  %v5452 = vpack.c.bf16 %v4912, %v4911
  %v5453 = vpack.c.bf16 %v4914, %v4913
  %v5454 = vpack.c.bf16 %v4916, %v4915
  %v5455 = vpack.c.bf16 %v4918, %v4917
  %v5456 = vpack.c.bf16 %v4920, %v4919
  %v5457 = vpack.c.bf16 %v4922, %v4921
  %v5458 = vpack.c.bf16 %v4924, %v4923
  %v5459 = vpack.c.bf16 %v4926, %v4925
  %v5460 = vpack.c.bf16 %v4928, %v4927
  %v5461 = vpack.c.bf16 %v4930, %v4929
  %v5462 = vpack.c.bf16 %v4932, %v4931
  %v5463 = vpack.c.bf16 %v4934, %v4933
  %v5464 = vpack.c.bf16 %v4936, %v4935
  %v5465 = vpack.c.bf16 %v4938, %v4937
  %v5466 = vpack.c.bf16 %v4940, %v4939
  %v5467 = vpack.c.bf16 %v4942, %v4941
  %v5468 = vpack.c.bf16 %v4944, %v4943
  %v5469 = vpack.c.bf16 %v4946, %v4945
  %v5470 = vpack.c.bf16 %v4948, %v4947
  %v5471 = vpack.c.bf16 %v4950, %v4949
  %v5472 = vpack.c.bf16 %v4952, %v4951
  %v5473 = vpack.c.bf16 %v4954, %v4953
  %v5474 = vpack.c.bf16 %v4956, %v4955
  %v5475 = vpack.c.bf16 %v4958, %v4957
  %v5476 = vpack.c.bf16 %v4960, %v4959
  %v5477 = vpack.c.bf16 %v4962, %v4961
  %v5478 = vpack.c.bf16 %v4964, %v4963
  %v5479 = vpack.c.bf16 %v4966, %v4965
  %v5480 = vpack.c.bf16 %v4968, %v4967
  %v5481 = vpack.c.bf16 %v4970, %v4969
  %v5482 = vpack.c.bf16 %v4972, %v4971
  %v5483 = vpack.c.bf16 %v4974, %v4973
  %v5484 = vpack.c.bf16 %v4976, %v4975
  %v5485 = vpack.c.bf16 %v4978, %v4977
  %v5486 = vpack.c.bf16 %v4980, %v4979
  %v5487 = vpack.c.bf16 %v4982, %v4981
  %v5488 = vpack.c.bf16 %v4984, %v4983
  %v5489 = vpack.c.bf16 %v4986, %v4985
  %v5490 = vpack.c.bf16 %v4988, %v4987
  %v5491 = vpack.c.bf16 %v4990, %v4989
  %v5492 = vpack.c.bf16 %v4992, %v4991
  %v5493 = vpack.c.bf16 %v4994, %v4993
  %v5494 = vpack.c.bf16 %v4996, %v4995
  %v5495 = vpack.c.bf16 %v4998, %v4997
  %v5496 = vpack.c.bf16 %v5000, %v4999
  %v5497 = vpack.c.bf16 %v5002, %v5001
  %v5498 = vpack.c.bf16 %v5004, %v5003
  %v5499 = vpack.c.bf16 %v5006, %v5005
  %v5500 = vpack.c.bf16 %v5008, %v5007
  %v5501 = vpack.c.bf16 %v5010, %v5009
  %v5502 = vpack.c.bf16 %v5012, %v5011
  %v5503 = vpack.c.bf16 %v5014, %v5013
  %v5504 = vpack.c.bf16 %v5016, %v5015
  %v5505 = vpack.c.bf16 %v5018, %v5017
  %v5506 = vpack.c.bf16 %v5020, %v5019
  %v5507 = vpack.c.bf16 %v5022, %v5021
  %v5508 = vpack.c.bf16 %v5024, %v5023
  %v5509 = vpack.c.bf16 %v5026, %v5025
  %v5510 = vpack.c.bf16 %v5028, %v5027
  %v5511 = vpack.c.bf16 %v5030, %v5029
  %v5512 = vpack.c.bf16 %v5032, %v5031
  %v5513 = vpack.c.bf16 %v5034, %v5033
  %v5514 = vpack.c.bf16 %v5036, %v5035
  %v5515 = vpack.c.bf16 %v5038, %v5037
  %v5516 = vpack.c.bf16 %v5040, %v5039
  %v5517 = vpack.c.bf16 %v5042, %v5041
  %v5518 = vpack.c.bf16 %v5044, %v5043
  %v5519 = vpack.c.bf16 %v5046, %v5045
  %v5520 = vpack.c.bf16 %v5048, %v5047
  %v5521 = vpack.c.bf16 %v5050, %v5049
  %v5522 = vpack.c.bf16 %v5052, %v5051
  %v5523 = vpack.c.bf16 %v5054, %v5053
  %v5524 = vpack.c.bf16 %v5056, %v5055
  %v5525 = vpack.c.bf16 %v5058, %v5057
  %v5526 = vpack.c.bf16 %v5060, %v5059
  %v5527 = vpack.c.bf16 %v5062, %v5061
  %v5528 = vpack.c.bf16 %v5064, %v5063
  %v5529 = vpack.c.bf16 %v5066, %v5065
  %v5530 = vpack.c.bf16 %v5068, %v5067
  %v5531 = vpack.c.bf16 %v5070, %v5069
  %v5532 = vpack.c.bf16 %v5072, %v5071
  %v5533 = vpack.c.bf16 %v5074, %v5073
  %v5534 = vpack.c.bf16 %v5076, %v5075
  %v5535 = vpack.c.bf16 %v5078, %v5077
  %v5536 = vpack.c.bf16 %v5080, %v5079
  %v5537 = vpack.c.bf16 %v5082, %v5081
  %v5538 = vpack.c.bf16 %v5084, %v5083
  %v5539 = vpack.c.bf16 %v5086, %v5085
  %v5540 = vpack.c.bf16 %v5088, %v5087
  %v5541 = vpack.c.bf16 %v5090, %v5089
  %v5542 = vpack.c.bf16 %v5092, %v5091
  %v5543 = vpack.c.bf16 %v5094, %v5093
  %v5544 = vpack.c.bf16 %v5096, %v5095
  %v5545 = vpack.c.bf16 %v5098, %v5097
  %v5546 = vpack.c.bf16 %v5100, %v5099
  %v5547 = vpack.c.bf16 %v5102, %v5101
  %v5548 = vpack.c.bf16 %v5104, %v5103
  %v5549 = vpack.c.bf16 %v5106, %v5105
  %v5550 = vpack.c.bf16 %v5108, %v5107
  %v5551 = vpack.c.bf16 %v5110, %v5109
  %v5552 = vpack.c.bf16 %v5112, %v5111
  %v5553 = vpack.c.bf16 %v5114, %v5113
  %v5554 = vpack.c.bf16 %v5116, %v5115
  %v5555 = vpack.c.bf16 %v5118, %v5117
  %v5556 = vpack.c.bf16 %v5120, %v5119
  %v5557 = vpack.c.bf16 %v5122, %v5121
  %v5558 = vpack.c.bf16 %v5124, %v5123
  %v5559 = vpack.c.bf16 %v5126, %v5125
  %v5560 = vpack.c.bf16 %v5128, %v5127
  %v5561 = vpack.c.bf16 %v5130, %v5129
  %v5562 = vpack.c.bf16 %v5132, %v5131
  %v5563 = vpack.c.bf16 %v5134, %v5133
  %v5564 = vpack.c.bf16 %v5136, %v5135
  %v5565 = vpack.c.bf16 %v5138, %v5137
  %v5566 = vpack.c.bf16 %v5140, %v5139
  %v5567 = vpack.c.bf16 %v5142, %v5141
  %v5568 = vpack.c.bf16 %v5144, %v5143
  %v5569 = vpack.c.bf16 %v5146, %v5145
  %v5570 = vpack.c.bf16 %v5148, %v5147
  %v5571 = vpack.c.bf16 %v5150, %v5149
  %v5572 = vpack.c.bf16 %v5152, %v5151
  %v5573 = vpack.c.bf16 %v5154, %v5153
  %v5574 = vpack.c.bf16 %v5156, %v5155
  %v5575 = vpack.c.bf16 %v5158, %v5157
  %v5576 = vpack.c.bf16 %v5160, %v5159
  %v5577 = vpack.c.bf16 %v5162, %v5161
  %v5578 = vpack.c.bf16 %v5164, %v5163
  %v5579 = vpack.c.bf16 %v5166, %v5165
  %v5580 = vpack.c.bf16 %v5168, %v5167
  %v5581 = vpack.c.bf16 %v5170, %v5169
  %v5582 = vpack.c.bf16 %v5172, %v5171
  %v5583 = vpack.c.bf16 %v5174, %v5173
  %v5584 = vpack.c.bf16 %v5176, %v5175
  %v5585 = vpack.c.bf16 %v5178, %v5177
  %v5586 = vpack.c.bf16 %v5180, %v5179
  %v5587 = vpack.c.bf16 %v5182, %v5181
  %v5588 = vpack.c.bf16 %v5184, %v5183
  %v5589 = vpack.c.bf16 %v5186, %v5185
  %v5590 = vpack.c.bf16 %v5188, %v5187
  %v5591 = vpack.c.bf16 %v5190, %v5189
  %v5592 = vpack.c.bf16 %v5192, %v5191
  %v5593 = vpack.c.bf16 %v5194, %v5193
  %v5594 = vpack.c.bf16 %v5196, %v5195
  %v5595 = vpack.c.bf16 %v5198, %v5197
  %v5596 = vpack.c.bf16 %v5200, %v5199
  %v5597 = vpack.c.bf16 %v5202, %v5201
  %v5598 = vpack.c.bf16 %v5204, %v5203
  %v5599 = vpack.c.bf16 %v5206, %v5205
  %v5600 = vpack.c.bf16 %v5208, %v5207
  %v5601 = vpack.c.bf16 %v5210, %v5209
  %v5602 = vpack.c.bf16 %v5212, %v5211
  %v5603 = vpack.c.bf16 %v5214, %v5213
  %v5604 = vpack.c.bf16 %v5216, %v5215
  %v5605 = vpack.c.bf16 %v5218, %v5217
  %v5606 = vpack.c.bf16 %v5220, %v5219
  %v5607 = vpack.c.bf16 %v5222, %v5221
  %v5608 = vpack.c.bf16 %v5224, %v5223
  %v5737 = vunpack.c.l.b16 %v5225
  %v5738 = vunpack.c.h.b16 %v5225
  %v5739 = vunpack.c.l.b16 %v5226
  %v5740 = vunpack.c.h.b16 %v5226
  %v5741 = vunpack.c.l.b16 %v5227
  %v5742 = vunpack.c.h.b16 %v5227
  %v5743 = vunpack.c.l.b16 %v5228
  %v5744 = vunpack.c.h.b16 %v5228
  %v5745 = vunpack.c.l.b16 %v5229
  %v5746 = vunpack.c.h.b16 %v5229
  %v5747 = vunpack.c.l.b16 %v5230
  %v5748 = vunpack.c.h.b16 %v5230
  %v5749 = vunpack.c.l.b16 %v5231
  %v5750 = vunpack.c.h.b16 %v5231
  %v5751 = vunpack.c.l.b16 %v5232
  %v5752 = vunpack.c.h.b16 %v5232
  %v5753 = vunpack.c.l.b16 %v5233
  %v5754 = vunpack.c.h.b16 %v5233
  %v5755 = vunpack.c.l.b16 %v5234
  %v5756 = vunpack.c.h.b16 %v5234
  %v5757 = vunpack.c.l.b16 %v5235
  %v5758 = vunpack.c.h.b16 %v5235
  %v5759 = vunpack.c.l.b16 %v5236
  %v5760 = vunpack.c.h.b16 %v5236
  %v5761 = vunpack.c.l.b16 %v5237
  %v5762 = vunpack.c.h.b16 %v5237
  %v5763 = vunpack.c.l.b16 %v5238
  %v5764 = vunpack.c.h.b16 %v5238
  %v5765 = vunpack.c.l.b16 %v5239
  %v5766 = vunpack.c.h.b16 %v5239
  %v5767 = vunpack.c.l.b16 %v5240
  %v5768 = vunpack.c.h.b16 %v5240
  %v5769 = vunpack.c.l.b16 %v5241
  %v5770 = vunpack.c.h.b16 %v5241
  %v5771 = vunpack.c.l.b16 %v5242
  %v5772 = vunpack.c.h.b16 %v5242
  %v5773 = vunpack.c.l.b16 %v5243
  %v5774 = vunpack.c.h.b16 %v5243
  %v5775 = vunpack.c.l.b16 %v5244
  %v5776 = vunpack.c.h.b16 %v5244
  %v5777 = vunpack.c.l.b16 %v5245
  %v5778 = vunpack.c.h.b16 %v5245
  %v5779 = vunpack.c.l.b16 %v5246
  %v5780 = vunpack.c.h.b16 %v5246
  %v5781 = vunpack.c.l.b16 %v5247
  %v5782 = vunpack.c.h.b16 %v5247
  %v5783 = vunpack.c.l.b16 %v5248
  %v5784 = vunpack.c.h.b16 %v5248
  %v5785 = vunpack.c.l.b16 %v5249
  %v5786 = vunpack.c.h.b16 %v5249
  %v5787 = vunpack.c.l.b16 %v5250
  %v5788 = vunpack.c.h.b16 %v5250
  %v5789 = vunpack.c.l.b16 %v5251
  %v5790 = vunpack.c.h.b16 %v5251
  %v5791 = vunpack.c.l.b16 %v5252
  %v5792 = vunpack.c.h.b16 %v5252
  %v5793 = vunpack.c.l.b16 %v5253
  %v5794 = vunpack.c.h.b16 %v5253
  %v5795 = vunpack.c.l.b16 %v5254
  %v5796 = vunpack.c.h.b16 %v5254
  %v5797 = vunpack.c.l.b16 %v5255
  %v5798 = vunpack.c.h.b16 %v5255
  %v5799 = vunpack.c.l.b16 %v5256
  %v5800 = vunpack.c.h.b16 %v5256
  %v5801 = vunpack.c.l.b16 %v5257
  %v5802 = vunpack.c.h.b16 %v5257
  %v5803 = vunpack.c.l.b16 %v5258
  %v5804 = vunpack.c.h.b16 %v5258
  %v5805 = vunpack.c.l.b16 %v5259
  %v5806 = vunpack.c.h.b16 %v5259
  %v5807 = vunpack.c.l.b16 %v5260
  %v5808 = vunpack.c.h.b16 %v5260
  %v5809 = vunpack.c.l.b16 %v5261
  %v5810 = vunpack.c.h.b16 %v5261
  %v5811 = vunpack.c.l.b16 %v5262
  %v5812 = vunpack.c.h.b16 %v5262
  %v5813 = vunpack.c.l.b16 %v5263
  %v5814 = vunpack.c.h.b16 %v5263
  %v5815 = vunpack.c.l.b16 %v5264
  %v5816 = vunpack.c.h.b16 %v5264
  %v5817 = vunpack.c.l.b16 %v5265
  %v5818 = vunpack.c.h.b16 %v5265
  %v5819 = vunpack.c.l.b16 %v5266
  %v5820 = vunpack.c.h.b16 %v5266
  %v5821 = vunpack.c.l.b16 %v5267
  %v5822 = vunpack.c.h.b16 %v5267
  %v5823 = vunpack.c.l.b16 %v5268
  %v5824 = vunpack.c.h.b16 %v5268
  %v5825 = vunpack.c.l.b16 %v5269
  %v5826 = vunpack.c.h.b16 %v5269
  %v5827 = vunpack.c.l.b16 %v5270
  %v5828 = vunpack.c.h.b16 %v5270
  %v5829 = vunpack.c.l.b16 %v5271
  %v5830 = vunpack.c.h.b16 %v5271
  %v5831 = vunpack.c.l.b16 %v5272
  %v5832 = vunpack.c.h.b16 %v5272
  %v5833 = vunpack.c.l.b16 %v5273
  %v5834 = vunpack.c.h.b16 %v5273
  %v5835 = vunpack.c.l.b16 %v5274
  %v5836 = vunpack.c.h.b16 %v5274
  %v5837 = vunpack.c.l.b16 %v5275
  %v5838 = vunpack.c.h.b16 %v5275
  %v5839 = vunpack.c.l.b16 %v5276
  %v5840 = vunpack.c.h.b16 %v5276
  %v5841 = vunpack.c.l.b16 %v5277
  %v5842 = vunpack.c.h.b16 %v5277
  %v5843 = vunpack.c.l.b16 %v5278
  %v5844 = vunpack.c.h.b16 %v5278
  %v5845 = vunpack.c.l.b16 %v5279
  %v5846 = vunpack.c.h.b16 %v5279
  %v5847 = vunpack.c.l.b16 %v5280
  %v5848 = vunpack.c.h.b16 %v5280
  %v5849 = vunpack.c.l.b16 %v5281
  %v5850 = vunpack.c.h.b16 %v5281
  %v5851 = vunpack.c.l.b16 %v5282
  %v5852 = vunpack.c.h.b16 %v5282
  %v5853 = vunpack.c.l.b16 %v5283
  %v5854 = vunpack.c.h.b16 %v5283
  %v5855 = vunpack.c.l.b16 %v5284
  %v5856 = vunpack.c.h.b16 %v5284
  %v5857 = vunpack.c.l.b16 %v5285
  %v5858 = vunpack.c.h.b16 %v5285
  %v5859 = vunpack.c.l.b16 %v5286
  %v5860 = vunpack.c.h.b16 %v5286
  %v5861 = vunpack.c.l.b16 %v5287
  %v5862 = vunpack.c.h.b16 %v5287
  %v5863 = vunpack.c.l.b16 %v5288
  %v5864 = vunpack.c.h.b16 %v5288
  %v5865 = vunpack.c.l.b16 %v5289
  %v5866 = vunpack.c.h.b16 %v5289
  %v5867 = vunpack.c.l.b16 %v5290
  %v5868 = vunpack.c.h.b16 %v5290
  %v5869 = vunpack.c.l.b16 %v5291
  %v5870 = vunpack.c.h.b16 %v5291
  %v5871 = vunpack.c.l.b16 %v5292
  %v5872 = vunpack.c.h.b16 %v5292
  %v5873 = vunpack.c.l.b16 %v5293
  %v5874 = vunpack.c.h.b16 %v5293
  %v5875 = vunpack.c.l.b16 %v5294
  %v5876 = vunpack.c.h.b16 %v5294
  %v5877 = vunpack.c.l.b16 %v5295
  %v5878 = vunpack.c.h.b16 %v5295
  %v5879 = vunpack.c.l.b16 %v5296
  %v5880 = vunpack.c.h.b16 %v5296
  %v5881 = vunpack.c.l.b16 %v5297
  %v5882 = vunpack.c.h.b16 %v5297
  %v5883 = vunpack.c.l.b16 %v5298
  %v5884 = vunpack.c.h.b16 %v5298
  %v5885 = vunpack.c.l.b16 %v5299
  %v5886 = vunpack.c.h.b16 %v5299
  %v5887 = vunpack.c.l.b16 %v5300
  %v5888 = vunpack.c.h.b16 %v5300
  %v5889 = vunpack.c.l.b16 %v5301
  %v5890 = vunpack.c.h.b16 %v5301
  %v5891 = vunpack.c.l.b16 %v5302
  %v5892 = vunpack.c.h.b16 %v5302
  %v5893 = vunpack.c.l.b16 %v5303
  %v5894 = vunpack.c.h.b16 %v5303
  %v5895 = vunpack.c.l.b16 %v5304
  %v5896 = vunpack.c.h.b16 %v5304
  %v5897 = vunpack.c.l.b16 %v5305
  %v5898 = vunpack.c.h.b16 %v5305
  %v5899 = vunpack.c.l.b16 %v5306
  %v5900 = vunpack.c.h.b16 %v5306
  %v5901 = vunpack.c.l.b16 %v5307
  %v5902 = vunpack.c.h.b16 %v5307
  %v5903 = vunpack.c.l.b16 %v5308
  %v5904 = vunpack.c.h.b16 %v5308
  %v5905 = vunpack.c.l.b16 %v5309
  %v5906 = vunpack.c.h.b16 %v5309
  %v5907 = vunpack.c.l.b16 %v5310
  %v5908 = vunpack.c.h.b16 %v5310
  %v5909 = vunpack.c.l.b16 %v5311
  %v5910 = vunpack.c.h.b16 %v5311
  %v5911 = vunpack.c.l.b16 %v5312
  %v5912 = vunpack.c.h.b16 %v5312
  %v5913 = vunpack.c.l.b16 %v5313
  %v5914 = vunpack.c.h.b16 %v5313
  %v5915 = vunpack.c.l.b16 %v5314
  %v5916 = vunpack.c.h.b16 %v5314
  %v5917 = vunpack.c.l.b16 %v5315
  %v5918 = vunpack.c.h.b16 %v5315
  %v5919 = vunpack.c.l.b16 %v5316
  %v5920 = vunpack.c.h.b16 %v5316
  %v5921 = vunpack.c.l.b16 %v5317
  %v5922 = vunpack.c.h.b16 %v5317
  %v5923 = vunpack.c.l.b16 %v5318
  %v5924 = vunpack.c.h.b16 %v5318
  %v5925 = vunpack.c.l.b16 %v5319
  %v5926 = vunpack.c.h.b16 %v5319
  %v5927 = vunpack.c.l.b16 %v5320
  %v5928 = vunpack.c.h.b16 %v5320
  %v5929 = vunpack.c.l.b16 %v5321
  %v5930 = vunpack.c.h.b16 %v5321
  %v5931 = vunpack.c.l.b16 %v5322
  %v5932 = vunpack.c.h.b16 %v5322
  %v5933 = vunpack.c.l.b16 %v5323
  %v5934 = vunpack.c.h.b16 %v5323
  %v5935 = vunpack.c.l.b16 %v5324
  %v5936 = vunpack.c.h.b16 %v5324
  %v5937 = vunpack.c.l.b16 %v5325
  %v5938 = vunpack.c.h.b16 %v5325
  %v5939 = vunpack.c.l.b16 %v5326
  %v5940 = vunpack.c.h.b16 %v5326
  %v5941 = vunpack.c.l.b16 %v5327
  %v5942 = vunpack.c.h.b16 %v5327
  %v5943 = vunpack.c.l.b16 %v5328
  %v5944 = vunpack.c.h.b16 %v5328
  %v5945 = vunpack.c.l.b16 %v5329
  %v5946 = vunpack.c.h.b16 %v5329
  %v5947 = vunpack.c.l.b16 %v5330
  %v5948 = vunpack.c.h.b16 %v5330
  %v5949 = vunpack.c.l.b16 %v5331
  %v5950 = vunpack.c.h.b16 %v5331
  %v5951 = vunpack.c.l.b16 %v5332
  %v5952 = vunpack.c.h.b16 %v5332
  %v5953 = vunpack.c.l.b16 %v5333
  %v5954 = vunpack.c.h.b16 %v5333
  %v5955 = vunpack.c.l.b16 %v5334
  %v5956 = vunpack.c.h.b16 %v5334
  %v5957 = vunpack.c.l.b16 %v5335
  %v5958 = vunpack.c.h.b16 %v5335
  %v5959 = vunpack.c.l.b16 %v5336
  %v5960 = vunpack.c.h.b16 %v5336
  %v5961 = vunpack.c.l.b16 %v5337
  %v5962 = vunpack.c.h.b16 %v5337
  %v5963 = vunpack.c.l.b16 %v5338
  %v5964 = vunpack.c.h.b16 %v5338
  %v5965 = vunpack.c.l.b16 %v5339
  %v5966 = vunpack.c.h.b16 %v5339
  %v5967 = vunpack.c.l.b16 %v5340
  %v5968 = vunpack.c.h.b16 %v5340
  %v5969 = vunpack.c.l.b16 %v5341
  %v5970 = vunpack.c.h.b16 %v5341
  %v5971 = vunpack.c.l.b16 %v5342
  %v5972 = vunpack.c.h.b16 %v5342
  %v5973 = vunpack.c.l.b16 %v5343
  %v5974 = vunpack.c.h.b16 %v5343
  %v5975 = vunpack.c.l.b16 %v5344
  %v5976 = vunpack.c.h.b16 %v5344
  %v5977 = vunpack.c.l.b16 %v5345
  %v5978 = vunpack.c.h.b16 %v5345
  %v5979 = vunpack.c.l.b16 %v5346
  %v5980 = vunpack.c.h.b16 %v5346
  %v5981 = vunpack.c.l.b16 %v5347
  %v5982 = vunpack.c.h.b16 %v5347
  %v5983 = vunpack.c.l.b16 %v5348
  %v5984 = vunpack.c.h.b16 %v5348
  %v5985 = vunpack.c.l.b16 %v5349
  %v5986 = vunpack.c.h.b16 %v5349
  %v5987 = vunpack.c.l.b16 %v5350
  %v5988 = vunpack.c.h.b16 %v5350
  %v5989 = vunpack.c.l.b16 %v5351
  %v5990 = vunpack.c.h.b16 %v5351
  %v5991 = vunpack.c.l.b16 %v5352
  %v5992 = vunpack.c.h.b16 %v5352
  %v5993 = vpack.c.b16 %v5769, %v5737
  %v5994 = vpack.c.b16 %v5770, %v5738
  %v5995 = vpack.c.b16 %v5771, %v5739
  %v5996 = vpack.c.b16 %v5772, %v5740
  %v5997 = vpack.c.b16 %v5773, %v5741
  %v5998 = vpack.c.b16 %v5774, %v5742
  %v5999 = vpack.c.b16 %v5775, %v5743
  %v6000 = vpack.c.b16 %v5776, %v5744
  %v6001 = vpack.c.b16 %v5777, %v5745
  %v6002 = vpack.c.b16 %v5778, %v5746
  %v6003 = vpack.c.b16 %v5779, %v5747
  %v6004 = vpack.c.b16 %v5780, %v5748
  %v6005 = vpack.c.b16 %v5781, %v5749
  %v6006 = vpack.c.b16 %v5782, %v5750
  %v6007 = vpack.c.b16 %v5783, %v5751
  %v6008 = vpack.c.b16 %v5784, %v5752
  %v6009 = vpack.c.b16 %v5785, %v5753
  %v6010 = vpack.c.b16 %v5786, %v5754
  %v6011 = vpack.c.b16 %v5787, %v5755
  %v6012 = vpack.c.b16 %v5788, %v5756
  %v6013 = vpack.c.b16 %v5789, %v5757
  %v6014 = vpack.c.b16 %v5790, %v5758
  %v6015 = vpack.c.b16 %v5791, %v5759
  %v6016 = vpack.c.b16 %v5792, %v5760
  %v6017 = vpack.c.b16 %v5793, %v5761
  %v6018 = vpack.c.b16 %v5794, %v5762
  %v6019 = vpack.c.b16 %v5795, %v5763
  %v6020 = vpack.c.b16 %v5796, %v5764
  %v6021 = vpack.c.b16 %v5797, %v5765
  %v6022 = vpack.c.b16 %v5798, %v5766
  %v6023 = vpack.c.b16 %v5799, %v5767
  %v6024 = vpack.c.b16 %v5800, %v5768
  %v6025 = vpack.c.b16 %v5833, %v5801
  %v6026 = vpack.c.b16 %v5834, %v5802
  %v6027 = vpack.c.b16 %v5835, %v5803
  %v6028 = vpack.c.b16 %v5836, %v5804
  %v6029 = vpack.c.b16 %v5837, %v5805
  %v6030 = vpack.c.b16 %v5838, %v5806
  %v6031 = vpack.c.b16 %v5839, %v5807
  %v6032 = vpack.c.b16 %v5840, %v5808
  %v6033 = vpack.c.b16 %v5841, %v5809
  %v6034 = vpack.c.b16 %v5842, %v5810
  %v6035 = vpack.c.b16 %v5843, %v5811
  %v6036 = vpack.c.b16 %v5844, %v5812
  %v6037 = vpack.c.b16 %v5845, %v5813
  %v6038 = vpack.c.b16 %v5846, %v5814
  %v6039 = vpack.c.b16 %v5847, %v5815
  %v6040 = vpack.c.b16 %v5848, %v5816
  %v6041 = vpack.c.b16 %v5849, %v5817
  %v6042 = vpack.c.b16 %v5850, %v5818
  %v6043 = vpack.c.b16 %v5851, %v5819
  %v6044 = vpack.c.b16 %v5852, %v5820
  %v6045 = vpack.c.b16 %v5853, %v5821
  %v6046 = vpack.c.b16 %v5854, %v5822
  %v6047 = vpack.c.b16 %v5855, %v5823
  %v6048 = vpack.c.b16 %v5856, %v5824
  %v6049 = vpack.c.b16 %v5857, %v5825
  %v6050 = vpack.c.b16 %v5858, %v5826
  %v6051 = vpack.c.b16 %v5859, %v5827
  %v6052 = vpack.c.b16 %v5860, %v5828
  %v6053 = vpack.c.b16 %v5861, %v5829
  %v6054 = vpack.c.b16 %v5862, %v5830
  %v6055 = vpack.c.b16 %v5863, %v5831
  %v6056 = vpack.c.b16 %v5864, %v5832
  %v6057 = vpack.c.b16 %v5897, %v5865
  %v6058 = vpack.c.b16 %v5898, %v5866
  %v6059 = vpack.c.b16 %v5899, %v5867
  %v6060 = vpack.c.b16 %v5900, %v5868
  %v6061 = vpack.c.b16 %v5901, %v5869
  %v6062 = vpack.c.b16 %v5902, %v5870
  %v6063 = vpack.c.b16 %v5903, %v5871
  %v6064 = vpack.c.b16 %v5904, %v5872
  %v6065 = vpack.c.b16 %v5905, %v5873
  %v6066 = vpack.c.b16 %v5906, %v5874
  %v6067 = vpack.c.b16 %v5907, %v5875
  %v6068 = vpack.c.b16 %v5908, %v5876
  %v6069 = vpack.c.b16 %v5909, %v5877
  %v6070 = vpack.c.b16 %v5910, %v5878
  %v6071 = vpack.c.b16 %v5911, %v5879
  %v6072 = vpack.c.b16 %v5912, %v5880
  %v6073 = vpack.c.b16 %v5913, %v5881
  %v6074 = vpack.c.b16 %v5914, %v5882
  %v6075 = vpack.c.b16 %v5915, %v5883
  %v6076 = vpack.c.b16 %v5916, %v5884
  %v6077 = vpack.c.b16 %v5917, %v5885
  %v6078 = vpack.c.b16 %v5918, %v5886
  %v6079 = vpack.c.b16 %v5919, %v5887
  %v6080 = vpack.c.b16 %v5920, %v5888
  %v6081 = vpack.c.b16 %v5921, %v5889
  %v6082 = vpack.c.b16 %v5922, %v5890
  %v6083 = vpack.c.b16 %v5923, %v5891
  %v6084 = vpack.c.b16 %v5924, %v5892
  %v6085 = vpack.c.b16 %v5925, %v5893
  %v6086 = vpack.c.b16 %v5926, %v5894
  %v6087 = vpack.c.b16 %v5927, %v5895
  %v6088 = vpack.c.b16 %v5928, %v5896
  %v6089 = vpack.c.b16 %v5961, %v5929
  %v6090 = vpack.c.b16 %v5962, %v5930
  %v6091 = vpack.c.b16 %v5963, %v5931
  %v6092 = vpack.c.b16 %v5964, %v5932
  %v6093 = vpack.c.b16 %v5965, %v5933
  %v6094 = vpack.c.b16 %v5966, %v5934
  %v6095 = vpack.c.b16 %v5967, %v5935
  %v6096 = vpack.c.b16 %v5968, %v5936
  %v6097 = vpack.c.b16 %v5969, %v5937
  %v6098 = vpack.c.b16 %v5970, %v5938
  %v6099 = vpack.c.b16 %v5971, %v5939
  %v6100 = vpack.c.b16 %v5972, %v5940
  %v6101 = vpack.c.b16 %v5973, %v5941
  %v6102 = vpack.c.b16 %v5974, %v5942
  %v6103 = vpack.c.b16 %v5975, %v5943
  %v6104 = vpack.c.b16 %v5976, %v5944
  %v6105 = vpack.c.b16 %v5977, %v5945
  %v6106 = vpack.c.b16 %v5978, %v5946
  %v6107 = vpack.c.b16 %v5979, %v5947
  %v6108 = vpack.c.b16 %v5980, %v5948
  %v6109 = vpack.c.b16 %v5981, %v5949
  %v6110 = vpack.c.b16 %v5982, %v5950
  %v6111 = vpack.c.b16 %v5983, %v5951
  %v6112 = vpack.c.b16 %v5984, %v5952
  %v6113 = vpack.c.b16 %v5985, %v5953
  %v6114 = vpack.c.b16 %v5986, %v5954
  %v6115 = vpack.c.b16 %v5987, %v5955
  %v6116 = vpack.c.b16 %v5988, %v5956
  %v6117 = vpack.c.b16 %v5989, %v5957
  %v6118 = vpack.c.b16 %v5990, %v5958
  %v6119 = vpack.c.b16 %v5991, %v5959
  %v6120 = vpack.c.b16 %v5992, %v5960
  %6249 = vmatprep.subr.bf16.mxu0 0
  %6250 = vmatpush1.bf16.msra.mxu0 %v5353
  %6251 = vmatprep.subr.bf16.mxu0 0
  %6252 = vmatpush1.bf16.msra.mxu0 %v5354
  %6253 = vmatprep.subr.bf16.mxu0 0
  %6254 = vmatpush1.bf16.msra.mxu0 %v5355
  %6255 = vmatprep.subr.bf16.mxu0 0
  %6256 = vmatpush1.bf16.msra.mxu0 %v5356
  %6257 = vmatprep.subr.bf16.mxu0 0
  %6258 = vmatpush1.bf16.msra.mxu0 %v5357
  %6259 = vmatprep.subr.bf16.mxu0 0
  %6260 = vmatpush1.bf16.msra.mxu0 %v5358
  %6261 = vmatprep.subr.bf16.mxu0 0
  %6262 = vmatpush1.bf16.msra.mxu0 %v5359
  %6263 = vmatprep.subr.bf16.mxu0 0
  %6264 = vmatpush1.bf16.msra.mxu0 %v5360
  %6265 = vmatprep.subr.bf16.mxu0 0
  %6266 = vmatpush1.bf16.msra.mxu0 %v5361
  %6267 = vmatprep.subr.bf16.mxu0 0
  %6268 = vmatpush1.bf16.msra.mxu0 %v5362
  %6269 = vmatprep.subr.bf16.mxu0 0
  %6270 = vmatpush1.bf16.msra.mxu0 %v5363
  %6271 = vmatprep.subr.bf16.mxu0 0
  %6272 = vmatpush1.bf16.msra.mxu0 %v5364
  %6273 = vmatprep.subr.bf16.mxu0 0
  %6274 = vmatpush1.bf16.msra.mxu0 %v5365
  %6275 = vmatprep.subr.bf16.mxu0 0
  %6276 = vmatpush1.bf16.msra.mxu0 %v5366
  %6277 = vmatprep.subr.bf16.mxu0 0
  %6278 = vmatpush1.bf16.msra.mxu0 %v5367
  %6279 = vmatprep.subr.bf16.mxu0 0
  %6280 = vmatpush1.bf16.msra.mxu0 %v5368
  %6281 = vmatprep.mubr.bf16.mxu0 %v5994
  %6282 = vmatmul.mubr.bf16.gmra.mrb[0].mxu0 %v5993
  %v6283 = vpop.f32.mrb[0].mxu0
  %v6284 = vadd.f32 0.0, %v6283
  %v6285 = vpop.f32.mrb[0].mxu0
  %v6286 = vpop.f32.mrb[0].mxu0
  %v6287 = vadd.f32 0.0, %v6286
  %v6288 = vpop.f32.mrb[0].mxu0
  %6289 = vmatprep.mubr.bf16.mxu0 %v6026
  %6290 = vmatmul.mubr.bf16.gmra.mrb[0].mxu0 %v6025
  %v6291 = vpop.f32.mrb[0].mxu0
  %v6292 = vadd.f32 0.0, %v6291
  %v6293 = vpop.f32.mrb[0].mxu0
  %v6294 = vpop.f32.mrb[0].mxu0
  %v6295 = vadd.f32 0.0, %v6294
  %v6296 = vpop.f32.mrb[0].mxu0
  %6297 = vmatprep.mubr.bf16.mxu0 %v6058
  %6298 = vmatmul.mubr.bf16.gmra.mrb[0].mxu0 %v6057
  %v6299 = vpop.f32.mrb[0].mxu0
  %v6300 = vadd.f32 0.0, %v6299
  %v6301 = vpop.f32.mrb[0].mxu0
  %v6302 = vpop.f32.mrb[0].mxu0
  %v6303 = vadd.f32 0.0, %v6302
  %v6304 = vpop.f32.mrb[0].mxu0
  %6305 = vmatprep.mubr.bf16.mxu0 %v6090
  %6306 = vmatmul.mubr.bf16.gmra.mrb[0].mxu0 %v6089
  %v6307 = vpop.f32.mrb[0].mxu0
  %v6308 = vadd.f32 0.0, %v6307
  %v6309 = vpop.f32.mrb[0].mxu0
  %v6310 = vpop.f32.mrb[0].mxu0
  %v6311 = vadd.f32 0.0, %v6310
  %v6312 = vpop.f32.mrb[0].mxu0
  %6313 = vdwg.mxu0
  %6314 = vmatprep.subr.bf16.mxu0 0
  %6315 = vmatpush1.bf16.msra.mxu0 %v5369
  %6316 = vmatprep.subr.bf16.mxu0 0
  %6317 = vmatpush1.bf16.msra.mxu0 %v5370
  %6318 = vmatprep.subr.bf16.mxu0 0
  %6319 = vmatpush1.bf16.msra.mxu0 %v5371
  %6320 = vmatprep.subr.bf16.mxu0 0
  %6321 = vmatpush1.bf16.msra.mxu0 %v5372
  %6322 = vmatprep.subr.bf16.mxu0 0
  %6323 = vmatpush1.bf16.msra.mxu0 %v5373
  %6324 = vmatprep.subr.bf16.mxu0 0
  %6325 = vmatpush1.bf16.msra.mxu0 %v5374
  %6326 = vmatprep.subr.bf16.mxu0 0
  %6327 = vmatpush1.bf16.msra.mxu0 %v5375
  %6328 = vmatprep.subr.bf16.mxu0 0
  %6329 = vmatpush1.bf16.msra.mxu0 %v5376
  %6330 = vmatprep.subr.bf16.mxu0 0
  %6331 = vmatpush1.bf16.msra.mxu0 %v5377
  %6332 = vmatprep.subr.bf16.mxu0 0
  %6333 = vmatpush1.bf16.msra.mxu0 %v5378
  %6334 = vmatprep.subr.bf16.mxu0 0
  %6335 = vmatpush1.bf16.msra.mxu0 %v5379
  %6336 = vmatprep.subr.bf16.mxu0 0
  %6337 = vmatpush1.bf16.msra.mxu0 %v5380
  %6338 = vmatprep.subr.bf16.mxu0 0
  %6339 = vmatpush1.bf16.msra.mxu0 %v5381
  %6340 = vmatprep.subr.bf16.mxu0 0
  %6341 = vmatpush1.bf16.msra.mxu0 %v5382
  %6342 = vmatprep.subr.bf16.mxu0 0
  %6343 = vmatpush1.bf16.msra.mxu0 %v5383
  %6344 = vmatprep.subr.bf16.mxu0 0
  %6345 = vmatpush1.bf16.msra.mxu0 %v5384
  %6346 = vmatprep.mubr.bf16.mxu0 %v5996
  %6347 = vmatmul.mubr.bf16.gmra.mrb[0].mxu0 %v5995
  %v6348 = vpop.f32.mrb[0].mxu0
  %v6349 = vadd.f32 %v6284, %v6348
  %v6350 = vpop.f32.mrb[0].mxu0
  %v6351 = vpop.f32.mrb[0].mxu0
  %v6352 = vadd.f32 %v6287, %v6351
  %v6353 = vpop.f32.mrb[0].mxu0
  %6354 = vmatprep.mubr.bf16.mxu0 %v6028
  %6355 = vmatmul.mubr.bf16.gmra.mrb[0].mxu0 %v6027
  %v6356 = vpop.f32.mrb[0].mxu0
  %v6357 = vadd.f32 %v6292, %v6356
  %v6358 = vpop.f32.mrb[0].mxu0
  %v6359 = vpop.f32.mrb[0].mxu0
  %v6360 = vadd.f32 %v6295, %v6359
  %v6361 = vpop.f32.mrb[0].mxu0
  %6362 = vmatprep.mubr.bf16.mxu0 %v6060
  %6363 = vmatmul.mubr.bf16.gmra.mrb[0].mxu0 %v6059
  %v6364 = vpop.f32.mrb[0].mxu0
  %v6365 = vadd.f32 %v6300, %v6364
  %v6366 = vpop.f32.mrb[0].mxu0
  %v6367 = vpop.f32.mrb[0].mxu0
  %v6368 = vadd.f32 %v6303, %v6367
  %v6369 = vpop.f32.mrb[0].mxu0
  %6370 = vmatprep.mubr.bf16.mxu0 %v6092
  %6371 = vmatmul.mubr.bf16.gmra.mrb[0].mxu0 %v6091
  %v6372 = vpop.f32.mrb[0].mxu0
  %v6373 = vadd.f32 %v6308, %v6372
  %v6374 = vpop.f32.mrb[0].mxu0
  %v6375 = vpop.f32.mrb[0].mxu0
  %v6376 = vadd.f32 %v6311, %v6375
  %v6377 = vpop.f32.mrb[0].mxu0
  %6378 = vdwg.mxu0
  %6379 = vmatprep.subr.bf16.mxu0 0
  %6380 = vmatpush1.bf16.msra.mxu0 %v5385
  %6381 = vmatprep.subr.bf16.mxu0 0
  %6382 = vmatpush1.bf16.msra.mxu0 %v5386
  %6383 = vmatprep.subr.bf16.mxu0 0
  %6384 = vmatpush1.bf16.msra.mxu0 %v5387
  %6385 = vmatprep.subr.bf16.mxu0 0
  %6386 = vmatpush1.bf16.msra.mxu0 %v5388
  %6387 = vmatprep.subr.bf16.mxu0 0
  %6388 = vmatpush1.bf16.msra.mxu0 %v5389
  %6389 = vmatprep.subr.bf16.mxu0 0
  %6390 = vmatpush1.bf16.msra.mxu0 %v5390
  %6391 = vmatprep.subr.bf16.mxu0 0
  %6392 = vmatpush1.bf16.msra.mxu0 %v5391
  %6393 = vmatprep.subr.bf16.mxu0 0
  %6394 = vmatpush1.bf16.msra.mxu0 %v5392
  %6395 = vmatprep.subr.bf16.mxu0 0
  %6396 = vmatpush1.bf16.msra.mxu0 %v5393
  %6397 = vmatprep.subr.bf16.mxu0 0
  %6398 = vmatpush1.bf16.msra.mxu0 %v5394
  %6399 = vmatprep.subr.bf16.mxu0 0
  %6400 = vmatpush1.bf16.msra.mxu0 %v5395
  %6401 = vmatprep.subr.bf16.mxu0 0
  %6402 = vmatpush1.bf16.msra.mxu0 %v5396
  %6403 = vmatprep.subr.bf16.mxu0 0
  %6404 = vmatpush1.bf16.msra.mxu0 %v5397
  %6405 = vmatprep.subr.bf16.mxu0 0
  %6406 = vmatpush1.bf16.msra.mxu0 %v5398
  %6407 = vmatprep.subr.bf16.mxu0 0
  %6408 = vmatpush1.bf16.msra.mxu0 %v5399
  %6409 = vmatprep.subr.bf16.mxu0 0
  %6410 = vmatpush1.bf16.msra.mxu0 %v5400
  %6411 = vmatprep.mubr.bf16.mxu0 %v5998
  %6412 = vmatmul.mubr.bf16.gmra.mrb[0].mxu0 %v5997
  %v6413 = vpop.f32.mrb[0].mxu0
  %v6414 = vadd.f32 %v6349, %v6413
  %v6415 = vpop.f32.mrb[0].mxu0
  %v6416 = vpop.f32.mrb[0].mxu0
  %v6417 = vadd.f32 %v6352, %v6416
  %v6418 = vpop.f32.mrb[0].mxu0
  %6419 = vmatprep.mubr.bf16.mxu0 %v6030
  %6420 = vmatmul.mubr.bf16.gmra.mrb[0].mxu0 %v6029
  %v6421 = vpop.f32.mrb[0].mxu0
  %v6422 = vadd.f32 %v6357, %v6421
  %v6423 = vpop.f32.mrb[0].mxu0
  %v6424 = vpop.f32.mrb[0].mxu0
  %v6425 = vadd.f32 %v6360, %v6424
  %v6426 = vpop.f32.mrb[0].mxu0
  %6427 = vmatprep.mubr.bf16.mxu0 %v6062
  %6428 = vmatmul.mubr.bf16.gmra.mrb[0].mxu0 %v6061
  %v6429 = vpop.f32.mrb[0].mxu0
  %v6430 = vadd.f32 %v6365, %v6429
  %v6431 = vpop.f32.mrb[0].mxu0
  %v6432 = vpop.f32.mrb[0].mxu0
  %v6433 = vadd.f32 %v6368, %v6432
  %v6434 = vpop.f32.mrb[0].mxu0
  %6435 = vmatprep.mubr.bf16.mxu0 %v6094
  %6436 = vmatmul.mubr.bf16.gmra.mrb[0].mxu0 %v6093
  %v6437 = vpop.f32.mrb[0].mxu0
  %v6438 = vadd.f32 %v6373, %v6437
  %v6439 = vpop.f32.mrb[0].mxu0
  %v6440 = vpop.f32.mrb[0].mxu0
  %v6441 = vadd.f32 %v6376, %v6440
  %v6442 = vpop.f32.mrb[0].mxu0
  %6443 = vdwg.mxu0
  %6444 = vmatprep.subr.bf16.mxu0 0
  %6445 = vmatpush1.bf16.msra.mxu0 %v5401
  %6446 = vmatprep.subr.bf16.mxu0 0
  %6447 = vmatpush1.bf16.msra.mxu0 %v5402
  %6448 = vmatprep.subr.bf16.mxu0 0
  %6449 = vmatpush1.bf16.msra.mxu0 %v5403
  %6450 = vmatprep.subr.bf16.mxu0 0
  %6451 = vmatpush1.bf16.msra.mxu0 %v5404
  %6452 = vmatprep.subr.bf16.mxu0 0
  %6453 = vmatpush1.bf16.msra.mxu0 %v5405
  %6454 = vmatprep.subr.bf16.mxu0 0
  %6455 = vmatpush1.bf16.msra.mxu0 %v5406
  %6456 = vmatprep.subr.bf16.mxu0 0
  %6457 = vmatpush1.bf16.msra.mxu0 %v5407
  %6458 = vmatprep.subr.bf16.mxu0 0
  %6459 = vmatpush1.bf16.msra.mxu0 %v5408
  %6460 = vmatprep.subr.bf16.mxu0 0
  %6461 = vmatpush1.bf16.msra.mxu0 %v5409
  %6462 = vmatprep.subr.bf16.mxu0 0
  %6463 = vmatpush1.bf16.msra.mxu0 %v5410
  %6464 = vmatprep.subr.bf16.mxu0 0
  %6465 = vmatpush1.bf16.msra.mxu0 %v5411
  %6466 = vmatprep.subr.bf16.mxu0 0
  %6467 = vmatpush1.bf16.msra.mxu0 %v5412
  %6468 = vmatprep.subr.bf16.mxu0 0
  %6469 = vmatpush1.bf16.msra.mxu0 %v5413
  %6470 = vmatprep.subr.bf16.mxu0 0
  %6471 = vmatpush1.bf16.msra.mxu0 %v5414
  %6472 = vmatprep.subr.bf16.mxu0 0
  %6473 = vmatpush1.bf16.msra.mxu0 %v5415
  %6474 = vmatprep.subr.bf16.mxu0 0
  %6475 = vmatpush1.bf16.msra.mxu0 %v5416
  %6476 = vmatprep.mubr.bf16.mxu0 %v6000
  %6477 = vmatmul.mubr.bf16.gmra.mrb[0].mxu0 %v5999
  %v6478 = vpop.f32.mrb[0].mxu0
  %v6479 = vadd.f32 %v6414, %v6478
  %v6480 = vpop.f32.mrb[0].mxu0
  %v6481 = vpop.f32.mrb[0].mxu0
  %v6482 = vadd.f32 %v6417, %v6481
  %v6483 = vpop.f32.mrb[0].mxu0
  %6484 = vmatprep.mubr.bf16.mxu0 %v6032
  %6485 = vmatmul.mubr.bf16.gmra.mrb[0].mxu0 %v6031
  %v6486 = vpop.f32.mrb[0].mxu0
  %v6487 = vadd.f32 %v6422, %v6486
  %v6488 = vpop.f32.mrb[0].mxu0
  %v6489 = vpop.f32.mrb[0].mxu0
  %v6490 = vadd.f32 %v6425, %v6489
  %v6491 = vpop.f32.mrb[0].mxu0
  %6492 = vmatprep.mubr.bf16.mxu0 %v6064
  %6493 = vmatmul.mubr.bf16.gmra.mrb[0].mxu0 %v6063
  %v6494 = vpop.f32.mrb[0].mxu0
  %v6495 = vadd.f32 %v6430, %v6494
  %v6496 = vpop.f32.mrb[0].mxu0
  %v6497 = vpop.f32.mrb[0].mxu0
  %v6498 = vadd.f32 %v6433, %v6497
  %v6499 = vpop.f32.mrb[0].mxu0
  %6500 = vmatprep.mubr.bf16.mxu0 %v6096
  %6501 = vmatmul.mubr.bf16.gmra.mrb[0].mxu0 %v6095
  %v6502 = vpop.f32.mrb[0].mxu0
  %v6503 = vadd.f32 %v6438, %v6502
  %v6504 = vpop.f32.mrb[0].mxu0
  %v6505 = vpop.f32.mrb[0].mxu0
  %v6506 = vadd.f32 %v6441, %v6505
  %v6507 = vpop.f32.mrb[0].mxu0
  %6508 = vdwg.mxu0
  %6509 = vmatprep.subr.bf16.mxu0 0
  %6510 = vmatpush1.bf16.msra.mxu0 %v5417
  %6511 = vmatprep.subr.bf16.mxu0 0
  %6512 = vmatpush1.bf16.msra.mxu0 %v5418
  %6513 = vmatprep.subr.bf16.mxu0 0
  %6514 = vmatpush1.bf16.msra.mxu0 %v5419
  %6515 = vmatprep.subr.bf16.mxu0 0
  %6516 = vmatpush1.bf16.msra.mxu0 %v5420
  %6517 = vmatprep.subr.bf16.mxu0 0
  %6518 = vmatpush1.bf16.msra.mxu0 %v5421
  %6519 = vmatprep.subr.bf16.mxu0 0
  %6520 = vmatpush1.bf16.msra.mxu0 %v5422
  %6521 = vmatprep.subr.bf16.mxu0 0
  %6522 = vmatpush1.bf16.msra.mxu0 %v5423
  %6523 = vmatprep.subr.bf16.mxu0 0
  %6524 = vmatpush1.bf16.msra.mxu0 %v5424
  %6525 = vmatprep.subr.bf16.mxu0 0
  %6526 = vmatpush1.bf16.msra.mxu0 %v5425
  %6527 = vmatprep.subr.bf16.mxu0 0
  %6528 = vmatpush1.bf16.msra.mxu0 %v5426
  %6529 = vmatprep.subr.bf16.mxu0 0
  %6530 = vmatpush1.bf16.msra.mxu0 %v5427
  %6531 = vmatprep.subr.bf16.mxu0 0
  %6532 = vmatpush1.bf16.msra.mxu0 %v5428
  %6533 = vmatprep.subr.bf16.mxu0 0
  %6534 = vmatpush1.bf16.msra.mxu0 %v5429
  %6535 = vmatprep.subr.bf16.mxu0 0
  %6536 = vmatpush1.bf16.msra.mxu0 %v5430
  %6537 = vmatprep.subr.bf16.mxu0 0
  %6538 = vmatpush1.bf16.msra.mxu0 %v5431
  %6539 = vmatprep.subr.bf16.mxu0 0
  %6540 = vmatpush1.bf16.msra.mxu0 %v5432
  %6541 = vmatprep.mubr.bf16.mxu0 %v6002
  %6542 = vmatmul.mubr.bf16.gmra.mrb[0].mxu0 %v6001
  %v6543 = vpop.f32.mrb[0].mxu0
  %v6544 = vadd.f32 %v6479, %v6543
  %v6545 = vpop.f32.mrb[0].mxu0
  %v6546 = vpop.f32.mrb[0].mxu0
  %v6547 = vadd.f32 %v6482, %v6546
  %v6548 = vpop.f32.mrb[0].mxu0
  %6549 = vmatprep.mubr.bf16.mxu0 %v6034
  %6550 = vmatmul.mubr.bf16.gmra.mrb[0].mxu0 %v6033
  %v6551 = vpop.f32.mrb[0].mxu0
  %v6552 = vadd.f32 %v6487, %v6551
  %v6553 = vpop.f32.mrb[0].mxu0
  %v6554 = vpop.f32.mrb[0].mxu0
  %v6555 = vadd.f32 %v6490, %v6554
  %v6556 = vpop.f32.mrb[0].mxu0
  %6557 = vmatprep.mubr.bf16.mxu0 %v6066
  %6558 = vmatmul.mubr.bf16.gmra.mrb[0].mxu0 %v6065
  %v6559 = vpop.f32.mrb[0].mxu0
  %v6560 = vadd.f32 %v6495, %v6559
  %v6561 = vpop.f32.mrb[0].mxu0
  %v6562 = vpop.f32.mrb[0].mxu0
  %v6563 = vadd.f32 %v6498, %v6562
  %v6564 = vpop.f32.mrb[0].mxu0
  %6565 = vmatprep.mubr.bf16.mxu0 %v6098
  %6566 = vmatmul.mubr.bf16.gmra.mrb[0].mxu0 %v6097
  %v6567 = vpop.f32.mrb[0].mxu0
  %v6568 = vadd.f32 %v6503, %v6567
  %v6569 = vpop.f32.mrb[0].mxu0
  %v6570 = vpop.f32.mrb[0].mxu0
  %v6571 = vadd.f32 %v6506, %v6570
  %v6572 = vpop.f32.mrb[0].mxu0
  %6573 = vdwg.mxu0
  %6574 = vmatprep.subr.bf16.mxu0 0
  %6575 = vmatpush1.bf16.msra.mxu0 %v5433
  %6576 = vmatprep.subr.bf16.mxu0 0
  %6577 = vmatpush1.bf16.msra.mxu0 %v5434
  %6578 = vmatprep.subr.bf16.mxu0 0
  %6579 = vmatpush1.bf16.msra.mxu0 %v5435
  %6580 = vmatprep.subr.bf16.mxu0 0
  %6581 = vmatpush1.bf16.msra.mxu0 %v5436
  %6582 = vmatprep.subr.bf16.mxu0 0
  %6583 = vmatpush1.bf16.msra.mxu0 %v5437
  %6584 = vmatprep.subr.bf16.mxu0 0
  %6585 = vmatpush1.bf16.msra.mxu0 %v5438
  %6586 = vmatprep.subr.bf16.mxu0 0
  %6587 = vmatpush1.bf16.msra.mxu0 %v5439
  %6588 = vmatprep.subr.bf16.mxu0 0
  %6589 = vmatpush1.bf16.msra.mxu0 %v5440
  %6590 = vmatprep.subr.bf16.mxu0 0
  %6591 = vmatpush1.bf16.msra.mxu0 %v5441
  %6592 = vmatprep.subr.bf16.mxu0 0
  %6593 = vmatpush1.bf16.msra.mxu0 %v5442
  %6594 = vmatprep.subr.bf16.mxu0 0
  %6595 = vmatpush1.bf16.msra.mxu0 %v5443
  %6596 = vmatprep.subr.bf16.mxu0 0
  %6597 = vmatpush1.bf16.msra.mxu0 %v5444
  %6598 = vmatprep.subr.bf16.mxu0 0
  %6599 = vmatpush1.bf16.msra.mxu0 %v5445
  %6600 = vmatprep.subr.bf16.mxu0 0
  %6601 = vmatpush1.bf16.msra.mxu0 %v5446
  %6602 = vmatprep.subr.bf16.mxu0 0
  %6603 = vmatpush1.bf16.msra.mxu0 %v5447
  %6604 = vmatprep.subr.bf16.mxu0 0
  %6605 = vmatpush1.bf16.msra.mxu0 %v5448
  %6606 = vmatprep.mubr.bf16.mxu0 %v6004
  %6607 = vmatmul.mubr.bf16.gmra.mrb[0].mxu0 %v6003
  %v6608 = vpop.f32.mrb[0].mxu0
  %v6609 = vadd.f32 %v6544, %v6608
  %v6610 = vpop.f32.mrb[0].mxu0
  %v6611 = vpop.f32.mrb[0].mxu0
  %v6612 = vadd.f32 %v6547, %v6611
  %v6613 = vpop.f32.mrb[0].mxu0
  %6614 = vmatprep.mubr.bf16.mxu0 %v6036
  %6615 = vmatmul.mubr.bf16.gmra.mrb[0].mxu0 %v6035
  %v6616 = vpop.f32.mrb[0].mxu0
  %v6617 = vadd.f32 %v6552, %v6616
  %v6618 = vpop.f32.mrb[0].mxu0
  %v6619 = vpop.f32.mrb[0].mxu0
  %v6620 = vadd.f32 %v6555, %v6619
  %v6621 = vpop.f32.mrb[0].mxu0
  %6622 = vmatprep.mubr.bf16.mxu0 %v6068
  %6623 = vmatmul.mubr.bf16.gmra.mrb[0].mxu0 %v6067
  %v6624 = vpop.f32.mrb[0].mxu0
  %v6625 = vadd.f32 %v6560, %v6624
  %v6626 = vpop.f32.mrb[0].mxu0
  %v6627 = vpop.f32.mrb[0].mxu0
  %v6628 = vadd.f32 %v6563, %v6627
  %v6629 = vpop.f32.mrb[0].mxu0
  %6630 = vmatprep.mubr.bf16.mxu0 %v6100
  %6631 = vmatmul.mubr.bf16.gmra.mrb[0].mxu0 %v6099
  %v6632 = vpop.f32.mrb[0].mxu0
  %v6633 = vadd.f32 %v6568, %v6632
  %v6634 = vpop.f32.mrb[0].mxu0
  %v6635 = vpop.f32.mrb[0].mxu0
  %v6636 = vadd.f32 %v6571, %v6635
  %v6637 = vpop.f32.mrb[0].mxu0
  %6638 = vdwg.mxu0
  %6639 = vmatprep.subr.bf16.mxu0 0
  %6640 = vmatpush1.bf16.msra.mxu0 %v5449
  %6641 = vmatprep.subr.bf16.mxu0 0
  %6642 = vmatpush1.bf16.msra.mxu0 %v5450
  %6643 = vmatprep.subr.bf16.mxu0 0
  %6644 = vmatpush1.bf16.msra.mxu0 %v5451
  %6645 = vmatprep.subr.bf16.mxu0 0
  %6646 = vmatpush1.bf16.msra.mxu0 %v5452
  %6647 = vmatprep.subr.bf16.mxu0 0
  %6648 = vmatpush1.bf16.msra.mxu0 %v5453
  %6649 = vmatprep.subr.bf16.mxu0 0
  %6650 = vmatpush1.bf16.msra.mxu0 %v5454
  %6651 = vmatprep.subr.bf16.mxu0 0
  %6652 = vmatpush1.bf16.msra.mxu0 %v5455
  %6653 = vmatprep.subr.bf16.mxu0 0
  %6654 = vmatpush1.bf16.msra.mxu0 %v5456
  %6655 = vmatprep.subr.bf16.mxu0 0
  %6656 = vmatpush1.bf16.msra.mxu0 %v5457
  %6657 = vmatprep.subr.bf16.mxu0 0
  %6658 = vmatpush1.bf16.msra.mxu0 %v5458
  %6659 = vmatprep.subr.bf16.mxu0 0
  %6660 = vmatpush1.bf16.msra.mxu0 %v5459
  %6661 = vmatprep.subr.bf16.mxu0 0
  %6662 = vmatpush1.bf16.msra.mxu0 %v5460
  %6663 = vmatprep.subr.bf16.mxu0 0
  %6664 = vmatpush1.bf16.msra.mxu0 %v5461
  %6665 = vmatprep.subr.bf16.mxu0 0
  %6666 = vmatpush1.bf16.msra.mxu0 %v5462
  %6667 = vmatprep.subr.bf16.mxu0 0
  %6668 = vmatpush1.bf16.msra.mxu0 %v5463
  %6669 = vmatprep.subr.bf16.mxu0 0
  %6670 = vmatpush1.bf16.msra.mxu0 %v5464
  %6671 = vmatprep.mubr.bf16.mxu0 %v6006
  %6672 = vmatmul.mubr.bf16.gmra.mrb[0].mxu0 %v6005
  %v6673 = vpop.f32.mrb[0].mxu0
  %v6674 = vadd.f32 %v6609, %v6673
  %v6675 = vpop.f32.mrb[0].mxu0
  %v6676 = vpop.f32.mrb[0].mxu0
  %v6677 = vadd.f32 %v6612, %v6676
  %v6678 = vpop.f32.mrb[0].mxu0
  %6679 = vmatprep.mubr.bf16.mxu0 %v6038
  %6680 = vmatmul.mubr.bf16.gmra.mrb[0].mxu0 %v6037
  %v6681 = vpop.f32.mrb[0].mxu0
  %v6682 = vadd.f32 %v6617, %v6681
  %v6683 = vpop.f32.mrb[0].mxu0
  %v6684 = vpop.f32.mrb[0].mxu0
  %v6685 = vadd.f32 %v6620, %v6684
  %v6686 = vpop.f32.mrb[0].mxu0
  %6687 = vmatprep.mubr.bf16.mxu0 %v6070
  %6688 = vmatmul.mubr.bf16.gmra.mrb[0].mxu0 %v6069
  %v6689 = vpop.f32.mrb[0].mxu0
  %v6690 = vadd.f32 %v6625, %v6689
  %v6691 = vpop.f32.mrb[0].mxu0
  %v6692 = vpop.f32.mrb[0].mxu0
  %v6693 = vadd.f32 %v6628, %v6692
  %v6694 = vpop.f32.mrb[0].mxu0
  %6695 = vmatprep.mubr.bf16.mxu0 %v6102
  %6696 = vmatmul.mubr.bf16.gmra.mrb[0].mxu0 %v6101
  %v6697 = vpop.f32.mrb[0].mxu0
  %v6698 = vadd.f32 %v6633, %v6697
  %v6699 = vpop.f32.mrb[0].mxu0
  %v6700 = vpop.f32.mrb[0].mxu0
  %v6701 = vadd.f32 %v6636, %v6700
  %v6702 = vpop.f32.mrb[0].mxu0
  %6703 = vdwg.mxu0
  %6704 = vmatprep.subr.bf16.mxu0 0
  %6705 = vmatpush1.bf16.msra.mxu0 %v5465
  %6706 = vmatprep.subr.bf16.mxu0 0
  %6707 = vmatpush1.bf16.msra.mxu0 %v5466
  %6708 = vmatprep.subr.bf16.mxu0 0
  %6709 = vmatpush1.bf16.msra.mxu0 %v5467
  %6710 = vmatprep.subr.bf16.mxu0 0
  %6711 = vmatpush1.bf16.msra.mxu0 %v5468
  %6712 = vmatprep.subr.bf16.mxu0 0
  %6713 = vmatpush1.bf16.msra.mxu0 %v5469
  %6714 = vmatprep.subr.bf16.mxu0 0
  %6715 = vmatpush1.bf16.msra.mxu0 %v5470
  %6716 = vmatprep.subr.bf16.mxu0 0
  %6717 = vmatpush1.bf16.msra.mxu0 %v5471
  %6718 = vmatprep.subr.bf16.mxu0 0
  %6719 = vmatpush1.bf16.msra.mxu0 %v5472
  %6720 = vmatprep.subr.bf16.mxu0 0
  %6721 = vmatpush1.bf16.msra.mxu0 %v5473
  %6722 = vmatprep.subr.bf16.mxu0 0
  %6723 = vmatpush1.bf16.msra.mxu0 %v5474
  %6724 = vmatprep.subr.bf16.mxu0 0
  %6725 = vmatpush1.bf16.msra.mxu0 %v5475
  %6726 = vmatprep.subr.bf16.mxu0 0
  %6727 = vmatpush1.bf16.msra.mxu0 %v5476
  %6728 = vmatprep.subr.bf16.mxu0 0
  %6729 = vmatpush1.bf16.msra.mxu0 %v5477
  %6730 = vmatprep.subr.bf16.mxu0 0
  %6731 = vmatpush1.bf16.msra.mxu0 %v5478
  %6732 = vmatprep.subr.bf16.mxu0 0
  %6733 = vmatpush1.bf16.msra.mxu0 %v5479
  %6734 = vmatprep.subr.bf16.mxu0 0
  %6735 = vmatpush1.bf16.msra.mxu0 %v5480
  %6736 = vmatprep.mubr.bf16.mxu0 %v6008
  %6737 = vmatmul.mubr.bf16.gmra.mrb[0].mxu0 %v6007
  %v6738 = vpop.f32.mrb[0].mxu0
  %v6739 = vadd.f32 %v6674, %v6738
  %v6740 = vpop.f32.mrb[0].mxu0
  %v6741 = vpop.f32.mrb[0].mxu0
  %v6742 = vadd.f32 %v6677, %v6741
  %v6743 = vpop.f32.mrb[0].mxu0
  %6744 = vmatprep.mubr.bf16.mxu0 %v6040
  %6745 = vmatmul.mubr.bf16.gmra.mrb[0].mxu0 %v6039
  %v6746 = vpop.f32.mrb[0].mxu0
  %v6747 = vadd.f32 %v6682, %v6746
  %v6748 = vpop.f32.mrb[0].mxu0
  %v6749 = vpop.f32.mrb[0].mxu0
  %v6750 = vadd.f32 %v6685, %v6749
  %v6751 = vpop.f32.mrb[0].mxu0
  %6752 = vmatprep.mubr.bf16.mxu0 %v6072
  %6753 = vmatmul.mubr.bf16.gmra.mrb[0].mxu0 %v6071
  %v6754 = vpop.f32.mrb[0].mxu0
  %v6755 = vadd.f32 %v6690, %v6754
  %v6756 = vpop.f32.mrb[0].mxu0
  %v6757 = vpop.f32.mrb[0].mxu0
  %v6758 = vadd.f32 %v6693, %v6757
  %v6759 = vpop.f32.mrb[0].mxu0
  %6760 = vmatprep.mubr.bf16.mxu0 %v6104
  %6761 = vmatmul.mubr.bf16.gmra.mrb[0].mxu0 %v6103
  %v6762 = vpop.f32.mrb[0].mxu0
  %v6763 = vadd.f32 %v6698, %v6762
  %v6764 = vpop.f32.mrb[0].mxu0
  %v6765 = vpop.f32.mrb[0].mxu0
  %v6766 = vadd.f32 %v6701, %v6765
  %v6767 = vpop.f32.mrb[0].mxu0
  %6768 = vdwg.mxu0
  %6769 = vmatprep.subr.bf16.mxu0 0
  %6770 = vmatpush1.bf16.msra.mxu0 %v5481
  %6771 = vmatprep.subr.bf16.mxu0 0
  %6772 = vmatpush1.bf16.msra.mxu0 %v5482
  %6773 = vmatprep.subr.bf16.mxu0 0
  %6774 = vmatpush1.bf16.msra.mxu0 %v5483
  %6775 = vmatprep.subr.bf16.mxu0 0
  %6776 = vmatpush1.bf16.msra.mxu0 %v5484
  %6777 = vmatprep.subr.bf16.mxu0 0
  %6778 = vmatpush1.bf16.msra.mxu0 %v5485
  %6779 = vmatprep.subr.bf16.mxu0 0
  %6780 = vmatpush1.bf16.msra.mxu0 %v5486
  %6781 = vmatprep.subr.bf16.mxu0 0
  %6782 = vmatpush1.bf16.msra.mxu0 %v5487
  %6783 = vmatprep.subr.bf16.mxu0 0
  %6784 = vmatpush1.bf16.msra.mxu0 %v5488
  %6785 = vmatprep.subr.bf16.mxu0 0
  %6786 = vmatpush1.bf16.msra.mxu0 %v5489
  %6787 = vmatprep.subr.bf16.mxu0 0
  %6788 = vmatpush1.bf16.msra.mxu0 %v5490
  %6789 = vmatprep.subr.bf16.mxu0 0
  %6790 = vmatpush1.bf16.msra.mxu0 %v5491
  %6791 = vmatprep.subr.bf16.mxu0 0
  %6792 = vmatpush1.bf16.msra.mxu0 %v5492
  %6793 = vmatprep.subr.bf16.mxu0 0
  %6794 = vmatpush1.bf16.msra.mxu0 %v5493
  %6795 = vmatprep.subr.bf16.mxu0 0
  %6796 = vmatpush1.bf16.msra.mxu0 %v5494
  %6797 = vmatprep.subr.bf16.mxu0 0
  %6798 = vmatpush1.bf16.msra.mxu0 %v5495
  %6799 = vmatprep.subr.bf16.mxu0 0
  %6800 = vmatpush1.bf16.msra.mxu0 %v5496
  %6801 = vmatprep.mubr.bf16.mxu0 %v6010
  %6802 = vmatmul.mubr.bf16.gmra.mrb[0].mxu0 %v6009
  %v6803 = vpop.f32.mrb[0].mxu0
  %v6804 = vadd.f32 %v6739, %v6803
  %v6805 = vpop.f32.mrb[0].mxu0
  %v6806 = vpop.f32.mrb[0].mxu0
  %v6807 = vadd.f32 %v6742, %v6806
  %v6808 = vpop.f32.mrb[0].mxu0
  %6809 = vmatprep.mubr.bf16.mxu0 %v6042
  %6810 = vmatmul.mubr.bf16.gmra.mrb[0].mxu0 %v6041
  %v6811 = vpop.f32.mrb[0].mxu0
  %v6812 = vadd.f32 %v6747, %v6811
  %v6813 = vpop.f32.mrb[0].mxu0
  %v6814 = vpop.f32.mrb[0].mxu0
  %v6815 = vadd.f32 %v6750, %v6814
  %v6816 = vpop.f32.mrb[0].mxu0
  %6817 = vmatprep.mubr.bf16.mxu0 %v6074
  %6818 = vmatmul.mubr.bf16.gmra.mrb[0].mxu0 %v6073
  %v6819 = vpop.f32.mrb[0].mxu0
  %v6820 = vadd.f32 %v6755, %v6819
  %v6821 = vpop.f32.mrb[0].mxu0
  %v6822 = vpop.f32.mrb[0].mxu0
  %v6823 = vadd.f32 %v6758, %v6822
  %v6824 = vpop.f32.mrb[0].mxu0
  %6825 = vmatprep.mubr.bf16.mxu0 %v6106
  %6826 = vmatmul.mubr.bf16.gmra.mrb[0].mxu0 %v6105
  %v6827 = vpop.f32.mrb[0].mxu0
  %v6828 = vadd.f32 %v6763, %v6827
  %v6829 = vpop.f32.mrb[0].mxu0
  %v6830 = vpop.f32.mrb[0].mxu0
  %v6831 = vadd.f32 %v6766, %v6830
  %v6832 = vpop.f32.mrb[0].mxu0
  %6833 = vdwg.mxu0
  %6834 = vmatprep.subr.bf16.mxu0 0
  %6835 = vmatpush1.bf16.msra.mxu0 %v5497
  %6836 = vmatprep.subr.bf16.mxu0 0
  %6837 = vmatpush1.bf16.msra.mxu0 %v5498
  %6838 = vmatprep.subr.bf16.mxu0 0
  %6839 = vmatpush1.bf16.msra.mxu0 %v5499
  %6840 = vmatprep.subr.bf16.mxu0 0
  %6841 = vmatpush1.bf16.msra.mxu0 %v5500
  %6842 = vmatprep.subr.bf16.mxu0 0
  %6843 = vmatpush1.bf16.msra.mxu0 %v5501
  %6844 = vmatprep.subr.bf16.mxu0 0
  %6845 = vmatpush1.bf16.msra.mxu0 %v5502
  %6846 = vmatprep.subr.bf16.mxu0 0
  %6847 = vmatpush1.bf16.msra.mxu0 %v5503
  %6848 = vmatprep.subr.bf16.mxu0 0
  %6849 = vmatpush1.bf16.msra.mxu0 %v5504
  %6850 = vmatprep.subr.bf16.mxu0 0
  %6851 = vmatpush1.bf16.msra.mxu0 %v5505
  %6852 = vmatprep.subr.bf16.mxu0 0
  %6853 = vmatpush1.bf16.msra.mxu0 %v5506
  %6854 = vmatprep.subr.bf16.mxu0 0
  %6855 = vmatpush1.bf16.msra.mxu0 %v5507
  %6856 = vmatprep.subr.bf16.mxu0 0
  %6857 = vmatpush1.bf16.msra.mxu0 %v5508
  %6858 = vmatprep.subr.bf16.mxu0 0
  %6859 = vmatpush1.bf16.msra.mxu0 %v5509
  %6860 = vmatprep.subr.bf16.mxu0 0
  %6861 = vmatpush1.bf16.msra.mxu0 %v5510
  %6862 = vmatprep.subr.bf16.mxu0 0
  %6863 = vmatpush1.bf16.msra.mxu0 %v5511
  %6864 = vmatprep.subr.bf16.mxu0 0
  %6865 = vmatpush1.bf16.msra.mxu0 %v5512
  %6866 = vmatprep.mubr.bf16.mxu0 %v6012
  %6867 = vmatmul.mubr.bf16.gmra.mrb[0].mxu0 %v6011
  %v6868 = vpop.f32.mrb[0].mxu0
  %v6869 = vadd.f32 %v6804, %v6868
  %v6870 = vpop.f32.mrb[0].mxu0
  %v6871 = vpop.f32.mrb[0].mxu0
  %v6872 = vadd.f32 %v6807, %v6871
  %v6873 = vpop.f32.mrb[0].mxu0
  %6874 = vmatprep.mubr.bf16.mxu0 %v6044
  %6875 = vmatmul.mubr.bf16.gmra.mrb[0].mxu0 %v6043
  %v6876 = vpop.f32.mrb[0].mxu0
  %v6877 = vadd.f32 %v6812, %v6876
  %v6878 = vpop.f32.mrb[0].mxu0
  %v6879 = vpop.f32.mrb[0].mxu0
  %v6880 = vadd.f32 %v6815, %v6879
  %v6881 = vpop.f32.mrb[0].mxu0
  %6882 = vmatprep.mubr.bf16.mxu0 %v6076
  %6883 = vmatmul.mubr.bf16.gmra.mrb[0].mxu0 %v6075
  %v6884 = vpop.f32.mrb[0].mxu0
  %v6885 = vadd.f32 %v6820, %v6884
  %v6886 = vpop.f32.mrb[0].mxu0
  %v6887 = vpop.f32.mrb[0].mxu0
  %v6888 = vadd.f32 %v6823, %v6887
  %v6889 = vpop.f32.mrb[0].mxu0
  %6890 = vmatprep.mubr.bf16.mxu0 %v6108
  %6891 = vmatmul.mubr.bf16.gmra.mrb[0].mxu0 %v6107
  %v6892 = vpop.f32.mrb[0].mxu0
  %v6893 = vadd.f32 %v6828, %v6892
  %v6894 = vpop.f32.mrb[0].mxu0
  %v6895 = vpop.f32.mrb[0].mxu0
  %v6896 = vadd.f32 %v6831, %v6895
  %v6897 = vpop.f32.mrb[0].mxu0
  %6898 = vdwg.mxu0
  %6899 = vmatprep.subr.bf16.mxu0 0
  %6900 = vmatpush1.bf16.msra.mxu0 %v5513
  %6901 = vmatprep.subr.bf16.mxu0 0
  %6902 = vmatpush1.bf16.msra.mxu0 %v5514
  %6903 = vmatprep.subr.bf16.mxu0 0
  %6904 = vmatpush1.bf16.msra.mxu0 %v5515
  %6905 = vmatprep.subr.bf16.mxu0 0
  %6906 = vmatpush1.bf16.msra.mxu0 %v5516
  %6907 = vmatprep.subr.bf16.mxu0 0
  %6908 = vmatpush1.bf16.msra.mxu0 %v5517
  %6909 = vmatprep.subr.bf16.mxu0 0
  %6910 = vmatpush1.bf16.msra.mxu0 %v5518
  %6911 = vmatprep.subr.bf16.mxu0 0
  %6912 = vmatpush1.bf16.msra.mxu0 %v5519
  %6913 = vmatprep.subr.bf16.mxu0 0
  %6914 = vmatpush1.bf16.msra.mxu0 %v5520
  %6915 = vmatprep.subr.bf16.mxu0 0
  %6916 = vmatpush1.bf16.msra.mxu0 %v5521
  %6917 = vmatprep.subr.bf16.mxu0 0
  %6918 = vmatpush1.bf16.msra.mxu0 %v5522
  %6919 = vmatprep.subr.bf16.mxu0 0
  %6920 = vmatpush1.bf16.msra.mxu0 %v5523
  %6921 = vmatprep.subr.bf16.mxu0 0
  %6922 = vmatpush1.bf16.msra.mxu0 %v5524
  %6923 = vmatprep.subr.bf16.mxu0 0
  %6924 = vmatpush1.bf16.msra.mxu0 %v5525
  %6925 = vmatprep.subr.bf16.mxu0 0
  %6926 = vmatpush1.bf16.msra.mxu0 %v5526
  %6927 = vmatprep.subr.bf16.mxu0 0
  %6928 = vmatpush1.bf16.msra.mxu0 %v5527
  %6929 = vmatprep.subr.bf16.mxu0 0
  %6930 = vmatpush1.bf16.msra.mxu0 %v5528
  %6931 = vmatprep.mubr.bf16.mxu0 %v6014
  %6932 = vmatmul.mubr.bf16.gmra.mrb[0].mxu0 %v6013
  %v6933 = vpop.f32.mrb[0].mxu0
  %v6934 = vadd.f32 %v6869, %v6933
  %v6935 = vpop.f32.mrb[0].mxu0
  %v6936 = vpop.f32.mrb[0].mxu0
  %v6937 = vadd.f32 %v6872, %v6936
  %v6938 = vpop.f32.mrb[0].mxu0
  %6939 = vmatprep.mubr.bf16.mxu0 %v6046
  %6940 = vmatmul.mubr.bf16.gmra.mrb[0].mxu0 %v6045
  %v6941 = vpop.f32.mrb[0].mxu0
  %v6942 = vadd.f32 %v6877, %v6941
  %v6943 = vpop.f32.mrb[0].mxu0
  %v6944 = vpop.f32.mrb[0].mxu0
  %v6945 = vadd.f32 %v6880, %v6944
  %v6946 = vpop.f32.mrb[0].mxu0
  %6947 = vmatprep.mubr.bf16.mxu0 %v6078
  %6948 = vmatmul.mubr.bf16.gmra.mrb[0].mxu0 %v6077
  %v6949 = vpop.f32.mrb[0].mxu0
  %v6950 = vadd.f32 %v6885, %v6949
  %v6951 = vpop.f32.mrb[0].mxu0
  %v6952 = vpop.f32.mrb[0].mxu0
  %v6953 = vadd.f32 %v6888, %v6952
  %v6954 = vpop.f32.mrb[0].mxu0
  %6955 = vmatprep.mubr.bf16.mxu0 %v6110
  %6956 = vmatmul.mubr.bf16.gmra.mrb[0].mxu0 %v6109
  %v6957 = vpop.f32.mrb[0].mxu0
  %v6958 = vadd.f32 %v6893, %v6957
  %v6959 = vpop.f32.mrb[0].mxu0
  %v6960 = vpop.f32.mrb[0].mxu0
  %v6961 = vadd.f32 %v6896, %v6960
  %v6962 = vpop.f32.mrb[0].mxu0
  %6963 = vdwg.mxu0
  %6964 = vmatprep.subr.bf16.mxu0 0
  %6965 = vmatpush1.bf16.msra.mxu0 %v5529
  %6966 = vmatprep.subr.bf16.mxu0 0
  %6967 = vmatpush1.bf16.msra.mxu0 %v5530
  %6968 = vmatprep.subr.bf16.mxu0 0
  %6969 = vmatpush1.bf16.msra.mxu0 %v5531
  %6970 = vmatprep.subr.bf16.mxu0 0
  %6971 = vmatpush1.bf16.msra.mxu0 %v5532
  %6972 = vmatprep.subr.bf16.mxu0 0
  %6973 = vmatpush1.bf16.msra.mxu0 %v5533
  %6974 = vmatprep.subr.bf16.mxu0 0
  %6975 = vmatpush1.bf16.msra.mxu0 %v5534
  %6976 = vmatprep.subr.bf16.mxu0 0
  %6977 = vmatpush1.bf16.msra.mxu0 %v5535
  %6978 = vmatprep.subr.bf16.mxu0 0
  %6979 = vmatpush1.bf16.msra.mxu0 %v5536
  %6980 = vmatprep.subr.bf16.mxu0 0
  %6981 = vmatpush1.bf16.msra.mxu0 %v5537
  %6982 = vmatprep.subr.bf16.mxu0 0
  %6983 = vmatpush1.bf16.msra.mxu0 %v5538
  %6984 = vmatprep.subr.bf16.mxu0 0
  %6985 = vmatpush1.bf16.msra.mxu0 %v5539
  %6986 = vmatprep.subr.bf16.mxu0 0
  %6987 = vmatpush1.bf16.msra.mxu0 %v5540
  %6988 = vmatprep.subr.bf16.mxu0 0
  %6989 = vmatpush1.bf16.msra.mxu0 %v5541
  %6990 = vmatprep.subr.bf16.mxu0 0
  %6991 = vmatpush1.bf16.msra.mxu0 %v5542
  %6992 = vmatprep.subr.bf16.mxu0 0
  %6993 = vmatpush1.bf16.msra.mxu0 %v5543
  %6994 = vmatprep.subr.bf16.mxu0 0
  %6995 = vmatpush1.bf16.msra.mxu0 %v5544
  %6996 = vmatprep.mubr.bf16.mxu0 %v6016
  %6997 = vmatmul.mubr.bf16.gmra.mrb[0].mxu0 %v6015
  %v6998 = vpop.f32.mrb[0].mxu0
  %v6999 = vadd.f32 %v6934, %v6998
  %v7000 = vpop.f32.mrb[0].mxu0
  %v7001 = vpop.f32.mrb[0].mxu0
  %v7002 = vadd.f32 %v6937, %v7001
  %v7003 = vpop.f32.mrb[0].mxu0
  %7004 = vmatprep.mubr.bf16.mxu0 %v6048
  %7005 = vmatmul.mubr.bf16.gmra.mrb[0].mxu0 %v6047
  %v7006 = vpop.f32.mrb[0].mxu0
  %v7007 = vadd.f32 %v6942, %v7006
  %v7008 = vpop.f32.mrb[0].mxu0
  %v7009 = vpop.f32.mrb[0].mxu0
  %v7010 = vadd.f32 %v6945, %v7009
  %v7011 = vpop.f32.mrb[0].mxu0
  %7012 = vmatprep.mubr.bf16.mxu0 %v6080
  %7013 = vmatmul.mubr.bf16.gmra.mrb[0].mxu0 %v6079
  %v7014 = vpop.f32.mrb[0].mxu0
  %v7015 = vadd.f32 %v6950, %v7014
  %v7016 = vpop.f32.mrb[0].mxu0
  %v7017 = vpop.f32.mrb[0].mxu0
  %v7018 = vadd.f32 %v6953, %v7017
  %v7019 = vpop.f32.mrb[0].mxu0
  %7020 = vmatprep.mubr.bf16.mxu0 %v6112
  %7021 = vmatmul.mubr.bf16.gmra.mrb[0].mxu0 %v6111
  %v7022 = vpop.f32.mrb[0].mxu0
  %v7023 = vadd.f32 %v6958, %v7022
  %v7024 = vpop.f32.mrb[0].mxu0
  %v7025 = vpop.f32.mrb[0].mxu0
  %v7026 = vadd.f32 %v6961, %v7025
  %v7027 = vpop.f32.mrb[0].mxu0
  %7028 = vdwg.mxu0
  %7029 = vmatprep.subr.bf16.mxu0 0
  %7030 = vmatpush1.bf16.msra.mxu0 %v5545
  %7031 = vmatprep.subr.bf16.mxu0 0
  %7032 = vmatpush1.bf16.msra.mxu0 %v5546
  %7033 = vmatprep.subr.bf16.mxu0 0
  %7034 = vmatpush1.bf16.msra.mxu0 %v5547
  %7035 = vmatprep.subr.bf16.mxu0 0
  %7036 = vmatpush1.bf16.msra.mxu0 %v5548
  %7037 = vmatprep.subr.bf16.mxu0 0
  %7038 = vmatpush1.bf16.msra.mxu0 %v5549
  %7039 = vmatprep.subr.bf16.mxu0 0
  %7040 = vmatpush1.bf16.msra.mxu0 %v5550
  %7041 = vmatprep.subr.bf16.mxu0 0
  %7042 = vmatpush1.bf16.msra.mxu0 %v5551
  %7043 = vmatprep.subr.bf16.mxu0 0
  %7044 = vmatpush1.bf16.msra.mxu0 %v5552
  %7045 = vmatprep.subr.bf16.mxu0 0
  %7046 = vmatpush1.bf16.msra.mxu0 %v5553
  %7047 = vmatprep.subr.bf16.mxu0 0
  %7048 = vmatpush1.bf16.msra.mxu0 %v5554
  %7049 = vmatprep.subr.bf16.mxu0 0
  %7050 = vmatpush1.bf16.msra.mxu0 %v5555
  %7051 = vmatprep.subr.bf16.mxu0 0
  %7052 = vmatpush1.bf16.msra.mxu0 %v5556
  %7053 = vmatprep.subr.bf16.mxu0 0
  %7054 = vmatpush1.bf16.msra.mxu0 %v5557
  %7055 = vmatprep.subr.bf16.mxu0 0
  %7056 = vmatpush1.bf16.msra.mxu0 %v5558
  %7057 = vmatprep.subr.bf16.mxu0 0
  %7058 = vmatpush1.bf16.msra.mxu0 %v5559
  %7059 = vmatprep.subr.bf16.mxu0 0
  %7060 = vmatpush1.bf16.msra.mxu0 %v5560
  %7061 = vmatprep.mubr.bf16.mxu0 %v6018
  %7062 = vmatmul.mubr.bf16.gmra.mrb[0].mxu0 %v6017
  %v7063 = vpop.f32.mrb[0].mxu0
  %v7064 = vadd.f32 %v6999, %v7063
  %v7065 = vpop.f32.mrb[0].mxu0
  %v7066 = vpop.f32.mrb[0].mxu0
  %v7067 = vadd.f32 %v7002, %v7066
  %v7068 = vpop.f32.mrb[0].mxu0
  %7069 = vmatprep.mubr.bf16.mxu0 %v6050
  %7070 = vmatmul.mubr.bf16.gmra.mrb[0].mxu0 %v6049
  %v7071 = vpop.f32.mrb[0].mxu0
  %v7072 = vadd.f32 %v7007, %v7071
  %v7073 = vpop.f32.mrb[0].mxu0
  %v7074 = vpop.f32.mrb[0].mxu0
  %v7075 = vadd.f32 %v7010, %v7074
  %v7076 = vpop.f32.mrb[0].mxu0
  %7077 = vmatprep.mubr.bf16.mxu0 %v6082
  %7078 = vmatmul.mubr.bf16.gmra.mrb[0].mxu0 %v6081
  %v7079 = vpop.f32.mrb[0].mxu0
  %v7080 = vadd.f32 %v7015, %v7079
  %v7081 = vpop.f32.mrb[0].mxu0
  %v7082 = vpop.f32.mrb[0].mxu0
  %v7083 = vadd.f32 %v7018, %v7082
  %v7084 = vpop.f32.mrb[0].mxu0
  %7085 = vmatprep.mubr.bf16.mxu0 %v6114
  %7086 = vmatmul.mubr.bf16.gmra.mrb[0].mxu0 %v6113
  %v7087 = vpop.f32.mrb[0].mxu0
  %v7088 = vadd.f32 %v7023, %v7087
  %v7089 = vpop.f32.mrb[0].mxu0
  %v7090 = vpop.f32.mrb[0].mxu0
  %v7091 = vadd.f32 %v7026, %v7090
  %v7092 = vpop.f32.mrb[0].mxu0
  %7093 = vdwg.mxu0
  %7094 = vmatprep.subr.bf16.mxu0 0
  %7095 = vmatpush1.bf16.msra.mxu0 %v5561
  %7096 = vmatprep.subr.bf16.mxu0 0
  %7097 = vmatpush1.bf16.msra.mxu0 %v5562
  %7098 = vmatprep.subr.bf16.mxu0 0
  %7099 = vmatpush1.bf16.msra.mxu0 %v5563
  %7100 = vmatprep.subr.bf16.mxu0 0
  %7101 = vmatpush1.bf16.msra.mxu0 %v5564
  %7102 = vmatprep.subr.bf16.mxu0 0
  %7103 = vmatpush1.bf16.msra.mxu0 %v5565
  %7104 = vmatprep.subr.bf16.mxu0 0
  %7105 = vmatpush1.bf16.msra.mxu0 %v5566
  %7106 = vmatprep.subr.bf16.mxu0 0
  %7107 = vmatpush1.bf16.msra.mxu0 %v5567
  %7108 = vmatprep.subr.bf16.mxu0 0
  %7109 = vmatpush1.bf16.msra.mxu0 %v5568
  %7110 = vmatprep.subr.bf16.mxu0 0
  %7111 = vmatpush1.bf16.msra.mxu0 %v5569
  %7112 = vmatprep.subr.bf16.mxu0 0
  %7113 = vmatpush1.bf16.msra.mxu0 %v5570
  %7114 = vmatprep.subr.bf16.mxu0 0
  %7115 = vmatpush1.bf16.msra.mxu0 %v5571
  %7116 = vmatprep.subr.bf16.mxu0 0
  %7117 = vmatpush1.bf16.msra.mxu0 %v5572
  %7118 = vmatprep.subr.bf16.mxu0 0
  %7119 = vmatpush1.bf16.msra.mxu0 %v5573
  %7120 = vmatprep.subr.bf16.mxu0 0
  %7121 = vmatpush1.bf16.msra.mxu0 %v5574
  %7122 = vmatprep.subr.bf16.mxu0 0
  %7123 = vmatpush1.bf16.msra.mxu0 %v5575
  %7124 = vmatprep.subr.bf16.mxu0 0
  %7125 = vmatpush1.bf16.msra.mxu0 %v5576
  %7126 = vmatprep.mubr.bf16.mxu0 %v6020
  %7127 = vmatmul.mubr.bf16.gmra.mrb[0].mxu0 %v6019
  %v7128 = vpop.f32.mrb[0].mxu0
  %v7129 = vadd.f32 %v7064, %v7128
  %v7130 = vpop.f32.mrb[0].mxu0
  %v7131 = vpop.f32.mrb[0].mxu0
  %v7132 = vadd.f32 %v7067, %v7131
  %v7133 = vpop.f32.mrb[0].mxu0
  %7134 = vmatprep.mubr.bf16.mxu0 %v6052
  %7135 = vmatmul.mubr.bf16.gmra.mrb[0].mxu0 %v6051
  %v7136 = vpop.f32.mrb[0].mxu0
  %v7137 = vadd.f32 %v7072, %v7136
  %v7138 = vpop.f32.mrb[0].mxu0
  %v7139 = vpop.f32.mrb[0].mxu0
  %v7140 = vadd.f32 %v7075, %v7139
  %v7141 = vpop.f32.mrb[0].mxu0
  %7142 = vmatprep.mubr.bf16.mxu0 %v6084
  %7143 = vmatmul.mubr.bf16.gmra.mrb[0].mxu0 %v6083
  %v7144 = vpop.f32.mrb[0].mxu0
  %v7145 = vadd.f32 %v7080, %v7144
  %v7146 = vpop.f32.mrb[0].mxu0
  %v7147 = vpop.f32.mrb[0].mxu0
  %v7148 = vadd.f32 %v7083, %v7147
  %v7149 = vpop.f32.mrb[0].mxu0
  %7150 = vmatprep.mubr.bf16.mxu0 %v6116
  %7151 = vmatmul.mubr.bf16.gmra.mrb[0].mxu0 %v6115
  %v7152 = vpop.f32.mrb[0].mxu0
  %v7153 = vadd.f32 %v7088, %v7152
  %v7154 = vpop.f32.mrb[0].mxu0
  %v7155 = vpop.f32.mrb[0].mxu0
  %v7156 = vadd.f32 %v7091, %v7155
  %v7157 = vpop.f32.mrb[0].mxu0
  %7158 = vdwg.mxu0
  %7159 = vmatprep.subr.bf16.mxu0 0
  %7160 = vmatpush1.bf16.msra.mxu0 %v5577
  %7161 = vmatprep.subr.bf16.mxu0 0
  %7162 = vmatpush1.bf16.msra.mxu0 %v5578
  %7163 = vmatprep.subr.bf16.mxu0 0
  %7164 = vmatpush1.bf16.msra.mxu0 %v5579
  %7165 = vmatprep.subr.bf16.mxu0 0
  %7166 = vmatpush1.bf16.msra.mxu0 %v5580
  %7167 = vmatprep.subr.bf16.mxu0 0
  %7168 = vmatpush1.bf16.msra.mxu0 %v5581
  %7169 = vmatprep.subr.bf16.mxu0 0
  %7170 = vmatpush1.bf16.msra.mxu0 %v5582
  %7171 = vmatprep.subr.bf16.mxu0 0
  %7172 = vmatpush1.bf16.msra.mxu0 %v5583
  %7173 = vmatprep.subr.bf16.mxu0 0
  %7174 = vmatpush1.bf16.msra.mxu0 %v5584
  %7175 = vmatprep.subr.bf16.mxu0 0
  %7176 = vmatpush1.bf16.msra.mxu0 %v5585
  %7177 = vmatprep.subr.bf16.mxu0 0
  %7178 = vmatpush1.bf16.msra.mxu0 %v5586
  %7179 = vmatprep.subr.bf16.mxu0 0
  %7180 = vmatpush1.bf16.msra.mxu0 %v5587
  %7181 = vmatprep.subr.bf16.mxu0 0
  %7182 = vmatpush1.bf16.msra.mxu0 %v5588
  %7183 = vmatprep.subr.bf16.mxu0 0
  %7184 = vmatpush1.bf16.msra.mxu0 %v5589
  %7185 = vmatprep.subr.bf16.mxu0 0
  %7186 = vmatpush1.bf16.msra.mxu0 %v5590
  %7187 = vmatprep.subr.bf16.mxu0 0
  %7188 = vmatpush1.bf16.msra.mxu0 %v5591
  %7189 = vmatprep.subr.bf16.mxu0 0
  %7190 = vmatpush1.bf16.msra.mxu0 %v5592
  %7191 = vmatprep.mubr.bf16.mxu0 %v6022
  %7192 = vmatmul.mubr.bf16.gmra.mrb[0].mxu0 %v6021
  %v7193 = vpop.f32.mrb[0].mxu0
  %v7194 = vadd.f32 %v7129, %v7193
  %v7195 = vpop.f32.mrb[0].mxu0
  %v7196 = vpop.f32.mrb[0].mxu0
  %v7197 = vadd.f32 %v7132, %v7196
  %v7198 = vpop.f32.mrb[0].mxu0
  %7199 = vmatprep.mubr.bf16.mxu0 %v6054
  %7200 = vmatmul.mubr.bf16.gmra.mrb[0].mxu0 %v6053
  %v7201 = vpop.f32.mrb[0].mxu0
  %v7202 = vadd.f32 %v7137, %v7201
  %v7203 = vpop.f32.mrb[0].mxu0
  %v7204 = vpop.f32.mrb[0].mxu0
  %v7205 = vadd.f32 %v7140, %v7204
  %v7206 = vpop.f32.mrb[0].mxu0
  %7207 = vmatprep.mubr.bf16.mxu0 %v6086
  %7208 = vmatmul.mubr.bf16.gmra.mrb[0].mxu0 %v6085
  %v7209 = vpop.f32.mrb[0].mxu0
  %v7210 = vadd.f32 %v7145, %v7209
  %v7211 = vpop.f32.mrb[0].mxu0
  %v7212 = vpop.f32.mrb[0].mxu0
  %v7213 = vadd.f32 %v7148, %v7212
  %v7214 = vpop.f32.mrb[0].mxu0
  %7215 = vmatprep.mubr.bf16.mxu0 %v6118
  %7216 = vmatmul.mubr.bf16.gmra.mrb[0].mxu0 %v6117
  %v7217 = vpop.f32.mrb[0].mxu0
  %v7218 = vadd.f32 %v7153, %v7217
  %v7219 = vpop.f32.mrb[0].mxu0
  %v7220 = vpop.f32.mrb[0].mxu0
  %v7221 = vadd.f32 %v7156, %v7220
  %v7222 = vpop.f32.mrb[0].mxu0
  %7223 = vdwg.mxu0
  %7224 = vmatprep.subr.bf16.mxu0 0
  %7225 = vmatpush1.bf16.msra.mxu0 %v5593
  %7226 = vmatprep.subr.bf16.mxu0 0
  %7227 = vmatpush1.bf16.msra.mxu0 %v5594
  %7228 = vmatprep.subr.bf16.mxu0 0
  %7229 = vmatpush1.bf16.msra.mxu0 %v5595
  %7230 = vmatprep.subr.bf16.mxu0 0
  %7231 = vmatpush1.bf16.msra.mxu0 %v5596
  %7232 = vmatprep.subr.bf16.mxu0 0
  %7233 = vmatpush1.bf16.msra.mxu0 %v5597
  %7234 = vmatprep.subr.bf16.mxu0 0
  %7235 = vmatpush1.bf16.msra.mxu0 %v5598
  %7236 = vmatprep.subr.bf16.mxu0 0
  %7237 = vmatpush1.bf16.msra.mxu0 %v5599
  %7238 = vmatprep.subr.bf16.mxu0 0
  %7239 = vmatpush1.bf16.msra.mxu0 %v5600
  %7240 = vmatprep.subr.bf16.mxu0 0
  %7241 = vmatpush1.bf16.msra.mxu0 %v5601
  %7242 = vmatprep.subr.bf16.mxu0 0
  %7243 = vmatpush1.bf16.msra.mxu0 %v5602
  %7244 = vmatprep.subr.bf16.mxu0 0
  %7245 = vmatpush1.bf16.msra.mxu0 %v5603
  %7246 = vmatprep.subr.bf16.mxu0 0
  %7247 = vmatpush1.bf16.msra.mxu0 %v5604
  %7248 = vmatprep.subr.bf16.mxu0 0
  %7249 = vmatpush1.bf16.msra.mxu0 %v5605
  %7250 = vmatprep.subr.bf16.mxu0 0
  %7251 = vmatpush1.bf16.msra.mxu0 %v5606
  %7252 = vmatprep.subr.bf16.mxu0 0
  %7253 = vmatpush1.bf16.msra.mxu0 %v5607
  %7254 = vmatprep.subr.bf16.mxu0 0
  %7255 = vmatpush1.bf16.msra.mxu0 %v5608
  %7256 = vmatprep.mubr.bf16.mxu0 %v6024
  %7257 = vmatmul.mubr.bf16.gmra.mrb[0].mxu0 %v6023
  %v7258 = vpop.f32.mrb[0].mxu0
  %v7259 = vadd.f32 %v7194, %v7258
  %v7260 = vpop.f32.mrb[0].mxu0
  %v7261 = vpop.f32.mrb[0].mxu0
  %v7262 = vadd.f32 %v7197, %v7261
  %v7263 = vpop.f32.mrb[0].mxu0
  %7264 = vmatprep.mubr.bf16.mxu0 %v6056
  %7265 = vmatmul.mubr.bf16.gmra.mrb[0].mxu0 %v6055
  %v7266 = vpop.f32.mrb[0].mxu0
  %v7267 = vadd.f32 %v7202, %v7266
  %v7268 = vpop.f32.mrb[0].mxu0
  %v7269 = vpop.f32.mrb[0].mxu0
  %v7270 = vadd.f32 %v7205, %v7269
  %v7271 = vpop.f32.mrb[0].mxu0
  %7272 = vmatprep.mubr.bf16.mxu0 %v6088
  %7273 = vmatmul.mubr.bf16.gmra.mrb[0].mxu0 %v6087
  %v7274 = vpop.f32.mrb[0].mxu0
  %v7275 = vadd.f32 %v7210, %v7274
  %v7276 = vpop.f32.mrb[0].mxu0
  %v7277 = vpop.f32.mrb[0].mxu0
  %v7278 = vadd.f32 %v7213, %v7277
  %v7279 = vpop.f32.mrb[0].mxu0
  %7280 = vmatprep.mubr.bf16.mxu0 %v6120
  %7281 = vmatmul.mubr.bf16.gmra.mrb[0].mxu0 %v6119
  %v7282 = vpop.f32.mrb[0].mxu0
  %v7283 = vadd.f32 %v7218, %v7282
  %v7284 = vpop.f32.mrb[0].mxu0
  %v7285 = vpop.f32.mrb[0].mxu0
  %v7286 = vadd.f32 %v7221, %v7285
  %v7287 = vpop.f32.mrb[0].mxu0
  %7288 = vdwg.mxu0
  %v7289 = vpack.c.bf16 %v7262, %v7259
  %v7290 = vpack.c.bf16 %v7270, %v7267
  %v7291 = vpack.c.bf16 %v7278, %v7275
  %v7292 = vpack.c.bf16 %v7286, %v7283
  %v7293 = vld [vmem:[%s4] sm:$0xff]
  %v7294 = vld [vmem:[%s4 + $0x8] sm:$0xf]
  %v7295 = vld [vmem:[%s4 + $0xc] sm:$0xff]
  %v7296 = vld [vmem:[%s4 + $0x14] sm:$0xf]
  %v7297 = vld [vmem:[%s4 + $0x18] sm:$0xff]
  %v7298 = vld [vmem:[%s4 + $0x20] sm:$0xf]
  %v7299 = vld [vmem:[%s4 + $0x24] sm:$0xff]
  %v7300 = vld [vmem:[%s4 + $0x2c] sm:$0xf]
  %v7301 = vld [vmem:[%s4 + $0x30] sm:$0xff]
  %v7302 = vld [vmem:[%s4 + $0x38] sm:$0xf]
  %v7303 = vld [vmem:[%s4 + $0x3c] sm:$0xff]
  %v7304 = vld [vmem:[%s4 + $0x44] sm:$0xf]
  %v7305 = vld [vmem:[%s4 + $0x48] sm:$0xff]
  %v7306 = vld [vmem:[%s4 + $0x50] sm:$0xf]
  %v7307 = vld [vmem:[%s4 + $0x54] sm:$0xff]
  %v7308 = vld [vmem:[%s4 + $0x5c] sm:$0xf]
  %v7309 = vld [vmem:[%s4 + $0x60] sm:$0xff]
  %v7310 = vld [vmem:[%s4 + $0x68] sm:$0xf]
  %v7311 = vld [vmem:[%s4 + $0x6c] sm:$0xff]
  %v7312 = vld [vmem:[%s4 + $0x74] sm:$0xf]
  %v7313 = vld [vmem:[%s4 + $0x78] sm:$0xff]
  %v7314 = vld [vmem:[%s4 + $0x80] sm:$0xf]
  %v7315 = vld [vmem:[%s4 + $0x84] sm:$0xff]
  %v7316 = vld [vmem:[%s4 + $0x8c] sm:$0xf]
  %v7317 = vld [vmem:[%s4 + $0x90] sm:$0xff]
  %v7318 = vld [vmem:[%s4 + $0x98] sm:$0xf]
  %v7319 = vld [vmem:[%s4 + $0x9c] sm:$0xff]
  %v7320 = vld [vmem:[%s4 + $0xa4] sm:$0xf]
  %v7321 = vld [vmem:[%s4 + $0xa8] sm:$0xff]
  %v7322 = vld [vmem:[%s4 + $0xb0] sm:$0xf]
  %v7323 = vld [vmem:[%s4 + $0xb4] sm:$0xff]
  %v7324 = vld [vmem:[%s4 + $0xbc] sm:$0xf]
  %v7325 = vld [vmem:[%s5] sm:$0x7]
  %v7327 = vlaneseq
  %v7328 = vshrl.u32 %v7327, 7
  %v7329 = vsub.s32 0, %v7328
  %v7330 = vrot.slane %v7325, %v7329
  %v7331 = vlaneseq
  %v7332 = vshrl.u32 %v7331, 7
  %v7333 = vsub.s32 1, %v7332
  %v7334 = vrot.slane %v7325, %v7333
  %v7335 = vlaneseq
  %v7336 = vshrl.u32 %v7335, 7
  %v7337 = vsub.s32 2, %v7336
  %v7338 = vrot.slane %v7325, %v7337
  %v7374 = vunpack.c.l.b16 %v7293
  %v7375 = vunpack.c.h.b16 %v7293
  %v7376 = vunpack.c.l.b16 %v7294
  %v7377 = vunpack.c.l.b16 %v7295
  %v7378 = vunpack.c.h.b16 %v7295
  %v7379 = vunpack.c.l.b16 %v7296
  %v7380 = vunpack.c.l.b16 %v7297
  %v7381 = vunpack.c.h.b16 %v7297
  %v7382 = vunpack.c.l.b16 %v7298
  %v7383 = vunpack.c.l.b16 %v7299
  %v7384 = vunpack.c.h.b16 %v7299
  %v7385 = vunpack.c.l.b16 %v7300
  %v7386 = vunpack.c.l.b16 %v7301
  %v7387 = vunpack.c.h.b16 %v7301
  %v7388 = vunpack.c.l.b16 %v7302
  %v7389 = vunpack.c.l.b16 %v7303
  %v7390 = vunpack.c.h.b16 %v7303
  %v7391 = vunpack.c.l.b16 %v7304
  %v7392 = vunpack.c.l.b16 %v7305
  %v7393 = vunpack.c.h.b16 %v7305
  %v7394 = vunpack.c.l.b16 %v7306
  %v7395 = vunpack.c.l.b16 %v7307
  %v7396 = vunpack.c.h.b16 %v7307
  %v7397 = vunpack.c.l.b16 %v7308
  %v7398 = vunpack.c.l.b16 %v7309
  %v7399 = vunpack.c.h.b16 %v7309
  %v7400 = vunpack.c.l.b16 %v7310
  %v7401 = vunpack.c.l.b16 %v7311
  %v7402 = vunpack.c.h.b16 %v7311
  %v7403 = vunpack.c.l.b16 %v7312
  %v7404 = vunpack.c.l.b16 %v7313
  %v7405 = vunpack.c.h.b16 %v7313
  %v7406 = vunpack.c.l.b16 %v7314
  %v7407 = vunpack.c.l.b16 %v7315
  %v7408 = vunpack.c.h.b16 %v7315
  %v7409 = vunpack.c.l.b16 %v7316
  %v7410 = vunpack.c.l.b16 %v7317
  %v7411 = vunpack.c.h.b16 %v7317
  %v7412 = vunpack.c.l.b16 %v7318
  %v7413 = vunpack.c.l.b16 %v7319
  %v7414 = vunpack.c.h.b16 %v7319
  %v7415 = vunpack.c.l.b16 %v7320
  %v7416 = vunpack.c.l.b16 %v7321
  %v7417 = vunpack.c.h.b16 %v7321
  %v7418 = vunpack.c.l.b16 %v7322
  %v7419 = vunpack.c.l.b16 %v7323
  %v7420 = vunpack.c.h.b16 %v7323
  %v7421 = vunpack.c.l.b16 %v7324
  %v7422 = vpack.c.b16 %v7377, %v7374
  %v7423 = vpack.c.b16 %v7378, %v7375
  %v7424 = vpack.c.b16 %v7379, %v7376
  %v7425 = vpack.c.b16 %v7383, %v7380
  %v7426 = vpack.c.b16 %v7384, %v7381
  %v7427 = vpack.c.b16 %v7385, %v7382
  %v7428 = vpack.c.b16 %v7389, %v7386
  %v7429 = vpack.c.b16 %v7390, %v7387
  %v7430 = vpack.c.b16 %v7391, %v7388
  %v7431 = vpack.c.b16 %v7395, %v7392
  %v7432 = vpack.c.b16 %v7396, %v7393
  %v7433 = vpack.c.b16 %v7397, %v7394
  %v7434 = vpack.c.b16 %v7401, %v7398
  %v7435 = vpack.c.b16 %v7402, %v7399
  %v7436 = vpack.c.b16 %v7403, %v7400
  %v7437 = vpack.c.b16 %v7407, %v7404
  %v7438 = vpack.c.b16 %v7408, %v7405
  %v7439 = vpack.c.b16 %v7409, %v7406
  %v7440 = vpack.c.b16 %v7413, %v7410
  %v7441 = vpack.c.b16 %v7414, %v7411
  %v7442 = vpack.c.b16 %v7415, %v7412
  %v7443 = vpack.c.b16 %v7419, %v7416
  %v7444 = vpack.c.b16 %v7420, %v7417
  %v7445 = vpack.c.b16 %v7421, %v7418
  %7470 = vmatprep.subr.bf16.mxu0 %v7423
  %7471 = vmatpush1.bf16.msra.mxu0 %v7422
  %7472 = vmatprep.subr.bf16.mxu0 %v7426
  %7473 = vmatpush1.bf16.msra.mxu0 %v7425
  %7474 = vmatprep.subr.bf16.mxu0 %v7429
  %7475 = vmatpush1.bf16.msra.mxu0 %v7428
  %7476 = vmatprep.subr.bf16.mxu0 %v7432
  %7477 = vmatpush1.bf16.msra.mxu0 %v7431
  %7478 = vmatprep.subr.bf16.mxu0 %v7435
  %7479 = vmatpush1.bf16.msra.mxu0 %v7434
  %7480 = vmatprep.subr.bf16.mxu0 %v7438
  %7481 = vmatpush1.bf16.msra.mxu0 %v7437
  %7482 = vmatprep.subr.bf16.mxu0 %v7441
  %7483 = vmatpush1.bf16.msra.mxu0 %v7440
  %7484 = vmatprep.subr.bf16.mxu0 %v7444
  %7485 = vmatpush1.bf16.msra.mxu0 %v7443
  %7486 = vmatprep.subr.bf16.mxu0 0
  %7487 = vmatpush1.bf16.msra.mxu0 0
  %7488 = vmatprep.subr.bf16.mxu0 0
  %7489 = vmatpush1.bf16.msra.mxu0 0
  %7490 = vmatprep.subr.bf16.mxu0 0
  %7491 = vmatpush1.bf16.msra.mxu0 0
  %7492 = vmatprep.subr.bf16.mxu0 0
  %7493 = vmatpush1.bf16.msra.mxu0 0
  %7494 = vmatprep.subr.bf16.mxu0 0
  %7495 = vmatpush1.bf16.msra.mxu0 0
  %7496 = vmatprep.subr.bf16.mxu0 0
  %7497 = vmatpush1.bf16.msra.mxu0 0
  %7498 = vmatprep.subr.bf16.mxu0 0
  %7499 = vmatpush1.bf16.msra.mxu0 0
  %7500 = vmatprep.subr.bf16.mxu0 0
  %7501 = vmatpush1.bf16.msra.mxu0 0
  %7502 = vmatprep.mubr.bf16.mxu0 0
  %7503 = vmatmul.mubr.bf16.gmra.mrb[0].mxu0 %v7289
  %v7504 = vpop.f32.mrb[0].mxu0
  %v7505 = vadd.f32 %v7330, %v7504
  %v7506 = vpop.f32.mrb[0].mxu0
  %v7507 = vadd.f32 %v7334, %v7506
  %v7508 = vpop.f32.mrb[0].mxu0
  %v7509 = vadd.f32 %v7330, %v7508
  %v7510 = vpop.f32.mrb[0].mxu0
  %v7511 = vadd.f32 %v7334, %v7510
  %7512 = vmatprep.mubr.bf16.mxu0 0
  %7513 = vmatmul.mubr.bf16.gmra.mrb[0].mxu0 %v7290
  %v7514 = vpop.f32.mrb[0].mxu0
  %v7515 = vadd.f32 %v7330, %v7514
  %v7516 = vpop.f32.mrb[0].mxu0
  %v7517 = vadd.f32 %v7334, %v7516
  %v7518 = vpop.f32.mrb[0].mxu0
  %v7519 = vadd.f32 %v7330, %v7518
  %v7520 = vpop.f32.mrb[0].mxu0
  %v7521 = vadd.f32 %v7334, %v7520
  %7522 = vmatprep.mubr.bf16.mxu0 0
  %7523 = vmatmul.mubr.bf16.gmra.mrb[0].mxu0 %v7291
  %v7524 = vpop.f32.mrb[0].mxu0
  %v7525 = vadd.f32 %v7330, %v7524
  %v7526 = vpop.f32.mrb[0].mxu0
  %v7527 = vadd.f32 %v7334, %v7526
  %v7528 = vpop.f32.mrb[0].mxu0
  %v7529 = vadd.f32 %v7330, %v7528
  %v7530 = vpop.f32.mrb[0].mxu0
  %v7531 = vadd.f32 %v7334, %v7530
  %7532 = vmatprep.mubr.bf16.mxu0 0
  %7533 = vmatmul.mubr.bf16.gmra.mrb[0].mxu0 %v7292
  %v7534 = vpop.f32.mrb[0].mxu0
  %v7535 = vadd.f32 %v7330, %v7534
  %v7536 = vpop.f32.mrb[0].mxu0
  %v7537 = vadd.f32 %v7334, %v7536
  %v7538 = vpop.f32.mrb[0].mxu0
  %v7539 = vadd.f32 %v7330, %v7538
  %v7540 = vpop.f32.mrb[0].mxu0
  %v7541 = vadd.f32 %v7334, %v7540
  %7542 = vdwg.mxu0
  %7543 = vmatprep.subr.bf16.mxu0 0
  %7544 = vmatpush1.bf16.msra.mxu0 %v7424
  %7545 = vmatprep.subr.bf16.mxu0 0
  %7546 = vmatpush1.bf16.msra.mxu0 %v7427
  %7547 = vmatprep.subr.bf16.mxu0 0
  %7548 = vmatpush1.bf16.msra.mxu0 %v7430
  %7549 = vmatprep.subr.bf16.mxu0 0
  %7550 = vmatpush1.bf16.msra.mxu0 %v7433
  %7551 = vmatprep.subr.bf16.mxu0 0
  %7552 = vmatpush1.bf16.msra.mxu0 %v7436
  %7553 = vmatprep.subr.bf16.mxu0 0
  %7554 = vmatpush1.bf16.msra.mxu0 %v7439
  %7555 = vmatprep.subr.bf16.mxu0 0
  %7556 = vmatpush1.bf16.msra.mxu0 %v7442
  %7557 = vmatprep.subr.bf16.mxu0 0
  %7558 = vmatpush1.bf16.msra.mxu0 %v7445
  %7559 = vmatprep.subr.bf16.mxu0 0
  %7560 = vmatpush1.bf16.msra.mxu0 0
  %7561 = vmatprep.subr.bf16.mxu0 0
  %7562 = vmatpush1.bf16.msra.mxu0 0
  %7563 = vmatprep.subr.bf16.mxu0 0
  %7564 = vmatpush1.bf16.msra.mxu0 0
  %7565 = vmatprep.subr.bf16.mxu0 0
  %7566 = vmatpush1.bf16.msra.mxu0 0
  %7567 = vmatprep.subr.bf16.mxu0 0
  %7568 = vmatpush1.bf16.msra.mxu0 0
  %7569 = vmatprep.subr.bf16.mxu0 0
  %7570 = vmatpush1.bf16.msra.mxu0 0
  %7571 = vmatprep.subr.bf16.mxu0 0
  %7572 = vmatpush1.bf16.msra.mxu0 0
  %7573 = vmatprep.subr.bf16.mxu0 0
  %7574 = vmatpush1.bf16.msra.mxu0 0
  %7575 = vmatprep.mubr.bf16.mxu0 0
  %7576 = vmatmul.mubr.bf16.gmra.mrb[0].mxu0 %v7289
  %v7577 = vpop.f32.mrb[0].mxu0
  %v7578 = vadd.f32 %v7338, %v7577
  %v7579 = vpop.f32.mrb[0].mxu0
  %v7580 = vpop.f32.mrb[0].mxu0
  %v7581 = vadd.f32 %v7338, %v7580
  %v7582 = vpop.f32.mrb[0].mxu0
  %7583 = vmatprep.mubr.bf16.mxu0 0
  %7584 = vmatmul.mubr.bf16.gmra.mrb[0].mxu0 %v7290
  %v7585 = vpop.f32.mrb[0].mxu0
  %v7586 = vadd.f32 %v7338, %v7585
  %v7587 = vpop.f32.mrb[0].mxu0
  %v7588 = vpop.f32.mrb[0].mxu0
  %v7589 = vadd.f32 %v7338, %v7588
  %v7590 = vpop.f32.mrb[0].mxu0
  %7591 = vmatprep.mubr.bf16.mxu0 0
  %7592 = vmatmul.mubr.bf16.gmra.mrb[0].mxu0 %v7291
  %v7593 = vpop.f32.mrb[0].mxu0
  %v7594 = vadd.f32 %v7338, %v7593
  %v7595 = vpop.f32.mrb[0].mxu0
  %v7596 = vpop.f32.mrb[0].mxu0
  %v7597 = vadd.f32 %v7338, %v7596
  %v7598 = vpop.f32.mrb[0].mxu0
  %7599 = vmatprep.mubr.bf16.mxu0 0
  %7600 = vmatmul.mubr.bf16.gmra.mrb[0].mxu0 %v7292
  %v7601 = vpop.f32.mrb[0].mxu0
  %v7602 = vadd.f32 %v7338, %v7601
  %v7603 = vpop.f32.mrb[0].mxu0
  %v7604 = vpop.f32.mrb[0].mxu0
  %v7605 = vadd.f32 %v7338, %v7604
  %v7606 = vpop.f32.mrb[0].mxu0
  %7607 = vdwg.mxu0
  %7608 = vst [vmem:[#allocation2] sm:$0xff] %v7505
  %7609 = vst [vmem:[#allocation2 + $0x8] sm:$0xff] %v7507
  %7610 = vst [vmem:[#allocation2 + $0x10] sm:$0xff] %v7578
  %7611 = vst [vmem:[#allocation2 + $0x18] sm:$0xff] %v7509
  %7612 = vst [vmem:[#allocation2 + $0x20] sm:$0xff] %v7511
  %7613 = vst [vmem:[#allocation2 + $0x28] sm:$0xff] %v7581
  %7614 = vst [vmem:[#allocation2 + $0x30] sm:$0xff] %v7515
  %7615 = vst [vmem:[#allocation2 + $0x38] sm:$0xff] %v7517
  %7616 = vst [vmem:[#allocation2 + $0x40] sm:$0xff] %v7586
  %7617 = vst [vmem:[#allocation2 + $0x48] sm:$0xff] %v7519
  %7618 = vst [vmem:[#allocation2 + $0x50] sm:$0xff] %v7521
  %7619 = vst [vmem:[#allocation2 + $0x58] sm:$0xff] %v7589
  %7620 = vst [vmem:[#allocation2 + $0x60] sm:$0xff] %v7525
  %7621 = vst [vmem:[#allocation2 + $0x68] sm:$0xff] %v7527
  %7622 = vst [vmem:[#allocation2 + $0x70] sm:$0xff] %v7594
  %7623 = vst [vmem:[#allocation2 + $0x78] sm:$0xff] %v7529
  %7624 = vst [vmem:[#allocation2 + $0x80] sm:$0xff] %v7531
  %7625 = vst [vmem:[#allocation2 + $0x88] sm:$0xff] %v7597
  %7626 = vst [vmem:[#allocation2 + $0x90] sm:$0xff] %v7535
  %7627 = vst [vmem:[#allocation2 + $0x98] sm:$0xff] %v7537
  %7628 = vst [vmem:[#allocation2 + $0xa0] sm:$0xff] %v7602
  %7629 = vst [vmem:[#allocation2 + $0xa8] sm:$0xff] %v7539
  %7630 = vst [vmem:[#allocation2 + $0xb0] sm:$0xff] %v7541
  %7631 = vst [vmem:[#allocation2 + $0xb8] sm:$0xff] %v7605
  %v7632 = vld [vmem:[%s7] sm:$0x7]
  %v7634 = vlaneseq
  %v7635 = vshrl.u32 %v7634, 7
  %v7636 = vsub.s32 0, %v7635
  %v7637 = vrot.slane %v7632, %v7636
  %v7638 = vlaneseq
  %v7639 = vshrl.u32 %v7638, 7
  %v7640 = vsub.s32 1, %v7639
  %v7641 = vrot.slane %v7632, %v7640
  %v7642 = vlaneseq
  %v7643 = vshrl.u32 %v7642, 7
  %v7644 = vsub.s32 2, %v7643
  %v7645 = vrot.slane %v7632, %v7644
  %v7649 = vld [vmem:[#allocation2] sm:$0xff]
  %v7650 = vld [vmem:[#allocation2 + $0x8] sm:$0xff]
  %v7651 = vld [vmem:[#allocation2 + $0x10] sm:$0xff]
  %v7652 = vld [vmem:[%s6] sm:$0xff]
  %v7653 = vld [vmem:[%s6 + $0x8] sm:$0xf]
  %v7654 = vld [vmem:[%s6 + $0xc] sm:$0xff]
  %v7655 = vld [vmem:[%s6 + $0x14] sm:$0xf]
  %v7656 = vld [vmem:[%s6 + $0x18] sm:$0xff]
  %v7657 = vld [vmem:[%s6 + $0x20] sm:$0xf]
  %v7658 = vld [vmem:[%s6 + $0x24] sm:$0xff]
  %v7659 = vld [vmem:[%s6 + $0x2c] sm:$0xf]
  %v7660 = vld [vmem:[%s6 + $0x30] sm:$0xff]
  %v7661 = vld [vmem:[%s6 + $0x38] sm:$0xf]
  %v7662 = vld [vmem:[%s6 + $0x3c] sm:$0xff]
  %v7663 = vld [vmem:[%s6 + $0x44] sm:$0xf]
  %v7664 = vld [vmem:[%s6 + $0x48] sm:$0xff]
  %v7665 = vld [vmem:[%s6 + $0x50] sm:$0xf]
  %v7666 = vld [vmem:[%s6 + $0x54] sm:$0xff]
  %v7667 = vld [vmem:[%s6 + $0x5c] sm:$0xf]
  %v7668 = vld [vmem:[%s6 + $0x60] sm:$0xff]
  %v7669 = vld [vmem:[%s6 + $0x68] sm:$0xf]
  %v7670 = vld [vmem:[%s6 + $0x6c] sm:$0xff]
  %v7671 = vld [vmem:[%s6 + $0x74] sm:$0xf]
  %v7672 = vld [vmem:[%s6 + $0x78] sm:$0xff]
  %v7673 = vld [vmem:[%s6 + $0x80] sm:$0xf]
  %v7674 = vld [vmem:[%s6 + $0x84] sm:$0xff]
  %v7675 = vld [vmem:[%s6 + $0x8c] sm:$0xf]
  %v7676 = vld [vmem:[%s6 + $0x90] sm:$0xff]
  %v7677 = vld [vmem:[%s6 + $0x98] sm:$0xf]
  %v7678 = vld [vmem:[%s6 + $0x9c] sm:$0xff]
  %v7679 = vld [vmem:[%s6 + $0xa4] sm:$0xf]
  %v7680 = vld [vmem:[%s6 + $0xa8] sm:$0xff]
  %v7681 = vld [vmem:[%s6 + $0xb0] sm:$0xf]
  %v7682 = vld [vmem:[%s6 + $0xb4] sm:$0xff]
  %v7683 = vld [vmem:[%s6 + $0xbc] sm:$0xf]
  %v7716 = vunpack.c.l.b16 %v7652
  %v7717 = vunpack.c.h.b16 %v7652
  %v7718 = vunpack.c.l.b16 %v7653
  %v7719 = vunpack.c.l.b16 %v7654
  %v7720 = vunpack.c.h.b16 %v7654
  %v7721 = vunpack.c.l.b16 %v7655
  %v7722 = vunpack.c.l.b16 %v7656
  %v7723 = vunpack.c.h.b16 %v7656
  %v7724 = vunpack.c.l.b16 %v7657
  %v7725 = vunpack.c.l.b16 %v7658
  %v7726 = vunpack.c.h.b16 %v7658
  %v7727 = vunpack.c.l.b16 %v7659
  %v7728 = vunpack.c.l.b16 %v7660
  %v7729 = vunpack.c.h.b16 %v7660
  %v7730 = vunpack.c.l.b16 %v7661
  %v7731 = vunpack.c.l.b16 %v7662
  %v7732 = vunpack.c.h.b16 %v7662
  %v7733 = vunpack.c.l.b16 %v7663
  %v7734 = vunpack.c.l.b16 %v7664
  %v7735 = vunpack.c.h.b16 %v7664
  %v7736 = vunpack.c.l.b16 %v7665
  %v7737 = vunpack.c.l.b16 %v7666
  %v7738 = vunpack.c.h.b16 %v7666
  %v7739 = vunpack.c.l.b16 %v7667
  %v7740 = vunpack.c.l.b16 %v7668
  %v7741 = vunpack.c.h.b16 %v7668
  %v7742 = vunpack.c.l.b16 %v7669
  %v7743 = vunpack.c.l.b16 %v7670
  %v7744 = vunpack.c.h.b16 %v7670
  %v7745 = vunpack.c.l.b16 %v7671
  %v7746 = vunpack.c.l.b16 %v7672
  %v7747 = vunpack.c.h.b16 %v7672
  %v7748 = vunpack.c.l.b16 %v7673
  %v7749 = vunpack.c.l.b16 %v7674
  %v7750 = vunpack.c.h.b16 %v7674
  %v7751 = vunpack.c.l.b16 %v7675
  %v7752 = vunpack.c.l.b16 %v7676
  %v7753 = vunpack.c.h.b16 %v7676
  %v7754 = vunpack.c.l.b16 %v7677
  %v7755 = vunpack.c.l.b16 %v7678
  %v7756 = vunpack.c.h.b16 %v7678
  %v7757 = vunpack.c.l.b16 %v7679
  %v7758 = vunpack.c.l.b16 %v7680
  %v7759 = vunpack.c.h.b16 %v7680
  %v7760 = vunpack.c.l.b16 %v7681
  %v7761 = vunpack.c.l.b16 %v7682
  %v7762 = vunpack.c.h.b16 %v7682
  %v7763 = vunpack.c.l.b16 %v7683
  %v7764 = vpack.c.b16 %v7719, %v7716
  %v7765 = vpack.c.b16 %v7720, %v7717
  %v7766 = vpack.c.b16 %v7721, %v7718
  %v7767 = vpack.c.b16 %v7725, %v7722
  %v7768 = vpack.c.b16 %v7726, %v7723
  %v7769 = vpack.c.b16 %v7727, %v7724
  %v7770 = vpack.c.b16 %v7731, %v7728
  %v7771 = vpack.c.b16 %v7732, %v7729
  %v7772 = vpack.c.b16 %v7733, %v7730
  %v7773 = vpack.c.b16 %v7737, %v7734
  %v7774 = vpack.c.b16 %v7738, %v7735
  %v7775 = vpack.c.b16 %v7739, %v7736
  %v7776 = vpack.c.b16 %v7743, %v7740
  %v7777 = vpack.c.b16 %v7744, %v7741
  %v7778 = vpack.c.b16 %v7745, %v7742
  %v7779 = vpack.c.b16 %v7749, %v7746
  %v7780 = vpack.c.b16 %v7750, %v7747
  %v7781 = vpack.c.b16 %v7751, %v7748
  %v7782 = vpack.c.b16 %v7755, %v7752
  %v7783 = vpack.c.b16 %v7756, %v7753
  %v7784 = vpack.c.b16 %v7757, %v7754
  %v7785 = vpack.c.b16 %v7761, %v7758
  %v7786 = vpack.c.b16 %v7762, %v7759
  %v7787 = vpack.c.b16 %v7763, %v7760
  %7812 = vmatprep.subr.bf16.mxu0 %v7765
  %7813 = vmatpush1.bf16.msra.mxu0 %v7764
  %7814 = vmatprep.subr.bf16.mxu0 %v7768
  %7815 = vmatpush1.bf16.msra.mxu0 %v7767
  %7816 = vmatprep.subr.bf16.mxu0 %v7771
  %7817 = vmatpush1.bf16.msra.mxu0 %v7770
  %7818 = vmatprep.subr.bf16.mxu0 %v7774
  %7819 = vmatpush1.bf16.msra.mxu0 %v7773
  %7820 = vmatprep.subr.bf16.mxu0 %v7777
  %7821 = vmatpush1.bf16.msra.mxu0 %v7776
  %7822 = vmatprep.subr.bf16.mxu0 %v7780
  %7823 = vmatpush1.bf16.msra.mxu0 %v7779
  %7824 = vmatprep.subr.bf16.mxu0 %v7783
  %7825 = vmatpush1.bf16.msra.mxu0 %v7782
  %7826 = vmatprep.subr.bf16.mxu0 %v7786
  %7827 = vmatpush1.bf16.msra.mxu0 %v7785
  %7828 = vmatprep.subr.bf16.mxu0 0
  %7829 = vmatpush1.bf16.msra.mxu0 0
  %7830 = vmatprep.subr.bf16.mxu0 0
  %7831 = vmatpush1.bf16.msra.mxu0 0
  %7832 = vmatprep.subr.bf16.mxu0 0
  %7833 = vmatpush1.bf16.msra.mxu0 0
  %7834 = vmatprep.subr.bf16.mxu0 0
  %7835 = vmatpush1.bf16.msra.mxu0 0
  %7836 = vmatprep.subr.bf16.mxu0 0
  %7837 = vmatpush1.bf16.msra.mxu0 0
  %7838 = vmatprep.subr.bf16.mxu0 0
  %7839 = vmatpush1.bf16.msra.mxu0 0
  %7840 = vmatprep.subr.bf16.mxu0 0
  %7841 = vmatpush1.bf16.msra.mxu0 0
  %7842 = vmatprep.subr.bf16.mxu0 0
  %7843 = vmatpush1.bf16.msra.mxu0 0
  %7844 = vmatprep.mubr.bf16.mxu0 0
  %7845 = vmatmul.mubr.bf16.gmra.mrb[0].mxu0 0
  %v7846 = vpop.f32.mrb[0].mxu0
  %v7847 = vadd.f32 %v7637, %v7846
  %v7848 = vpop.f32.mrb[0].mxu0
  %v7849 = vadd.f32 %v7641, %v7848
  %v7850 = vpop.f32.mrb[0].mxu0
  %v7851 = vpop.f32.mrb[0].mxu0
  %7852 = vdwg.mxu0
  %7853 = vmatprep.subr.bf16.mxu0 0
  %7854 = vmatpush1.bf16.msra.mxu0 %v7766
  %7855 = vmatprep.subr.bf16.mxu0 0
  %7856 = vmatpush1.bf16.msra.mxu0 %v7769
  %7857 = vmatprep.subr.bf16.mxu0 0
  %7858 = vmatpush1.bf16.msra.mxu0 %v7772
  %7859 = vmatprep.subr.bf16.mxu0 0
  %7860 = vmatpush1.bf16.msra.mxu0 %v7775
  %7861 = vmatprep.subr.bf16.mxu0 0
  %7862 = vmatpush1.bf16.msra.mxu0 %v7778
  %7863 = vmatprep.subr.bf16.mxu0 0
  %7864 = vmatpush1.bf16.msra.mxu0 %v7781
  %7865 = vmatprep.subr.bf16.mxu0 0
  %7866 = vmatpush1.bf16.msra.mxu0 %v7784
  %7867 = vmatprep.subr.bf16.mxu0 0
  %7868 = vmatpush1.bf16.msra.mxu0 %v7787
  %7869 = vmatprep.subr.bf16.mxu0 0
  %7870 = vmatpush1.bf16.msra.mxu0 0
  %7871 = vmatprep.subr.bf16.mxu0 0
  %7872 = vmatpush1.bf16.msra.mxu0 0
  %7873 = vmatprep.subr.bf16.mxu0 0
  %7874 = vmatpush1.bf16.msra.mxu0 0
  %7875 = vmatprep.subr.bf16.mxu0 0
  %7876 = vmatpush1.bf16.msra.mxu0 0
  %7877 = vmatprep.subr.bf16.mxu0 0
  %7878 = vmatpush1.bf16.msra.mxu0 0
  %7879 = vmatprep.subr.bf16.mxu0 0
  %7880 = vmatpush1.bf16.msra.mxu0 0
  %7881 = vmatprep.subr.bf16.mxu0 0
  %7882 = vmatpush1.bf16.msra.mxu0 0
  %7883 = vmatprep.subr.bf16.mxu0 0
  %7884 = vmatpush1.bf16.msra.mxu0 0
  %7885 = vmatprep.mubr.bf16.mxu0 0
  %7886 = vmatmul.mubr.bf16.gmra.mrb[0].mxu0 0
  %v7887 = vpop.f32.mrb[0].mxu0
  %v7888 = vadd.f32 %v7645, %v7887
  %v7889 = vpop.f32.mrb[0].mxu0
  %v7890 = vpop.f32.mrb[0].mxu0
  %v7891 = vpop.f32.mrb[0].mxu0
  %7892 = vdwg.mxu0
  %v7893 = vadd.f32 %v7649, %v7847
  %v7894 = vxor.u32 %v7893, 2147483648
  %v7895 = vmul.f32 %v7894, 1.442695
  %v7896 = vpow.pop %v7895
  %v7897 = vadd.f32 %v7896, 1.0
  %v7898 = vrcp.pop %v7897
  %v7899 = vmul.f32 1.0, %v7898
  %v7900 = vadd.f32 %v7650, %v7849
  %v7901 = vxor.u32 %v7900, 2147483648
  %v7902 = vmul.f32 %v7901, 1.442695
  %v7903 = vpow.pop %v7902
  %v7904 = vadd.f32 %v7903, 1.0
  %v7905 = vrcp.pop %v7904
  %v7906 = vmul.f32 1.0, %v7905
  %v7907 = vmul.f32 %v7899, %v7888
  %v7908 = vadd.f32 %v7651, %v7907
  %v7909 = vtanh.pop %v7908
  %v7910 = vsub.f32 1.0, %v7906
  %v7911 = vmul.f32 %v7910, %v7909
  %v7912 = vmul.f32 %v7906, 0.0
  %v7913 = vadd.f32 %v7911, %v7912
  %s7914 = scalar_lea.vmem [#allocation2], 24
  %v7915 = vld [vmem:[%s7914] sm:$0xff]
  %v7916 = vld [vmem:[%s7914 + $0x8] sm:$0xff]
  %v7917 = vld [vmem:[%s7914 + $0x10] sm:$0xff]
  %v7918 = vpack.c.bf16 %v7913, %v7913
  %7919 = vmatprep.subr.bf16.mxu0 %v7765
  %7920 = vmatpush1.bf16.msra.mxu0 %v7764
  %7921 = vmatprep.subr.bf16.mxu0 %v7768
  %7922 = vmatpush1.bf16.msra.mxu0 %v7767
  %7923 = vmatprep.subr.bf16.mxu0 %v7771
  %7924 = vmatpush1.bf16.msra.mxu0 %v7770
  %7925 = vmatprep.subr.bf16.mxu0 %v7774
  %7926 = vmatpush1.bf16.msra.mxu0 %v7773
  %7927 = vmatprep.subr.bf16.mxu0 %v7777
  %7928 = vmatpush1.bf16.msra.mxu0 %v7776
  %7929 = vmatprep.subr.bf16.mxu0 %v7780
  %7930 = vmatpush1.bf16.msra.mxu0 %v7779
  %7931 = vmatprep.subr.bf16.mxu0 %v7783
  %7932 = vmatpush1.bf16.msra.mxu0 %v7782
  %7933 = vmatprep.subr.bf16.mxu0 %v7786
  %7934 = vmatpush1.bf16.msra.mxu0 %v7785
  %7935 = vmatprep.subr.bf16.mxu0 0
  %7936 = vmatpush1.bf16.msra.mxu0 0
  %7937 = vmatprep.subr.bf16.mxu0 0
  %7938 = vmatpush1.bf16.msra.mxu0 0
  %7939 = vmatprep.subr.bf16.mxu0 0
  %7940 = vmatpush1.bf16.msra.mxu0 0
  %7941 = vmatprep.subr.bf16.mxu0 0
  %7942 = vmatpush1.bf16.msra.mxu0 0
  %7943 = vmatprep.subr.bf16.mxu0 0
  %7944 = vmatpush1.bf16.msra.mxu0 0
  %7945 = vmatprep.subr.bf16.mxu0 0
  %7946 = vmatpush1.bf16.msra.mxu0 0
  %7947 = vmatprep.subr.bf16.mxu0 0
  %7948 = vmatpush1.bf16.msra.mxu0 0
  %7949 = vmatprep.subr.bf16.mxu0 0
  %7950 = vmatpush1.bf16.msra.mxu0 0
  %7951 = vmatprep.mubr.bf16.mxu0 0
  %7952 = vmatmul.mubr.bf16.gmra.mrb[0].mxu0 %v7918
  %v7953 = vpop.f32.mrb[0].mxu0
  %v7954 = vadd.f32 %v7637, %v7953
  %v7955 = vpop.f32.mrb[0].mxu0
  %v7956 = vadd.f32 %v7641, %v7955
  %v7957 = vpop.f32.mrb[0].mxu0
  %v7958 = vpop.f32.mrb[0].mxu0
  %7959 = vdwg.mxu0
  %7960 = vmatprep.subr.bf16.mxu0 0
  %7961 = vmatpush1.bf16.msra.mxu0 %v7766
  %7962 = vmatprep.subr.bf16.mxu0 0
  %7963 = vmatpush1.bf16.msra.mxu0 %v7769
  %7964 = vmatprep.subr.bf16.mxu0 0
  %7965 = vmatpush1.bf16.msra.mxu0 %v7772
  %7966 = vmatprep.subr.bf16.mxu0 0
  %7967 = vmatpush1.bf16.msra.mxu0 %v7775
  %7968 = vmatprep.subr.bf16.mxu0 0
  %7969 = vmatpush1.bf16.msra.mxu0 %v7778
  %7970 = vmatprep.subr.bf16.mxu0 0
  %7971 = vmatpush1.bf16.msra.mxu0 %v7781
  %7972 = vmatprep.subr.bf16.mxu0 0
  %7973 = vmatpush1.bf16.msra.mxu0 %v7784
  %7974 = vmatprep.subr.bf16.mxu0 0
  %7975 = vmatpush1.bf16.msra.mxu0 %v7787
  %7976 = vmatprep.subr.bf16.mxu0 0
  %7977 = vmatpush1.bf16.msra.mxu0 0
  %7978 = vmatprep.subr.bf16.mxu0 0
  %7979 = vmatpush1.bf16.msra.mxu0 0
  %7980 = vmatprep.subr.bf16.mxu0 0
  %7981 = vmatpush1.bf16.msra.mxu0 0
  %7982 = vmatprep.subr.bf16.mxu0 0
  %7983 = vmatpush1.bf16.msra.mxu0 0
  %7984 = vmatprep.subr.bf16.mxu0 0
  %7985 = vmatpush1.bf16.msra.mxu0 0
  %7986 = vmatprep.subr.bf16.mxu0 0
  %7987 = vmatpush1.bf16.msra.mxu0 0
  %7988 = vmatprep.subr.bf16.mxu0 0
  %7989 = vmatpush1.bf16.msra.mxu0 0
  %7990 = vmatprep.subr.bf16.mxu0 0
  %7991 = vmatpush1.bf16.msra.mxu0 0
  %7992 = vmatprep.mubr.bf16.mxu0 0
  %7993 = vmatmul.mubr.bf16.gmra.mrb[0].mxu0 %v7918
  %v7994 = vpop.f32.mrb[0].mxu0
  %v7995 = vadd.f32 %v7645, %v7994
  %v7996 = vpop.f32.mrb[0].mxu0
  %v7997 = vpop.f32.mrb[0].mxu0
  %v7998 = vpop.f32.mrb[0].mxu0
  %7999 = vdwg.mxu0
  %v8000 = vadd.f32 %v7915, %v7954
  %v8001 = vxor.u32 %v8000, 2147483648
  %v8002 = vmul.f32 %v8001, 1.442695
  %v8003 = vpow.pop %v8002
  %v8004 = vadd.f32 %v8003, 1.0
  %v8005 = vrcp.pop %v8004
  %v8006 = vmul.f32 1.0, %v8005
  %v8007 = vadd.f32 %v7916, %v7956
  %v8008 = vxor.u32 %v8007, 2147483648
  %v8009 = vmul.f32 %v8008, 1.442695
  %v8010 = vpow.pop %v8009
  %v8011 = vadd.f32 %v8010, 1.0
  %v8012 = vrcp.pop %v8011
  %v8013 = vmul.f32 1.0, %v8012
  %v8014 = vmul.f32 %v8006, %v7995
  %v8015 = vadd.f32 %v7917, %v8014
  %v8016 = vtanh.pop %v8015
  %v8017 = vsub.f32 1.0, %v8013
  %v8018 = vmul.f32 %v8017, %v8016
  %v8019 = vmul.f32 %v8013, %v7913
  %v8020 = vadd.f32 %v8018, %v8019
  %s8021 = scalar_lea.vmem [#allocation2], 48
  %v8022 = vld [vmem:[%s8021] sm:$0xff]
  %v8023 = vld [vmem:[%s8021 + $0x8] sm:$0xff]
  %v8024 = vld [vmem:[%s8021 + $0x10] sm:$0xff]
  %v8025 = vpack.c.bf16 %v8020, %v8020
  %8026 = vmatprep.subr.bf16.mxu0 %v7765
  %8027 = vmatpush1.bf16.msra.mxu0 %v7764
  %8028 = vmatprep.subr.bf16.mxu0 %v7768
  %8029 = vmatpush1.bf16.msra.mxu0 %v7767
  %8030 = vmatprep.subr.bf16.mxu0 %v7771
  %8031 = vmatpush1.bf16.msra.mxu0 %v7770
  %8032 = vmatprep.subr.bf16.mxu0 %v7774
  %8033 = vmatpush1.bf16.msra.mxu0 %v7773
  %8034 = vmatprep.subr.bf16.mxu0 %v7777
  %8035 = vmatpush1.bf16.msra.mxu0 %v7776
  %8036 = vmatprep.subr.bf16.mxu0 %v7780
  %8037 = vmatpush1.bf16.msra.mxu0 %v7779
  %8038 = vmatprep.subr.bf16.mxu0 %v7783
  %8039 = vmatpush1.bf16.msra.mxu0 %v7782
  %8040 = vmatprep.subr.bf16.mxu0 %v7786
  %8041 = vmatpush1.bf16.msra.mxu0 %v7785
  %8042 = vmatprep.subr.bf16.mxu0 0
  %8043 = vmatpush1.bf16.msra.mxu0 0
  %8044 = vmatprep.subr.bf16.mxu0 0
  %8045 = vmatpush1.bf16.msra.mxu0 0
  %8046 = vmatprep.subr.bf16.mxu0 0
  %8047 = vmatpush1.bf16.msra.mxu0 0
  %8048 = vmatprep.subr.bf16.mxu0 0
  %8049 = vmatpush1.bf16.msra.mxu0 0
  %8050 = vmatprep.subr.bf16.mxu0 0
  %8051 = vmatpush1.bf16.msra.mxu0 0
  %8052 = vmatprep.subr.bf16.mxu0 0
  %8053 = vmatpush1.bf16.msra.mxu0 0
  %8054 = vmatprep.subr.bf16.mxu0 0
  %8055 = vmatpush1.bf16.msra.mxu0 0
  %8056 = vmatprep.subr.bf16.mxu0 0
  %8057 = vmatpush1.bf16.msra.mxu0 0
  %8058 = vmatprep.mubr.bf16.mxu0 0
  %8059 = vmatmul.mubr.bf16.gmra.mrb[0].mxu0 %v8025
  %v8060 = vpop.f32.mrb[0].mxu0
  %v8061 = vadd.f32 %v7637, %v8060
  %v8062 = vpop.f32.mrb[0].mxu0
  %v8063 = vadd.f32 %v7641, %v8062
  %v8064 = vpop.f32.mrb[0].mxu0
  %v8065 = vpop.f32.mrb[0].mxu0
  %8066 = vdwg.mxu0
  %8067 = vmatprep.subr.bf16.mxu0 0
  %8068 = vmatpush1.bf16.msra.mxu0 %v7766
  %8069 = vmatprep.subr.bf16.mxu0 0
  %8070 = vmatpush1.bf16.msra.mxu0 %v7769
  %8071 = vmatprep.subr.bf16.mxu0 0
  %8072 = vmatpush1.bf16.msra.mxu0 %v7772
  %8073 = vmatprep.subr.bf16.mxu0 0
  %8074 = vmatpush1.bf16.msra.mxu0 %v7775
  %8075 = vmatprep.subr.bf16.mxu0 0
  %8076 = vmatpush1.bf16.msra.mxu0 %v7778
  %8077 = vmatprep.subr.bf16.mxu0 0
  %8078 = vmatpush1.bf16.msra.mxu0 %v7781
  %8079 = vmatprep.subr.bf16.mxu0 0
  %8080 = vmatpush1.bf16.msra.mxu0 %v7784
  %8081 = vmatprep.subr.bf16.mxu0 0
  %8082 = vmatpush1.bf16.msra.mxu0 %v7787
  %8083 = vmatprep.subr.bf16.mxu0 0
  %8084 = vmatpush1.bf16.msra.mxu0 0
  %8085 = vmatprep.subr.bf16.mxu0 0
  %8086 = vmatpush1.bf16.msra.mxu0 0
  %8087 = vmatprep.subr.bf16.mxu0 0
  %8088 = vmatpush1.bf16.msra.mxu0 0
  %8089 = vmatprep.subr.bf16.mxu0 0
  %8090 = vmatpush1.bf16.msra.mxu0 0
  %8091 = vmatprep.subr.bf16.mxu0 0
  %8092 = vmatpush1.bf16.msra.mxu0 0
  %8093 = vmatprep.subr.bf16.mxu0 0
  %8094 = vmatpush1.bf16.msra.mxu0 0
  %8095 = vmatprep.subr.bf16.mxu0 0
  %8096 = vmatpush1.bf16.msra.mxu0 0
  %8097 = vmatprep.subr.bf16.mxu0 0
  %8098 = vmatpush1.bf16.msra.mxu0 0
  %8099 = vmatprep.mubr.bf16.mxu0 0
  %8100 = vmatmul.mubr.bf16.gmra.mrb[0].mxu0 %v8025
  %v8101 = vpop.f32.mrb[0].mxu0
  %v8102 = vadd.f32 %v7645, %v8101
  %v8103 = vpop.f32.mrb[0].mxu0
  %v8104 = vpop.f32.mrb[0].mxu0
  %v8105 = vpop.f32.mrb[0].mxu0
  %8106 = vdwg.mxu0
  %v8107 = vadd.f32 %v8022, %v8061
  %v8108 = vxor.u32 %v8107, 2147483648
  %v8109 = vmul.f32 %v8108, 1.442695
  %v8110 = vpow.pop %v8109
  %v8111 = vadd.f32 %v8110, 1.0
  %v8112 = vrcp.pop %v8111
  %v8113 = vmul.f32 1.0, %v8112
  %v8114 = vadd.f32 %v8023, %v8063
  %v8115 = vxor.u32 %v8114, 2147483648
  %v8116 = vmul.f32 %v8115, 1.442695
  %v8117 = vpow.pop %v8116
  %v8118 = vadd.f32 %v8117, 1.0
  %v8119 = vrcp.pop %v8118
  %v8120 = vmul.f32 1.0, %v8119
  %v8121 = vmul.f32 %v8113, %v8102
  %v8122 = vadd.f32 %v8024, %v8121
  %v8123 = vtanh.pop %v8122
  %v8124 = vsub.f32 1.0, %v8120
  %v8125 = vmul.f32 %v8124, %v8123
  %v8126 = vmul.f32 %v8120, %v8020
  %v8127 = vadd.f32 %v8125, %v8126
  %s8128 = scalar_lea.vmem [#allocation2], 72
  %v8129 = vld [vmem:[%s8128] sm:$0xff]
  %v8130 = vld [vmem:[%s8128 + $0x8] sm:$0xff]
  %v8131 = vld [vmem:[%s8128 + $0x10] sm:$0xff]
  %v8132 = vpack.c.bf16 %v8127, %v8127
  %8133 = vmatprep.subr.bf16.mxu0 %v7765
  %8134 = vmatpush1.bf16.msra.mxu0 %v7764
  %8135 = vmatprep.subr.bf16.mxu0 %v7768
  %8136 = vmatpush1.bf16.msra.mxu0 %v7767
  %8137 = vmatprep.subr.bf16.mxu0 %v7771
  %8138 = vmatpush1.bf16.msra.mxu0 %v7770
  %8139 = vmatprep.subr.bf16.mxu0 %v7774
  %8140 = vmatpush1.bf16.msra.mxu0 %v7773
  %8141 = vmatprep.subr.bf16.mxu0 %v7777
  %8142 = vmatpush1.bf16.msra.mxu0 %v7776
  %8143 = vmatprep.subr.bf16.mxu0 %v7780
  %8144 = vmatpush1.bf16.msra.mxu0 %v7779
  %8145 = vmatprep.subr.bf16.mxu0 %v7783
  %8146 = vmatpush1.bf16.msra.mxu0 %v7782
  %8147 = vmatprep.subr.bf16.mxu0 %v7786
  %8148 = vmatpush1.bf16.msra.mxu0 %v7785
  %8149 = vmatprep.subr.bf16.mxu0 0
  %8150 = vmatpush1.bf16.msra.mxu0 0
  %8151 = vmatprep.subr.bf16.mxu0 0
  %8152 = vmatpush1.bf16.msra.mxu0 0
  %8153 = vmatprep.subr.bf16.mxu0 0
  %8154 = vmatpush1.bf16.msra.mxu0 0
  %8155 = vmatprep.subr.bf16.mxu0 0
  %8156 = vmatpush1.bf16.msra.mxu0 0
  %8157 = vmatprep.subr.bf16.mxu0 0
  %8158 = vmatpush1.bf16.msra.mxu0 0
  %8159 = vmatprep.subr.bf16.mxu0 0
  %8160 = vmatpush1.bf16.msra.mxu0 0
  %8161 = vmatprep.subr.bf16.mxu0 0
  %8162 = vmatpush1.bf16.msra.mxu0 0
  %8163 = vmatprep.subr.bf16.mxu0 0
  %8164 = vmatpush1.bf16.msra.mxu0 0
  %8165 = vmatprep.mubr.bf16.mxu0 0
  %8166 = vmatmul.mubr.bf16.gmra.mrb[0].mxu0 %v8132
  %v8167 = vpop.f32.mrb[0].mxu0
  %v8168 = vadd.f32 %v7637, %v8167
  %v8169 = vpop.f32.mrb[0].mxu0
  %v8170 = vadd.f32 %v7641, %v8169
  %v8171 = vpop.f32.mrb[0].mxu0
  %v8172 = vpop.f32.mrb[0].mxu0
  %8173 = vdwg.mxu0
  %8174 = vmatprep.subr.bf16.mxu0 0
  %8175 = vmatpush1.bf16.msra.mxu0 %v7766
  %8176 = vmatprep.subr.bf16.mxu0 0
  %8177 = vmatpush1.bf16.msra.mxu0 %v7769
  %8178 = vmatprep.subr.bf16.mxu0 0
  %8179 = vmatpush1.bf16.msra.mxu0 %v7772
  %8180 = vmatprep.subr.bf16.mxu0 0
  %8181 = vmatpush1.bf16.msra.mxu0 %v7775
  %8182 = vmatprep.subr.bf16.mxu0 0
  %8183 = vmatpush1.bf16.msra.mxu0 %v7778
  %8184 = vmatprep.subr.bf16.mxu0 0
  %8185 = vmatpush1.bf16.msra.mxu0 %v7781
  %8186 = vmatprep.subr.bf16.mxu0 0
  %8187 = vmatpush1.bf16.msra.mxu0 %v7784
  %8188 = vmatprep.subr.bf16.mxu0 0
  %8189 = vmatpush1.bf16.msra.mxu0 %v7787
  %8190 = vmatprep.subr.bf16.mxu0 0
  %8191 = vmatpush1.bf16.msra.mxu0 0
  %8192 = vmatprep.subr.bf16.mxu0 0
  %8193 = vmatpush1.bf16.msra.mxu0 0
  %8194 = vmatprep.subr.bf16.mxu0 0
  %8195 = vmatpush1.bf16.msra.mxu0 0
  %8196 = vmatprep.subr.bf16.mxu0 0
  %8197 = vmatpush1.bf16.msra.mxu0 0
  %8198 = vmatprep.subr.bf16.mxu0 0
  %8199 = vmatpush1.bf16.msra.mxu0 0
  %8200 = vmatprep.subr.bf16.mxu0 0
  %8201 = vmatpush1.bf16.msra.mxu0 0
  %8202 = vmatprep.subr.bf16.mxu0 0
  %8203 = vmatpush1.bf16.msra.mxu0 0
  %8204 = vmatprep.subr.bf16.mxu0 0
  %8205 = vmatpush1.bf16.msra.mxu0 0
  %8206 = vmatprep.mubr.bf16.mxu0 0
  %8207 = vmatmul.mubr.bf16.gmra.mrb[0].mxu0 %v8132
  %v8208 = vpop.f32.mrb[0].mxu0
  %v8209 = vadd.f32 %v7645, %v8208
  %v8210 = vpop.f32.mrb[0].mxu0
  %v8211 = vpop.f32.mrb[0].mxu0
  %v8212 = vpop.f32.mrb[0].mxu0
  %8213 = vdwg.mxu0
  %v8214 = vadd.f32 %v8129, %v8168
  %v8215 = vxor.u32 %v8214, 2147483648
  %v8216 = vmul.f32 %v8215, 1.442695
  %v8217 = vpow.pop %v8216
  %v8218 = vadd.f32 %v8217, 1.0
  %v8219 = vrcp.pop %v8218
  %v8220 = vmul.f32 1.0, %v8219
  %v8221 = vadd.f32 %v8130, %v8170
  %v8222 = vxor.u32 %v8221, 2147483648
  %v8223 = vmul.f32 %v8222, 1.442695
  %v8224 = vpow.pop %v8223
  %v8225 = vadd.f32 %v8224, 1.0
  %v8226 = vrcp.pop %v8225
  %v8227 = vmul.f32 1.0, %v8226
  %v8228 = vmul.f32 %v8220, %v8209
  %v8229 = vadd.f32 %v8131, %v8228
  %v8230 = vtanh.pop %v8229
  %v8231 = vsub.f32 1.0, %v8227
  %v8232 = vmul.f32 %v8231, %v8230
  %v8233 = vmul.f32 %v8227, %v8127
  %v8234 = vadd.f32 %v8232, %v8233
  %s8235 = scalar_lea.vmem [#allocation2], 96
  %v8236 = vld [vmem:[%s8235] sm:$0xff]
  %v8237 = vld [vmem:[%s8235 + $0x8] sm:$0xff]
  %v8238 = vld [vmem:[%s8235 + $0x10] sm:$0xff]
  %v8239 = vpack.c.bf16 %v8234, %v8234
  %8240 = vmatprep.subr.bf16.mxu0 %v7765
  %8241 = vmatpush1.bf16.msra.mxu0 %v7764
  %8242 = vmatprep.subr.bf16.mxu0 %v7768
  %8243 = vmatpush1.bf16.msra.mxu0 %v7767
  %8244 = vmatprep.subr.bf16.mxu0 %v7771
  %8245 = vmatpush1.bf16.msra.mxu0 %v7770
  %8246 = vmatprep.subr.bf16.mxu0 %v7774
  %8247 = vmatpush1.bf16.msra.mxu0 %v7773
  %8248 = vmatprep.subr.bf16.mxu0 %v7777
  %8249 = vmatpush1.bf16.msra.mxu0 %v7776
  %8250 = vmatprep.subr.bf16.mxu0 %v7780
  %8251 = vmatpush1.bf16.msra.mxu0 %v7779
  %8252 = vmatprep.subr.bf16.mxu0 %v7783
  %8253 = vmatpush1.bf16.msra.mxu0 %v7782
  %8254 = vmatprep.subr.bf16.mxu0 %v7786
  %8255 = vmatpush1.bf16.msra.mxu0 %v7785
  %8256 = vmatprep.subr.bf16.mxu0 0
  %8257 = vmatpush1.bf16.msra.mxu0 0
  %8258 = vmatprep.subr.bf16.mxu0 0
  %8259 = vmatpush1.bf16.msra.mxu0 0
  %8260 = vmatprep.subr.bf16.mxu0 0
  %8261 = vmatpush1.bf16.msra.mxu0 0
  %8262 = vmatprep.subr.bf16.mxu0 0
  %8263 = vmatpush1.bf16.msra.mxu0 0
  %8264 = vmatprep.subr.bf16.mxu0 0
  %8265 = vmatpush1.bf16.msra.mxu0 0
  %8266 = vmatprep.subr.bf16.mxu0 0
  %8267 = vmatpush1.bf16.msra.mxu0 0
  %8268 = vmatprep.subr.bf16.mxu0 0
  %8269 = vmatpush1.bf16.msra.mxu0 0
  %8270 = vmatprep.subr.bf16.mxu0 0
  %8271 = vmatpush1.bf16.msra.mxu0 0
  %8272 = vmatprep.mubr.bf16.mxu0 0
  %8273 = vmatmul.mubr.bf16.gmra.mrb[0].mxu0 %v8239
  %v8274 = vpop.f32.mrb[0].mxu0
  %v8275 = vadd.f32 %v7637, %v8274
  %v8276 = vpop.f32.mrb[0].mxu0
  %v8277 = vadd.f32 %v7641, %v8276
  %v8278 = vpop.f32.mrb[0].mxu0
  %v8279 = vpop.f32.mrb[0].mxu0
  %8280 = vdwg.mxu0
  %8281 = vmatprep.subr.bf16.mxu0 0
  %8282 = vmatpush1.bf16.msra.mxu0 %v7766
  %8283 = vmatprep.subr.bf16.mxu0 0
  %8284 = vmatpush1.bf16.msra.mxu0 %v7769
  %8285 = vmatprep.subr.bf16.mxu0 0
  %8286 = vmatpush1.bf16.msra.mxu0 %v7772
  %8287 = vmatprep.subr.bf16.mxu0 0
  %8288 = vmatpush1.bf16.msra.mxu0 %v7775
  %8289 = vmatprep.subr.bf16.mxu0 0
  %8290 = vmatpush1.bf16.msra.mxu0 %v7778
  %8291 = vmatprep.subr.bf16.mxu0 0
  %8292 = vmatpush1.bf16.msra.mxu0 %v7781
  %8293 = vmatprep.subr.bf16.mxu0 0
  %8294 = vmatpush1.bf16.msra.mxu0 %v7784
  %8295 = vmatprep.subr.bf16.mxu0 0
  %8296 = vmatpush1.bf16.msra.mxu0 %v7787
  %8297 = vmatprep.subr.bf16.mxu0 0
  %8298 = vmatpush1.bf16.msra.mxu0 0
  %8299 = vmatprep.subr.bf16.mxu0 0
  %8300 = vmatpush1.bf16.msra.mxu0 0
  %8301 = vmatprep.subr.bf16.mxu0 0
  %8302 = vmatpush1.bf16.msra.mxu0 0
  %8303 = vmatprep.subr.bf16.mxu0 0
  %8304 = vmatpush1.bf16.msra.mxu0 0
  %8305 = vmatprep.subr.bf16.mxu0 0
  %8306 = vmatpush1.bf16.msra.mxu0 0
  %8307 = vmatprep.subr.bf16.mxu0 0
  %8308 = vmatpush1.bf16.msra.mxu0 0
  %8309 = vmatprep.subr.bf16.mxu0 0
  %8310 = vmatpush1.bf16.msra.mxu0 0
  %8311 = vmatprep.subr.bf16.mxu0 0
  %8312 = vmatpush1.bf16.msra.mxu0 0
  %8313 = vmatprep.mubr.bf16.mxu0 0
  %8314 = vmatmul.mubr.bf16.gmra.mrb[0].mxu0 %v8239
  %v8315 = vpop.f32.mrb[0].mxu0
  %v8316 = vadd.f32 %v7645, %v8315
  %v8317 = vpop.f32.mrb[0].mxu0
  %v8318 = vpop.f32.mrb[0].mxu0
  %v8319 = vpop.f32.mrb[0].mxu0
  %8320 = vdwg.mxu0
  %v8321 = vadd.f32 %v8236, %v8275
  %v8322 = vxor.u32 %v8321, 2147483648
  %v8323 = vmul.f32 %v8322, 1.442695
  %v8324 = vpow.pop %v8323
  %v8325 = vadd.f32 %v8324, 1.0
  %v8326 = vrcp.pop %v8325
  %v8327 = vmul.f32 1.0, %v8326
  %v8328 = vadd.f32 %v8237, %v8277
  %v8329 = vxor.u32 %v8328, 2147483648
  %v8330 = vmul.f32 %v8329, 1.442695
  %v8331 = vpow.pop %v8330
  %v8332 = vadd.f32 %v8331, 1.0
  %v8333 = vrcp.pop %v8332
  %v8334 = vmul.f32 1.0, %v8333
  %v8335 = vmul.f32 %v8327, %v8316
  %v8336 = vadd.f32 %v8238, %v8335
  %v8337 = vtanh.pop %v8336
  %v8338 = vsub.f32 1.0, %v8334
  %v8339 = vmul.f32 %v8338, %v8337
  %v8340 = vmul.f32 %v8334, %v8234
  %v8341 = vadd.f32 %v8339, %v8340
  %s8342 = scalar_lea.vmem [#allocation2], 120
  %v8343 = vld [vmem:[%s8342] sm:$0xff]
  %v8344 = vld [vmem:[%s8342 + $0x8] sm:$0xff]
  %v8345 = vld [vmem:[%s8342 + $0x10] sm:$0xff]
  %v8346 = vpack.c.bf16 %v8341, %v8341
  %8347 = vmatprep.subr.bf16.mxu0 %v7765
  %8348 = vmatpush1.bf16.msra.mxu0 %v7764
  %8349 = vmatprep.subr.bf16.mxu0 %v7768
  %8350 = vmatpush1.bf16.msra.mxu0 %v7767
  %8351 = vmatprep.subr.bf16.mxu0 %v7771
  %8352 = vmatpush1.bf16.msra.mxu0 %v7770
  %8353 = vmatprep.subr.bf16.mxu0 %v7774
  %8354 = vmatpush1.bf16.msra.mxu0 %v7773
  %8355 = vmatprep.subr.bf16.mxu0 %v7777
  %8356 = vmatpush1.bf16.msra.mxu0 %v7776
  %8357 = vmatprep.subr.bf16.mxu0 %v7780
  %8358 = vmatpush1.bf16.msra.mxu0 %v7779
  %8359 = vmatprep.subr.bf16.mxu0 %v7783
  %8360 = vmatpush1.bf16.msra.mxu0 %v7782
  %8361 = vmatprep.subr.bf16.mxu0 %v7786
  %8362 = vmatpush1.bf16.msra.mxu0 %v7785
  %8363 = vmatprep.subr.bf16.mxu0 0
  %8364 = vmatpush1.bf16.msra.mxu0 0
  %8365 = vmatprep.subr.bf16.mxu0 0
  %8366 = vmatpush1.bf16.msra.mxu0 0
  %8367 = vmatprep.subr.bf16.mxu0 0
  %8368 = vmatpush1.bf16.msra.mxu0 0
  %8369 = vmatprep.subr.bf16.mxu0 0
  %8370 = vmatpush1.bf16.msra.mxu0 0
  %8371 = vmatprep.subr.bf16.mxu0 0
  %8372 = vmatpush1.bf16.msra.mxu0 0
  %8373 = vmatprep.subr.bf16.mxu0 0
  %8374 = vmatpush1.bf16.msra.mxu0 0
  %8375 = vmatprep.subr.bf16.mxu0 0
  %8376 = vmatpush1.bf16.msra.mxu0 0
  %8377 = vmatprep.subr.bf16.mxu0 0
  %8378 = vmatpush1.bf16.msra.mxu0 0
  %8379 = vmatprep.mubr.bf16.mxu0 0
  %8380 = vmatmul.mubr.bf16.gmra.mrb[0].mxu0 %v8346
  %v8381 = vpop.f32.mrb[0].mxu0
  %v8382 = vadd.f32 %v7637, %v8381
  %v8383 = vpop.f32.mrb[0].mxu0
  %v8384 = vadd.f32 %v7641, %v8383
  %v8385 = vpop.f32.mrb[0].mxu0
  %v8386 = vpop.f32.mrb[0].mxu0
  %8387 = vdwg.mxu0
  %8388 = vmatprep.subr.bf16.mxu0 0
  %8389 = vmatpush1.bf16.msra.mxu0 %v7766
  %8390 = vmatprep.subr.bf16.mxu0 0
  %8391 = vmatpush1.bf16.msra.mxu0 %v7769
  %8392 = vmatprep.subr.bf16.mxu0 0
  %8393 = vmatpush1.bf16.msra.mxu0 %v7772
  %8394 = vmatprep.subr.bf16.mxu0 0
  %8395 = vmatpush1.bf16.msra.mxu0 %v7775
  %8396 = vmatprep.subr.bf16.mxu0 0
  %8397 = vmatpush1.bf16.msra.mxu0 %v7778
  %8398 = vmatprep.subr.bf16.mxu0 0
  %8399 = vmatpush1.bf16.msra.mxu0 %v7781
  %8400 = vmatprep.subr.bf16.mxu0 0
  %8401 = vmatpush1.bf16.msra.mxu0 %v7784
  %8402 = vmatprep.subr.bf16.mxu0 0
  %8403 = vmatpush1.bf16.msra.mxu0 %v7787
  %8404 = vmatprep.subr.bf16.mxu0 0
  %8405 = vmatpush1.bf16.msra.mxu0 0
  %8406 = vmatprep.subr.bf16.mxu0 0
  %8407 = vmatpush1.bf16.msra.mxu0 0
  %8408 = vmatprep.subr.bf16.mxu0 0
  %8409 = vmatpush1.bf16.msra.mxu0 0
  %8410 = vmatprep.subr.bf16.mxu0 0
  %8411 = vmatpush1.bf16.msra.mxu0 0
  %8412 = vmatprep.subr.bf16.mxu0 0
  %8413 = vmatpush1.bf16.msra.mxu0 0
  %8414 = vmatprep.subr.bf16.mxu0 0
  %8415 = vmatpush1.bf16.msra.mxu0 0
  %8416 = vmatprep.subr.bf16.mxu0 0
  %8417 = vmatpush1.bf16.msra.mxu0 0
  %8418 = vmatprep.subr.bf16.mxu0 0
  %8419 = vmatpush1.bf16.msra.mxu0 0
  %8420 = vmatprep.mubr.bf16.mxu0 0
  %8421 = vmatmul.mubr.bf16.gmra.mrb[0].mxu0 %v8346
  %v8422 = vpop.f32.mrb[0].mxu0
  %v8423 = vadd.f32 %v7645, %v8422
  %v8424 = vpop.f32.mrb[0].mxu0
  %v8425 = vpop.f32.mrb[0].mxu0
  %v8426 = vpop.f32.mrb[0].mxu0
  %8427 = vdwg.mxu0
  %v8428 = vadd.f32 %v8343, %v8382
  %v8429 = vxor.u32 %v8428, 2147483648
  %v8430 = vmul.f32 %v8429, 1.442695
  %v8431 = vpow.pop %v8430
  %v8432 = vadd.f32 %v8431, 1.0
  %v8433 = vrcp.pop %v8432
  %v8434 = vmul.f32 1.0, %v8433
  %v8435 = vadd.f32 %v8344, %v8384
  %v8436 = vxor.u32 %v8435, 2147483648
  %v8437 = vmul.f32 %v8436, 1.442695
  %v8438 = vpow.pop %v8437
  %v8439 = vadd.f32 %v8438, 1.0
  %v8440 = vrcp.pop %v8439
  %v8441 = vmul.f32 1.0, %v8440
  %v8442 = vmul.f32 %v8434, %v8423
  %v8443 = vadd.f32 %v8345, %v8442
  %v8444 = vtanh.pop %v8443
  %v8445 = vsub.f32 1.0, %v8441
  %v8446 = vmul.f32 %v8445, %v8444
  %v8447 = vmul.f32 %v8441, %v8341
  %v8448 = vadd.f32 %v8446, %v8447
  %s8449 = scalar_lea.vmem [#allocation2], 144
  %v8450 = vld [vmem:[%s8449] sm:$0xff]
  %v8451 = vld [vmem:[%s8449 + $0x8] sm:$0xff]
  %v8452 = vld [vmem:[%s8449 + $0x10] sm:$0xff]
  %v8453 = vpack.c.bf16 %v8448, %v8448
  %8454 = vmatprep.subr.bf16.mxu0 %v7765
  %8455 = vmatpush1.bf16.msra.mxu0 %v7764
  %8456 = vmatprep.subr.bf16.mxu0 %v7768
  %8457 = vmatpush1.bf16.msra.mxu0 %v7767
  %8458 = vmatprep.subr.bf16.mxu0 %v7771
  %8459 = vmatpush1.bf16.msra.mxu0 %v7770
  %8460 = vmatprep.subr.bf16.mxu0 %v7774
  %8461 = vmatpush1.bf16.msra.mxu0 %v7773
  %8462 = vmatprep.subr.bf16.mxu0 %v7777
  %8463 = vmatpush1.bf16.msra.mxu0 %v7776
  %8464 = vmatprep.subr.bf16.mxu0 %v7780
  %8465 = vmatpush1.bf16.msra.mxu0 %v7779
  %8466 = vmatprep.subr.bf16.mxu0 %v7783
  %8467 = vmatpush1.bf16.msra.mxu0 %v7782
  %8468 = vmatprep.subr.bf16.mxu0 %v7786
  %8469 = vmatpush1.bf16.msra.mxu0 %v7785
  %8470 = vmatprep.subr.bf16.mxu0 0
  %8471 = vmatpush1.bf16.msra.mxu0 0
  %8472 = vmatprep.subr.bf16.mxu0 0
  %8473 = vmatpush1.bf16.msra.mxu0 0
  %8474 = vmatprep.subr.bf16.mxu0 0
  %8475 = vmatpush1.bf16.msra.mxu0 0
  %8476 = vmatprep.subr.bf16.mxu0 0
  %8477 = vmatpush1.bf16.msra.mxu0 0
  %8478 = vmatprep.subr.bf16.mxu0 0
  %8479 = vmatpush1.bf16.msra.mxu0 0
  %8480 = vmatprep.subr.bf16.mxu0 0
  %8481 = vmatpush1.bf16.msra.mxu0 0
  %8482 = vmatprep.subr.bf16.mxu0 0
  %8483 = vmatpush1.bf16.msra.mxu0 0
  %8484 = vmatprep.subr.bf16.mxu0 0
  %8485 = vmatpush1.bf16.msra.mxu0 0
  %8486 = vmatprep.mubr.bf16.mxu0 0
  %8487 = vmatmul.mubr.bf16.gmra.mrb[0].mxu0 %v8453
  %v8488 = vpop.f32.mrb[0].mxu0
  %v8489 = vadd.f32 %v7637, %v8488
  %v8490 = vpop.f32.mrb[0].mxu0
  %v8491 = vadd.f32 %v7641, %v8490
  %v8492 = vpop.f32.mrb[0].mxu0
  %v8493 = vpop.f32.mrb[0].mxu0
  %8494 = vdwg.mxu0
  %8495 = vmatprep.subr.bf16.mxu0 0
  %8496 = vmatpush1.bf16.msra.mxu0 %v7766
  %8497 = vmatprep.subr.bf16.mxu0 0
  %8498 = vmatpush1.bf16.msra.mxu0 %v7769
  %8499 = vmatprep.subr.bf16.mxu0 0
  %8500 = vmatpush1.bf16.msra.mxu0 %v7772
  %8501 = vmatprep.subr.bf16.mxu0 0
  %8502 = vmatpush1.bf16.msra.mxu0 %v7775
  %8503 = vmatprep.subr.bf16.mxu0 0
  %8504 = vmatpush1.bf16.msra.mxu0 %v7778
  %8505 = vmatprep.subr.bf16.mxu0 0
  %8506 = vmatpush1.bf16.msra.mxu0 %v7781
  %8507 = vmatprep.subr.bf16.mxu0 0
  %8508 = vmatpush1.bf16.msra.mxu0 %v7784
  %8509 = vmatprep.subr.bf16.mxu0 0
  %8510 = vmatpush1.bf16.msra.mxu0 %v7787
  %8511 = vmatprep.subr.bf16.mxu0 0
  %8512 = vmatpush1.bf16.msra.mxu0 0
  %8513 = vmatprep.subr.bf16.mxu0 0
  %8514 = vmatpush1.bf16.msra.mxu0 0
  %8515 = vmatprep.subr.bf16.mxu0 0
  %8516 = vmatpush1.bf16.msra.mxu0 0
  %8517 = vmatprep.subr.bf16.mxu0 0
  %8518 = vmatpush1.bf16.msra.mxu0 0
  %8519 = vmatprep.subr.bf16.mxu0 0
  %8520 = vmatpush1.bf16.msra.mxu0 0
  %8521 = vmatprep.subr.bf16.mxu0 0
  %8522 = vmatpush1.bf16.msra.mxu0 0
  %8523 = vmatprep.subr.bf16.mxu0 0
  %8524 = vmatpush1.bf16.msra.mxu0 0
  %8525 = vmatprep.subr.bf16.mxu0 0
  %8526 = vmatpush1.bf16.msra.mxu0 0
  %8527 = vmatprep.mubr.bf16.mxu0 0
  %8528 = vmatmul.mubr.bf16.gmra.mrb[0].mxu0 %v8453
  %v8529 = vpop.f32.mrb[0].mxu0
  %v8530 = vadd.f32 %v7645, %v8529
  %v8531 = vpop.f32.mrb[0].mxu0
  %v8532 = vpop.f32.mrb[0].mxu0
  %v8533 = vpop.f32.mrb[0].mxu0
  %8534 = vdwg.mxu0
  %v8535 = vadd.f32 %v8450, %v8489
  %v8536 = vxor.u32 %v8535, 2147483648
  %v8537 = vmul.f32 %v8536, 1.442695
  %v8538 = vpow.pop %v8537
  %v8539 = vadd.f32 %v8538, 1.0
  %v8540 = vrcp.pop %v8539
  %v8541 = vmul.f32 1.0, %v8540
  %v8542 = vadd.f32 %v8451, %v8491
  %v8543 = vxor.u32 %v8542, 2147483648
  %v8544 = vmul.f32 %v8543, 1.442695
  %v8545 = vpow.pop %v8544
  %v8546 = vadd.f32 %v8545, 1.0
  %v8547 = vrcp.pop %v8546
  %v8548 = vmul.f32 1.0, %v8547
  %v8549 = vmul.f32 %v8541, %v8530
  %v8550 = vadd.f32 %v8452, %v8549
  %v8551 = vtanh.pop %v8550
  %v8552 = vsub.f32 1.0, %v8548
  %v8553 = vmul.f32 %v8552, %v8551
  %v8554 = vmul.f32 %v8548, %v8448
  %v8555 = vadd.f32 %v8553, %v8554
  %s8556 = scalar_lea.vmem [#allocation2], 168
  %v8557 = vld [vmem:[%s8556] sm:$0xff]
  %v8558 = vld [vmem:[%s8556 + $0x8] sm:$0xff]
  %v8559 = vld [vmem:[%s8556 + $0x10] sm:$0xff]
  %v8560 = vpack.c.bf16 %v8555, %v8555
  %8561 = vmatprep.subr.bf16.mxu0 %v7765
  %8562 = vmatpush1.bf16.msra.mxu0 %v7764
  %8563 = vmatprep.subr.bf16.mxu0 %v7768
  %8564 = vmatpush1.bf16.msra.mxu0 %v7767
  %8565 = vmatprep.subr.bf16.mxu0 %v7771
  %8566 = vmatpush1.bf16.msra.mxu0 %v7770
  %8567 = vmatprep.subr.bf16.mxu0 %v7774
  %8568 = vmatpush1.bf16.msra.mxu0 %v7773
  %8569 = vmatprep.subr.bf16.mxu0 %v7777
  %8570 = vmatpush1.bf16.msra.mxu0 %v7776
  %8571 = vmatprep.subr.bf16.mxu0 %v7780
  %8572 = vmatpush1.bf16.msra.mxu0 %v7779
  %8573 = vmatprep.subr.bf16.mxu0 %v7783
  %8574 = vmatpush1.bf16.msra.mxu0 %v7782
  %8575 = vmatprep.subr.bf16.mxu0 %v7786
  %8576 = vmatpush1.bf16.msra.mxu0 %v7785
  %8577 = vmatprep.subr.bf16.mxu0 0
  %8578 = vmatpush1.bf16.msra.mxu0 0
  %8579 = vmatprep.subr.bf16.mxu0 0
  %8580 = vmatpush1.bf16.msra.mxu0 0
  %8581 = vmatprep.subr.bf16.mxu0 0
  %8582 = vmatpush1.bf16.msra.mxu0 0
  %8583 = vmatprep.subr.bf16.mxu0 0
  %8584 = vmatpush1.bf16.msra.mxu0 0
  %8585 = vmatprep.subr.bf16.mxu0 0
  %8586 = vmatpush1.bf16.msra.mxu0 0
  %8587 = vmatprep.subr.bf16.mxu0 0
  %8588 = vmatpush1.bf16.msra.mxu0 0
  %8589 = vmatprep.subr.bf16.mxu0 0
  %8590 = vmatpush1.bf16.msra.mxu0 0
  %8591 = vmatprep.subr.bf16.mxu0 0
  %8592 = vmatpush1.bf16.msra.mxu0 0
  %8593 = vmatprep.mubr.bf16.mxu0 0
  %8594 = vmatmul.mubr.bf16.gmra.mrb[0].mxu0 %v8560
  %v8595 = vpop.f32.mrb[0].mxu0
  %v8596 = vadd.f32 %v7637, %v8595
  %v8597 = vpop.f32.mrb[0].mxu0
  %v8598 = vadd.f32 %v7641, %v8597
  %v8599 = vpop.f32.mrb[0].mxu0
  %v8600 = vpop.f32.mrb[0].mxu0
  %8601 = vdwg.mxu0
  %8602 = vmatprep.subr.bf16.mxu0 0
  %8603 = vmatpush1.bf16.msra.mxu0 %v7766
  %8604 = vmatprep.subr.bf16.mxu0 0
  %8605 = vmatpush1.bf16.msra.mxu0 %v7769
  %8606 = vmatprep.subr.bf16.mxu0 0
  %8607 = vmatpush1.bf16.msra.mxu0 %v7772
  %8608 = vmatprep.subr.bf16.mxu0 0
  %8609 = vmatpush1.bf16.msra.mxu0 %v7775
  %8610 = vmatprep.subr.bf16.mxu0 0
  %8611 = vmatpush1.bf16.msra.mxu0 %v7778
  %8612 = vmatprep.subr.bf16.mxu0 0
  %8613 = vmatpush1.bf16.msra.mxu0 %v7781
  %8614 = vmatprep.subr.bf16.mxu0 0
  %8615 = vmatpush1.bf16.msra.mxu0 %v7784
  %8616 = vmatprep.subr.bf16.mxu0 0
  %8617 = vmatpush1.bf16.msra.mxu0 %v7787
  %8618 = vmatprep.subr.bf16.mxu0 0
  %8619 = vmatpush1.bf16.msra.mxu0 0
  %8620 = vmatprep.subr.bf16.mxu0 0
  %8621 = vmatpush1.bf16.msra.mxu0 0
  %8622 = vmatprep.subr.bf16.mxu0 0
  %8623 = vmatpush1.bf16.msra.mxu0 0
  %8624 = vmatprep.subr.bf16.mxu0 0
  %8625 = vmatpush1.bf16.msra.mxu0 0
  %8626 = vmatprep.subr.bf16.mxu0 0
  %8627 = vmatpush1.bf16.msra.mxu0 0
  %8628 = vmatprep.subr.bf16.mxu0 0
  %8629 = vmatpush1.bf16.msra.mxu0 0
  %8630 = vmatprep.subr.bf16.mxu0 0
  %8631 = vmatpush1.bf16.msra.mxu0 0
  %8632 = vmatprep.subr.bf16.mxu0 0
  %8633 = vmatpush1.bf16.msra.mxu0 0
  %8634 = vmatprep.mubr.bf16.mxu0 0
  %8635 = vmatmul.mubr.bf16.gmra.mrb[0].mxu0 %v8560
  %v8636 = vpop.f32.mrb[0].mxu0
  %v8637 = vadd.f32 %v7645, %v8636
  %v8638 = vpop.f32.mrb[0].mxu0
  %v8639 = vpop.f32.mrb[0].mxu0
  %v8640 = vpop.f32.mrb[0].mxu0
  %8641 = vdwg.mxu0
  %v8642 = vadd.f32 %v8557, %v8596
  %v8643 = vxor.u32 %v8642, 2147483648
  %v8644 = vmul.f32 %v8643, 1.442695
  %v8645 = vpow.pop %v8644
  %v8646 = vadd.f32 %v8645, 1.0
  %v8647 = vrcp.pop %v8646
  %v8648 = vmul.f32 1.0, %v8647
  %v8649 = vadd.f32 %v8558, %v8598
  %v8650 = vxor.u32 %v8649, 2147483648
  %v8651 = vmul.f32 %v8650, 1.442695
  %v8652 = vpow.pop %v8651
  %v8653 = vadd.f32 %v8652, 1.0
  %v8654 = vrcp.pop %v8653
  %v8655 = vmul.f32 1.0, %v8654
  %v8656 = vmul.f32 %v8648, %v8637
  %v8657 = vadd.f32 %v8559, %v8656
  %v8658 = vtanh.pop %v8657
  %v8659 = vsub.f32 1.0, %v8655
  %v8660 = vmul.f32 %v8659, %v8658
  %v8661 = vmul.f32 %v8655, %v8555
  %v8662 = vadd.f32 %v8660, %v8661
  %v8663 = vld [vmem:[%s8] sm:$0xff]
  %v8664 = vld [vmem:[%s8 + $0x8] sm:$0xff]
  %v8665 = vld [vmem:[%s8 + $0x10] sm:$0xff]
  %v8666 = vld [vmem:[%s8 + $0x18] sm:$0xff]
  %v8667 = vld [vmem:[%s8 + $0x20] sm:$0xff]
  %v8668 = vld [vmem:[%s8 + $0x28] sm:$0xff]
  %v8669 = vld [vmem:[%s8 + $0x30] sm:$0xff]
  %v8670 = vld [vmem:[%s8 + $0x38] sm:$0xff]
  %v8671 = vld [vmem:[%s8 + $0x40] sm:$0xff]
  %v8672 = vld [vmem:[%s8 + $0x48] sm:$0xff]
  %v8673 = vld [vmem:[%s8 + $0x50] sm:$0xff]
  %v8674 = vld [vmem:[%s8 + $0x58] sm:$0xff]
  %v8675 = vld [vmem:[%s8 + $0x60] sm:$0xff]
  %v8676 = vld [vmem:[%s8 + $0x68] sm:$0xff]
  %v8677 = vld [vmem:[%s8 + $0x70] sm:$0xff]
  %v8678 = vld [vmem:[%s8 + $0x78] sm:$0xff]
  %v8679 = vld [vmem:[%s9] sm:$0x1]
  %v8681 = vlaneseq
  %v8682 = vshrl.u32 %v8681, 7
  %v8683 = vsub.s32 0, %v8682
  %v8684 = vrot.slane %v8679, %v8683
  %8686 = vmatprep.subr.mxu0 0.0
  %8687 = vmatpush1.msra.mxu0 %v8663
  %8688 = vmatprep.subr.mxu0 0.0
  %8689 = vmatpush1.msra.mxu0 %v8664
  %8690 = vmatprep.subr.mxu0 0.0
  %8691 = vmatpush1.msra.mxu0 %v8665
  %8692 = vmatprep.subr.mxu0 0.0
  %8693 = vmatpush1.msra.mxu0 %v8666
  %8694 = vmatprep.subr.mxu0 0.0
  %8695 = vmatpush1.msra.mxu0 %v8667
  %8696 = vmatprep.subr.mxu0 0.0
  %8697 = vmatpush1.msra.mxu0 %v8668
  %8698 = vmatprep.subr.mxu0 0.0
  %8699 = vmatpush1.msra.mxu0 %v8669
  %8700 = vmatprep.subr.mxu0 0.0
  %8701 = vmatpush1.msra.mxu0 %v8670
  %8702 = vmatprep.subr.mxu0 0.0
  %8703 = vmatpush1.msra.mxu0 %v8671
  %8704 = vmatprep.subr.mxu0 0.0
  %8705 = vmatpush1.msra.mxu0 %v8672
  %8706 = vmatprep.subr.mxu0 0.0
  %8707 = vmatpush1.msra.mxu0 %v8673
  %8708 = vmatprep.subr.mxu0 0.0
  %8709 = vmatpush1.msra.mxu0 %v8674
  %8710 = vmatprep.subr.mxu0 0.0
  %8711 = vmatpush1.msra.mxu0 %v8675
  %8712 = vmatprep.subr.mxu0 0.0
  %8713 = vmatpush1.msra.mxu0 %v8676
  %8714 = vmatprep.subr.mxu0 0.0
  %8715 = vmatpush1.msra.mxu0 %v8677
  %8716 = vmatprep.subr.mxu0 0.0
  %8717 = vmatpush1.msra.mxu0 %v8678
  %8718 = vmatprep.subr.mxu0 0.0
  %8719 = vmatpush1.msra.mxu0 0.0
  %8720 = vmatprep.subr.mxu0 0.0
  %8721 = vmatpush1.msra.mxu0 0.0
  %8722 = vmatprep.subr.mxu0 0.0
  %8723 = vmatpush1.msra.mxu0 0.0
  %8724 = vmatprep.subr.mxu0 0.0
  %8725 = vmatpush1.msra.mxu0 0.0
  %8726 = vmatprep.subr.mxu0 0.0
  %8727 = vmatpush1.msra.mxu0 0.0
  %8728 = vmatprep.subr.mxu0 0.0
  %8729 = vmatpush1.msra.mxu0 0.0
  %8730 = vmatprep.subr.mxu0 0.0
  %8731 = vmatpush1.msra.mxu0 0.0
  %8732 = vmatprep.subr.mxu0 0.0
  %8733 = vmatpush1.msra.mxu0 0.0
  %8734 = vmatprep.subr.mxu0 0.0
  %8735 = vmatpush1.msra.mxu0 0.0
  %8736 = vmatprep.subr.mxu0 0.0
  %8737 = vmatpush1.msra.mxu0 0.0
  %8738 = vmatprep.subr.mxu0 0.0
  %8739 = vmatpush1.msra.mxu0 0.0
  %8740 = vmatprep.subr.mxu0 0.0
  %8741 = vmatpush1.msra.mxu0 0.0
  %8742 = vmatprep.subr.mxu0 0.0
  %8743 = vmatpush1.msra.mxu0 0.0
  %8744 = vmatprep.subr.mxu0 0.0
  %8745 = vmatpush1.msra.mxu0 0.0
  %8746 = vmatprep.subr.mxu0 0.0
  %8747 = vmatpush1.msra.mxu0 0.0
  %8748 = vmatprep.subr.mxu0 0.0
  %8749 = vmatpush1.msra.mxu0 0.0
  %8750 = vmatprep.mubr.f32.mxu0 0.0
  %8751 = vmatmul.mubr.f32.gmra.mrb[0].mxu0 %v8662
  %v8752 = vpop.f32.mrb[0].mxu0
  %v8753 = vadd.f32 %v8684, %v8752
  %v8754 = vpop.f32.mrb[0].mxu0
  %8755 = vdwg.mxu0
  %v8756 = vmax.f32 %v8753, 0.0
  %v8757 = vld [vmem:[%s10] sm:$0xff]
  %v8758 = vld [vmem:[%s10 + $0x8] sm:$0xff]
  %v8759 = vld [vmem:[%s10 + $0x10] sm:$0xff]
  %v8760 = vld [vmem:[%s10 + $0x18] sm:$0xff]
  %v8761 = vld [vmem:[%s10 + $0x20] sm:$0xff]
  %v8762 = vld [vmem:[%s10 + $0x28] sm:$0xff]
  %v8763 = vld [vmem:[%s10 + $0x30] sm:$0xff]
  %v8764 = vld [vmem:[%s10 + $0x38] sm:$0xff]
  %v8765 = vld [vmem:[%s10 + $0x40] sm:$0xff]
  %v8766 = vld [vmem:[%s10 + $0x48] sm:$0xff]
  %v8767 = vld [vmem:[%s10 + $0x50] sm:$0xff]
  %v8768 = vld [vmem:[%s10 + $0x58] sm:$0xff]
  %v8769 = vld [vmem:[%s10 + $0x60] sm:$0xff]
  %v8770 = vld [vmem:[%s10 + $0x68] sm:$0xff]
  %v8771 = vld [vmem:[%s10 + $0x70] sm:$0xff]
  %v8772 = vld [vmem:[%s10 + $0x78] sm:$0xff]
  %v8773 = vld [vmem:[%s11] sm:$0x1]
  %v8775 = vlaneseq
  %v8776 = vshrl.u32 %v8775, 7
  %v8777 = vsub.s32 0, %v8776
  %v8778 = vrot.slane %v8773, %v8777
  %8780 = vmatprep.subr.mxu0 0.0
  %8781 = vmatpush1.msra.mxu0 %v8757
  %8782 = vmatprep.subr.mxu0 0.0
  %8783 = vmatpush1.msra.mxu0 %v8758
  %8784 = vmatprep.subr.mxu0 0.0
  %8785 = vmatpush1.msra.mxu0 %v8759
  %8786 = vmatprep.subr.mxu0 0.0
  %8787 = vmatpush1.msra.mxu0 %v8760
  %8788 = vmatprep.subr.mxu0 0.0
  %8789 = vmatpush1.msra.mxu0 %v8761
  %8790 = vmatprep.subr.mxu0 0.0
  %8791 = vmatpush1.msra.mxu0 %v8762
  %8792 = vmatprep.subr.mxu0 0.0
  %8793 = vmatpush1.msra.mxu0 %v8763
  %8794 = vmatprep.subr.mxu0 0.0
  %8795 = vmatpush1.msra.mxu0 %v8764
  %8796 = vmatprep.subr.mxu0 0.0
  %8797 = vmatpush1.msra.mxu0 %v8765
  %8798 = vmatprep.subr.mxu0 0.0
  %8799 = vmatpush1.msra.mxu0 %v8766
  %8800 = vmatprep.subr.mxu0 0.0
  %8801 = vmatpush1.msra.mxu0 %v8767
  %8802 = vmatprep.subr.mxu0 0.0
  %8803 = vmatpush1.msra.mxu0 %v8768
  %8804 = vmatprep.subr.mxu0 0.0
  %8805 = vmatpush1.msra.mxu0 %v8769
  %8806 = vmatprep.subr.mxu0 0.0
  %8807 = vmatpush1.msra.mxu0 %v8770
  %8808 = vmatprep.subr.mxu0 0.0
  %8809 = vmatpush1.msra.mxu0 %v8771
  %8810 = vmatprep.subr.mxu0 0.0
  %8811 = vmatpush1.msra.mxu0 %v8772
  %8812 = vmatprep.subr.mxu0 0.0
  %8813 = vmatpush1.msra.mxu0 0.0
  %8814 = vmatprep.subr.mxu0 0.0
  %8815 = vmatpush1.msra.mxu0 0.0
  %8816 = vmatprep.subr.mxu0 0.0
  %8817 = vmatpush1.msra.mxu0 0.0
  %8818 = vmatprep.subr.mxu0 0.0
  %8819 = vmatpush1.msra.mxu0 0.0
  %8820 = vmatprep.subr.mxu0 0.0
  %8821 = vmatpush1.msra.mxu0 0.0
  %8822 = vmatprep.subr.mxu0 0.0
  %8823 = vmatpush1.msra.mxu0 0.0
  %8824 = vmatprep.subr.mxu0 0.0
  %8825 = vmatpush1.msra.mxu0 0.0
  %8826 = vmatprep.subr.mxu0 0.0
  %8827 = vmatpush1.msra.mxu0 0.0
  %8828 = vmatprep.subr.mxu0 0.0
  %8829 = vmatpush1.msra.mxu0 0.0
  %8830 = vmatprep.subr.mxu0 0.0
  %8831 = vmatpush1.msra.mxu0 0.0
  %8832 = vmatprep.subr.mxu0 0.0
  %8833 = vmatpush1.msra.mxu0 0.0
  %8834 = vmatprep.subr.mxu0 0.0
  %8835 = vmatpush1.msra.mxu0 0.0
  %8836 = vmatprep.subr.mxu0 0.0
  %8837 = vmatpush1.msra.mxu0 0.0
  %8838 = vmatprep.subr.mxu0 0.0
  %8839 = vmatpush1.msra.mxu0 0.0
  %8840 = vmatprep.subr.mxu0 0.0
  %8841 = vmatpush1.msra.mxu0 0.0
  %8842 = vmatprep.subr.mxu0 0.0
  %8843 = vmatpush1.msra.mxu0 0.0
  %8844 = vmatprep.mubr.f32.mxu0 0.0
  %8845 = vmatmul.mubr.f32.gmra.mrb[0].mxu0 %v8756
  %v8846 = vpop.f32.mrb[0].mxu0
  %v8847 = vadd.f32 %v8778, %v8846
  %v8848 = vpop.f32.mrb[0].mxu0
  %8849 = vdwg.mxu0
  %8850 = vst [vmem:[%s12] sm:$0xff] %v8847
  // Predicated region
  $region50: #{grunet_forward.1} parent=0 // pred_check
    _
  $region51: #{grunet_forward.1} parent=0 // pred_check_branch
    %8852 = sbr.rel (0) target = $region53
  $region52: #{grunet_forward.1} parent=0 // pred_region
    _
  $region53: #{grunet_forward.1} parent=0 // pred_fallthru
    _
  // Predicated region
  $region54: #{grunet_forward.1} parent=0 // pred_check
    _
  $region55: #{grunet_forward.1} parent=0 // pred_check_branch
    %8854 = sbr.rel (0) target = $region57
  $region56: #{grunet_forward.1} parent=0 // pred_region
    _
  $region57: #{grunet_forward.1} parent=0 // pred_fallthru
    _

</llo_original>
